<compile_context>
chip_gen: v7x
topology: tpu7x:2x2x1
jax: 0.10.0
libtpu: 0.0.40
codegen_flags: <defaults>
</compile_context>

<pallas_src>
import functools

import jax
import jax.numpy as jnp
from jax.experimental import pallas as pl
from jax.experimental.pallas import tpu as pltpu


def _leaky_relu(x, slope=0.2):
    return jnp.where(x > 0, x, slope * x)


def _round_up(x, m):
    return ((x + m - 1) // m) * m


def disc_kernel(x_ref, w1_ref, b1_ref, w2_ref, b2_ref, w3_ref, b3_ref, o_ref):
    # Entire MLP fused: two big MXU matmuls + a lane-dense NT matmul epilogue.
    w1 = w1_ref[...]
    w2 = w2_ref[...]

    x = x_ref[...]
    # Cast activations to the weight dtype only at the dot (bf16 MXU operands,
    # f32 accumulation); bias / LeakyReLU / sigmoid math stays f32.
    h1 = jnp.dot(x.astype(w1.dtype), w1, preferred_element_type=jnp.float32)
    h1 = _leaky_relu(h1 + b1_ref[...])

    h2 = jnp.dot(h1.astype(w2.dtype), w2, preferred_element_type=jnp.float32)
    h2 = _leaky_relu(h2 + b2_ref[...])

    # Final 256 -> 1 layer as (1, 256) . (tile, 256)^T -> (1, tile): contract
    # the feature dims of w3 (torch layout (out=1, in=256)) and h2, giving a
    # lane-dense (1, batch_tile) output row instead of a masked (tile, 1).
    logits = jax.lax.dot_general(
        w3_ref[...], h2,
        dimension_numbers=(((1,), (1,)), ((), ())),
        preferred_element_type=jnp.float32,
    ) + b3_ref[...]

    o_ref[...] = jax.nn.sigmoid(logits).astype(o_ref.dtype)


def prepare_params(params, weights_dtype=jnp.bfloat16):
    """One-time (outside jit) cast of the two big matmul weights to the MXU
    operand dtype.  w3/biases stay f32 (final-layer precision; f32 VPU math)."""
    w1, b1, w2, b2, w3, b3 = params
    return (w1.astype(weights_dtype), b1, w2.astype(weights_dtype), b2, w3, b3)


@functools.partial(jax.jit, static_argnames=("batch_tile",))
def discriminator_forward(img, params, batch_tile=512):
    """img: (B, 784) float32 -> (B, 1) float32.

    `params` should come from prepare_params(); w1/w2 may be bf16 (default)
    or f32.  batch_tile is clamped to round_up(B, 128) so small batches do
    not pad to a full tile.
    """
    w1, b1, w2, b2, w3, b3 = params
    B, D_in = img.shape
    assert D_in == 784

    # Effective tile: multiple of 128 (v5e MXU / lane-dense output), no larger
    # than the padded batch.  All of this is static at trace time.
    bt = max(128, min(batch_tile, _round_up(B, 128)))
    Bp = _round_up(B, bt)
    img_p = jnp.pad(img, ((0, Bp - B), (0, 0)))  # batch pad only; no K pad.

    grid = (Bp // bt,)

    # Weights/biases are small -> whole arrays resident in VMEM, same block
    # every grid step (index_map constant).
    whole = lambda shape: pl.BlockSpec(shape, lambda i: (0, 0))

    out = pl.pallas_call(
        disc_kernel,
        out_shape=jax.ShapeDtypeStruct((1, Bp), jnp.float32),
        grid_spec=pltpu.PrefetchScalarGridSpec(
            num_scalar_prefetch=0,
            grid=grid,
            in_specs=[
                pl.BlockSpec((bt, 784), lambda i: (i, 0)),  # x (full last dim)
                whole((784, 512)),  # w1 (in, out), unpadded K
                whole((1, 512)),    # b1
                whole((512, 256)),  # w2
                whole((1, 256)),    # b2
                whole((1, 256)),    # w3 (torch layout: (out=1, in=256))
                whole((1, 1)),      # b3
            ],
            out_specs=pl.BlockSpec((1, bt), lambda i: (0, i)),
        ),
        compiler_params=pltpu.CompilerParams(
            dimension_semantics=("parallel",),
        ),
    )(img_p, w1, b1, w2, b2, w3, b3)

    # (1, Bp) lane-dense kernel output -> (B, 1) module output.
    return out[0, :B].reshape(B, 1)


def init_params(key):
    """Deterministic init matching torch.nn.Linear default:
    U(-1/sqrt(fan_in), 1/sqrt(fan_in)) for both weight and bias.
    w1/w2 stored as (in, out); w3 stored torch-style as (out=1, in=256)."""
    def linear(key, fan_in, fan_out):
        kw, kb = jax.random.split(key)
        bound = 1.0 / jnp.sqrt(fan_in)
        w = jax.random.uniform(kw, (fan_in, fan_out), jnp.float32, -bound, bound)
        b = jax.random.uniform(kb, (1, fan_out), jnp.float32, -bound, bound)
        return w, b

    k1, k2, k3 = jax.random.split(key, 3)
    w1, b1 = linear(k1, 784, 512)
    w2, b2 = linear(k2, 512, 256)
    w3_col, b3 = linear(k3, 256, 1)
    w3 = w3_col.T  # (1, 256)
    return (w1, b1, w2, b2, w3, b3)


def reference_forward(img, params):
    w1, b1, w2, b2, w3, b3 = params
    h1 = _leaky_relu(img @ w1 + b1)
    h2 = _leaky_relu(h1 @ w2 + b2)
    return jax.nn.sigmoid(h2 @ w3.T + b3)


if __name__ == "__main__":
    key = jax.random.PRNGKey(0)
    k_params, k_img = jax.random.split(key)

    params_f32 = init_params(k_params)
    # B=1000 pads to 1024 -> 2 grid steps of 512 (exercises batch padding and
    # the parallel grid) while staying a modest example size.
    B = 1000
    img = jax.random.normal(k_img, (B, 784), jnp.float32)  # flattened 28x28

    ref = reference_forward(img, params_f32)

    # Default path: bf16 MXU operands for the two big matmuls, f32 everywhere
    # else.  Tolerance is loose-ish but fine for sigmoid outputs in [0, 1].
    params_bf16 = prepare_params(params_f32)  # default bf16, hoisted cast
    out = jax.block_until_ready(discriminator_forward(img, params_bf16))
    assert out.shape == (B, 1), out.shape
    assert jnp.allclose(out, ref, atol=3e-2, rtol=3e-2), (
        f"max abs err (bf16) {jnp.max(jnp.abs(out - ref))}"
    )

    # f32-weight path (default MXU f32 decomposition; documented 1e-4 tol).
    params_f32_dev = prepare_params(params_f32, jnp.float32)
    out_f32 = jax.block_until_ready(discriminator_forward(img, params_f32_dev))
    assert out_f32.shape == (B, 1), out_f32.shape
    assert jnp.allclose(out_f32, ref, atol=1e-4, rtol=1e-4), (
        f"max abs err (f32) {jnp.max(jnp.abs(out_f32 - ref))}"
    )

    print("KERNEL_OK")
</pallas_src>

<mosaic_0001>
module attributes {stable_mosaic.version = 11 : i64} {
  func.func @disc_kernel(%arg0: i32, %arg1: memref<512x784xf32, #tpu.memory_space<vmem>>, %arg2: memref<784x512xbf16, #tpu.memory_space<vmem>>, %arg3: memref<1x512xf32, #tpu.memory_space<vmem>>, %arg4: memref<512x256xbf16, #tpu.memory_space<vmem>>, %arg5: memref<1x256xf32, #tpu.memory_space<vmem>>, %arg6: memref<1x256xf32, #tpu.memory_space<vmem>>, %arg7: memref<1x1xf32, #tpu.memory_space<vmem>>, %arg8: memref<1x512xf32, #tpu.memory_space<vmem>>) attributes {dimension_semantics = [#tpu.dimension_semantics<parallel>], iteration_bounds = array<i64: 2>, scalar_prefetch = 0 : i64, scratch_operands = 0 : i64, tpu.core_type = #tpu.core_type<tc>, window_params = [{transform_indices = @transform_0, window_bounds = array<i64: 512, 784>}, {pipeline_mode = #tpu.pipeline_mode<synchronous>, transform_indices = @transform_1, window_bounds = array<i64: 784, 512>}, {pipeline_mode = #tpu.pipeline_mode<synchronous>, transform_indices = @transform_2, window_bounds = array<i64: 1, 512>}, {pipeline_mode = #tpu.pipeline_mode<synchronous>, transform_indices = @transform_3, window_bounds = array<i64: 512, 256>}, {pipeline_mode = #tpu.pipeline_mode<synchronous>, transform_indices = @transform_4, window_bounds = array<i64: 1, 256>}, {pipeline_mode = #tpu.pipeline_mode<synchronous>, transform_indices = @transform_5, window_bounds = array<i64: 1, 256>}, {pipeline_mode = #tpu.pipeline_mode<synchronous>, transform_indices = @transform_6, window_bounds = array<i64: 1, 1>}, {transform_indices = @transform_7, window_bounds = array<i64: 1, 512>}]} {
    %c0 = arith.constant 0 : index
    %c0_0 = arith.constant 0 : index
    %0 = vector.load %arg2[%c0, %c0_0] : memref<784x512xbf16, #tpu.memory_space<vmem>>, vector<784x512xbf16>
    %c0_1 = arith.constant 0 : index
    %c0_2 = arith.constant 0 : index
    %1 = vector.load %arg4[%c0_1, %c0_2] : memref<512x256xbf16, #tpu.memory_space<vmem>>, vector<512x256xbf16>
    %c0_3 = arith.constant 0 : index
    %c0_4 = arith.constant 0 : index
    %2 = vector.load %arg1[%c0_3, %c0_4] : memref<512x784xf32, #tpu.memory_space<vmem>>, vector<512x784xf32>
    %3 = arith.truncf %2 : vector<512x784xf32> to vector<512x784xbf16>
    %cst = arith.constant dense<0.000000e+00> : vector<512x512xf32>
    %4 = tpu.matmul %3, %0, %cst {dimension_numbers = #tpu.dot_dimension_numbers<[1], [0], [0], [1], [0, 0, 1, 1], [], []>} : vector<512x784xbf16>, vector<784x512xbf16>, vector<512x512xf32> -> vector<512x512xf32>
    %c0_5 = arith.constant 0 : index
    %c0_6 = arith.constant 0 : index
    %5 = vector.load %arg3[%c0_5, %c0_6] : memref<1x512xf32, #tpu.memory_space<vmem>>, vector<1x512xf32>
    %6 = vector.broadcast %5 : vector<1x512xf32> to vector<512x512xf32>
    %7 = arith.addf %4, %6 : vector<512x512xf32>
    %cst_7 = arith.constant 0.000000e+00 : f32
    %8 = vector.broadcast %cst_7 : f32 to vector<512x512xf32>
    %9 = arith.cmpf ogt, %7, %8 : vector<512x512xf32>
    %cst_8 = arith.constant 2.000000e-01 : f32
    %10 = vector.broadcast %cst_8 : f32 to vector<512x512xf32>
    %11 = arith.mulf %10, %7 : vector<512x512xf32>
    %12 = arith.select %9, %7, %11 : vector<512x512xi1>, vector<512x512xf32>
    %13 = arith.truncf %12 : vector<512x512xf32> to vector<512x512xbf16>
    %cst_9 = arith.constant dense<0.000000e+00> : vector<512x256xf32>
    %14 = tpu.matmul %13, %1, %cst_9 {dimension_numbers = #tpu.dot_dimension_numbers<[1], [0], [0], [1], [0, 0, 1, 1], [], []>} : vector<512x512xbf16>, vector<512x256xbf16>, vector<512x256xf32> -> vector<512x256xf32>
    %c0_10 = arith.constant 0 : index
    %c0_11 = arith.constant 0 : index
    %15 = vector.load %arg5[%c0_10, %c0_11] : memref<1x256xf32, #tpu.memory_space<vmem>>, vector<1x256xf32>
    %16 = vector.broadcast %15 : vector<1x256xf32> to vector<512x256xf32>
    %17 = arith.addf %14, %16 : vector<512x256xf32>
    %cst_12 = arith.constant 0.000000e+00 : f32
    %18 = vector.broadcast %cst_12 : f32 to vector<512x256xf32>
    %19 = arith.cmpf ogt, %17, %18 : vector<512x256xf32>
    %cst_13 = arith.constant 2.000000e-01 : f32
    %20 = vector.broadcast %cst_13 : f32 to vector<512x256xf32>
    %21 = arith.mulf %20, %17 : vector<512x256xf32>
    %22 = arith.select %19, %17, %21 : vector<512x256xi1>, vector<512x256xf32>
    %c0_14 = arith.constant 0 : index
    %c0_15 = arith.constant 0 : index
    %23 = vector.load %arg6[%c0_14, %c0_15] : memref<1x256xf32, #tpu.memory_space<vmem>>, vector<1x256xf32>
    %cst_16 = arith.constant dense<0.000000e+00> : vector<1x512xf32>
    %24 = tpu.matmul %23, %22, %cst_16 {dimension_numbers = #tpu.dot_dimension_numbers<[1], [1], [0], [0], [0, 0, 1, 0], [], []>} : vector<1x256xf32>, vector<512x256xf32>, vector<1x512xf32> -> vector<1x512xf32>
    %c0_17 = arith.constant 0 : index
    %c0_18 = arith.constant 0 : index
    %25 = vector.load %arg7[%c0_17, %c0_18] : memref<1x1xf32, #tpu.memory_space<vmem>>, vector<1x1xf32>
    %26 = vector.broadcast %25 : vector<1x1xf32> to vector<1x512xf32>
    %27 = arith.addf %24, %26 : vector<1x512xf32>
    %28 = arith.negf %27 : vector<1x512xf32>
    %29 = math.exp %28 : vector<1x512xf32>
    %cst_19 = arith.constant 1.000000e+00 : f32
    %30 = vector.broadcast %cst_19 : f32 to vector<1x512xf32>
    %31 = arith.addf %30, %29 : vector<1x512xf32>
    %32 = arith.divf %30, %31 : vector<1x512xf32>
    %c0_20 = arith.constant 0 : index
    %c0_21 = arith.constant 0 : index
    %33 = vector.load %arg8[%c0_20, %c0_21] : memref<1x512xf32, #tpu.memory_space<vmem>>, vector<1x512xf32>
    tpu.vector_store %arg8[%c0_20, %c0_21], %32 {strides = array<i32>} : memref<1x512xf32, #tpu.memory_space<vmem>>, vector<1x512xf32>,
    return
  }
  func.func @transform_0(%arg0: i32) -> (i32, i32) {
    %c0_i32 = arith.constant 0 : i32
    %c0_i32_0 = arith.constant 0 : i32
    return %arg0, %c0_i32 : i32, i32
  }
  func.func @transform_1(%arg0: i32) -> (i32, i32) {
    %c0_i32 = arith.constant 0 : i32
    %c0_i32_0 = arith.constant 0 : i32
    %c0_i32_1 = arith.constant 0 : i32
    return %c0_i32, %c0_i32_0 : i32, i32
  }
  func.func @transform_2(%arg0: i32) -> (i32, i32) {
    %c0_i32 = arith.constant 0 : i32
    %c0_i32_0 = arith.constant 0 : i32
    %c0_i32_1 = arith.constant 0 : i32
    return %c0_i32, %c0_i32_0 : i32, i32
  }
  func.func @transform_3(%arg0: i32) -> (i32, i32) {
    %c0_i32 = arith.constant 0 : i32
    %c0_i32_0 = arith.constant 0 : i32
    %c0_i32_1 = arith.constant 0 : i32
    return %c0_i32, %c0_i32_0 : i32, i32
  }
  func.func @transform_4(%arg0: i32) -> (i32, i32) {
    %c0_i32 = arith.constant 0 : i32
    %c0_i32_0 = arith.constant 0 : i32
    %c0_i32_1 = arith.constant 0 : i32
    return %c0_i32, %c0_i32_0 : i32, i32
  }
  func.func @transform_5(%arg0: i32) -> (i32, i32) {
    %c0_i32 = arith.constant 0 : i32
    %c0_i32_0 = arith.constant 0 : i32
    %c0_i32_1 = arith.constant 0 : i32
    return %c0_i32, %c0_i32_0 : i32, i32
  }
  func.func @transform_6(%arg0: i32) -> (i32, i32) {
    %c0_i32 = arith.constant 0 : i32
    %c0_i32_0 = arith.constant 0 : i32
    %c0_i32_1 = arith.constant 0 : i32
    return %c0_i32, %c0_i32_0 : i32, i32
  }
  func.func @transform_7(%arg0: i32) -> (i32, i32) {
    %c0_i32 = arith.constant 0 : i32
    %c0_i32_0 = arith.constant 0 : i32
    return %c0_i32, %arg0 : i32, i32
  }
}

</mosaic_0001>

<llo_original>
// kernel: discriminator_forward.1
$region0: #{discriminator_forward.1}
  #allocation0 [shape = 'u32[]', space=smem, size = 0x4, offset = 0x4, fixed_abs, tag = 'smem constant byte address 0x4 - core index']
  #allocation1 [shape = 'u32[144,128]{1,0:T(1,128)}', space=vmem, size = 0x12000, scoped, tag = 'internal scratch']
  #allocation2 [shape = 'f32[1,1]{1,0:T(1,128)S(1)}', space=vmem, size = 0x200, scoped, tag = 'scoped memory for discriminator_forward.1']
  %s0 = inlined_call_operand.vmem [shape: f32[1024,784], index: 0, kind: input, shape index: {}]
  %s1 = inlined_call_operand.vmem [shape: bf16[784,512], index: 1, kind: input, shape index: {}]
  %s2 = inlined_call_operand.vmem [shape: f32[1,512], index: 2, kind: input, shape index: {}]
  %s3 = inlined_call_operand.vmem [shape: bf16[512,256], index: 3, kind: input, shape index: {}]
  %s4 = inlined_call_operand.vmem [shape: f32[1,256], index: 4, kind: input, shape index: {}]
  %s5 = inlined_call_operand.vmem [shape: f32[1,256], index: 5, kind: input, shape index: {}]
  %s6 = inlined_call_operand.<no memory space> [shape: f32[1,1], index: 6, kind: input, shape index: {}]
  %s7 = inlined_call_operand.vmem [shape: f32[1,1024], index: 7, kind: output, shape index: {}]
  %s8 = sld [smem:[#allocation0]]
  $region61: #{discriminator_forward.1} parent=0
    _
  %s10 = ssub.s32 1, %s8
  %s11 = scalar_select 0, %s10, %s8
  %v12 = vstv %s6
  %13 = vst [vmem:[#allocation2] sm:$0x1] %v12
  loop: start=0, step=1, limit=4
  $region2: #{discriminator_forward.1} parent=0 // loop_pre_header
    _
  $region3: #{discriminator_forward.1} parent=0 // loop_header
    %s15 = sphi 0, %s19
    %p16 = scmp.ge.s32.totalorder %s15, 4
    %s25 = sphi 0, %s27
    %s28 = sphi 0, %s25
    %s29 = sphi 0, %s28
    %s45 = sphi 0, %s29
    %s49 = sphi 0, %s49
    %s51 = sphi 0, %s49
    %s52 = sphi 0, %s51
    %s66 = sphi 0, %s52
    %s70 = sphi 0, %s70
    %s72 = sphi 0, %s70
    %s73 = sphi 0, %s72
    %s87 = sphi 0, %s73
    %s91 = sphi 0, %s91
    %s93 = sphi 0, %s91
    %s94 = sphi 0, %s93
    %s108 = sphi 0, %s94
    %s112 = sphi 0, %s112
    %s114 = sphi 0, %s112
    %s115 = sphi 0, %s114
    %s129 = sphi 0, %s115
    %s133 = sphi 0, %s133
    %s135 = sphi 0, %s133
    %s136 = sphi 0, %s135
    %s150 = sphi 0, %s136
    %s154 = sphi 0, %s154
    %s156 = sphi 0, %s154
    %s157 = sphi 0, %s156
    %s171 = sphi 0, %s157
    %s177 = sphi 0, %s179
    %s180 = sphi 0, %s177
    %s181 = sphi 0, %s180
    %s197 = sphi 0, %s181
  $region4: #{discriminator_forward.1} parent=0 // loop_header_branch
    %18 = sbr.rel (%p16) target = $region8
  $region5: #{discriminator_forward.1} parent=0 // loop_body
    %s20 = ssub.s32 %s15, 1
    %s21 = ssub.s32 %s15, 2
    %s22 = sadd.s32 %s15, 1
    %s23 = ssub.s32 %s15, %s22
    %p24 = scmp.eq.s32.totalorder %s23, 0
    %s26 = sadd.s32 %s25, 1
    %s27 = scalar_select %p24, %s25, %s26
    %p30 = pneg %p24
    %p31 = scmp.eq.s32.totalorder %s15, 1
    %p32 = por %p30, %p31
    %p33 = scmp.ne.s32.totalorder %s25, %s28
    %p34 = scmp.eq.s32.totalorder %s15, 0
    %p35 = por %p33, %p34
    %p36 = scmp.ne.s32.totalorder %s25, %s28
    %p37 = scmp.eq.s32.totalorder %s20, 1
    %p38 = por %p36, %p37
    %p39 = scmp.ne.s32.totalorder %s28, %s29
    %p40 = scmp.eq.s32.totalorder %s20, 0
    %p41 = por %p39, %p40
    %p42 = scmp.ne.s32.totalorder %s28, %s29
    %p43 = scmp.eq.s32.totalorder %s21, 1
    %p44 = por %p42, %p43
    %p46 = scmp.ne.s32.totalorder %s29, %s45
    %p47 = scmp.eq.s32.totalorder %s21, 0
    %p48 = por %p46, %p47
    %s50 = sadd.s32 %s49, 1
    %p53 = scmp.eq.s32.totalorder %s15, 1
    %p54 = scmp.ne.s32.totalorder %s49, %s51
    %p55 = scmp.eq.s32.totalorder %s15, 0
    %p56 = por %p54, %p55
    %p57 = scmp.ne.s32.totalorder %s49, %s51
    %p58 = scmp.eq.s32.totalorder %s20, 1
    %p59 = por %p57, %p58
    %p60 = scmp.ne.s32.totalorder %s51, %s52
    %p61 = scmp.eq.s32.totalorder %s20, 0
    %p62 = por %p60, %p61
    %p63 = scmp.ne.s32.totalorder %s51, %s52
    %p64 = scmp.eq.s32.totalorder %s21, 1
    %p65 = por %p63, %p64
    %p67 = scmp.ne.s32.totalorder %s52, %s66
    %p68 = scmp.eq.s32.totalorder %s21, 0
    %p69 = por %p67, %p68
    %s71 = sadd.s32 %s70, 1
    %p74 = scmp.eq.s32.totalorder %s15, 1
    %p75 = scmp.ne.s32.totalorder %s70, %s72
    %p76 = scmp.eq.s32.totalorder %s15, 0
    %p77 = por %p75, %p76
    %p78 = scmp.ne.s32.totalorder %s70, %s72
    %p79 = scmp.eq.s32.totalorder %s20, 1
    %p80 = por %p78, %p79
    %p81 = scmp.ne.s32.totalorder %s72, %s73
    %p82 = scmp.eq.s32.totalorder %s20, 0
    %p83 = por %p81, %p82
    %p84 = scmp.ne.s32.totalorder %s72, %s73
    %p85 = scmp.eq.s32.totalorder %s21, 1
    %p86 = por %p84, %p85
    %p88 = scmp.ne.s32.totalorder %s73, %s87
    %p89 = scmp.eq.s32.totalorder %s21, 0
    %p90 = por %p88, %p89
    %s92 = sadd.s32 %s91, 1
    %p95 = scmp.eq.s32.totalorder %s15, 1
    %p96 = scmp.ne.s32.totalorder %s91, %s93
    %p97 = scmp.eq.s32.totalorder %s15, 0
    %p98 = por %p96, %p97
    %p99 = scmp.ne.s32.totalorder %s91, %s93
    %p100 = scmp.eq.s32.totalorder %s20, 1
    %p101 = por %p99, %p100
    %p102 = scmp.ne.s32.totalorder %s93, %s94
    %p103 = scmp.eq.s32.totalorder %s20, 0
    %p104 = por %p102, %p103
    %p105 = scmp.ne.s32.totalorder %s93, %s94
    %p106 = scmp.eq.s32.totalorder %s21, 1
    %p107 = por %p105, %p106
    %p109 = scmp.ne.s32.totalorder %s94, %s108
    %p110 = scmp.eq.s32.totalorder %s21, 0
    %p111 = por %p109, %p110
    %s113 = sadd.s32 %s112, 1
    %p116 = scmp.eq.s32.totalorder %s15, 1
    %p117 = scmp.ne.s32.totalorder %s112, %s114
    %p118 = scmp.eq.s32.totalorder %s15, 0
    %p119 = por %p117, %p118
    %p120 = scmp.ne.s32.totalorder %s112, %s114
    %p121 = scmp.eq.s32.totalorder %s20, 1
    %p122 = por %p120, %p121
    %p123 = scmp.ne.s32.totalorder %s114, %s115
    %p124 = scmp.eq.s32.totalorder %s20, 0
    %p125 = por %p123, %p124
    %p126 = scmp.ne.s32.totalorder %s114, %s115
    %p127 = scmp.eq.s32.totalorder %s21, 1
    %p128 = por %p126, %p127
    %p130 = scmp.ne.s32.totalorder %s115, %s129
    %p131 = scmp.eq.s32.totalorder %s21, 0
    %p132 = por %p130, %p131
    %s134 = sadd.s32 %s133, 1
    %p137 = scmp.eq.s32.totalorder %s15, 1
    %p138 = scmp.ne.s32.totalorder %s133, %s135
    %p139 = scmp.eq.s32.totalorder %s15, 0
    %p140 = por %p138, %p139
    %p141 = scmp.ne.s32.totalorder %s133, %s135
    %p142 = scmp.eq.s32.totalorder %s20, 1
    %p143 = por %p141, %p142
    %p144 = scmp.ne.s32.totalorder %s135, %s136
    %p145 = scmp.eq.s32.totalorder %s20, 0
    %p146 = por %p144, %p145
    %p147 = scmp.ne.s32.totalorder %s135, %s136
    %p148 = scmp.eq.s32.totalorder %s21, 1
    %p149 = por %p147, %p148
    %p151 = scmp.ne.s32.totalorder %s136, %s150
    %p152 = scmp.eq.s32.totalorder %s21, 0
    %p153 = por %p151, %p152
    %s155 = sadd.s32 %s154, 1
    %p158 = scmp.eq.s32.totalorder %s15, 1
    %p159 = scmp.ne.s32.totalorder %s154, %s156
    %p160 = scmp.eq.s32.totalorder %s15, 0
    %p161 = por %p159, %p160
    %p162 = scmp.ne.s32.totalorder %s154, %s156
    %p163 = scmp.eq.s32.totalorder %s20, 1
    %p164 = por %p162, %p163
    %p165 = scmp.ne.s32.totalorder %s156, %s157
    %p166 = scmp.eq.s32.totalorder %s20, 0
    %p167 = por %p165, %p166
    %p168 = scmp.ne.s32.totalorder %s156, %s157
    %p169 = scmp.eq.s32.totalorder %s21, 1
    %p170 = por %p168, %p169
    %p172 = scmp.ne.s32.totalorder %s157, %s171
    %p173 = scmp.eq.s32.totalorder %s21, 0
    %p174 = por %p172, %p173
    %s175 = ssub.s32 %s15, %s22
    %p176 = scmp.eq.s32.totalorder %s175, 0
    %s178 = sadd.s32 %s177, 1
    %s179 = scalar_select %p176, %s177, %s178
    %p182 = pneg %p176
    %p183 = scmp.eq.s32.totalorder %s15, 1
    %p184 = por %p182, %p183
    %p185 = scmp.ne.s32.totalorder %s177, %s180
    %p186 = scmp.eq.s32.totalorder %s15, 0
    %p187 = por %p185, %p186
    %p188 = scmp.ne.s32.totalorder %s177, %s180
    %p189 = scmp.eq.s32.totalorder %s20, 1
    %p190 = por %p188, %p189
    %p191 = scmp.ne.s32.totalorder %s180, %s181
    %p192 = scmp.eq.s32.totalorder %s20, 0
    %p193 = por %p191, %p192
    %p194 = scmp.ne.s32.totalorder %s180, %s181
    %p195 = scmp.eq.s32.totalorder %s21, 1
    %p196 = por %p194, %p195
    %p198 = scmp.ne.s32.totalorder %s181, %s197
    %p199 = scmp.eq.s32.totalorder %s21, 0
    %p200 = por %p198, %p199
    %p201 = scmp.le.s32.totalorder 1, %s15
    %p202 = scmp.lt.s32.totalorder %s15, 3
    %p203 = pnand %p201, %p202
    %p204 = pneg %p203
    // Predicated region
    $region9: #{discriminator_forward.1} parent=5 // pred_check
      _
    $region10: #{discriminator_forward.1} parent=5 // pred_check_branch
      %206 = sbr.rel (%p203) target = $region12
    $region11: #{discriminator_forward.1} parent=5 // pred_region
      %s207 = ssub.s32 %s15, 1
      // Predicated region
      $region13: #{discriminator_forward.1} parent=11 // pred_check
        %p208 = pneg %p62
      $region14: #{discriminator_forward.1} parent=11 // pred_check_branch
        %210 = sbr.rel (%p208) target = $region16
      $region15: #{discriminator_forward.1} parent=11 // pred_region
        _
      $region16: #{discriminator_forward.1} parent=11 // pred_fallthru
        _
      // Predicated region
      $region17: #{discriminator_forward.1} parent=11 // pred_check
        %p211 = pneg %p83
      $region18: #{discriminator_forward.1} parent=11 // pred_check_branch
        %213 = sbr.rel (%p211) target = $region20
      $region19: #{discriminator_forward.1} parent=11 // pred_region
        _
      $region20: #{discriminator_forward.1} parent=11 // pred_fallthru
        _
      // Predicated region
      $region21: #{discriminator_forward.1} parent=11 // pred_check
        %p214 = pneg %p104
      $region22: #{discriminator_forward.1} parent=11 // pred_check_branch
        %216 = sbr.rel (%p214) target = $region24
      $region23: #{discriminator_forward.1} parent=11 // pred_region
        _
      $region24: #{discriminator_forward.1} parent=11 // pred_fallthru
        _
      // Predicated region
      $region25: #{discriminator_forward.1} parent=11 // pred_check
        %p217 = pneg %p125
      $region26: #{discriminator_forward.1} parent=11 // pred_check_branch
        %219 = sbr.rel (%p217) target = $region28
      $region27: #{discriminator_forward.1} parent=11 // pred_region
        _
      $region28: #{discriminator_forward.1} parent=11 // pred_fallthru
        _
      // Predicated region
      $region29: #{discriminator_forward.1} parent=11 // pred_check
        %p220 = pneg %p146
      $region30: #{discriminator_forward.1} parent=11 // pred_check_branch
        %222 = sbr.rel (%p220) target = $region32
      $region31: #{discriminator_forward.1} parent=11 // pred_region
        _
      $region32: #{discriminator_forward.1} parent=11 // pred_fallthru
        _
      // Predicated region
      $region33: #{discriminator_forward.1} parent=11 // pred_check
        %p223 = pneg %p167
      $region34: #{discriminator_forward.1} parent=11 // pred_check_branch
        %225 = sbr.rel (%p223) target = $region36
      $region35: #{discriminator_forward.1} parent=11 // pred_region
        _
      $region36: #{discriminator_forward.1} parent=11 // pred_fallthru
        _
    $region12: #{discriminator_forward.1} parent=5 // pred_fallthru
      _
    %p226 = scmp.lt.s32.totalorder %s15, 2
    // Predicated region
    $region37: #{discriminator_forward.1} parent=5 // pred_check
      %p227 = pneg %p226
    $region38: #{discriminator_forward.1} parent=5 // pred_check_branch
      %229 = sbr.rel (%p227) target = $region40
    $region39: #{discriminator_forward.1} parent=5 // pred_region
      // Predicated region
      $region41: #{discriminator_forward.1} parent=39 // pred_check
        %p230 = pneg %p35
      $region42: #{discriminator_forward.1} parent=39 // pred_check_branch
        %232 = sbr.rel (%p230) target = $region44
      $region43: #{discriminator_forward.1} parent=39 // pred_region
        %s233 = smul.u32 64, %s15
        %p234 = scmp.lt.s32.totalorder %s233, 127
        %s235 = scalar_select %p234, %s233, 127
        %s236 = smul.addr %s235, 7
        %s237 = smul.addr %s236, 8
        %s238 = scalar_lea.vmem %s0, %s237
        %s239 = smul.u32 64, %s15
      $region44: #{discriminator_forward.1} parent=39 // pred_fallthru
        _
    $region40: #{discriminator_forward.1} parent=5 // pred_fallthru
      _
    %p240 = scmp.le.s32.totalorder 1, %s15
    %p241 = scmp.lt.s32.totalorder %s15, 3
    %p242 = pnand %p240, %p241
    %p243 = pneg %p242
    // Predicated region
    $region45: #{discriminator_forward.1} parent=5 // pred_check
      _
    $region46: #{discriminator_forward.1} parent=5 // pred_check_branch
      %245 = sbr.rel (%p242) target = $region48
    $region47: #{discriminator_forward.1} parent=5 // pred_region
      %s246 = ssub.s32 %s15, 1
      %s247 = smul.u32 64, %s20
      %p248 = scmp.lt.s32.totalorder %s247, 127
      %s249 = scalar_select %p248, %s247, 127
      %s250 = smul.addr %s249, 7
      %s251 = smul.addr %s250, 8
      %s252 = scalar_lea.vmem %s0, %s251
      %p253 = pneg %p41
      %p254 = pneg %p38
      %p255 = pneg %p62
      %p256 = pneg %p59
      %p257 = pneg %p83
      %p258 = pneg %p80
      %p259 = pneg %p104
      %p260 = pneg %p101
      %p261 = pneg %p125
      %p262 = pneg %p122
      %p263 = pneg %p146
      %p264 = pneg %p143
      %p265 = pneg %p167
      %p266 = pneg %p164
      %p267 = pneg %p193
      %p268 = pneg %p190
      %s269 = smul.u32 4, %s20
      %p270 = scmp.lt.s32.totalorder %s269, 7
      %s271 = scalar_select %p270, %s269, 7
      %s272 = scalar_lea.vmem %s7, %s271
      %s273 = smul.u32 64, %s20
      %p274 = scmp.lt.s32.totalorder %s273, 127
      %s275 = scalar_select %p274, %s273, 127
      %s276 = smul.addr %s275, 7
      %s277 = smul.addr %s276, 8
      %s278 = scalar_lea.vmem %s0, %s277
      %s279 = smul.u32 64, %s20
      %s280 = smul.u32 4, %s20
      %p281 = scmp.lt.s32.totalorder %s280, 7
      %s282 = scalar_select %p281, %s280, 7
      %s283 = scalar_lea.vmem %s7, %s282
      %s284 = smul.u32 4, %s20
      %v286 = vld [vmem:[%s1] sm:$0xff]
      %v287 = vld [vmem:[%s1 + $0x8] sm:$0xff]
      %v288 = vld [vmem:[%s1 + $0x10] sm:$0xff]
      %v289 = vld [vmem:[%s1 + $0x18] sm:$0xff]
      %v290 = vld [vmem:[%s1 + $0x20] sm:$0xff]
      %v291 = vld [vmem:[%s1 + $0x28] sm:$0xff]
      %v292 = vld [vmem:[%s1 + $0x30] sm:$0xff]
      %v293 = vld [vmem:[%s1 + $0x38] sm:$0xff]
      %v294 = vld [vmem:[%s1 + $0x40] sm:$0xff]
      %v295 = vld [vmem:[%s1 + $0x48] sm:$0xff]
      %v296 = vld [vmem:[%s1 + $0x50] sm:$0xff]
      %v297 = vld [vmem:[%s1 + $0x58] sm:$0xff]
      %v298 = vld [vmem:[%s1 + $0x60] sm:$0xff]
      %v299 = vld [vmem:[%s1 + $0x68] sm:$0xff]
      %v300 = vld [vmem:[%s1 + $0x70] sm:$0xff]
      %v301 = vld [vmem:[%s1 + $0x78] sm:$0xff]
      %v302 = vld [vmem:[%s1 + $0x80] sm:$0xff]
      %v303 = vld [vmem:[%s1 + $0x88] sm:$0xff]
      %v304 = vld [vmem:[%s1 + $0x90] sm:$0xff]
      %v305 = vld [vmem:[%s1 + $0x98] sm:$0xff]
      %v306 = vld [vmem:[%s1 + $0xa0] sm:$0xff]
      %v307 = vld [vmem:[%s1 + $0xa8] sm:$0xff]
      %v308 = vld [vmem:[%s1 + $0xb0] sm:$0xff]
      %v309 = vld [vmem:[%s1 + $0xb8] sm:$0xff]
      %v310 = vld [vmem:[%s1 + $0xc0] sm:$0xff]
      %v311 = vld [vmem:[%s1 + $0xc8] sm:$0xff]
      %v312 = vld [vmem:[%s1 + $0xd0] sm:$0xff]
      %v313 = vld [vmem:[%s1 + $0xd8] sm:$0xff]
      %v314 = vld [vmem:[%s1 + $0xe0] sm:$0xff]
      %v315 = vld [vmem:[%s1 + $0xe8] sm:$0xff]
      %v316 = vld [vmem:[%s1 + $0xf0] sm:$0xff]
      %v317 = vld [vmem:[%s1 + $0xf8] sm:$0xff]
      %v318 = vld [vmem:[%s1 + $0x100] sm:$0xff]
      %v319 = vld [vmem:[%s1 + $0x108] sm:$0xff]
      %v320 = vld [vmem:[%s1 + $0x110] sm:$0xff]
      %v321 = vld [vmem:[%s1 + $0x118] sm:$0xff]
      %v322 = vld [vmem:[%s1 + $0x120] sm:$0xff]
      %v323 = vld [vmem:[%s1 + $0x128] sm:$0xff]
      %v324 = vld [vmem:[%s1 + $0x130] sm:$0xff]
      %v325 = vld [vmem:[%s1 + $0x138] sm:$0xff]
      %v326 = vld [vmem:[%s1 + $0x140] sm:$0xff]
      %v327 = vld [vmem:[%s1 + $0x148] sm:$0xff]
      %v328 = vld [vmem:[%s1 + $0x150] sm:$0xff]
      %v329 = vld [vmem:[%s1 + $0x158] sm:$0xff]
      %v330 = vld [vmem:[%s1 + $0x160] sm:$0xff]
      %v331 = vld [vmem:[%s1 + $0x168] sm:$0xff]
      %v332 = vld [vmem:[%s1 + $0x170] sm:$0xff]
      %v333 = vld [vmem:[%s1 + $0x178] sm:$0xff]
      %v334 = vld [vmem:[%s1 + $0x180] sm:$0xff]
      %v335 = vld [vmem:[%s1 + $0x188] sm:$0xff]
      %v336 = vld [vmem:[%s1 + $0x190] sm:$0xff]
      %v337 = vld [vmem:[%s1 + $0x198] sm:$0xff]
      %v338 = vld [vmem:[%s1 + $0x1a0] sm:$0xff]
      %v339 = vld [vmem:[%s1 + $0x1a8] sm:$0xff]
      %v340 = vld [vmem:[%s1 + $0x1b0] sm:$0xff]
      %v341 = vld [vmem:[%s1 + $0x1b8] sm:$0xff]
      %v342 = vld [vmem:[%s1 + $0x1c0] sm:$0xff]
      %v343 = vld [vmem:[%s1 + $0x1c8] sm:$0xff]
      %v344 = vld [vmem:[%s1 + $0x1d0] sm:$0xff]
      %v345 = vld [vmem:[%s1 + $0x1d8] sm:$0xff]
      %v346 = vld [vmem:[%s1 + $0x1e0] sm:$0xff]
      %v347 = vld [vmem:[%s1 + $0x1e8] sm:$0xff]
      %v348 = vld [vmem:[%s1 + $0x1f0] sm:$0xff]
      %v349 = vld [vmem:[%s1 + $0x1f8] sm:$0xff]
      %v350 = vld [vmem:[%s1 + $0x200] sm:$0xff]
      %v351 = vld [vmem:[%s1 + $0x208] sm:$0xff]
      %v352 = vld [vmem:[%s1 + $0x210] sm:$0xff]
      %v353 = vld [vmem:[%s1 + $0x218] sm:$0xff]
      %v354 = vld [vmem:[%s1 + $0x220] sm:$0xff]
      %v355 = vld [vmem:[%s1 + $0x228] sm:$0xff]
      %v356 = vld [vmem:[%s1 + $0x230] sm:$0xff]
      %v357 = vld [vmem:[%s1 + $0x238] sm:$0xff]
      %v358 = vld [vmem:[%s1 + $0x240] sm:$0xff]
      %v359 = vld [vmem:[%s1 + $0x248] sm:$0xff]
      %v360 = vld [vmem:[%s1 + $0x250] sm:$0xff]
      %v361 = vld [vmem:[%s1 + $0x258] sm:$0xff]
      %v362 = vld [vmem:[%s1 + $0x260] sm:$0xff]
      %v363 = vld [vmem:[%s1 + $0x268] sm:$0xff]
      %v364 = vld [vmem:[%s1 + $0x270] sm:$0xff]
      %v365 = vld [vmem:[%s1 + $0x278] sm:$0xff]
      %v366 = vld [vmem:[%s1 + $0x280] sm:$0xff]
      %v367 = vld [vmem:[%s1 + $0x288] sm:$0xff]
      %v368 = vld [vmem:[%s1 + $0x290] sm:$0xff]
      %v369 = vld [vmem:[%s1 + $0x298] sm:$0xff]
      %v370 = vld [vmem:[%s1 + $0x2a0] sm:$0xff]
      %v371 = vld [vmem:[%s1 + $0x2a8] sm:$0xff]
      %v372 = vld [vmem:[%s1 + $0x2b0] sm:$0xff]
      %v373 = vld [vmem:[%s1 + $0x2b8] sm:$0xff]
      %v374 = vld [vmem:[%s1 + $0x2c0] sm:$0xff]
      %v375 = vld [vmem:[%s1 + $0x2c8] sm:$0xff]
      %v376 = vld [vmem:[%s1 + $0x2d0] sm:$0xff]
      %v377 = vld [vmem:[%s1 + $0x2d8] sm:$0xff]
      %v378 = vld [vmem:[%s1 + $0x2e0] sm:$0xff]
      %v379 = vld [vmem:[%s1 + $0x2e8] sm:$0xff]
      %v380 = vld [vmem:[%s1 + $0x2f0] sm:$0xff]
      %v381 = vld [vmem:[%s1 + $0x2f8] sm:$0xff]
      %v382 = vld [vmem:[%s1 + $0x300] sm:$0xff]
      %v383 = vld [vmem:[%s1 + $0x308] sm:$0xff]
      %v384 = vld [vmem:[%s1 + $0x310] sm:$0xff]
      %v385 = vld [vmem:[%s1 + $0x318] sm:$0xff]
      %v386 = vld [vmem:[%s1 + $0x320] sm:$0xff]
      %v387 = vld [vmem:[%s1 + $0x328] sm:$0xff]
      %v388 = vld [vmem:[%s1 + $0x330] sm:$0xff]
      %v389 = vld [vmem:[%s1 + $0x338] sm:$0xff]
      %v390 = vld [vmem:[%s1 + $0x340] sm:$0xff]
      %v391 = vld [vmem:[%s1 + $0x348] sm:$0xff]
      %v392 = vld [vmem:[%s1 + $0x350] sm:$0xff]
      %v393 = vld [vmem:[%s1 + $0x358] sm:$0xff]
      %v394 = vld [vmem:[%s1 + $0x360] sm:$0xff]
      %v395 = vld [vmem:[%s1 + $0x368] sm:$0xff]
      %v396 = vld [vmem:[%s1 + $0x370] sm:$0xff]
      %v397 = vld [vmem:[%s1 + $0x378] sm:$0xff]
      %v398 = vld [vmem:[%s1 + $0x380] sm:$0xff]
      %v399 = vld [vmem:[%s1 + $0x388] sm:$0xff]
      %v400 = vld [vmem:[%s1 + $0x390] sm:$0xff]
      %v401 = vld [vmem:[%s1 + $0x398] sm:$0xff]
      %v402 = vld [vmem:[%s1 + $0x3a0] sm:$0xff]
      %v403 = vld [vmem:[%s1 + $0x3a8] sm:$0xff]
      %v404 = vld [vmem:[%s1 + $0x3b0] sm:$0xff]
      %v405 = vld [vmem:[%s1 + $0x3b8] sm:$0xff]
      %v406 = vld [vmem:[%s1 + $0x3c0] sm:$0xff]
      %v407 = vld [vmem:[%s1 + $0x3c8] sm:$0xff]
      %v408 = vld [vmem:[%s1 + $0x3d0] sm:$0xff]
      %v409 = vld [vmem:[%s1 + $0x3d8] sm:$0xff]
      %v410 = vld [vmem:[%s1 + $0x3e0] sm:$0xff]
      %v411 = vld [vmem:[%s1 + $0x3e8] sm:$0xff]
      %v412 = vld [vmem:[%s1 + $0x3f0] sm:$0xff]
      %v413 = vld [vmem:[%s1 + $0x3f8] sm:$0xff]
      %v414 = vld [vmem:[%s1 + $0x400] sm:$0xff]
      %v415 = vld [vmem:[%s1 + $0x408] sm:$0xff]
      %v416 = vld [vmem:[%s1 + $0x410] sm:$0xff]
      %v417 = vld [vmem:[%s1 + $0x418] sm:$0xff]
      %v418 = vld [vmem:[%s1 + $0x420] sm:$0xff]
      %v419 = vld [vmem:[%s1 + $0x428] sm:$0xff]
      %v420 = vld [vmem:[%s1 + $0x430] sm:$0xff]
      %v421 = vld [vmem:[%s1 + $0x438] sm:$0xff]
      %v422 = vld [vmem:[%s1 + $0x440] sm:$0xff]
      %v423 = vld [vmem:[%s1 + $0x448] sm:$0xff]
      %v424 = vld [vmem:[%s1 + $0x450] sm:$0xff]
      %v425 = vld [vmem:[%s1 + $0x458] sm:$0xff]
      %v426 = vld [vmem:[%s1 + $0x460] sm:$0xff]
      %v427 = vld [vmem:[%s1 + $0x468] sm:$0xff]
      %v428 = vld [vmem:[%s1 + $0x470] sm:$0xff]
      %v429 = vld [vmem:[%s1 + $0x478] sm:$0xff]
      %v430 = vld [vmem:[%s1 + $0x480] sm:$0xff]
      %v431 = vld [vmem:[%s1 + $0x488] sm:$0xff]
      %v432 = vld [vmem:[%s1 + $0x490] sm:$0xff]
      %v433 = vld [vmem:[%s1 + $0x498] sm:$0xff]
      %v434 = vld [vmem:[%s1 + $0x4a0] sm:$0xff]
      %v435 = vld [vmem:[%s1 + $0x4a8] sm:$0xff]
      %v436 = vld [vmem:[%s1 + $0x4b0] sm:$0xff]
      %v437 = vld [vmem:[%s1 + $0x4b8] sm:$0xff]
      %v438 = vld [vmem:[%s1 + $0x4c0] sm:$0xff]
      %v439 = vld [vmem:[%s1 + $0x4c8] sm:$0xff]
      %v440 = vld [vmem:[%s1 + $0x4d0] sm:$0xff]
      %v441 = vld [vmem:[%s1 + $0x4d8] sm:$0xff]
      %v442 = vld [vmem:[%s1 + $0x4e0] sm:$0xff]
      %v443 = vld [vmem:[%s1 + $0x4e8] sm:$0xff]
      %v444 = vld [vmem:[%s1 + $0x4f0] sm:$0xff]
      %v445 = vld [vmem:[%s1 + $0x4f8] sm:$0xff]
      %v446 = vld [vmem:[%s1 + $0x500] sm:$0xff]
      %v447 = vld [vmem:[%s1 + $0x508] sm:$0xff]
      %v448 = vld [vmem:[%s1 + $0x510] sm:$0xff]
      %v449 = vld [vmem:[%s1 + $0x518] sm:$0xff]
      %v450 = vld [vmem:[%s1 + $0x520] sm:$0xff]
      %v451 = vld [vmem:[%s1 + $0x528] sm:$0xff]
      %v452 = vld [vmem:[%s1 + $0x530] sm:$0xff]
      %v453 = vld [vmem:[%s1 + $0x538] sm:$0xff]
      %v454 = vld [vmem:[%s1 + $0x540] sm:$0xff]
      %v455 = vld [vmem:[%s1 + $0x548] sm:$0xff]
      %v456 = vld [vmem:[%s1 + $0x550] sm:$0xff]
      %v457 = vld [vmem:[%s1 + $0x558] sm:$0xff]
      %v458 = vld [vmem:[%s1 + $0x560] sm:$0xff]
      %v459 = vld [vmem:[%s1 + $0x568] sm:$0xff]
      %v460 = vld [vmem:[%s1 + $0x570] sm:$0xff]
      %v461 = vld [vmem:[%s1 + $0x578] sm:$0xff]
      %v462 = vld [vmem:[%s1 + $0x580] sm:$0xff]
      %v463 = vld [vmem:[%s1 + $0x588] sm:$0xff]
      %v464 = vld [vmem:[%s1 + $0x590] sm:$0xff]
      %v465 = vld [vmem:[%s1 + $0x598] sm:$0xff]
      %v466 = vld [vmem:[%s1 + $0x5a0] sm:$0xff]
      %v467 = vld [vmem:[%s1 + $0x5a8] sm:$0xff]
      %v468 = vld [vmem:[%s1 + $0x5b0] sm:$0xff]
      %v469 = vld [vmem:[%s1 + $0x5b8] sm:$0xff]
      %v470 = vld [vmem:[%s1 + $0x5c0] sm:$0xff]
      %v471 = vld [vmem:[%s1 + $0x5c8] sm:$0xff]
      %v472 = vld [vmem:[%s1 + $0x5d0] sm:$0xff]
      %v473 = vld [vmem:[%s1 + $0x5d8] sm:$0xff]
      %v474 = vld [vmem:[%s1 + $0x5e0] sm:$0xff]
      %v475 = vld [vmem:[%s1 + $0x5e8] sm:$0xff]
      %v476 = vld [vmem:[%s1 + $0x5f0] sm:$0xff]
      %v477 = vld [vmem:[%s1 + $0x5f8] sm:$0xff]
      %v478 = vld [vmem:[%s1 + $0x600] sm:$0xff]
      %v479 = vld [vmem:[%s1 + $0x608] sm:$0xff]
      %v480 = vld [vmem:[%s1 + $0x610] sm:$0xff]
      %v481 = vld [vmem:[%s1 + $0x618] sm:$0xff]
      %v482 = vld [vmem:[%s3] sm:$0xff]
      %v483 = vld [vmem:[%s3 + $0x8] sm:$0xff]
      %v484 = vld [vmem:[%s3 + $0x10] sm:$0xff]
      %v485 = vld [vmem:[%s3 + $0x18] sm:$0xff]
      %v486 = vld [vmem:[%s3 + $0x20] sm:$0xff]
      %v487 = vld [vmem:[%s3 + $0x28] sm:$0xff]
      %v488 = vld [vmem:[%s3 + $0x30] sm:$0xff]
      %v489 = vld [vmem:[%s3 + $0x38] sm:$0xff]
      %v490 = vld [vmem:[%s3 + $0x40] sm:$0xff]
      %v491 = vld [vmem:[%s3 + $0x48] sm:$0xff]
      %v492 = vld [vmem:[%s3 + $0x50] sm:$0xff]
      %v493 = vld [vmem:[%s3 + $0x58] sm:$0xff]
      %v494 = vld [vmem:[%s3 + $0x60] sm:$0xff]
      %v495 = vld [vmem:[%s3 + $0x68] sm:$0xff]
      %v496 = vld [vmem:[%s3 + $0x70] sm:$0xff]
      %v497 = vld [vmem:[%s3 + $0x78] sm:$0xff]
      %v498 = vld [vmem:[%s3 + $0x80] sm:$0xff]
      %v499 = vld [vmem:[%s3 + $0x88] sm:$0xff]
      %v500 = vld [vmem:[%s3 + $0x90] sm:$0xff]
      %v501 = vld [vmem:[%s3 + $0x98] sm:$0xff]
      %v502 = vld [vmem:[%s3 + $0xa0] sm:$0xff]
      %v503 = vld [vmem:[%s3 + $0xa8] sm:$0xff]
      %v504 = vld [vmem:[%s3 + $0xb0] sm:$0xff]
      %v505 = vld [vmem:[%s3 + $0xb8] sm:$0xff]
      %v506 = vld [vmem:[%s3 + $0xc0] sm:$0xff]
      %v507 = vld [vmem:[%s3 + $0xc8] sm:$0xff]
      %v508 = vld [vmem:[%s3 + $0xd0] sm:$0xff]
      %v509 = vld [vmem:[%s3 + $0xd8] sm:$0xff]
      %v510 = vld [vmem:[%s3 + $0xe0] sm:$0xff]
      %v511 = vld [vmem:[%s3 + $0xe8] sm:$0xff]
      %v512 = vld [vmem:[%s3 + $0xf0] sm:$0xff]
      %v513 = vld [vmem:[%s3 + $0xf8] sm:$0xff]
      %v514 = vld [vmem:[%s3 + $0x100] sm:$0xff]
      %v515 = vld [vmem:[%s3 + $0x108] sm:$0xff]
      %v516 = vld [vmem:[%s3 + $0x110] sm:$0xff]
      %v517 = vld [vmem:[%s3 + $0x118] sm:$0xff]
      %v518 = vld [vmem:[%s3 + $0x120] sm:$0xff]
      %v519 = vld [vmem:[%s3 + $0x128] sm:$0xff]
      %v520 = vld [vmem:[%s3 + $0x130] sm:$0xff]
      %v521 = vld [vmem:[%s3 + $0x138] sm:$0xff]
      %v522 = vld [vmem:[%s3 + $0x140] sm:$0xff]
      %v523 = vld [vmem:[%s3 + $0x148] sm:$0xff]
      %v524 = vld [vmem:[%s3 + $0x150] sm:$0xff]
      %v525 = vld [vmem:[%s3 + $0x158] sm:$0xff]
      %v526 = vld [vmem:[%s3 + $0x160] sm:$0xff]
      %v527 = vld [vmem:[%s3 + $0x168] sm:$0xff]
      %v528 = vld [vmem:[%s3 + $0x170] sm:$0xff]
      %v529 = vld [vmem:[%s3 + $0x178] sm:$0xff]
      %v530 = vld [vmem:[%s3 + $0x180] sm:$0xff]
      %v531 = vld [vmem:[%s3 + $0x188] sm:$0xff]
      %v532 = vld [vmem:[%s3 + $0x190] sm:$0xff]
      %v533 = vld [vmem:[%s3 + $0x198] sm:$0xff]
      %v534 = vld [vmem:[%s3 + $0x1a0] sm:$0xff]
      %v535 = vld [vmem:[%s3 + $0x1a8] sm:$0xff]
      %v536 = vld [vmem:[%s3 + $0x1b0] sm:$0xff]
      %v537 = vld [vmem:[%s3 + $0x1b8] sm:$0xff]
      %v538 = vld [vmem:[%s3 + $0x1c0] sm:$0xff]
      %v539 = vld [vmem:[%s3 + $0x1c8] sm:$0xff]
      %v540 = vld [vmem:[%s3 + $0x1d0] sm:$0xff]
      %v541 = vld [vmem:[%s3 + $0x1d8] sm:$0xff]
      %v542 = vld [vmem:[%s3 + $0x1e0] sm:$0xff]
      %v543 = vld [vmem:[%s3 + $0x1e8] sm:$0xff]
      %v544 = vld [vmem:[%s3 + $0x1f0] sm:$0xff]
      %v545 = vld [vmem:[%s3 + $0x1f8] sm:$0xff]
      %v546 = vld [vmem:[%s278] sm:$0xff]
      %v547 = vld [vmem:[%s278 + $0x8] sm:$0xff]
      %v548 = vld [vmem:[%s278 + $0x10] sm:$0xff]
      %v549 = vld [vmem:[%s278 + $0x18] sm:$0xff]
      %v550 = vld [vmem:[%s278 + $0x20] sm:$0xff]
      %v551 = vld [vmem:[%s278 + $0x28] sm:$0xff]
      %v552 = vld [vmem:[%s278 + $0x30] sm:$0xff]
      %v553 = vld [vmem:[%s278 + $0x38] sm:$0xff]
      %v554 = vld [vmem:[%s278 + $0x40] sm:$0xff]
      %v555 = vld [vmem:[%s278 + $0x48] sm:$0xff]
      %v556 = vld [vmem:[%s278 + $0x50] sm:$0xff]
      %v557 = vld [vmem:[%s278 + $0x58] sm:$0xff]
      %v558 = vld [vmem:[%s278 + $0x60] sm:$0xff]
      %v559 = vld [vmem:[%s278 + $0x68] sm:$0xff]
      %v560 = vld [vmem:[%s278 + $0x70] sm:$0xff]
      %v561 = vld [vmem:[%s278 + $0x78] sm:$0xff]
      %v562 = vld [vmem:[%s278 + $0x80] sm:$0xff]
      %v563 = vld [vmem:[%s278 + $0x88] sm:$0xff]
      %v564 = vld [vmem:[%s278 + $0x90] sm:$0xff]
      %v565 = vld [vmem:[%s278 + $0x98] sm:$0xff]
      %v566 = vld [vmem:[%s278 + $0xa0] sm:$0xff]
      %v567 = vld [vmem:[%s278 + $0xa8] sm:$0xff]
      %v568 = vld [vmem:[%s278 + $0xb0] sm:$0xff]
      %v569 = vld [vmem:[%s278 + $0xb8] sm:$0xff]
      %v570 = vld [vmem:[%s278 + $0xc0] sm:$0xff]
      %v571 = vld [vmem:[%s278 + $0xc8] sm:$0xff]
      %v572 = vld [vmem:[%s278 + $0xd0] sm:$0xff]
      %v573 = vld [vmem:[%s278 + $0xd8] sm:$0xff]
      %v574 = vld [vmem:[%s278 + $0xe0] sm:$0xff]
      %v575 = vld [vmem:[%s278 + $0xe8] sm:$0xff]
      %v576 = vld [vmem:[%s278 + $0xf0] sm:$0xff]
      %v577 = vld [vmem:[%s278 + $0xf8] sm:$0xff]
      %v578 = vld [vmem:[%s278 + $0x100] sm:$0xff]
      %v579 = vld [vmem:[%s278 + $0x108] sm:$0xff]
      %v580 = vld [vmem:[%s278 + $0x110] sm:$0xff]
      %v581 = vld [vmem:[%s278 + $0x118] sm:$0xff]
      %v582 = vld [vmem:[%s278 + $0x120] sm:$0xff]
      %v583 = vld [vmem:[%s278 + $0x128] sm:$0xff]
      %v584 = vld [vmem:[%s278 + $0x130] sm:$0xff]
      %v585 = vld [vmem:[%s278 + $0x138] sm:$0xff]
      %v586 = vld [vmem:[%s278 + $0x140] sm:$0xff]
      %v587 = vld [vmem:[%s278 + $0x148] sm:$0xff]
      %v588 = vld [vmem:[%s278 + $0x150] sm:$0xff]
      %v589 = vld [vmem:[%s278 + $0x158] sm:$0xff]
      %v590 = vld [vmem:[%s278 + $0x160] sm:$0xff]
      %v591 = vld [vmem:[%s278 + $0x168] sm:$0xff]
      %v592 = vld [vmem:[%s278 + $0x170] sm:$0xff]
      %v593 = vld [vmem:[%s278 + $0x178] sm:$0xff]
      %v594 = vld [vmem:[%s278 + $0x180] sm:$0xff]
      %v595 = vld [vmem:[%s278 + $0x188] sm:$0xff]
      %v596 = vld [vmem:[%s278 + $0x190] sm:$0xff]
      %v597 = vld [vmem:[%s278 + $0x198] sm:$0xff]
      %v598 = vld [vmem:[%s278 + $0x1a0] sm:$0xff]
      %v599 = vld [vmem:[%s278 + $0x1a8] sm:$0xff]
      %v600 = vld [vmem:[%s278 + $0x1b0] sm:$0xff]
      %v601 = vld [vmem:[%s278 + $0x1b8] sm:$0xff]
      %v602 = vld [vmem:[%s278 + $0x1c0] sm:$0xff]
      %v603 = vld [vmem:[%s278 + $0x1c8] sm:$0xff]
      %v604 = vld [vmem:[%s278 + $0x1d0] sm:$0xff]
      %v605 = vld [vmem:[%s278 + $0x1d8] sm:$0xff]
      %v606 = vld [vmem:[%s278 + $0x1e0] sm:$0xff]
      %v607 = vld [vmem:[%s278 + $0x1e8] sm:$0xff]
      %v608 = vld [vmem:[%s278 + $0x1f0] sm:$0xff]
      %v609 = vld [vmem:[%s278 + $0x1f8] sm:$0xff]
      %v610 = vld [vmem:[%s278 + $0x200] sm:$0xff]
      %v611 = vld [vmem:[%s278 + $0x208] sm:$0xff]
      %v612 = vld [vmem:[%s278 + $0x210] sm:$0xff]
      %v613 = vld [vmem:[%s278 + $0x218] sm:$0xff]
      %v614 = vld [vmem:[%s278 + $0x220] sm:$0xff]
      %v615 = vld [vmem:[%s278 + $0x228] sm:$0xff]
      %v616 = vld [vmem:[%s278 + $0x230] sm:$0xff]
      %v617 = vld [vmem:[%s278 + $0x238] sm:$0xff]
      %v618 = vld [vmem:[%s278 + $0x240] sm:$0xff]
      %v619 = vld [vmem:[%s278 + $0x248] sm:$0xff]
      %v620 = vld [vmem:[%s278 + $0x250] sm:$0xff]
      %v621 = vld [vmem:[%s278 + $0x258] sm:$0xff]
      %v622 = vld [vmem:[%s278 + $0x260] sm:$0xff]
      %v623 = vld [vmem:[%s278 + $0x268] sm:$0xff]
      %v624 = vld [vmem:[%s278 + $0x270] sm:$0xff]
      %v625 = vld [vmem:[%s278 + $0x278] sm:$0xff]
      %v626 = vld [vmem:[%s278 + $0x280] sm:$0xff]
      %v627 = vld [vmem:[%s278 + $0x288] sm:$0xff]
      %v628 = vld [vmem:[%s278 + $0x290] sm:$0xff]
      %v629 = vld [vmem:[%s278 + $0x298] sm:$0xff]
      %v630 = vld [vmem:[%s278 + $0x2a0] sm:$0xff]
      %v631 = vld [vmem:[%s278 + $0x2a8] sm:$0xff]
      %v632 = vld [vmem:[%s278 + $0x2b0] sm:$0xff]
      %v633 = vld [vmem:[%s278 + $0x2b8] sm:$0xff]
      %v634 = vld [vmem:[%s278 + $0x2c0] sm:$0xff]
      %v635 = vld [vmem:[%s278 + $0x2c8] sm:$0xff]
      %v636 = vld [vmem:[%s278 + $0x2d0] sm:$0xff]
      %v637 = vld [vmem:[%s278 + $0x2d8] sm:$0xff]
      %v638 = vld [vmem:[%s278 + $0x2e0] sm:$0xff]
      %v639 = vld [vmem:[%s278 + $0x2e8] sm:$0xff]
      %v640 = vld [vmem:[%s278 + $0x2f0] sm:$0xff]
      %v641 = vld [vmem:[%s278 + $0x2f8] sm:$0xff]
      %v642 = vld [vmem:[%s278 + $0x300] sm:$0xff]
      %v643 = vld [vmem:[%s278 + $0x308] sm:$0xff]
      %v644 = vld [vmem:[%s278 + $0x310] sm:$0xff]
      %v645 = vld [vmem:[%s278 + $0x318] sm:$0xff]
      %v646 = vld [vmem:[%s278 + $0x320] sm:$0xff]
      %v647 = vld [vmem:[%s278 + $0x328] sm:$0xff]
      %v648 = vld [vmem:[%s278 + $0x330] sm:$0xff]
      %v649 = vld [vmem:[%s278 + $0x338] sm:$0xff]
      %v650 = vld [vmem:[%s278 + $0x340] sm:$0xff]
      %v651 = vld [vmem:[%s278 + $0x348] sm:$0xff]
      %v652 = vld [vmem:[%s278 + $0x350] sm:$0xff]
      %v653 = vld [vmem:[%s278 + $0x358] sm:$0xff]
      %v654 = vld [vmem:[%s278 + $0x360] sm:$0xff]
      %v655 = vld [vmem:[%s278 + $0x368] sm:$0xff]
      %v656 = vld [vmem:[%s278 + $0x370] sm:$0xff]
      %v657 = vld [vmem:[%s278 + $0x378] sm:$0xff]
      %v658 = vld [vmem:[%s278 + $0x380] sm:$0xff]
      %v659 = vld [vmem:[%s278 + $0x388] sm:$0xff]
      %v660 = vld [vmem:[%s278 + $0x390] sm:$0xff]
      %v661 = vld [vmem:[%s278 + $0x398] sm:$0xff]
      %v662 = vld [vmem:[%s278 + $0x3a0] sm:$0xff]
      %v663 = vld [vmem:[%s278 + $0x3a8] sm:$0xff]
      %v664 = vld [vmem:[%s278 + $0x3b0] sm:$0xff]
      %v665 = vld [vmem:[%s278 + $0x3b8] sm:$0xff]
      %v666 = vld [vmem:[%s278 + $0x3c0] sm:$0xff]
      %v667 = vld [vmem:[%s278 + $0x3c8] sm:$0xff]
      %v668 = vld [vmem:[%s278 + $0x3d0] sm:$0xff]
      %v669 = vld [vmem:[%s278 + $0x3d8] sm:$0xff]
      %v670 = vld [vmem:[%s278 + $0x3e0] sm:$0xff]
      %v671 = vld [vmem:[%s278 + $0x3e8] sm:$0xff]
      %v672 = vld [vmem:[%s278 + $0x3f0] sm:$0xff]
      %v673 = vld [vmem:[%s278 + $0x3f8] sm:$0xff]
      %v674 = vld [vmem:[%s278 + $0x400] sm:$0xff]
      %v675 = vld [vmem:[%s278 + $0x408] sm:$0xff]
      %v676 = vld [vmem:[%s278 + $0x410] sm:$0xff]
      %v677 = vld [vmem:[%s278 + $0x418] sm:$0xff]
      %v678 = vld [vmem:[%s278 + $0x420] sm:$0xff]
      %v679 = vld [vmem:[%s278 + $0x428] sm:$0xff]
      %v680 = vld [vmem:[%s278 + $0x430] sm:$0xff]
      %v681 = vld [vmem:[%s278 + $0x438] sm:$0xff]
      %v682 = vld [vmem:[%s278 + $0x440] sm:$0xff]
      %v683 = vld [vmem:[%s278 + $0x448] sm:$0xff]
      %v684 = vld [vmem:[%s278 + $0x450] sm:$0xff]
      %v685 = vld [vmem:[%s278 + $0x458] sm:$0xff]
      %v686 = vld [vmem:[%s278 + $0x460] sm:$0xff]
      %v687 = vld [vmem:[%s278 + $0x468] sm:$0xff]
      %v688 = vld [vmem:[%s278 + $0x470] sm:$0xff]
      %v689 = vld [vmem:[%s278 + $0x478] sm:$0xff]
      %v690 = vld [vmem:[%s278 + $0x480] sm:$0xff]
      %v691 = vld [vmem:[%s278 + $0x488] sm:$0xff]
      %v692 = vld [vmem:[%s278 + $0x490] sm:$0xff]
      %v693 = vld [vmem:[%s278 + $0x498] sm:$0xff]
      %v694 = vld [vmem:[%s278 + $0x4a0] sm:$0xff]
      %v695 = vld [vmem:[%s278 + $0x4a8] sm:$0xff]
      %v696 = vld [vmem:[%s278 + $0x4b0] sm:$0xff]
      %v697 = vld [vmem:[%s278 + $0x4b8] sm:$0xff]
      %v698 = vld [vmem:[%s278 + $0x4c0] sm:$0xff]
      %v699 = vld [vmem:[%s278 + $0x4c8] sm:$0xff]
      %v700 = vld [vmem:[%s278 + $0x4d0] sm:$0xff]
      %v701 = vld [vmem:[%s278 + $0x4d8] sm:$0xff]
      %v702 = vld [vmem:[%s278 + $0x4e0] sm:$0xff]
      %v703 = vld [vmem:[%s278 + $0x4e8] sm:$0xff]
      %v704 = vld [vmem:[%s278 + $0x4f0] sm:$0xff]
      %v705 = vld [vmem:[%s278 + $0x4f8] sm:$0xff]
      %v706 = vld [vmem:[%s278 + $0x500] sm:$0xff]
      %v707 = vld [vmem:[%s278 + $0x508] sm:$0xff]
      %v708 = vld [vmem:[%s278 + $0x510] sm:$0xff]
      %v709 = vld [vmem:[%s278 + $0x518] sm:$0xff]
      %v710 = vld [vmem:[%s278 + $0x520] sm:$0xff]
      %v711 = vld [vmem:[%s278 + $0x528] sm:$0xff]
      %v712 = vld [vmem:[%s278 + $0x530] sm:$0xff]
      %v713 = vld [vmem:[%s278 + $0x538] sm:$0xff]
      %v714 = vld [vmem:[%s278 + $0x540] sm:$0xff]
      %v715 = vld [vmem:[%s278 + $0x548] sm:$0xff]
      %v716 = vld [vmem:[%s278 + $0x550] sm:$0xff]
      %v717 = vld [vmem:[%s278 + $0x558] sm:$0xff]
      %v718 = vld [vmem:[%s278 + $0x560] sm:$0xff]
      %v719 = vld [vmem:[%s278 + $0x568] sm:$0xff]
      %v720 = vld [vmem:[%s278 + $0x570] sm:$0xff]
      %v721 = vld [vmem:[%s278 + $0x578] sm:$0xff]
      %v722 = vld [vmem:[%s278 + $0x580] sm:$0xff]
      %v723 = vld [vmem:[%s278 + $0x588] sm:$0xff]
      %v724 = vld [vmem:[%s278 + $0x590] sm:$0xff]
      %v725 = vld [vmem:[%s278 + $0x598] sm:$0xff]
      %v726 = vld [vmem:[%s278 + $0x5a0] sm:$0xff]
      %v727 = vld [vmem:[%s278 + $0x5a8] sm:$0xff]
      %v728 = vld [vmem:[%s278 + $0x5b0] sm:$0xff]
      %v729 = vld [vmem:[%s278 + $0x5b8] sm:$0xff]
      %v730 = vld [vmem:[%s278 + $0x5c0] sm:$0xff]
      %v731 = vld [vmem:[%s278 + $0x5c8] sm:$0xff]
      %v732 = vld [vmem:[%s278 + $0x5d0] sm:$0xff]
      %v733 = vld [vmem:[%s278 + $0x5d8] sm:$0xff]
      %v734 = vld [vmem:[%s278 + $0x5e0] sm:$0xff]
      %v735 = vld [vmem:[%s278 + $0x5e8] sm:$0xff]
      %v736 = vld [vmem:[%s278 + $0x5f0] sm:$0xff]
      %v737 = vld [vmem:[%s278 + $0x5f8] sm:$0xff]
      %v738 = vld [vmem:[%s278 + $0x600] sm:$0xff]
      %v739 = vld [vmem:[%s278 + $0x608] sm:$0xff]
      %v740 = vld [vmem:[%s278 + $0x610] sm:$0xff]
      %v741 = vld [vmem:[%s278 + $0x618] sm:$0xff]
      %v742 = vld [vmem:[%s278 + $0x620] sm:$0xff]
      %v743 = vld [vmem:[%s278 + $0x628] sm:$0xff]
      %v744 = vld [vmem:[%s278 + $0x630] sm:$0xff]
      %v745 = vld [vmem:[%s278 + $0x638] sm:$0xff]
      %v746 = vld [vmem:[%s278 + $0x640] sm:$0xff]
      %v747 = vld [vmem:[%s278 + $0x648] sm:$0xff]
      %v748 = vld [vmem:[%s278 + $0x650] sm:$0xff]
      %v749 = vld [vmem:[%s278 + $0x658] sm:$0xff]
      %v750 = vld [vmem:[%s278 + $0x660] sm:$0xff]
      %v751 = vld [vmem:[%s278 + $0x668] sm:$0xff]
      %v752 = vld [vmem:[%s278 + $0x670] sm:$0xff]
      %v753 = vld [vmem:[%s278 + $0x678] sm:$0xff]
      %v754 = vld [vmem:[%s278 + $0x680] sm:$0xff]
      %v755 = vld [vmem:[%s278 + $0x688] sm:$0xff]
      %v756 = vld [vmem:[%s278 + $0x690] sm:$0xff]
      %v757 = vld [vmem:[%s278 + $0x698] sm:$0xff]
      %v758 = vld [vmem:[%s278 + $0x6a0] sm:$0xff]
      %v759 = vld [vmem:[%s278 + $0x6a8] sm:$0xff]
      %v760 = vld [vmem:[%s278 + $0x6b0] sm:$0xff]
      %v761 = vld [vmem:[%s278 + $0x6b8] sm:$0xff]
      %v762 = vld [vmem:[%s278 + $0x6c0] sm:$0xff]
      %v763 = vld [vmem:[%s278 + $0x6c8] sm:$0xff]
      %v764 = vld [vmem:[%s278 + $0x6d0] sm:$0xff]
      %v765 = vld [vmem:[%s278 + $0x6d8] sm:$0xff]
      %v766 = vld [vmem:[%s278 + $0x6e0] sm:$0xff]
      %v767 = vld [vmem:[%s278 + $0x6e8] sm:$0xff]
      %v768 = vld [vmem:[%s278 + $0x6f0] sm:$0xff]
      %v769 = vld [vmem:[%s278 + $0x6f8] sm:$0xff]
      %v770 = vld [vmem:[%s278 + $0x700] sm:$0xff]
      %v771 = vld [vmem:[%s278 + $0x708] sm:$0xff]
      %v772 = vld [vmem:[%s278 + $0x710] sm:$0xff]
      %v773 = vld [vmem:[%s278 + $0x718] sm:$0xff]
      %v774 = vld [vmem:[%s278 + $0x720] sm:$0xff]
      %v775 = vld [vmem:[%s278 + $0x728] sm:$0xff]
      %v776 = vld [vmem:[%s278 + $0x730] sm:$0xff]
      %v777 = vld [vmem:[%s278 + $0x738] sm:$0xff]
      %v778 = vld [vmem:[%s278 + $0x740] sm:$0xff]
      %v779 = vld [vmem:[%s278 + $0x748] sm:$0xff]
      %v780 = vld [vmem:[%s278 + $0x750] sm:$0xff]
      %v781 = vld [vmem:[%s278 + $0x758] sm:$0xff]
      %v782 = vld [vmem:[%s278 + $0x760] sm:$0xff]
      %v783 = vld [vmem:[%s278 + $0x768] sm:$0xff]
      %v784 = vld [vmem:[%s278 + $0x770] sm:$0xff]
      %v785 = vld [vmem:[%s278 + $0x778] sm:$0xff]
      %v786 = vld [vmem:[%s278 + $0x780] sm:$0xff]
      %v787 = vld [vmem:[%s278 + $0x788] sm:$0xff]
      %v788 = vld [vmem:[%s278 + $0x790] sm:$0xff]
      %v789 = vld [vmem:[%s278 + $0x798] sm:$0xff]
      %v790 = vld [vmem:[%s278 + $0x7a0] sm:$0xff]
      %v791 = vld [vmem:[%s278 + $0x7a8] sm:$0xff]
      %v792 = vld [vmem:[%s278 + $0x7b0] sm:$0xff]
      %v793 = vld [vmem:[%s278 + $0x7b8] sm:$0xff]
      %v794 = vld [vmem:[%s278 + $0x7c0] sm:$0xff]
      %v795 = vld [vmem:[%s278 + $0x7c8] sm:$0xff]
      %v796 = vld [vmem:[%s278 + $0x7d0] sm:$0xff]
      %v797 = vld [vmem:[%s278 + $0x7d8] sm:$0xff]
      %v798 = vld [vmem:[%s278 + $0x7e0] sm:$0xff]
      %v799 = vld [vmem:[%s278 + $0x7e8] sm:$0xff]
      %v800 = vld [vmem:[%s278 + $0x7f0] sm:$0xff]
      %v801 = vld [vmem:[%s278 + $0x7f8] sm:$0xff]
      %v802 = vld [vmem:[%s278 + $0x800] sm:$0xff]
      %v803 = vld [vmem:[%s278 + $0x808] sm:$0xff]
      %v804 = vld [vmem:[%s278 + $0x810] sm:$0xff]
      %v805 = vld [vmem:[%s278 + $0x818] sm:$0xff]
      %v806 = vld [vmem:[%s278 + $0x820] sm:$0xff]
      %v807 = vld [vmem:[%s278 + $0x828] sm:$0xff]
      %v808 = vld [vmem:[%s278 + $0x830] sm:$0xff]
      %v809 = vld [vmem:[%s278 + $0x838] sm:$0xff]
      %v810 = vld [vmem:[%s278 + $0x840] sm:$0xff]
      %v811 = vld [vmem:[%s278 + $0x848] sm:$0xff]
      %v812 = vld [vmem:[%s278 + $0x850] sm:$0xff]
      %v813 = vld [vmem:[%s278 + $0x858] sm:$0xff]
      %v814 = vld [vmem:[%s278 + $0x860] sm:$0xff]
      %v815 = vld [vmem:[%s278 + $0x868] sm:$0xff]
      %v816 = vld [vmem:[%s278 + $0x870] sm:$0xff]
      %v817 = vld [vmem:[%s278 + $0x878] sm:$0xff]
      %v818 = vld [vmem:[%s278 + $0x880] sm:$0xff]
      %v819 = vld [vmem:[%s278 + $0x888] sm:$0xff]
      %v820 = vld [vmem:[%s278 + $0x890] sm:$0xff]
      %v821 = vld [vmem:[%s278 + $0x898] sm:$0xff]
      %v822 = vld [vmem:[%s278 + $0x8a0] sm:$0xff]
      %v823 = vld [vmem:[%s278 + $0x8a8] sm:$0xff]
      %v824 = vld [vmem:[%s278 + $0x8b0] sm:$0xff]
      %v825 = vld [vmem:[%s278 + $0x8b8] sm:$0xff]
      %v826 = vld [vmem:[%s278 + $0x8c0] sm:$0xff]
      %v827 = vld [vmem:[%s278 + $0x8c8] sm:$0xff]
      %v828 = vld [vmem:[%s278 + $0x8d0] sm:$0xff]
      %v829 = vld [vmem:[%s278 + $0x8d8] sm:$0xff]
      %v830 = vld [vmem:[%s278 + $0x8e0] sm:$0xff]
      %v831 = vld [vmem:[%s278 + $0x8e8] sm:$0xff]
      %v832 = vld [vmem:[%s278 + $0x8f0] sm:$0xff]
      %v833 = vld [vmem:[%s278 + $0x8f8] sm:$0xff]
      %v834 = vld [vmem:[%s278 + $0x900] sm:$0xff]
      %v835 = vld [vmem:[%s278 + $0x908] sm:$0xff]
      %v836 = vld [vmem:[%s278 + $0x910] sm:$0xff]
      %v837 = vld [vmem:[%s278 + $0x918] sm:$0xff]
      %v838 = vld [vmem:[%s278 + $0x920] sm:$0xff]
      %v839 = vld [vmem:[%s278 + $0x928] sm:$0xff]
      %v840 = vld [vmem:[%s278 + $0x930] sm:$0xff]
      %v841 = vld [vmem:[%s278 + $0x938] sm:$0xff]
      %v842 = vld [vmem:[%s278 + $0x940] sm:$0xff]
      %v843 = vld [vmem:[%s278 + $0x948] sm:$0xff]
      %v844 = vld [vmem:[%s278 + $0x950] sm:$0xff]
      %v845 = vld [vmem:[%s278 + $0x958] sm:$0xff]
      %v846 = vld [vmem:[%s278 + $0x960] sm:$0xff]
      %v847 = vld [vmem:[%s278 + $0x968] sm:$0xff]
      %v848 = vld [vmem:[%s278 + $0x970] sm:$0xff]
      %v849 = vld [vmem:[%s278 + $0x978] sm:$0xff]
      %v850 = vld [vmem:[%s278 + $0x980] sm:$0xff]
      %v851 = vld [vmem:[%s278 + $0x988] sm:$0xff]
      %v852 = vld [vmem:[%s278 + $0x990] sm:$0xff]
      %v853 = vld [vmem:[%s278 + $0x998] sm:$0xff]
      %v854 = vld [vmem:[%s278 + $0x9a0] sm:$0xff]
      %v855 = vld [vmem:[%s278 + $0x9a8] sm:$0xff]
      %v856 = vld [vmem:[%s278 + $0x9b0] sm:$0xff]
      %v857 = vld [vmem:[%s278 + $0x9b8] sm:$0xff]
      %v858 = vld [vmem:[%s278 + $0x9c0] sm:$0xff]
      %v859 = vld [vmem:[%s278 + $0x9c8] sm:$0xff]
      %v860 = vld [vmem:[%s278 + $0x9d0] sm:$0xff]
      %v861 = vld [vmem:[%s278 + $0x9d8] sm:$0xff]
      %v862 = vld [vmem:[%s278 + $0x9e0] sm:$0xff]
      %v863 = vld [vmem:[%s278 + $0x9e8] sm:$0xff]
      %v864 = vld [vmem:[%s278 + $0x9f0] sm:$0xff]
      %v865 = vld [vmem:[%s278 + $0x9f8] sm:$0xff]
      %v866 = vld [vmem:[%s278 + $0xa00] sm:$0xff]
      %v867 = vld [vmem:[%s278 + $0xa08] sm:$0xff]
      %v868 = vld [vmem:[%s278 + $0xa10] sm:$0xff]
      %v869 = vld [vmem:[%s278 + $0xa18] sm:$0xff]
      %v870 = vld [vmem:[%s278 + $0xa20] sm:$0xff]
      %v871 = vld [vmem:[%s278 + $0xa28] sm:$0xff]
      %v872 = vld [vmem:[%s278 + $0xa30] sm:$0xff]
      %v873 = vld [vmem:[%s278 + $0xa38] sm:$0xff]
      %v874 = vld [vmem:[%s278 + $0xa40] sm:$0xff]
      %v875 = vld [vmem:[%s278 + $0xa48] sm:$0xff]
      %v876 = vld [vmem:[%s278 + $0xa50] sm:$0xff]
      %v877 = vld [vmem:[%s278 + $0xa58] sm:$0xff]
      %v878 = vld [vmem:[%s278 + $0xa60] sm:$0xff]
      %v879 = vld [vmem:[%s278 + $0xa68] sm:$0xff]
      %v880 = vld [vmem:[%s278 + $0xa70] sm:$0xff]
      %v881 = vld [vmem:[%s278 + $0xa78] sm:$0xff]
      %v882 = vld [vmem:[%s278 + $0xa80] sm:$0xff]
      %v883 = vld [vmem:[%s278 + $0xa88] sm:$0xff]
      %v884 = vld [vmem:[%s278 + $0xa90] sm:$0xff]
      %v885 = vld [vmem:[%s278 + $0xa98] sm:$0xff]
      %v886 = vld [vmem:[%s278 + $0xaa0] sm:$0xff]
      %v887 = vld [vmem:[%s278 + $0xaa8] sm:$0xff]
      %v888 = vld [vmem:[%s278 + $0xab0] sm:$0xff]
      %v889 = vld [vmem:[%s278 + $0xab8] sm:$0xff]
      %v890 = vld [vmem:[%s278 + $0xac0] sm:$0xff]
      %v891 = vld [vmem:[%s278 + $0xac8] sm:$0xff]
      %v892 = vld [vmem:[%s278 + $0xad0] sm:$0xff]
      %v893 = vld [vmem:[%s278 + $0xad8] sm:$0xff]
      %v894 = vld [vmem:[%s278 + $0xae0] sm:$0xff]
      %v895 = vld [vmem:[%s278 + $0xae8] sm:$0xff]
      %v896 = vld [vmem:[%s278 + $0xaf0] sm:$0xff]
      %v897 = vld [vmem:[%s278 + $0xaf8] sm:$0xff]
      %v898 = vld [vmem:[%s278 + $0xb00] sm:$0xff]
      %v899 = vld [vmem:[%s278 + $0xb08] sm:$0xff]
      %v900 = vld [vmem:[%s278 + $0xb10] sm:$0xff]
      %v901 = vld [vmem:[%s278 + $0xb18] sm:$0xff]
      %v902 = vld [vmem:[%s278 + $0xb20] sm:$0xff]
      %v903 = vld [vmem:[%s278 + $0xb28] sm:$0xff]
      %v904 = vld [vmem:[%s278 + $0xb30] sm:$0xff]
      %v905 = vld [vmem:[%s278 + $0xb38] sm:$0xff]
      %v906 = vld [vmem:[%s278 + $0xb40] sm:$0xff]
      %v907 = vld [vmem:[%s278 + $0xb48] sm:$0xff]
      %v908 = vld [vmem:[%s278 + $0xb50] sm:$0xff]
      %v909 = vld [vmem:[%s278 + $0xb58] sm:$0xff]
      %v910 = vld [vmem:[%s278 + $0xb60] sm:$0xff]
      %v911 = vld [vmem:[%s278 + $0xb68] sm:$0xff]
      %v912 = vld [vmem:[%s278 + $0xb70] sm:$0xff]
      %v913 = vld [vmem:[%s278 + $0xb78] sm:$0xff]
      %v914 = vld [vmem:[%s278 + $0xb80] sm:$0xff]
      %v915 = vld [vmem:[%s278 + $0xb88] sm:$0xff]
      %v916 = vld [vmem:[%s278 + $0xb90] sm:$0xff]
      %v917 = vld [vmem:[%s278 + $0xb98] sm:$0xff]
      %v918 = vld [vmem:[%s278 + $0xba0] sm:$0xff]
      %v919 = vld [vmem:[%s278 + $0xba8] sm:$0xff]
      %v920 = vld [vmem:[%s278 + $0xbb0] sm:$0xff]
      %v921 = vld [vmem:[%s278 + $0xbb8] sm:$0xff]
      %v922 = vld [vmem:[%s278 + $0xbc0] sm:$0xff]
      %v923 = vld [vmem:[%s278 + $0xbc8] sm:$0xff]
      %v924 = vld [vmem:[%s278 + $0xbd0] sm:$0xff]
      %v925 = vld [vmem:[%s278 + $0xbd8] sm:$0xff]
      %v926 = vld [vmem:[%s278 + $0xbe0] sm:$0xff]
      %v927 = vld [vmem:[%s278 + $0xbe8] sm:$0xff]
      %v928 = vld [vmem:[%s278 + $0xbf0] sm:$0xff]
      %v929 = vld [vmem:[%s278 + $0xbf8] sm:$0xff]
      %v930 = vld [vmem:[%s278 + $0xc00] sm:$0xff]
      %v931 = vld [vmem:[%s278 + $0xc08] sm:$0xff]
      %v932 = vld [vmem:[%s278 + $0xc10] sm:$0xff]
      %v933 = vld [vmem:[%s278 + $0xc18] sm:$0xff]
      %v934 = vld [vmem:[%s278 + $0xc20] sm:$0xff]
      %v935 = vld [vmem:[%s278 + $0xc28] sm:$0xff]
      %v936 = vld [vmem:[%s278 + $0xc30] sm:$0xff]
      %v937 = vld [vmem:[%s278 + $0xc38] sm:$0xff]
      %v938 = vld [vmem:[%s278 + $0xc40] sm:$0xff]
      %v939 = vld [vmem:[%s278 + $0xc48] sm:$0xff]
      %v940 = vld [vmem:[%s278 + $0xc50] sm:$0xff]
      %v941 = vld [vmem:[%s278 + $0xc58] sm:$0xff]
      %v942 = vld [vmem:[%s278 + $0xc60] sm:$0xff]
      %v943 = vld [vmem:[%s278 + $0xc68] sm:$0xff]
      %v944 = vld [vmem:[%s278 + $0xc70] sm:$0xff]
      %v945 = vld [vmem:[%s278 + $0xc78] sm:$0xff]
      %v946 = vld [vmem:[%s278 + $0xc80] sm:$0xff]
      %v947 = vld [vmem:[%s278 + $0xc88] sm:$0xff]
      %v948 = vld [vmem:[%s278 + $0xc90] sm:$0xff]
      %v949 = vld [vmem:[%s278 + $0xc98] sm:$0xff]
      %v950 = vld [vmem:[%s278 + $0xca0] sm:$0xff]
      %v951 = vld [vmem:[%s278 + $0xca8] sm:$0xff]
      %v952 = vld [vmem:[%s278 + $0xcb0] sm:$0xff]
      %v953 = vld [vmem:[%s278 + $0xcb8] sm:$0xff]
      %v954 = vld [vmem:[%s278 + $0xcc0] sm:$0xff]
      %v955 = vld [vmem:[%s278 + $0xcc8] sm:$0xff]
      %v956 = vld [vmem:[%s278 + $0xcd0] sm:$0xff]
      %v957 = vld [vmem:[%s278 + $0xcd8] sm:$0xff]
      %v958 = vld [vmem:[%s278 + $0xce0] sm:$0xff]
      %v959 = vld [vmem:[%s278 + $0xce8] sm:$0xff]
      %v960 = vld [vmem:[%s278 + $0xcf0] sm:$0xff]
      %v961 = vld [vmem:[%s278 + $0xcf8] sm:$0xff]
      %v962 = vld [vmem:[%s278 + $0xd00] sm:$0xff]
      %v963 = vld [vmem:[%s278 + $0xd08] sm:$0xff]
      %v964 = vld [vmem:[%s278 + $0xd10] sm:$0xff]
      %v965 = vld [vmem:[%s278 + $0xd18] sm:$0xff]
      %v966 = vld [vmem:[%s278 + $0xd20] sm:$0xff]
      %v967 = vld [vmem:[%s278 + $0xd28] sm:$0xff]
      %v968 = vld [vmem:[%s278 + $0xd30] sm:$0xff]
      %v969 = vld [vmem:[%s278 + $0xd38] sm:$0xff]
      %v970 = vld [vmem:[%s278 + $0xd40] sm:$0xff]
      %v971 = vld [vmem:[%s278 + $0xd48] sm:$0xff]
      %v972 = vld [vmem:[%s278 + $0xd50] sm:$0xff]
      %v973 = vld [vmem:[%s278 + $0xd58] sm:$0xff]
      %v974 = vld [vmem:[%s278 + $0xd60] sm:$0xff]
      %v975 = vld [vmem:[%s278 + $0xd68] sm:$0xff]
      %v976 = vld [vmem:[%s278 + $0xd70] sm:$0xff]
      %v977 = vld [vmem:[%s278 + $0xd78] sm:$0xff]
      %v978 = vld [vmem:[%s278 + $0xd80] sm:$0xff]
      %v979 = vld [vmem:[%s278 + $0xd88] sm:$0xff]
      %v980 = vld [vmem:[%s278 + $0xd90] sm:$0xff]
      %v981 = vld [vmem:[%s278 + $0xd98] sm:$0xff]
      %v982 = vld [vmem:[%s278 + $0xda0] sm:$0xff]
      %v983 = vld [vmem:[%s278 + $0xda8] sm:$0xff]
      %v984 = vld [vmem:[%s278 + $0xdb0] sm:$0xff]
      %v985 = vld [vmem:[%s278 + $0xdb8] sm:$0xff]
      %v986 = vld [vmem:[%s278 + $0xdc0] sm:$0xff]
      %v987 = vld [vmem:[%s278 + $0xdc8] sm:$0xff]
      %v988 = vld [vmem:[%s278 + $0xdd0] sm:$0xff]
      %v989 = vld [vmem:[%s278 + $0xdd8] sm:$0xff]
      %v990 = vld [vmem:[%s278 + $0xde0] sm:$0xff]
      %v991 = vld [vmem:[%s278 + $0xde8] sm:$0xff]
      %v992 = vld [vmem:[%s278 + $0xdf0] sm:$0xff]
      %v993 = vld [vmem:[%s278 + $0xdf8] sm:$0xff]
      %v994 = vpack.c.bf16 %v553, %v546
      %v995 = vpack.c.bf16 %v554, %v547
      %v996 = vpack.c.bf16 %v555, %v548
      %v997 = vpack.c.bf16 %v556, %v549
      %v998 = vpack.c.bf16 %v557, %v550
      %v999 = vpack.c.bf16 %v558, %v551
      %v1000 = vpack.c.bf16 %v559, %v552
      %v1001 = vpack.c.bf16 %v567, %v560
      %v1002 = vpack.c.bf16 %v568, %v561
      %v1003 = vpack.c.bf16 %v569, %v562
      %v1004 = vpack.c.bf16 %v570, %v563
      %v1005 = vpack.c.bf16 %v571, %v564
      %v1006 = vpack.c.bf16 %v572, %v565
      %v1007 = vpack.c.bf16 %v573, %v566
      %v1008 = vpack.c.bf16 %v581, %v574
      %v1009 = vpack.c.bf16 %v582, %v575
      %v1010 = vpack.c.bf16 %v583, %v576
      %v1011 = vpack.c.bf16 %v584, %v577
      %v1012 = vpack.c.bf16 %v585, %v578
      %v1013 = vpack.c.bf16 %v586, %v579
      %v1014 = vpack.c.bf16 %v587, %v580
      %v1015 = vpack.c.bf16 %v595, %v588
      %v1016 = vpack.c.bf16 %v596, %v589
      %v1017 = vpack.c.bf16 %v597, %v590
      %v1018 = vpack.c.bf16 %v598, %v591
      %v1019 = vpack.c.bf16 %v599, %v592
      %v1020 = vpack.c.bf16 %v600, %v593
      %v1021 = vpack.c.bf16 %v601, %v594
      %v1022 = vpack.c.bf16 %v609, %v602
      %v1023 = vpack.c.bf16 %v610, %v603
      %v1024 = vpack.c.bf16 %v611, %v604
      %v1025 = vpack.c.bf16 %v612, %v605
      %v1026 = vpack.c.bf16 %v613, %v606
      %v1027 = vpack.c.bf16 %v614, %v607
      %v1028 = vpack.c.bf16 %v615, %v608
      %v1029 = vpack.c.bf16 %v623, %v616
      %v1030 = vpack.c.bf16 %v624, %v617
      %v1031 = vpack.c.bf16 %v625, %v618
      %v1032 = vpack.c.bf16 %v626, %v619
      %v1033 = vpack.c.bf16 %v627, %v620
      %v1034 = vpack.c.bf16 %v628, %v621
      %v1035 = vpack.c.bf16 %v629, %v622
      %v1036 = vpack.c.bf16 %v637, %v630
      %v1037 = vpack.c.bf16 %v638, %v631
      %v1038 = vpack.c.bf16 %v639, %v632
      %v1039 = vpack.c.bf16 %v640, %v633
      %v1040 = vpack.c.bf16 %v641, %v634
      %v1041 = vpack.c.bf16 %v642, %v635
      %v1042 = vpack.c.bf16 %v643, %v636
      %v1043 = vpack.c.bf16 %v651, %v644
      %v1044 = vpack.c.bf16 %v652, %v645
      %v1045 = vpack.c.bf16 %v653, %v646
      %v1046 = vpack.c.bf16 %v654, %v647
      %v1047 = vpack.c.bf16 %v655, %v648
      %v1048 = vpack.c.bf16 %v656, %v649
      %v1049 = vpack.c.bf16 %v657, %v650
      %v1050 = vpack.c.bf16 %v665, %v658
      %v1051 = vpack.c.bf16 %v666, %v659
      %v1052 = vpack.c.bf16 %v667, %v660
      %v1053 = vpack.c.bf16 %v668, %v661
      %v1054 = vpack.c.bf16 %v669, %v662
      %v1055 = vpack.c.bf16 %v670, %v663
      %v1056 = vpack.c.bf16 %v671, %v664
      %v1057 = vpack.c.bf16 %v679, %v672
      %v1058 = vpack.c.bf16 %v680, %v673
      %v1059 = vpack.c.bf16 %v681, %v674
      %v1060 = vpack.c.bf16 %v682, %v675
      %v1061 = vpack.c.bf16 %v683, %v676
      %v1062 = vpack.c.bf16 %v684, %v677
      %v1063 = vpack.c.bf16 %v685, %v678
      %v1064 = vpack.c.bf16 %v693, %v686
      %v1065 = vpack.c.bf16 %v694, %v687
      %v1066 = vpack.c.bf16 %v695, %v688
      %v1067 = vpack.c.bf16 %v696, %v689
      %v1068 = vpack.c.bf16 %v697, %v690
      %v1069 = vpack.c.bf16 %v698, %v691
      %v1070 = vpack.c.bf16 %v699, %v692
      %v1071 = vpack.c.bf16 %v707, %v700
      %v1072 = vpack.c.bf16 %v708, %v701
      %v1073 = vpack.c.bf16 %v709, %v702
      %v1074 = vpack.c.bf16 %v710, %v703
      %v1075 = vpack.c.bf16 %v711, %v704
      %v1076 = vpack.c.bf16 %v712, %v705
      %v1077 = vpack.c.bf16 %v713, %v706
      %v1078 = vpack.c.bf16 %v721, %v714
      %v1079 = vpack.c.bf16 %v722, %v715
      %v1080 = vpack.c.bf16 %v723, %v716
      %v1081 = vpack.c.bf16 %v724, %v717
      %v1082 = vpack.c.bf16 %v725, %v718
      %v1083 = vpack.c.bf16 %v726, %v719
      %v1084 = vpack.c.bf16 %v727, %v720
      %v1085 = vpack.c.bf16 %v735, %v728
      %v1086 = vpack.c.bf16 %v736, %v729
      %v1087 = vpack.c.bf16 %v737, %v730
      %v1088 = vpack.c.bf16 %v738, %v731
      %v1089 = vpack.c.bf16 %v739, %v732
      %v1090 = vpack.c.bf16 %v740, %v733
      %v1091 = vpack.c.bf16 %v741, %v734
      %v1092 = vpack.c.bf16 %v749, %v742
      %v1093 = vpack.c.bf16 %v750, %v743
      %v1094 = vpack.c.bf16 %v751, %v744
      %v1095 = vpack.c.bf16 %v752, %v745
      %v1096 = vpack.c.bf16 %v753, %v746
      %v1097 = vpack.c.bf16 %v754, %v747
      %v1098 = vpack.c.bf16 %v755, %v748
      %v1099 = vpack.c.bf16 %v763, %v756
      %v1100 = vpack.c.bf16 %v764, %v757
      %v1101 = vpack.c.bf16 %v765, %v758
      %v1102 = vpack.c.bf16 %v766, %v759
      %v1103 = vpack.c.bf16 %v767, %v760
      %v1104 = vpack.c.bf16 %v768, %v761
      %v1105 = vpack.c.bf16 %v769, %v762
      %v1106 = vpack.c.bf16 %v777, %v770
      %v1107 = vpack.c.bf16 %v778, %v771
      %v1108 = vpack.c.bf16 %v779, %v772
      %v1109 = vpack.c.bf16 %v780, %v773
      %v1110 = vpack.c.bf16 %v781, %v774
      %v1111 = vpack.c.bf16 %v782, %v775
      %v1112 = vpack.c.bf16 %v783, %v776
      %v1113 = vpack.c.bf16 %v791, %v784
      %v1114 = vpack.c.bf16 %v792, %v785
      %v1115 = vpack.c.bf16 %v793, %v786
      %v1116 = vpack.c.bf16 %v794, %v787
      %v1117 = vpack.c.bf16 %v795, %v788
      %v1118 = vpack.c.bf16 %v796, %v789
      %v1119 = vpack.c.bf16 %v797, %v790
      %v1120 = vpack.c.bf16 %v805, %v798
      %v1121 = vpack.c.bf16 %v806, %v799
      %v1122 = vpack.c.bf16 %v807, %v800
      %v1123 = vpack.c.bf16 %v808, %v801
      %v1124 = vpack.c.bf16 %v809, %v802
      %v1125 = vpack.c.bf16 %v810, %v803
      %v1126 = vpack.c.bf16 %v811, %v804
      %v1127 = vpack.c.bf16 %v819, %v812
      %v1128 = vpack.c.bf16 %v820, %v813
      %v1129 = vpack.c.bf16 %v821, %v814
      %v1130 = vpack.c.bf16 %v822, %v815
      %v1131 = vpack.c.bf16 %v823, %v816
      %v1132 = vpack.c.bf16 %v824, %v817
      %v1133 = vpack.c.bf16 %v825, %v818
      %v1134 = vpack.c.bf16 %v833, %v826
      %v1135 = vpack.c.bf16 %v834, %v827
      %v1136 = vpack.c.bf16 %v835, %v828
      %v1137 = vpack.c.bf16 %v836, %v829
      %v1138 = vpack.c.bf16 %v837, %v830
      %v1139 = vpack.c.bf16 %v838, %v831
      %v1140 = vpack.c.bf16 %v839, %v832
      %v1141 = vpack.c.bf16 %v847, %v840
      %v1142 = vpack.c.bf16 %v848, %v841
      %v1143 = vpack.c.bf16 %v849, %v842
      %v1144 = vpack.c.bf16 %v850, %v843
      %v1145 = vpack.c.bf16 %v851, %v844
      %v1146 = vpack.c.bf16 %v852, %v845
      %v1147 = vpack.c.bf16 %v853, %v846
      %v1148 = vpack.c.bf16 %v861, %v854
      %v1149 = vpack.c.bf16 %v862, %v855
      %v1150 = vpack.c.bf16 %v863, %v856
      %v1151 = vpack.c.bf16 %v864, %v857
      %v1152 = vpack.c.bf16 %v865, %v858
      %v1153 = vpack.c.bf16 %v866, %v859
      %v1154 = vpack.c.bf16 %v867, %v860
      %v1155 = vpack.c.bf16 %v875, %v868
      %v1156 = vpack.c.bf16 %v876, %v869
      %v1157 = vpack.c.bf16 %v877, %v870
      %v1158 = vpack.c.bf16 %v878, %v871
      %v1159 = vpack.c.bf16 %v879, %v872
      %v1160 = vpack.c.bf16 %v880, %v873
      %v1161 = vpack.c.bf16 %v881, %v874
      %v1162 = vpack.c.bf16 %v889, %v882
      %v1163 = vpack.c.bf16 %v890, %v883
      %v1164 = vpack.c.bf16 %v891, %v884
      %v1165 = vpack.c.bf16 %v892, %v885
      %v1166 = vpack.c.bf16 %v893, %v886
      %v1167 = vpack.c.bf16 %v894, %v887
      %v1168 = vpack.c.bf16 %v895, %v888
      %v1169 = vpack.c.bf16 %v903, %v896
      %v1170 = vpack.c.bf16 %v904, %v897
      %v1171 = vpack.c.bf16 %v905, %v898
      %v1172 = vpack.c.bf16 %v906, %v899
      %v1173 = vpack.c.bf16 %v907, %v900
      %v1174 = vpack.c.bf16 %v908, %v901
      %v1175 = vpack.c.bf16 %v909, %v902
      %v1176 = vpack.c.bf16 %v917, %v910
      %v1177 = vpack.c.bf16 %v918, %v911
      %v1178 = vpack.c.bf16 %v919, %v912
      %v1179 = vpack.c.bf16 %v920, %v913
      %v1180 = vpack.c.bf16 %v921, %v914
      %v1181 = vpack.c.bf16 %v922, %v915
      %v1182 = vpack.c.bf16 %v923, %v916
      %v1183 = vpack.c.bf16 %v931, %v924
      %v1184 = vpack.c.bf16 %v932, %v925
      %v1185 = vpack.c.bf16 %v933, %v926
      %v1186 = vpack.c.bf16 %v934, %v927
      %v1187 = vpack.c.bf16 %v935, %v928
      %v1188 = vpack.c.bf16 %v936, %v929
      %v1189 = vpack.c.bf16 %v937, %v930
      %v1190 = vpack.c.bf16 %v945, %v938
      %v1191 = vpack.c.bf16 %v946, %v939
      %v1192 = vpack.c.bf16 %v947, %v940
      %v1193 = vpack.c.bf16 %v948, %v941
      %v1194 = vpack.c.bf16 %v949, %v942
      %v1195 = vpack.c.bf16 %v950, %v943
      %v1196 = vpack.c.bf16 %v951, %v944
      %v1197 = vpack.c.bf16 %v959, %v952
      %v1198 = vpack.c.bf16 %v960, %v953
      %v1199 = vpack.c.bf16 %v961, %v954
      %v1200 = vpack.c.bf16 %v962, %v955
      %v1201 = vpack.c.bf16 %v963, %v956
      %v1202 = vpack.c.bf16 %v964, %v957
      %v1203 = vpack.c.bf16 %v965, %v958
      %v1204 = vpack.c.bf16 %v973, %v966
      %v1205 = vpack.c.bf16 %v974, %v967
      %v1206 = vpack.c.bf16 %v975, %v968
      %v1207 = vpack.c.bf16 %v976, %v969
      %v1208 = vpack.c.bf16 %v977, %v970
      %v1209 = vpack.c.bf16 %v978, %v971
      %v1210 = vpack.c.bf16 %v979, %v972
      %v1211 = vpack.c.bf16 %v987, %v980
      %v1212 = vpack.c.bf16 %v988, %v981
      %v1213 = vpack.c.bf16 %v989, %v982
      %v1214 = vpack.c.bf16 %v990, %v983
      %v1215 = vpack.c.bf16 %v991, %v984
      %v1216 = vpack.c.bf16 %v992, %v985
      %v1217 = vpack.c.bf16 %v993, %v986
      %v1218 = vld [vmem:[%s2] sm:$0xf]
      %v1220 = vlaneseq
      %v1221 = vshrl.u32 %v1220, 7
      %v1222 = vsub.s32 0, %v1221
      %v1223 = vrot.slane %v1218, %v1222
      %v1224 = vlaneseq
      %v1225 = vshrl.u32 %v1224, 7
      %v1226 = vsub.s32 1, %v1225
      %v1227 = vrot.slane %v1218, %v1226
      %v1228 = vlaneseq
      %v1229 = vshrl.u32 %v1228, 7
      %v1230 = vsub.s32 2, %v1229
      %v1231 = vrot.slane %v1218, %v1230
      %v1232 = vlaneseq
      %v1233 = vshrl.u32 %v1232, 7
      %v1234 = vsub.s32 3, %v1233
      %v1235 = vrot.slane %v1218, %v1234
      %v1436 = vunpack.c.l.b16 %v286
      %v1437 = vunpack.c.h.b16 %v286
      %v1438 = vunpack.c.l.b16 %v287
      %v1439 = vunpack.c.h.b16 %v287
      %v1440 = vunpack.c.l.b16 %v288
      %v1441 = vunpack.c.h.b16 %v288
      %v1442 = vunpack.c.l.b16 %v289
      %v1443 = vunpack.c.h.b16 %v289
      %v1444 = vunpack.c.l.b16 %v290
      %v1445 = vunpack.c.h.b16 %v290
      %v1446 = vunpack.c.l.b16 %v291
      %v1447 = vunpack.c.h.b16 %v291
      %v1448 = vunpack.c.l.b16 %v292
      %v1449 = vunpack.c.h.b16 %v292
      %v1450 = vunpack.c.l.b16 %v293
      %v1451 = vunpack.c.h.b16 %v293
      %v1452 = vunpack.c.l.b16 %v294
      %v1453 = vunpack.c.h.b16 %v294
      %v1454 = vunpack.c.l.b16 %v295
      %v1455 = vunpack.c.h.b16 %v295
      %v1456 = vunpack.c.l.b16 %v296
      %v1457 = vunpack.c.h.b16 %v296
      %v1458 = vunpack.c.l.b16 %v297
      %v1459 = vunpack.c.h.b16 %v297
      %v1460 = vunpack.c.l.b16 %v298
      %v1461 = vunpack.c.h.b16 %v298
      %v1462 = vunpack.c.l.b16 %v299
      %v1463 = vunpack.c.h.b16 %v299
      %v1464 = vunpack.c.l.b16 %v300
      %v1465 = vunpack.c.h.b16 %v300
      %v1466 = vunpack.c.l.b16 %v301
      %v1467 = vunpack.c.h.b16 %v301
      %v1468 = vunpack.c.l.b16 %v302
      %v1469 = vunpack.c.h.b16 %v302
      %v1470 = vunpack.c.l.b16 %v303
      %v1471 = vunpack.c.h.b16 %v303
      %v1472 = vunpack.c.l.b16 %v304
      %v1473 = vunpack.c.h.b16 %v304
      %v1474 = vunpack.c.l.b16 %v305
      %v1475 = vunpack.c.h.b16 %v305
      %v1476 = vunpack.c.l.b16 %v306
      %v1477 = vunpack.c.h.b16 %v306
      %v1478 = vunpack.c.l.b16 %v307
      %v1479 = vunpack.c.h.b16 %v307
      %v1480 = vunpack.c.l.b16 %v308
      %v1481 = vunpack.c.h.b16 %v308
      %v1482 = vunpack.c.l.b16 %v309
      %v1483 = vunpack.c.h.b16 %v309
      %v1484 = vunpack.c.l.b16 %v310
      %v1485 = vunpack.c.h.b16 %v310
      %v1486 = vunpack.c.l.b16 %v311
      %v1487 = vunpack.c.h.b16 %v311
      %v1488 = vunpack.c.l.b16 %v312
      %v1489 = vunpack.c.h.b16 %v312
      %v1490 = vunpack.c.l.b16 %v313
      %v1491 = vunpack.c.h.b16 %v313
      %v1492 = vunpack.c.l.b16 %v314
      %v1493 = vunpack.c.h.b16 %v314
      %v1494 = vunpack.c.l.b16 %v315
      %v1495 = vunpack.c.h.b16 %v315
      %v1496 = vunpack.c.l.b16 %v316
      %v1497 = vunpack.c.h.b16 %v316
      %v1498 = vunpack.c.l.b16 %v317
      %v1499 = vunpack.c.h.b16 %v317
      %v1500 = vunpack.c.l.b16 %v318
      %v1501 = vunpack.c.h.b16 %v318
      %v1502 = vunpack.c.l.b16 %v319
      %v1503 = vunpack.c.h.b16 %v319
      %v1504 = vunpack.c.l.b16 %v320
      %v1505 = vunpack.c.h.b16 %v320
      %v1506 = vunpack.c.l.b16 %v321
      %v1507 = vunpack.c.h.b16 %v321
      %v1508 = vunpack.c.l.b16 %v322
      %v1509 = vunpack.c.h.b16 %v322
      %v1510 = vunpack.c.l.b16 %v323
      %v1511 = vunpack.c.h.b16 %v323
      %v1512 = vunpack.c.l.b16 %v324
      %v1513 = vunpack.c.h.b16 %v324
      %v1514 = vunpack.c.l.b16 %v325
      %v1515 = vunpack.c.h.b16 %v325
      %v1516 = vunpack.c.l.b16 %v326
      %v1517 = vunpack.c.h.b16 %v326
      %v1518 = vunpack.c.l.b16 %v327
      %v1519 = vunpack.c.h.b16 %v327
      %v1520 = vunpack.c.l.b16 %v328
      %v1521 = vunpack.c.h.b16 %v328
      %v1522 = vunpack.c.l.b16 %v329
      %v1523 = vunpack.c.h.b16 %v329
      %v1524 = vunpack.c.l.b16 %v330
      %v1525 = vunpack.c.h.b16 %v330
      %v1526 = vunpack.c.l.b16 %v331
      %v1527 = vunpack.c.h.b16 %v331
      %v1528 = vunpack.c.l.b16 %v332
      %v1529 = vunpack.c.h.b16 %v332
      %v1530 = vunpack.c.l.b16 %v333
      %v1531 = vunpack.c.h.b16 %v333
      %v1532 = vunpack.c.l.b16 %v334
      %v1533 = vunpack.c.h.b16 %v334
      %v1534 = vunpack.c.l.b16 %v335
      %v1535 = vunpack.c.h.b16 %v335
      %v1536 = vunpack.c.l.b16 %v336
      %v1537 = vunpack.c.h.b16 %v336
      %v1538 = vunpack.c.l.b16 %v337
      %v1539 = vunpack.c.h.b16 %v337
      %v1540 = vunpack.c.l.b16 %v338
      %v1541 = vunpack.c.h.b16 %v338
      %v1542 = vunpack.c.l.b16 %v339
      %v1543 = vunpack.c.h.b16 %v339
      %v1544 = vunpack.c.l.b16 %v340
      %v1545 = vunpack.c.h.b16 %v340
      %v1546 = vunpack.c.l.b16 %v341
      %v1547 = vunpack.c.h.b16 %v341
      %v1548 = vunpack.c.l.b16 %v342
      %v1549 = vunpack.c.h.b16 %v342
      %v1550 = vunpack.c.l.b16 %v343
      %v1551 = vunpack.c.h.b16 %v343
      %v1552 = vunpack.c.l.b16 %v344
      %v1553 = vunpack.c.h.b16 %v344
      %v1554 = vunpack.c.l.b16 %v345
      %v1555 = vunpack.c.h.b16 %v345
      %v1556 = vunpack.c.l.b16 %v346
      %v1557 = vunpack.c.h.b16 %v346
      %v1558 = vunpack.c.l.b16 %v347
      %v1559 = vunpack.c.h.b16 %v347
      %v1560 = vunpack.c.l.b16 %v348
      %v1561 = vunpack.c.h.b16 %v348
      %v1562 = vunpack.c.l.b16 %v349
      %v1563 = vunpack.c.h.b16 %v349
      %v1564 = vunpack.c.l.b16 %v350
      %v1565 = vunpack.c.h.b16 %v350
      %v1566 = vunpack.c.l.b16 %v351
      %v1567 = vunpack.c.h.b16 %v351
      %v1568 = vunpack.c.l.b16 %v352
      %v1569 = vunpack.c.h.b16 %v352
      %v1570 = vunpack.c.l.b16 %v353
      %v1571 = vunpack.c.h.b16 %v353
      %v1572 = vunpack.c.l.b16 %v354
      %v1573 = vunpack.c.h.b16 %v354
      %v1574 = vunpack.c.l.b16 %v355
      %v1575 = vunpack.c.h.b16 %v355
      %v1576 = vunpack.c.l.b16 %v356
      %v1577 = vunpack.c.h.b16 %v356
      %v1578 = vunpack.c.l.b16 %v357
      %v1579 = vunpack.c.h.b16 %v357
      %v1580 = vunpack.c.l.b16 %v358
      %v1581 = vunpack.c.h.b16 %v358
      %v1582 = vunpack.c.l.b16 %v359
      %v1583 = vunpack.c.h.b16 %v359
      %v1584 = vunpack.c.l.b16 %v360
      %v1585 = vunpack.c.h.b16 %v360
      %v1586 = vunpack.c.l.b16 %v361
      %v1587 = vunpack.c.h.b16 %v361
      %v1588 = vunpack.c.l.b16 %v362
      %v1589 = vunpack.c.h.b16 %v362
      %v1590 = vunpack.c.l.b16 %v363
      %v1591 = vunpack.c.h.b16 %v363
      %v1592 = vunpack.c.l.b16 %v364
      %v1593 = vunpack.c.h.b16 %v364
      %v1594 = vunpack.c.l.b16 %v365
      %v1595 = vunpack.c.h.b16 %v365
      %v1596 = vunpack.c.l.b16 %v366
      %v1597 = vunpack.c.h.b16 %v366
      %v1598 = vunpack.c.l.b16 %v367
      %v1599 = vunpack.c.h.b16 %v367
      %v1600 = vunpack.c.l.b16 %v368
      %v1601 = vunpack.c.h.b16 %v368
      %v1602 = vunpack.c.l.b16 %v369
      %v1603 = vunpack.c.h.b16 %v369
      %v1604 = vunpack.c.l.b16 %v370
      %v1605 = vunpack.c.h.b16 %v370
      %v1606 = vunpack.c.l.b16 %v371
      %v1607 = vunpack.c.h.b16 %v371
      %v1608 = vunpack.c.l.b16 %v372
      %v1609 = vunpack.c.h.b16 %v372
      %v1610 = vunpack.c.l.b16 %v373
      %v1611 = vunpack.c.h.b16 %v373
      %v1612 = vunpack.c.l.b16 %v374
      %v1613 = vunpack.c.h.b16 %v374
      %v1614 = vunpack.c.l.b16 %v375
      %v1615 = vunpack.c.h.b16 %v375
      %v1616 = vunpack.c.l.b16 %v376
      %v1617 = vunpack.c.h.b16 %v376
      %v1618 = vunpack.c.l.b16 %v377
      %v1619 = vunpack.c.h.b16 %v377
      %v1620 = vunpack.c.l.b16 %v378
      %v1621 = vunpack.c.h.b16 %v378
      %v1622 = vunpack.c.l.b16 %v379
      %v1623 = vunpack.c.h.b16 %v379
      %v1624 = vunpack.c.l.b16 %v380
      %v1625 = vunpack.c.h.b16 %v380
      %v1626 = vunpack.c.l.b16 %v381
      %v1627 = vunpack.c.h.b16 %v381
      %v1628 = vunpack.c.l.b16 %v382
      %v1629 = vunpack.c.h.b16 %v382
      %v1630 = vunpack.c.l.b16 %v383
      %v1631 = vunpack.c.h.b16 %v383
      %v1632 = vunpack.c.l.b16 %v384
      %v1633 = vunpack.c.h.b16 %v384
      %v1634 = vunpack.c.l.b16 %v385
      %v1635 = vunpack.c.h.b16 %v385
      %v1636 = vunpack.c.l.b16 %v386
      %v1637 = vunpack.c.h.b16 %v386
      %v1638 = vunpack.c.l.b16 %v387
      %v1639 = vunpack.c.h.b16 %v387
      %v1640 = vunpack.c.l.b16 %v388
      %v1641 = vunpack.c.h.b16 %v388
      %v1642 = vunpack.c.l.b16 %v389
      %v1643 = vunpack.c.h.b16 %v389
      %v1644 = vunpack.c.l.b16 %v390
      %v1645 = vunpack.c.h.b16 %v390
      %v1646 = vunpack.c.l.b16 %v391
      %v1647 = vunpack.c.h.b16 %v391
      %v1648 = vunpack.c.l.b16 %v392
      %v1649 = vunpack.c.h.b16 %v392
      %v1650 = vunpack.c.l.b16 %v393
      %v1651 = vunpack.c.h.b16 %v393
      %v1652 = vunpack.c.l.b16 %v394
      %v1653 = vunpack.c.h.b16 %v394
      %v1654 = vunpack.c.l.b16 %v395
      %v1655 = vunpack.c.h.b16 %v395
      %v1656 = vunpack.c.l.b16 %v396
      %v1657 = vunpack.c.h.b16 %v396
      %v1658 = vunpack.c.l.b16 %v397
      %v1659 = vunpack.c.h.b16 %v397
      %v1660 = vunpack.c.l.b16 %v398
      %v1661 = vunpack.c.h.b16 %v398
      %v1662 = vunpack.c.l.b16 %v399
      %v1663 = vunpack.c.h.b16 %v399
      %v1664 = vunpack.c.l.b16 %v400
      %v1665 = vunpack.c.h.b16 %v400
      %v1666 = vunpack.c.l.b16 %v401
      %v1667 = vunpack.c.h.b16 %v401
      %v1668 = vunpack.c.l.b16 %v402
      %v1669 = vunpack.c.h.b16 %v402
      %v1670 = vunpack.c.l.b16 %v403
      %v1671 = vunpack.c.h.b16 %v403
      %v1672 = vunpack.c.l.b16 %v404
      %v1673 = vunpack.c.h.b16 %v404
      %v1674 = vunpack.c.l.b16 %v405
      %v1675 = vunpack.c.h.b16 %v405
      %v1676 = vunpack.c.l.b16 %v406
      %v1677 = vunpack.c.h.b16 %v406
      %v1678 = vunpack.c.l.b16 %v407
      %v1679 = vunpack.c.h.b16 %v407
      %v1680 = vunpack.c.l.b16 %v408
      %v1681 = vunpack.c.h.b16 %v408
      %v1682 = vunpack.c.l.b16 %v409
      %v1683 = vunpack.c.h.b16 %v409
      %v1684 = vunpack.c.l.b16 %v410
      %v1685 = vunpack.c.h.b16 %v410
      %v1686 = vunpack.c.l.b16 %v411
      %v1687 = vunpack.c.h.b16 %v411
      %v1688 = vunpack.c.l.b16 %v412
      %v1689 = vunpack.c.h.b16 %v412
      %v1690 = vunpack.c.l.b16 %v413
      %v1691 = vunpack.c.h.b16 %v413
      %v1692 = vunpack.c.l.b16 %v414
      %v1693 = vunpack.c.h.b16 %v414
      %v1694 = vunpack.c.l.b16 %v415
      %v1695 = vunpack.c.h.b16 %v415
      %v1696 = vunpack.c.l.b16 %v416
      %v1697 = vunpack.c.h.b16 %v416
      %v1698 = vunpack.c.l.b16 %v417
      %v1699 = vunpack.c.h.b16 %v417
      %v1700 = vunpack.c.l.b16 %v418
      %v1701 = vunpack.c.h.b16 %v418
      %v1702 = vunpack.c.l.b16 %v419
      %v1703 = vunpack.c.h.b16 %v419
      %v1704 = vunpack.c.l.b16 %v420
      %v1705 = vunpack.c.h.b16 %v420
      %v1706 = vunpack.c.l.b16 %v421
      %v1707 = vunpack.c.h.b16 %v421
      %v1708 = vunpack.c.l.b16 %v422
      %v1709 = vunpack.c.h.b16 %v422
      %v1710 = vunpack.c.l.b16 %v423
      %v1711 = vunpack.c.h.b16 %v423
      %v1712 = vunpack.c.l.b16 %v424
      %v1713 = vunpack.c.h.b16 %v424
      %v1714 = vunpack.c.l.b16 %v425
      %v1715 = vunpack.c.h.b16 %v425
      %v1716 = vunpack.c.l.b16 %v426
      %v1717 = vunpack.c.h.b16 %v426
      %v1718 = vunpack.c.l.b16 %v427
      %v1719 = vunpack.c.h.b16 %v427
      %v1720 = vunpack.c.l.b16 %v428
      %v1721 = vunpack.c.h.b16 %v428
      %v1722 = vunpack.c.l.b16 %v429
      %v1723 = vunpack.c.h.b16 %v429
      %v1724 = vunpack.c.l.b16 %v430
      %v1725 = vunpack.c.h.b16 %v430
      %v1726 = vunpack.c.l.b16 %v431
      %v1727 = vunpack.c.h.b16 %v431
      %v1728 = vunpack.c.l.b16 %v432
      %v1729 = vunpack.c.h.b16 %v432
      %v1730 = vunpack.c.l.b16 %v433
      %v1731 = vunpack.c.h.b16 %v433
      %v1732 = vunpack.c.l.b16 %v434
      %v1733 = vunpack.c.h.b16 %v434
      %v1734 = vunpack.c.l.b16 %v435
      %v1735 = vunpack.c.h.b16 %v435
      %v1736 = vunpack.c.l.b16 %v436
      %v1737 = vunpack.c.h.b16 %v436
      %v1738 = vunpack.c.l.b16 %v437
      %v1739 = vunpack.c.h.b16 %v437
      %v1740 = vunpack.c.l.b16 %v438
      %v1741 = vunpack.c.h.b16 %v438
      %v1742 = vunpack.c.l.b16 %v439
      %v1743 = vunpack.c.h.b16 %v439
      %v1744 = vunpack.c.l.b16 %v440
      %v1745 = vunpack.c.h.b16 %v440
      %v1746 = vunpack.c.l.b16 %v441
      %v1747 = vunpack.c.h.b16 %v441
      %v1748 = vunpack.c.l.b16 %v442
      %v1749 = vunpack.c.h.b16 %v442
      %v1750 = vunpack.c.l.b16 %v443
      %v1751 = vunpack.c.h.b16 %v443
      %v1752 = vunpack.c.l.b16 %v444
      %v1753 = vunpack.c.h.b16 %v444
      %v1754 = vunpack.c.l.b16 %v445
      %v1755 = vunpack.c.h.b16 %v445
      %v1756 = vunpack.c.l.b16 %v446
      %v1757 = vunpack.c.h.b16 %v446
      %v1758 = vunpack.c.l.b16 %v447
      %v1759 = vunpack.c.h.b16 %v447
      %v1760 = vunpack.c.l.b16 %v448
      %v1761 = vunpack.c.h.b16 %v448
      %v1762 = vunpack.c.l.b16 %v449
      %v1763 = vunpack.c.h.b16 %v449
      %v1764 = vunpack.c.l.b16 %v450
      %v1765 = vunpack.c.h.b16 %v450
      %v1766 = vunpack.c.l.b16 %v451
      %v1767 = vunpack.c.h.b16 %v451
      %v1768 = vunpack.c.l.b16 %v452
      %v1769 = vunpack.c.h.b16 %v452
      %v1770 = vunpack.c.l.b16 %v453
      %v1771 = vunpack.c.h.b16 %v453
      %v1772 = vunpack.c.l.b16 %v454
      %v1773 = vunpack.c.h.b16 %v454
      %v1774 = vunpack.c.l.b16 %v455
      %v1775 = vunpack.c.h.b16 %v455
      %v1776 = vunpack.c.l.b16 %v456
      %v1777 = vunpack.c.h.b16 %v456
      %v1778 = vunpack.c.l.b16 %v457
      %v1779 = vunpack.c.h.b16 %v457
      %v1780 = vunpack.c.l.b16 %v458
      %v1781 = vunpack.c.h.b16 %v458
      %v1782 = vunpack.c.l.b16 %v459
      %v1783 = vunpack.c.h.b16 %v459
      %v1784 = vunpack.c.l.b16 %v460
      %v1785 = vunpack.c.h.b16 %v460
      %v1786 = vunpack.c.l.b16 %v461
      %v1787 = vunpack.c.h.b16 %v461
      %v1788 = vunpack.c.l.b16 %v462
      %v1789 = vunpack.c.h.b16 %v462
      %v1790 = vunpack.c.l.b16 %v463
      %v1791 = vunpack.c.h.b16 %v463
      %v1792 = vunpack.c.l.b16 %v464
      %v1793 = vunpack.c.h.b16 %v464
      %v1794 = vunpack.c.l.b16 %v465
      %v1795 = vunpack.c.h.b16 %v465
      %v1796 = vunpack.c.l.b16 %v466
      %v1797 = vunpack.c.h.b16 %v466
      %v1798 = vunpack.c.l.b16 %v467
      %v1799 = vunpack.c.h.b16 %v467
      %v1800 = vunpack.c.l.b16 %v468
      %v1801 = vunpack.c.h.b16 %v468
      %v1802 = vunpack.c.l.b16 %v469
      %v1803 = vunpack.c.h.b16 %v469
      %v1804 = vunpack.c.l.b16 %v470
      %v1805 = vunpack.c.h.b16 %v470
      %v1806 = vunpack.c.l.b16 %v471
      %v1807 = vunpack.c.h.b16 %v471
      %v1808 = vunpack.c.l.b16 %v472
      %v1809 = vunpack.c.h.b16 %v472
      %v1810 = vunpack.c.l.b16 %v473
      %v1811 = vunpack.c.h.b16 %v473
      %v1812 = vunpack.c.l.b16 %v474
      %v1813 = vunpack.c.h.b16 %v474
      %v1814 = vunpack.c.l.b16 %v475
      %v1815 = vunpack.c.h.b16 %v475
      %v1816 = vunpack.c.l.b16 %v476
      %v1817 = vunpack.c.h.b16 %v476
      %v1818 = vunpack.c.l.b16 %v477
      %v1819 = vunpack.c.h.b16 %v477
      %v1820 = vunpack.c.l.b16 %v478
      %v1821 = vunpack.c.h.b16 %v478
      %v1822 = vunpack.c.l.b16 %v479
      %v1823 = vunpack.c.h.b16 %v479
      %v1824 = vunpack.c.l.b16 %v480
      %v1825 = vunpack.c.h.b16 %v480
      %v1826 = vunpack.c.l.b16 %v481
      %v1827 = vunpack.c.h.b16 %v481
      %v1828 = vpack.c.b16 %v1440, %v1436
      %v1829 = vpack.c.b16 %v1441, %v1437
      %v1830 = vpack.c.b16 %v1442, %v1438
      %v1831 = vpack.c.b16 %v1443, %v1439
      %v1832 = vpack.c.b16 %v1448, %v1444
      %v1833 = vpack.c.b16 %v1449, %v1445
      %v1834 = vpack.c.b16 %v1450, %v1446
      %v1835 = vpack.c.b16 %v1451, %v1447
      %v1836 = vpack.c.b16 %v1456, %v1452
      %v1837 = vpack.c.b16 %v1457, %v1453
      %v1838 = vpack.c.b16 %v1458, %v1454
      %v1839 = vpack.c.b16 %v1459, %v1455
      %v1840 = vpack.c.b16 %v1464, %v1460
      %v1841 = vpack.c.b16 %v1465, %v1461
      %v1842 = vpack.c.b16 %v1466, %v1462
      %v1843 = vpack.c.b16 %v1467, %v1463
      %v1844 = vpack.c.b16 %v1472, %v1468
      %v1845 = vpack.c.b16 %v1473, %v1469
      %v1846 = vpack.c.b16 %v1474, %v1470
      %v1847 = vpack.c.b16 %v1475, %v1471
      %v1848 = vpack.c.b16 %v1480, %v1476
      %v1849 = vpack.c.b16 %v1481, %v1477
      %v1850 = vpack.c.b16 %v1482, %v1478
      %v1851 = vpack.c.b16 %v1483, %v1479
      %v1852 = vpack.c.b16 %v1488, %v1484
      %v1853 = vpack.c.b16 %v1489, %v1485
      %v1854 = vpack.c.b16 %v1490, %v1486
      %v1855 = vpack.c.b16 %v1491, %v1487
      %v1856 = vpack.c.b16 %v1496, %v1492
      %v1857 = vpack.c.b16 %v1497, %v1493
      %v1858 = vpack.c.b16 %v1498, %v1494
      %v1859 = vpack.c.b16 %v1499, %v1495
      %v1860 = vpack.c.b16 %v1504, %v1500
      %v1861 = vpack.c.b16 %v1505, %v1501
      %v1862 = vpack.c.b16 %v1506, %v1502
      %v1863 = vpack.c.b16 %v1507, %v1503
      %v1864 = vpack.c.b16 %v1512, %v1508
      %v1865 = vpack.c.b16 %v1513, %v1509
      %v1866 = vpack.c.b16 %v1514, %v1510
      %v1867 = vpack.c.b16 %v1515, %v1511
      %v1868 = vpack.c.b16 %v1520, %v1516
      %v1869 = vpack.c.b16 %v1521, %v1517
      %v1870 = vpack.c.b16 %v1522, %v1518
      %v1871 = vpack.c.b16 %v1523, %v1519
      %v1872 = vpack.c.b16 %v1528, %v1524
      %v1873 = vpack.c.b16 %v1529, %v1525
      %v1874 = vpack.c.b16 %v1530, %v1526
      %v1875 = vpack.c.b16 %v1531, %v1527
      %v1876 = vpack.c.b16 %v1536, %v1532
      %v1877 = vpack.c.b16 %v1537, %v1533
      %v1878 = vpack.c.b16 %v1538, %v1534
      %v1879 = vpack.c.b16 %v1539, %v1535
      %v1880 = vpack.c.b16 %v1544, %v1540
      %v1881 = vpack.c.b16 %v1545, %v1541
      %v1882 = vpack.c.b16 %v1546, %v1542
      %v1883 = vpack.c.b16 %v1547, %v1543
      %v1884 = vpack.c.b16 %v1552, %v1548
      %v1885 = vpack.c.b16 %v1553, %v1549
      %v1886 = vpack.c.b16 %v1554, %v1550
      %v1887 = vpack.c.b16 %v1555, %v1551
      %v1888 = vpack.c.b16 %v1560, %v1556
      %v1889 = vpack.c.b16 %v1561, %v1557
      %v1890 = vpack.c.b16 %v1562, %v1558
      %v1891 = vpack.c.b16 %v1563, %v1559
      %v1892 = vpack.c.b16 %v1568, %v1564
      %v1893 = vpack.c.b16 %v1569, %v1565
      %v1894 = vpack.c.b16 %v1570, %v1566
      %v1895 = vpack.c.b16 %v1571, %v1567
      %v1896 = vpack.c.b16 %v1576, %v1572
      %v1897 = vpack.c.b16 %v1577, %v1573
      %v1898 = vpack.c.b16 %v1578, %v1574
      %v1899 = vpack.c.b16 %v1579, %v1575
      %v1900 = vpack.c.b16 %v1584, %v1580
      %v1901 = vpack.c.b16 %v1585, %v1581
      %v1902 = vpack.c.b16 %v1586, %v1582
      %v1903 = vpack.c.b16 %v1587, %v1583
      %v1904 = vpack.c.b16 %v1592, %v1588
      %v1905 = vpack.c.b16 %v1593, %v1589
      %v1906 = vpack.c.b16 %v1594, %v1590
      %v1907 = vpack.c.b16 %v1595, %v1591
      %v1908 = vpack.c.b16 %v1600, %v1596
      %v1909 = vpack.c.b16 %v1601, %v1597
      %v1910 = vpack.c.b16 %v1602, %v1598
      %v1911 = vpack.c.b16 %v1603, %v1599
      %v1912 = vpack.c.b16 %v1608, %v1604
      %v1913 = vpack.c.b16 %v1609, %v1605
      %v1914 = vpack.c.b16 %v1610, %v1606
      %v1915 = vpack.c.b16 %v1611, %v1607
      %v1916 = vpack.c.b16 %v1616, %v1612
      %v1917 = vpack.c.b16 %v1617, %v1613
      %v1918 = vpack.c.b16 %v1618, %v1614
      %v1919 = vpack.c.b16 %v1619, %v1615
      %v1920 = vpack.c.b16 %v1624, %v1620
      %v1921 = vpack.c.b16 %v1625, %v1621
      %v1922 = vpack.c.b16 %v1626, %v1622
      %v1923 = vpack.c.b16 %v1627, %v1623
      %v1924 = vpack.c.b16 %v1632, %v1628
      %v1925 = vpack.c.b16 %v1633, %v1629
      %v1926 = vpack.c.b16 %v1634, %v1630
      %v1927 = vpack.c.b16 %v1635, %v1631
      %v1928 = vpack.c.b16 %v1640, %v1636
      %v1929 = vpack.c.b16 %v1641, %v1637
      %v1930 = vpack.c.b16 %v1642, %v1638
      %v1931 = vpack.c.b16 %v1643, %v1639
      %v1932 = vpack.c.b16 %v1648, %v1644
      %v1933 = vpack.c.b16 %v1649, %v1645
      %v1934 = vpack.c.b16 %v1650, %v1646
      %v1935 = vpack.c.b16 %v1651, %v1647
      %v1936 = vpack.c.b16 %v1656, %v1652
      %v1937 = vpack.c.b16 %v1657, %v1653
      %v1938 = vpack.c.b16 %v1658, %v1654
      %v1939 = vpack.c.b16 %v1659, %v1655
      %v1940 = vpack.c.b16 %v1664, %v1660
      %v1941 = vpack.c.b16 %v1665, %v1661
      %v1942 = vpack.c.b16 %v1666, %v1662
      %v1943 = vpack.c.b16 %v1667, %v1663
      %v1944 = vpack.c.b16 %v1672, %v1668
      %v1945 = vpack.c.b16 %v1673, %v1669
      %v1946 = vpack.c.b16 %v1674, %v1670
      %v1947 = vpack.c.b16 %v1675, %v1671
      %v1948 = vpack.c.b16 %v1680, %v1676
      %v1949 = vpack.c.b16 %v1681, %v1677
      %v1950 = vpack.c.b16 %v1682, %v1678
      %v1951 = vpack.c.b16 %v1683, %v1679
      %v1952 = vpack.c.b16 %v1688, %v1684
      %v1953 = vpack.c.b16 %v1689, %v1685
      %v1954 = vpack.c.b16 %v1690, %v1686
      %v1955 = vpack.c.b16 %v1691, %v1687
      %v1956 = vpack.c.b16 %v1696, %v1692
      %v1957 = vpack.c.b16 %v1697, %v1693
      %v1958 = vpack.c.b16 %v1698, %v1694
      %v1959 = vpack.c.b16 %v1699, %v1695
      %v1960 = vpack.c.b16 %v1704, %v1700
      %v1961 = vpack.c.b16 %v1705, %v1701
      %v1962 = vpack.c.b16 %v1706, %v1702
      %v1963 = vpack.c.b16 %v1707, %v1703
      %v1964 = vpack.c.b16 %v1712, %v1708
      %v1965 = vpack.c.b16 %v1713, %v1709
      %v1966 = vpack.c.b16 %v1714, %v1710
      %v1967 = vpack.c.b16 %v1715, %v1711
      %v1968 = vpack.c.b16 %v1720, %v1716
      %v1969 = vpack.c.b16 %v1721, %v1717
      %v1970 = vpack.c.b16 %v1722, %v1718
      %v1971 = vpack.c.b16 %v1723, %v1719
      %v1972 = vpack.c.b16 %v1728, %v1724
      %v1973 = vpack.c.b16 %v1729, %v1725
      %v1974 = vpack.c.b16 %v1730, %v1726
      %v1975 = vpack.c.b16 %v1731, %v1727
      %v1976 = vpack.c.b16 %v1736, %v1732
      %v1977 = vpack.c.b16 %v1737, %v1733
      %v1978 = vpack.c.b16 %v1738, %v1734
      %v1979 = vpack.c.b16 %v1739, %v1735
      %v1980 = vpack.c.b16 %v1744, %v1740
      %v1981 = vpack.c.b16 %v1745, %v1741
      %v1982 = vpack.c.b16 %v1746, %v1742
      %v1983 = vpack.c.b16 %v1747, %v1743
      %v1984 = vpack.c.b16 %v1752, %v1748
      %v1985 = vpack.c.b16 %v1753, %v1749
      %v1986 = vpack.c.b16 %v1754, %v1750
      %v1987 = vpack.c.b16 %v1755, %v1751
      %v1988 = vpack.c.b16 %v1760, %v1756
      %v1989 = vpack.c.b16 %v1761, %v1757
      %v1990 = vpack.c.b16 %v1762, %v1758
      %v1991 = vpack.c.b16 %v1763, %v1759
      %v1992 = vpack.c.b16 %v1768, %v1764
      %v1993 = vpack.c.b16 %v1769, %v1765
      %v1994 = vpack.c.b16 %v1770, %v1766
      %v1995 = vpack.c.b16 %v1771, %v1767
      %v1996 = vpack.c.b16 %v1776, %v1772
      %v1997 = vpack.c.b16 %v1777, %v1773
      %v1998 = vpack.c.b16 %v1778, %v1774
      %v1999 = vpack.c.b16 %v1779, %v1775
      %v2000 = vpack.c.b16 %v1784, %v1780
      %v2001 = vpack.c.b16 %v1785, %v1781
      %v2002 = vpack.c.b16 %v1786, %v1782
      %v2003 = vpack.c.b16 %v1787, %v1783
      %v2004 = vpack.c.b16 %v1792, %v1788
      %v2005 = vpack.c.b16 %v1793, %v1789
      %v2006 = vpack.c.b16 %v1794, %v1790
      %v2007 = vpack.c.b16 %v1795, %v1791
      %v2008 = vpack.c.b16 %v1800, %v1796
      %v2009 = vpack.c.b16 %v1801, %v1797
      %v2010 = vpack.c.b16 %v1802, %v1798
      %v2011 = vpack.c.b16 %v1803, %v1799
      %v2012 = vpack.c.b16 %v1808, %v1804
      %v2013 = vpack.c.b16 %v1809, %v1805
      %v2014 = vpack.c.b16 %v1810, %v1806
      %v2015 = vpack.c.b16 %v1811, %v1807
      %v2016 = vpack.c.b16 %v1816, %v1812
      %v2017 = vpack.c.b16 %v1817, %v1813
      %v2018 = vpack.c.b16 %v1818, %v1814
      %v2019 = vpack.c.b16 %v1819, %v1815
      %v2020 = vpack.c.b16 %v1824, %v1820
      %v2021 = vpack.c.b16 %v1825, %v1821
      %v2022 = vpack.c.b16 %v1826, %v1822
      %v2023 = vpack.c.b16 %v1827, %v1823
      %vm2220 = vcmask 130048
      %v2222 = vsel %vm2220, %v1000, 0
      %v2225 = vsel %vm2220, %v1007, 0
      %v2228 = vsel %vm2220, %v1014, 0
      %v2231 = vsel %vm2220, %v1021, 0
      %v2234 = vsel %vm2220, %v1028, 0
      %v2237 = vsel %vm2220, %v1035, 0
      %v2240 = vsel %vm2220, %v1042, 0
      %v2243 = vsel %vm2220, %v1049, 0
      %v2246 = vsel %vm2220, %v1056, 0
      %v2249 = vsel %vm2220, %v1063, 0
      %v2252 = vsel %vm2220, %v1070, 0
      %v2255 = vsel %vm2220, %v1077, 0
      %v2258 = vsel %vm2220, %v1084, 0
      %v2261 = vsel %vm2220, %v1091, 0
      %v2264 = vsel %vm2220, %v1098, 0
      %v2267 = vsel %vm2220, %v1105, 0
      %v2270 = vsel %vm2220, %v1112, 0
      %v2273 = vsel %vm2220, %v1119, 0
      %v2276 = vsel %vm2220, %v1126, 0
      %v2279 = vsel %vm2220, %v1133, 0
      %v2282 = vsel %vm2220, %v1140, 0
      %v2285 = vsel %vm2220, %v1147, 0
      %v2288 = vsel %vm2220, %v1154, 0
      %v2291 = vsel %vm2220, %v1161, 0
      %v2294 = vsel %vm2220, %v1168, 0
      %v2297 = vsel %vm2220, %v1175, 0
      %v2300 = vsel %vm2220, %v1182, 0
      %v2303 = vsel %vm2220, %v1189, 0
      %v2306 = vsel %vm2220, %v1196, 0
      %v2309 = vsel %vm2220, %v1203, 0
      %v2312 = vsel %vm2220, %v1210, 0
      %v2315 = vsel %vm2220, %v1217, 0
      %2317 = vmatprep.subr.bf16.mxu0 %v1829
      %2318 = vmatpush1.bf16.msra.mxu0 %v1828
      %2319 = vmatprep.subr.bf16.mxu0 %v1833
      %2320 = vmatpush1.bf16.msra.mxu0 %v1832
      %2321 = vmatprep.subr.bf16.mxu0 %v1837
      %2322 = vmatpush1.bf16.msra.mxu0 %v1836
      %2323 = vmatprep.subr.bf16.mxu0 %v1841
      %2324 = vmatpush1.bf16.msra.mxu0 %v1840
      %2325 = vmatprep.subr.bf16.mxu0 %v1845
      %2326 = vmatpush1.bf16.msra.mxu0 %v1844
      %2327 = vmatprep.subr.bf16.mxu0 %v1849
      %2328 = vmatpush1.bf16.msra.mxu0 %v1848
      %2329 = vmatprep.subr.bf16.mxu0 %v1853
      %2330 = vmatpush1.bf16.msra.mxu0 %v1852
      %2331 = vmatprep.subr.bf16.mxu0 %v1857
      %2332 = vmatpush1.bf16.msra.mxu0 %v1856
      %2333 = vmatprep.subr.bf16.mxu0 %v1861
      %2334 = vmatpush1.bf16.msra.mxu0 %v1860
      %2335 = vmatprep.subr.bf16.mxu0 %v1865
      %2336 = vmatpush1.bf16.msra.mxu0 %v1864
      %2337 = vmatprep.subr.bf16.mxu0 %v1869
      %2338 = vmatpush1.bf16.msra.mxu0 %v1868
      %2339 = vmatprep.subr.bf16.mxu0 %v1873
      %2340 = vmatpush1.bf16.msra.mxu0 %v1872
      %2341 = vmatprep.subr.bf16.mxu0 %v1877
      %2342 = vmatpush1.bf16.msra.mxu0 %v1876
      %2343 = vmatprep.subr.bf16.mxu0 %v1881
      %2344 = vmatpush1.bf16.msra.mxu0 %v1880
      %2345 = vmatprep.subr.bf16.mxu0 %v1885
      %2346 = vmatpush1.bf16.msra.mxu0 %v1884
      %2347 = vmatprep.subr.bf16.mxu0 %v1889
      %2348 = vmatpush1.bf16.msra.mxu0 %v1888
      %2349 = vmatprep.mubr.bf16.mxu0 %v995
      %2350 = vmatmul.mubr.bf16.gmra.mrb[0].mxu0 %v994
      %v2351 = vpop.f32.mrb[0].mxu0
      %v2352 = vadd.f32 %v1223, %v2351
      %v2353 = vpop.f32.mrb[0].mxu0
      %v2354 = vadd.f32 %v1227, %v2353
      %v2355 = vpop.f32.mrb[0].mxu0
      %v2356 = vadd.f32 %v1223, %v2355
      %v2357 = vpop.f32.mrb[0].mxu0
      %v2358 = vadd.f32 %v1227, %v2357
      %2359 = vmatprep.mubr.bf16.mxu0 %v1002
      %2360 = vmatmul.mubr.bf16.gmra.mrb[0].mxu0 %v1001
      %v2361 = vpop.f32.mrb[0].mxu0
      %v2362 = vadd.f32 %v1223, %v2361
      %v2363 = vpop.f32.mrb[0].mxu0
      %v2364 = vadd.f32 %v1227, %v2363
      %v2365 = vpop.f32.mrb[0].mxu0
      %v2366 = vadd.f32 %v1223, %v2365
      %v2367 = vpop.f32.mrb[0].mxu0
      %v2368 = vadd.f32 %v1227, %v2367
      %2369 = vmatprep.mubr.bf16.mxu0 %v1009
      %2370 = vmatmul.mubr.bf16.gmra.mrb[0].mxu0 %v1008
      %v2371 = vpop.f32.mrb[0].mxu0
      %v2372 = vadd.f32 %v1223, %v2371
      %v2373 = vpop.f32.mrb[0].mxu0
      %v2374 = vadd.f32 %v1227, %v2373
      %v2375 = vpop.f32.mrb[0].mxu0
      %v2376 = vadd.f32 %v1223, %v2375
      %v2377 = vpop.f32.mrb[0].mxu0
      %v2378 = vadd.f32 %v1227, %v2377
      %2379 = vmatprep.mubr.bf16.mxu0 %v1016
      %2380 = vmatmul.mubr.bf16.gmra.mrb[0].mxu0 %v1015
      %v2381 = vpop.f32.mrb[0].mxu0
      %v2382 = vadd.f32 %v1223, %v2381
      %v2383 = vpop.f32.mrb[0].mxu0
      %v2384 = vadd.f32 %v1227, %v2383
      %v2385 = vpop.f32.mrb[0].mxu0
      %v2386 = vadd.f32 %v1223, %v2385
      %v2387 = vpop.f32.mrb[0].mxu0
      %v2388 = vadd.f32 %v1227, %v2387
      %2389 = vmatprep.mubr.bf16.mxu0 %v1023
      %2390 = vmatmul.mubr.bf16.gmra.mrb[0].mxu0 %v1022
      %v2391 = vpop.f32.mrb[0].mxu0
      %v2392 = vadd.f32 %v1223, %v2391
      %v2393 = vpop.f32.mrb[0].mxu0
      %v2394 = vadd.f32 %v1227, %v2393
      %v2395 = vpop.f32.mrb[0].mxu0
      %v2396 = vadd.f32 %v1223, %v2395
      %v2397 = vpop.f32.mrb[0].mxu0
      %v2398 = vadd.f32 %v1227, %v2397
      %2399 = vmatprep.mubr.bf16.mxu0 %v1030
      %2400 = vmatmul.mubr.bf16.gmra.mrb[0].mxu0 %v1029
      %v2401 = vpop.f32.mrb[0].mxu0
      %v2402 = vadd.f32 %v1223, %v2401
      %v2403 = vpop.f32.mrb[0].mxu0
      %v2404 = vadd.f32 %v1227, %v2403
      %v2405 = vpop.f32.mrb[0].mxu0
      %v2406 = vadd.f32 %v1223, %v2405
      %v2407 = vpop.f32.mrb[0].mxu0
      %v2408 = vadd.f32 %v1227, %v2407
      %2409 = vmatprep.mubr.bf16.mxu0 %v1037
      %2410 = vmatmul.mubr.bf16.gmra.mrb[0].mxu0 %v1036
      %v2411 = vpop.f32.mrb[0].mxu0
      %v2412 = vadd.f32 %v1223, %v2411
      %v2413 = vpop.f32.mrb[0].mxu0
      %v2414 = vadd.f32 %v1227, %v2413
      %v2415 = vpop.f32.mrb[0].mxu0
      %v2416 = vadd.f32 %v1223, %v2415
      %v2417 = vpop.f32.mrb[0].mxu0
      %v2418 = vadd.f32 %v1227, %v2417
      %2419 = vmatprep.mubr.bf16.mxu0 %v1044
      %2420 = vmatmul.mubr.bf16.gmra.mrb[0].mxu0 %v1043
      %v2421 = vpop.f32.mrb[0].mxu0
      %v2422 = vadd.f32 %v1223, %v2421
      %v2423 = vpop.f32.mrb[0].mxu0
      %v2424 = vadd.f32 %v1227, %v2423
      %v2425 = vpop.f32.mrb[0].mxu0
      %v2426 = vadd.f32 %v1223, %v2425
      %v2427 = vpop.f32.mrb[0].mxu0
      %v2428 = vadd.f32 %v1227, %v2427
      %2429 = vmatprep.mubr.bf16.mxu0 %v1051
      %2430 = vmatmul.mubr.bf16.gmra.mrb[0].mxu0 %v1050
      %v2431 = vpop.f32.mrb[0].mxu0
      %v2432 = vadd.f32 %v1223, %v2431
      %v2433 = vpop.f32.mrb[0].mxu0
      %v2434 = vadd.f32 %v1227, %v2433
      %v2435 = vpop.f32.mrb[0].mxu0
      %v2436 = vadd.f32 %v1223, %v2435
      %v2437 = vpop.f32.mrb[0].mxu0
      %v2438 = vadd.f32 %v1227, %v2437
      %2439 = vmatprep.mubr.bf16.mxu0 %v1058
      %2440 = vmatmul.mubr.bf16.gmra.mrb[0].mxu0 %v1057
      %v2441 = vpop.f32.mrb[0].mxu0
      %v2442 = vadd.f32 %v1223, %v2441
      %v2443 = vpop.f32.mrb[0].mxu0
      %v2444 = vadd.f32 %v1227, %v2443
      %v2445 = vpop.f32.mrb[0].mxu0
      %v2446 = vadd.f32 %v1223, %v2445
      %v2447 = vpop.f32.mrb[0].mxu0
      %v2448 = vadd.f32 %v1227, %v2447
      %2449 = vmatprep.mubr.bf16.mxu0 %v1065
      %2450 = vmatmul.mubr.bf16.gmra.mrb[0].mxu0 %v1064
      %v2451 = vpop.f32.mrb[0].mxu0
      %v2452 = vadd.f32 %v1223, %v2451
      %v2453 = vpop.f32.mrb[0].mxu0
      %v2454 = vadd.f32 %v1227, %v2453
      %v2455 = vpop.f32.mrb[0].mxu0
      %v2456 = vadd.f32 %v1223, %v2455
      %v2457 = vpop.f32.mrb[0].mxu0
      %v2458 = vadd.f32 %v1227, %v2457
      %2459 = vmatprep.mubr.bf16.mxu0 %v1072
      %2460 = vmatmul.mubr.bf16.gmra.mrb[0].mxu0 %v1071
      %v2461 = vpop.f32.mrb[0].mxu0
      %v2462 = vadd.f32 %v1223, %v2461
      %v2463 = vpop.f32.mrb[0].mxu0
      %v2464 = vadd.f32 %v1227, %v2463
      %v2465 = vpop.f32.mrb[0].mxu0
      %v2466 = vadd.f32 %v1223, %v2465
      %v2467 = vpop.f32.mrb[0].mxu0
      %v2468 = vadd.f32 %v1227, %v2467
      %2469 = vmatprep.mubr.bf16.mxu0 %v1079
      %2470 = vmatmul.mubr.bf16.gmra.mrb[0].mxu0 %v1078
      %v2471 = vpop.f32.mrb[0].mxu0
      %v2472 = vadd.f32 %v1223, %v2471
      %v2473 = vpop.f32.mrb[0].mxu0
      %v2474 = vadd.f32 %v1227, %v2473
      %v2475 = vpop.f32.mrb[0].mxu0
      %v2476 = vadd.f32 %v1223, %v2475
      %v2477 = vpop.f32.mrb[0].mxu0
      %v2478 = vadd.f32 %v1227, %v2477
      %2479 = vmatprep.mubr.bf16.mxu0 %v1086
      %2480 = vmatmul.mubr.bf16.gmra.mrb[0].mxu0 %v1085
      %v2481 = vpop.f32.mrb[0].mxu0
      %v2482 = vadd.f32 %v1223, %v2481
      %v2483 = vpop.f32.mrb[0].mxu0
      %v2484 = vadd.f32 %v1227, %v2483
      %v2485 = vpop.f32.mrb[0].mxu0
      %v2486 = vadd.f32 %v1223, %v2485
      %v2487 = vpop.f32.mrb[0].mxu0
      %v2488 = vadd.f32 %v1227, %v2487
      %2489 = vmatprep.mubr.bf16.mxu0 %v1093
      %2490 = vmatmul.mubr.bf16.gmra.mrb[0].mxu0 %v1092
      %v2491 = vpop.f32.mrb[0].mxu0
      %v2492 = vadd.f32 %v1223, %v2491
      %v2493 = vpop.f32.mrb[0].mxu0
      %v2494 = vadd.f32 %v1227, %v2493
      %v2495 = vpop.f32.mrb[0].mxu0
      %v2496 = vadd.f32 %v1223, %v2495
      %v2497 = vpop.f32.mrb[0].mxu0
      %v2498 = vadd.f32 %v1227, %v2497
      %2499 = vmatprep.mubr.bf16.mxu0 %v1100
      %2500 = vmatmul.mubr.bf16.gmra.mrb[0].mxu0 %v1099
      %v2501 = vpop.f32.mrb[0].mxu0
      %v2502 = vadd.f32 %v1223, %v2501
      %v2503 = vpop.f32.mrb[0].mxu0
      %v2504 = vadd.f32 %v1227, %v2503
      %v2505 = vpop.f32.mrb[0].mxu0
      %v2506 = vadd.f32 %v1223, %v2505
      %v2507 = vpop.f32.mrb[0].mxu0
      %v2508 = vadd.f32 %v1227, %v2507
      %2509 = vmatprep.mubr.bf16.mxu0 %v1107
      %2510 = vmatmul.mubr.bf16.gmra.mrb[0].mxu0 %v1106
      %v2511 = vpop.f32.mrb[0].mxu0
      %v2512 = vadd.f32 %v1223, %v2511
      %v2513 = vpop.f32.mrb[0].mxu0
      %v2514 = vadd.f32 %v1227, %v2513
      %v2515 = vpop.f32.mrb[0].mxu0
      %v2516 = vadd.f32 %v1223, %v2515
      %v2517 = vpop.f32.mrb[0].mxu0
      %v2518 = vadd.f32 %v1227, %v2517
      %2519 = vmatprep.mubr.bf16.mxu0 %v1114
      %2520 = vmatmul.mubr.bf16.gmra.mrb[0].mxu0 %v1113
      %v2521 = vpop.f32.mrb[0].mxu0
      %v2522 = vadd.f32 %v1223, %v2521
      %v2523 = vpop.f32.mrb[0].mxu0
      %v2524 = vadd.f32 %v1227, %v2523
      %v2525 = vpop.f32.mrb[0].mxu0
      %v2526 = vadd.f32 %v1223, %v2525
      %v2527 = vpop.f32.mrb[0].mxu0
      %v2528 = vadd.f32 %v1227, %v2527
      %2529 = vmatprep.mubr.bf16.mxu0 %v1121
      %2530 = vmatmul.mubr.bf16.gmra.mrb[0].mxu0 %v1120
      %v2531 = vpop.f32.mrb[0].mxu0
      %v2532 = vadd.f32 %v1223, %v2531
      %v2533 = vpop.f32.mrb[0].mxu0
      %v2534 = vadd.f32 %v1227, %v2533
      %v2535 = vpop.f32.mrb[0].mxu0
      %v2536 = vadd.f32 %v1223, %v2535
      %v2537 = vpop.f32.mrb[0].mxu0
      %v2538 = vadd.f32 %v1227, %v2537
      %2539 = vmatprep.mubr.bf16.mxu0 %v1128
      %2540 = vmatmul.mubr.bf16.gmra.mrb[0].mxu0 %v1127
      %v2541 = vpop.f32.mrb[0].mxu0
      %v2542 = vadd.f32 %v1223, %v2541
      %v2543 = vpop.f32.mrb[0].mxu0
      %v2544 = vadd.f32 %v1227, %v2543
      %v2545 = vpop.f32.mrb[0].mxu0
      %v2546 = vadd.f32 %v1223, %v2545
      %v2547 = vpop.f32.mrb[0].mxu0
      %v2548 = vadd.f32 %v1227, %v2547
      %2549 = vmatprep.mubr.bf16.mxu0 %v1135
      %2550 = vmatmul.mubr.bf16.gmra.mrb[0].mxu0 %v1134
      %v2551 = vpop.f32.mrb[0].mxu0
      %v2552 = vadd.f32 %v1223, %v2551
      %v2553 = vpop.f32.mrb[0].mxu0
      %v2554 = vadd.f32 %v1227, %v2553
      %v2555 = vpop.f32.mrb[0].mxu0
      %v2556 = vadd.f32 %v1223, %v2555
      %v2557 = vpop.f32.mrb[0].mxu0
      %v2558 = vadd.f32 %v1227, %v2557
      %2559 = vmatprep.mubr.bf16.mxu0 %v1142
      %2560 = vmatmul.mubr.bf16.gmra.mrb[0].mxu0 %v1141
      %v2561 = vpop.f32.mrb[0].mxu0
      %v2562 = vadd.f32 %v1223, %v2561
      %v2563 = vpop.f32.mrb[0].mxu0
      %v2564 = vadd.f32 %v1227, %v2563
      %v2565 = vpop.f32.mrb[0].mxu0
      %v2566 = vadd.f32 %v1223, %v2565
      %v2567 = vpop.f32.mrb[0].mxu0
      %v2568 = vadd.f32 %v1227, %v2567
      %2569 = vmatprep.mubr.bf16.mxu0 %v1149
      %2570 = vmatmul.mubr.bf16.gmra.mrb[0].mxu0 %v1148
      %v2571 = vpop.f32.mrb[0].mxu0
      %v2572 = vadd.f32 %v1223, %v2571
      %v2573 = vpop.f32.mrb[0].mxu0
      %v2574 = vadd.f32 %v1227, %v2573
      %v2575 = vpop.f32.mrb[0].mxu0
      %v2576 = vadd.f32 %v1223, %v2575
      %v2577 = vpop.f32.mrb[0].mxu0
      %v2578 = vadd.f32 %v1227, %v2577
      %2579 = vmatprep.mubr.bf16.mxu0 %v1156
      %2580 = vmatmul.mubr.bf16.gmra.mrb[0].mxu0 %v1155
      %v2581 = vpop.f32.mrb[0].mxu0
      %v2582 = vadd.f32 %v1223, %v2581
      %v2583 = vpop.f32.mrb[0].mxu0
      %v2584 = vadd.f32 %v1227, %v2583
      %v2585 = vpop.f32.mrb[0].mxu0
      %v2586 = vadd.f32 %v1223, %v2585
      %v2587 = vpop.f32.mrb[0].mxu0
      %v2588 = vadd.f32 %v1227, %v2587
      %2589 = vmatprep.mubr.bf16.mxu0 %v1163
      %2590 = vmatmul.mubr.bf16.gmra.mrb[0].mxu0 %v1162
      %v2591 = vpop.f32.mrb[0].mxu0
      %v2592 = vadd.f32 %v1223, %v2591
      %v2593 = vpop.f32.mrb[0].mxu0
      %v2594 = vadd.f32 %v1227, %v2593
      %v2595 = vpop.f32.mrb[0].mxu0
      %v2596 = vadd.f32 %v1223, %v2595
      %v2597 = vpop.f32.mrb[0].mxu0
      %v2598 = vadd.f32 %v1227, %v2597
      %2599 = vmatprep.mubr.bf16.mxu0 %v1170
      %2600 = vmatmul.mubr.bf16.gmra.mrb[0].mxu0 %v1169
      %v2601 = vpop.f32.mrb[0].mxu0
      %v2602 = vadd.f32 %v1223, %v2601
      %v2603 = vpop.f32.mrb[0].mxu0
      %v2604 = vadd.f32 %v1227, %v2603
      %v2605 = vpop.f32.mrb[0].mxu0
      %v2606 = vadd.f32 %v1223, %v2605
      %v2607 = vpop.f32.mrb[0].mxu0
      %v2608 = vadd.f32 %v1227, %v2607
      %2609 = vmatprep.mubr.bf16.mxu0 %v1177
      %2610 = vmatmul.mubr.bf16.gmra.mrb[0].mxu0 %v1176
      %v2611 = vpop.f32.mrb[0].mxu0
      %v2612 = vadd.f32 %v1223, %v2611
      %v2613 = vpop.f32.mrb[0].mxu0
      %v2614 = vadd.f32 %v1227, %v2613
      %v2615 = vpop.f32.mrb[0].mxu0
      %v2616 = vadd.f32 %v1223, %v2615
      %v2617 = vpop.f32.mrb[0].mxu0
      %v2618 = vadd.f32 %v1227, %v2617
      %2619 = vmatprep.mubr.bf16.mxu0 %v1184
      %2620 = vmatmul.mubr.bf16.gmra.mrb[0].mxu0 %v1183
      %v2621 = vpop.f32.mrb[0].mxu0
      %v2622 = vadd.f32 %v1223, %v2621
      %v2623 = vpop.f32.mrb[0].mxu0
      %v2624 = vadd.f32 %v1227, %v2623
      %v2625 = vpop.f32.mrb[0].mxu0
      %v2626 = vadd.f32 %v1223, %v2625
      %v2627 = vpop.f32.mrb[0].mxu0
      %v2628 = vadd.f32 %v1227, %v2627
      %2629 = vmatprep.mubr.bf16.mxu0 %v1191
      %2630 = vmatmul.mubr.bf16.gmra.mrb[0].mxu0 %v1190
      %v2631 = vpop.f32.mrb[0].mxu0
      %v2632 = vadd.f32 %v1223, %v2631
      %v2633 = vpop.f32.mrb[0].mxu0
      %v2634 = vadd.f32 %v1227, %v2633
      %v2635 = vpop.f32.mrb[0].mxu0
      %v2636 = vadd.f32 %v1223, %v2635
      %v2637 = vpop.f32.mrb[0].mxu0
      %v2638 = vadd.f32 %v1227, %v2637
      %2639 = vmatprep.mubr.bf16.mxu0 %v1198
      %2640 = vmatmul.mubr.bf16.gmra.mrb[0].mxu0 %v1197
      %v2641 = vpop.f32.mrb[0].mxu0
      %v2642 = vadd.f32 %v1223, %v2641
      %v2643 = vpop.f32.mrb[0].mxu0
      %v2644 = vadd.f32 %v1227, %v2643
      %v2645 = vpop.f32.mrb[0].mxu0
      %v2646 = vadd.f32 %v1223, %v2645
      %v2647 = vpop.f32.mrb[0].mxu0
      %v2648 = vadd.f32 %v1227, %v2647
      %2649 = vmatprep.mubr.bf16.mxu0 %v1205
      %2650 = vmatmul.mubr.bf16.gmra.mrb[0].mxu0 %v1204
      %v2651 = vpop.f32.mrb[0].mxu0
      %v2652 = vadd.f32 %v1223, %v2651
      %v2653 = vpop.f32.mrb[0].mxu0
      %v2654 = vadd.f32 %v1227, %v2653
      %v2655 = vpop.f32.mrb[0].mxu0
      %v2656 = vadd.f32 %v1223, %v2655
      %v2657 = vpop.f32.mrb[0].mxu0
      %v2658 = vadd.f32 %v1227, %v2657
      %2659 = vmatprep.mubr.bf16.mxu0 %v1212
      %2660 = vmatmul.mubr.bf16.gmra.mrb[0].mxu0 %v1211
      %v2661 = vpop.f32.mrb[0].mxu0
      %v2662 = vadd.f32 %v1223, %v2661
      %v2663 = vpop.f32.mrb[0].mxu0
      %v2664 = vadd.f32 %v1227, %v2663
      %v2665 = vpop.f32.mrb[0].mxu0
      %v2666 = vadd.f32 %v1223, %v2665
      %v2667 = vpop.f32.mrb[0].mxu0
      %v2668 = vadd.f32 %v1227, %v2667
      %2669 = vdwg.mxu0
      %2670 = vmatprep.subr.bf16.mxu0 %v1893
      %2671 = vmatpush1.bf16.msra.mxu0 %v1892
      %2672 = vmatprep.subr.bf16.mxu0 %v1897
      %2673 = vmatpush1.bf16.msra.mxu0 %v1896
      %2674 = vmatprep.subr.bf16.mxu0 %v1901
      %2675 = vmatpush1.bf16.msra.mxu0 %v1900
      %2676 = vmatprep.subr.bf16.mxu0 %v1905
      %2677 = vmatpush1.bf16.msra.mxu0 %v1904
      %2678 = vmatprep.subr.bf16.mxu0 %v1909
      %2679 = vmatpush1.bf16.msra.mxu0 %v1908
      %2680 = vmatprep.subr.bf16.mxu0 %v1913
      %2681 = vmatpush1.bf16.msra.mxu0 %v1912
      %2682 = vmatprep.subr.bf16.mxu0 %v1917
      %2683 = vmatpush1.bf16.msra.mxu0 %v1916
      %2684 = vmatprep.subr.bf16.mxu0 %v1921
      %2685 = vmatpush1.bf16.msra.mxu0 %v1920
      %2686 = vmatprep.subr.bf16.mxu0 %v1925
      %2687 = vmatpush1.bf16.msra.mxu0 %v1924
      %2688 = vmatprep.subr.bf16.mxu0 %v1929
      %2689 = vmatpush1.bf16.msra.mxu0 %v1928
      %2690 = vmatprep.subr.bf16.mxu0 %v1933
      %2691 = vmatpush1.bf16.msra.mxu0 %v1932
      %2692 = vmatprep.subr.bf16.mxu0 %v1937
      %2693 = vmatpush1.bf16.msra.mxu0 %v1936
      %2694 = vmatprep.subr.bf16.mxu0 %v1941
      %2695 = vmatpush1.bf16.msra.mxu0 %v1940
      %2696 = vmatprep.subr.bf16.mxu0 %v1945
      %2697 = vmatpush1.bf16.msra.mxu0 %v1944
      %2698 = vmatprep.subr.bf16.mxu0 %v1949
      %2699 = vmatpush1.bf16.msra.mxu0 %v1948
      %2700 = vmatprep.subr.bf16.mxu0 %v1953
      %2701 = vmatpush1.bf16.msra.mxu0 %v1952
      %2702 = vmatprep.mubr.bf16.mxu0 %v997
      %2703 = vmatmul.mubr.bf16.gmra.mrb[0].mxu0 %v996
      %v2704 = vpop.f32.mrb[0].mxu0
      %v2705 = vadd.f32 %v2352, %v2704
      %v2706 = vpop.f32.mrb[0].mxu0
      %v2707 = vadd.f32 %v2354, %v2706
      %v2708 = vpop.f32.mrb[0].mxu0
      %v2709 = vadd.f32 %v2356, %v2708
      %v2710 = vpop.f32.mrb[0].mxu0
      %v2711 = vadd.f32 %v2358, %v2710
      %2712 = vmatprep.mubr.bf16.mxu0 %v1004
      %2713 = vmatmul.mubr.bf16.gmra.mrb[0].mxu0 %v1003
      %v2714 = vpop.f32.mrb[0].mxu0
      %v2715 = vadd.f32 %v2362, %v2714
      %v2716 = vpop.f32.mrb[0].mxu0
      %v2717 = vadd.f32 %v2364, %v2716
      %v2718 = vpop.f32.mrb[0].mxu0
      %v2719 = vadd.f32 %v2366, %v2718
      %v2720 = vpop.f32.mrb[0].mxu0
      %v2721 = vadd.f32 %v2368, %v2720
      %2722 = vmatprep.mubr.bf16.mxu0 %v1011
      %2723 = vmatmul.mubr.bf16.gmra.mrb[0].mxu0 %v1010
      %v2724 = vpop.f32.mrb[0].mxu0
      %v2725 = vadd.f32 %v2372, %v2724
      %v2726 = vpop.f32.mrb[0].mxu0
      %v2727 = vadd.f32 %v2374, %v2726
      %v2728 = vpop.f32.mrb[0].mxu0
      %v2729 = vadd.f32 %v2376, %v2728
      %v2730 = vpop.f32.mrb[0].mxu0
      %v2731 = vadd.f32 %v2378, %v2730
      %2732 = vmatprep.mubr.bf16.mxu0 %v1018
      %2733 = vmatmul.mubr.bf16.gmra.mrb[0].mxu0 %v1017
      %v2734 = vpop.f32.mrb[0].mxu0
      %v2735 = vadd.f32 %v2382, %v2734
      %v2736 = vpop.f32.mrb[0].mxu0
      %v2737 = vadd.f32 %v2384, %v2736
      %v2738 = vpop.f32.mrb[0].mxu0
      %v2739 = vadd.f32 %v2386, %v2738
      %v2740 = vpop.f32.mrb[0].mxu0
      %v2741 = vadd.f32 %v2388, %v2740
      %2742 = vmatprep.mubr.bf16.mxu0 %v1025
      %2743 = vmatmul.mubr.bf16.gmra.mrb[0].mxu0 %v1024
      %v2744 = vpop.f32.mrb[0].mxu0
      %v2745 = vadd.f32 %v2392, %v2744
      %v2746 = vpop.f32.mrb[0].mxu0
      %v2747 = vadd.f32 %v2394, %v2746
      %v2748 = vpop.f32.mrb[0].mxu0
      %v2749 = vadd.f32 %v2396, %v2748
      %v2750 = vpop.f32.mrb[0].mxu0
      %v2751 = vadd.f32 %v2398, %v2750
      %2752 = vmatprep.mubr.bf16.mxu0 %v1032
      %2753 = vmatmul.mubr.bf16.gmra.mrb[0].mxu0 %v1031
      %v2754 = vpop.f32.mrb[0].mxu0
      %v2755 = vadd.f32 %v2402, %v2754
      %v2756 = vpop.f32.mrb[0].mxu0
      %v2757 = vadd.f32 %v2404, %v2756
      %v2758 = vpop.f32.mrb[0].mxu0
      %v2759 = vadd.f32 %v2406, %v2758
      %v2760 = vpop.f32.mrb[0].mxu0
      %v2761 = vadd.f32 %v2408, %v2760
      %2762 = vmatprep.mubr.bf16.mxu0 %v1039
      %2763 = vmatmul.mubr.bf16.gmra.mrb[0].mxu0 %v1038
      %v2764 = vpop.f32.mrb[0].mxu0
      %v2765 = vadd.f32 %v2412, %v2764
      %v2766 = vpop.f32.mrb[0].mxu0
      %v2767 = vadd.f32 %v2414, %v2766
      %v2768 = vpop.f32.mrb[0].mxu0
      %v2769 = vadd.f32 %v2416, %v2768
      %v2770 = vpop.f32.mrb[0].mxu0
      %v2771 = vadd.f32 %v2418, %v2770
      %2772 = vmatprep.mubr.bf16.mxu0 %v1046
      %2773 = vmatmul.mubr.bf16.gmra.mrb[0].mxu0 %v1045
      %v2774 = vpop.f32.mrb[0].mxu0
      %v2775 = vadd.f32 %v2422, %v2774
      %v2776 = vpop.f32.mrb[0].mxu0
      %v2777 = vadd.f32 %v2424, %v2776
      %v2778 = vpop.f32.mrb[0].mxu0
      %v2779 = vadd.f32 %v2426, %v2778
      %v2780 = vpop.f32.mrb[0].mxu0
      %v2781 = vadd.f32 %v2428, %v2780
      %2782 = vmatprep.mubr.bf16.mxu0 %v1053
      %2783 = vmatmul.mubr.bf16.gmra.mrb[0].mxu0 %v1052
      %v2784 = vpop.f32.mrb[0].mxu0
      %v2785 = vadd.f32 %v2432, %v2784
      %v2786 = vpop.f32.mrb[0].mxu0
      %v2787 = vadd.f32 %v2434, %v2786
      %v2788 = vpop.f32.mrb[0].mxu0
      %v2789 = vadd.f32 %v2436, %v2788
      %v2790 = vpop.f32.mrb[0].mxu0
      %v2791 = vadd.f32 %v2438, %v2790
      %2792 = vmatprep.mubr.bf16.mxu0 %v1060
      %2793 = vmatmul.mubr.bf16.gmra.mrb[0].mxu0 %v1059
      %v2794 = vpop.f32.mrb[0].mxu0
      %v2795 = vadd.f32 %v2442, %v2794
      %v2796 = vpop.f32.mrb[0].mxu0
      %v2797 = vadd.f32 %v2444, %v2796
      %v2798 = vpop.f32.mrb[0].mxu0
      %v2799 = vadd.f32 %v2446, %v2798
      %v2800 = vpop.f32.mrb[0].mxu0
      %v2801 = vadd.f32 %v2448, %v2800
      %2802 = vmatprep.mubr.bf16.mxu0 %v1067
      %2803 = vmatmul.mubr.bf16.gmra.mrb[0].mxu0 %v1066
      %v2804 = vpop.f32.mrb[0].mxu0
      %v2805 = vadd.f32 %v2452, %v2804
      %v2806 = vpop.f32.mrb[0].mxu0
      %v2807 = vadd.f32 %v2454, %v2806
      %v2808 = vpop.f32.mrb[0].mxu0
      %v2809 = vadd.f32 %v2456, %v2808
      %v2810 = vpop.f32.mrb[0].mxu0
      %v2811 = vadd.f32 %v2458, %v2810
      %2812 = vmatprep.mubr.bf16.mxu0 %v1074
      %2813 = vmatmul.mubr.bf16.gmra.mrb[0].mxu0 %v1073
      %v2814 = vpop.f32.mrb[0].mxu0
      %v2815 = vadd.f32 %v2462, %v2814
      %v2816 = vpop.f32.mrb[0].mxu0
      %v2817 = vadd.f32 %v2464, %v2816
      %v2818 = vpop.f32.mrb[0].mxu0
      %v2819 = vadd.f32 %v2466, %v2818
      %v2820 = vpop.f32.mrb[0].mxu0
      %v2821 = vadd.f32 %v2468, %v2820
      %2822 = vmatprep.mubr.bf16.mxu0 %v1081
      %2823 = vmatmul.mubr.bf16.gmra.mrb[0].mxu0 %v1080
      %v2824 = vpop.f32.mrb[0].mxu0
      %v2825 = vadd.f32 %v2472, %v2824
      %v2826 = vpop.f32.mrb[0].mxu0
      %v2827 = vadd.f32 %v2474, %v2826
      %v2828 = vpop.f32.mrb[0].mxu0
      %v2829 = vadd.f32 %v2476, %v2828
      %v2830 = vpop.f32.mrb[0].mxu0
      %v2831 = vadd.f32 %v2478, %v2830
      %2832 = vmatprep.mubr.bf16.mxu0 %v1088
      %2833 = vmatmul.mubr.bf16.gmra.mrb[0].mxu0 %v1087
      %v2834 = vpop.f32.mrb[0].mxu0
      %v2835 = vadd.f32 %v2482, %v2834
      %v2836 = vpop.f32.mrb[0].mxu0
      %v2837 = vadd.f32 %v2484, %v2836
      %v2838 = vpop.f32.mrb[0].mxu0
      %v2839 = vadd.f32 %v2486, %v2838
      %v2840 = vpop.f32.mrb[0].mxu0
      %v2841 = vadd.f32 %v2488, %v2840
      %2842 = vmatprep.mubr.bf16.mxu0 %v1095
      %2843 = vmatmul.mubr.bf16.gmra.mrb[0].mxu0 %v1094
      %v2844 = vpop.f32.mrb[0].mxu0
      %v2845 = vadd.f32 %v2492, %v2844
      %v2846 = vpop.f32.mrb[0].mxu0
      %v2847 = vadd.f32 %v2494, %v2846
      %v2848 = vpop.f32.mrb[0].mxu0
      %v2849 = vadd.f32 %v2496, %v2848
      %v2850 = vpop.f32.mrb[0].mxu0
      %v2851 = vadd.f32 %v2498, %v2850
      %2852 = vmatprep.mubr.bf16.mxu0 %v1102
      %2853 = vmatmul.mubr.bf16.gmra.mrb[0].mxu0 %v1101
      %v2854 = vpop.f32.mrb[0].mxu0
      %v2855 = vadd.f32 %v2502, %v2854
      %v2856 = vpop.f32.mrb[0].mxu0
      %v2857 = vadd.f32 %v2504, %v2856
      %v2858 = vpop.f32.mrb[0].mxu0
      %v2859 = vadd.f32 %v2506, %v2858
      %v2860 = vpop.f32.mrb[0].mxu0
      %v2861 = vadd.f32 %v2508, %v2860
      %2862 = vmatprep.mubr.bf16.mxu0 %v1109
      %2863 = vmatmul.mubr.bf16.gmra.mrb[0].mxu0 %v1108
      %v2864 = vpop.f32.mrb[0].mxu0
      %v2865 = vadd.f32 %v2512, %v2864
      %v2866 = vpop.f32.mrb[0].mxu0
      %v2867 = vadd.f32 %v2514, %v2866
      %v2868 = vpop.f32.mrb[0].mxu0
      %v2869 = vadd.f32 %v2516, %v2868
      %v2870 = vpop.f32.mrb[0].mxu0
      %v2871 = vadd.f32 %v2518, %v2870
      %2872 = vmatprep.mubr.bf16.mxu0 %v1116
      %2873 = vmatmul.mubr.bf16.gmra.mrb[0].mxu0 %v1115
      %v2874 = vpop.f32.mrb[0].mxu0
      %v2875 = vadd.f32 %v2522, %v2874
      %v2876 = vpop.f32.mrb[0].mxu0
      %v2877 = vadd.f32 %v2524, %v2876
      %v2878 = vpop.f32.mrb[0].mxu0
      %v2879 = vadd.f32 %v2526, %v2878
      %v2880 = vpop.f32.mrb[0].mxu0
      %v2881 = vadd.f32 %v2528, %v2880
      %2882 = vmatprep.mubr.bf16.mxu0 %v1123
      %2883 = vmatmul.mubr.bf16.gmra.mrb[0].mxu0 %v1122
      %v2884 = vpop.f32.mrb[0].mxu0
      %v2885 = vadd.f32 %v2532, %v2884
      %v2886 = vpop.f32.mrb[0].mxu0
      %v2887 = vadd.f32 %v2534, %v2886
      %v2888 = vpop.f32.mrb[0].mxu0
      %v2889 = vadd.f32 %v2536, %v2888
      %v2890 = vpop.f32.mrb[0].mxu0
      %v2891 = vadd.f32 %v2538, %v2890
      %2892 = vmatprep.mubr.bf16.mxu0 %v1130
      %2893 = vmatmul.mubr.bf16.gmra.mrb[0].mxu0 %v1129
      %v2894 = vpop.f32.mrb[0].mxu0
      %v2895 = vadd.f32 %v2542, %v2894
      %v2896 = vpop.f32.mrb[0].mxu0
      %v2897 = vadd.f32 %v2544, %v2896
      %v2898 = vpop.f32.mrb[0].mxu0
      %v2899 = vadd.f32 %v2546, %v2898
      %v2900 = vpop.f32.mrb[0].mxu0
      %v2901 = vadd.f32 %v2548, %v2900
      %2902 = vmatprep.mubr.bf16.mxu0 %v1137
      %2903 = vmatmul.mubr.bf16.gmra.mrb[0].mxu0 %v1136
      %v2904 = vpop.f32.mrb[0].mxu0
      %v2905 = vadd.f32 %v2552, %v2904
      %v2906 = vpop.f32.mrb[0].mxu0
      %v2907 = vadd.f32 %v2554, %v2906
      %v2908 = vpop.f32.mrb[0].mxu0
      %v2909 = vadd.f32 %v2556, %v2908
      %v2910 = vpop.f32.mrb[0].mxu0
      %v2911 = vadd.f32 %v2558, %v2910
      %2912 = vmatprep.mubr.bf16.mxu0 %v1144
      %2913 = vmatmul.mubr.bf16.gmra.mrb[0].mxu0 %v1143
      %v2914 = vpop.f32.mrb[0].mxu0
      %v2915 = vadd.f32 %v2562, %v2914
      %v2916 = vpop.f32.mrb[0].mxu0
      %v2917 = vadd.f32 %v2564, %v2916
      %v2918 = vpop.f32.mrb[0].mxu0
      %v2919 = vadd.f32 %v2566, %v2918
      %v2920 = vpop.f32.mrb[0].mxu0
      %v2921 = vadd.f32 %v2568, %v2920
      %2922 = vmatprep.mubr.bf16.mxu0 %v1151
      %2923 = vmatmul.mubr.bf16.gmra.mrb[0].mxu0 %v1150
      %v2924 = vpop.f32.mrb[0].mxu0
      %v2925 = vadd.f32 %v2572, %v2924
      %v2926 = vpop.f32.mrb[0].mxu0
      %v2927 = vadd.f32 %v2574, %v2926
      %v2928 = vpop.f32.mrb[0].mxu0
      %v2929 = vadd.f32 %v2576, %v2928
      %v2930 = vpop.f32.mrb[0].mxu0
      %v2931 = vadd.f32 %v2578, %v2930
      %2932 = vmatprep.mubr.bf16.mxu0 %v1158
      %2933 = vmatmul.mubr.bf16.gmra.mrb[0].mxu0 %v1157
      %v2934 = vpop.f32.mrb[0].mxu0
      %v2935 = vadd.f32 %v2582, %v2934
      %v2936 = vpop.f32.mrb[0].mxu0
      %v2937 = vadd.f32 %v2584, %v2936
      %v2938 = vpop.f32.mrb[0].mxu0
      %v2939 = vadd.f32 %v2586, %v2938
      %v2940 = vpop.f32.mrb[0].mxu0
      %v2941 = vadd.f32 %v2588, %v2940
      %2942 = vmatprep.mubr.bf16.mxu0 %v1165
      %2943 = vmatmul.mubr.bf16.gmra.mrb[0].mxu0 %v1164
      %v2944 = vpop.f32.mrb[0].mxu0
      %v2945 = vadd.f32 %v2592, %v2944
      %v2946 = vpop.f32.mrb[0].mxu0
      %v2947 = vadd.f32 %v2594, %v2946
      %v2948 = vpop.f32.mrb[0].mxu0
      %v2949 = vadd.f32 %v2596, %v2948
      %v2950 = vpop.f32.mrb[0].mxu0
      %v2951 = vadd.f32 %v2598, %v2950
      %2952 = vmatprep.mubr.bf16.mxu0 %v1172
      %2953 = vmatmul.mubr.bf16.gmra.mrb[0].mxu0 %v1171
      %v2954 = vpop.f32.mrb[0].mxu0
      %v2955 = vadd.f32 %v2602, %v2954
      %v2956 = vpop.f32.mrb[0].mxu0
      %v2957 = vadd.f32 %v2604, %v2956
      %v2958 = vpop.f32.mrb[0].mxu0
      %v2959 = vadd.f32 %v2606, %v2958
      %v2960 = vpop.f32.mrb[0].mxu0
      %v2961 = vadd.f32 %v2608, %v2960
      %2962 = vmatprep.mubr.bf16.mxu0 %v1179
      %2963 = vmatmul.mubr.bf16.gmra.mrb[0].mxu0 %v1178
      %v2964 = vpop.f32.mrb[0].mxu0
      %v2965 = vadd.f32 %v2612, %v2964
      %v2966 = vpop.f32.mrb[0].mxu0
      %v2967 = vadd.f32 %v2614, %v2966
      %v2968 = vpop.f32.mrb[0].mxu0
      %v2969 = vadd.f32 %v2616, %v2968
      %v2970 = vpop.f32.mrb[0].mxu0
      %v2971 = vadd.f32 %v2618, %v2970
      %2972 = vmatprep.mubr.bf16.mxu0 %v1186
      %2973 = vmatmul.mubr.bf16.gmra.mrb[0].mxu0 %v1185
      %v2974 = vpop.f32.mrb[0].mxu0
      %v2975 = vadd.f32 %v2622, %v2974
      %v2976 = vpop.f32.mrb[0].mxu0
      %v2977 = vadd.f32 %v2624, %v2976
      %v2978 = vpop.f32.mrb[0].mxu0
      %v2979 = vadd.f32 %v2626, %v2978
      %v2980 = vpop.f32.mrb[0].mxu0
      %v2981 = vadd.f32 %v2628, %v2980
      %2982 = vmatprep.mubr.bf16.mxu0 %v1193
      %2983 = vmatmul.mubr.bf16.gmra.mrb[0].mxu0 %v1192
      %v2984 = vpop.f32.mrb[0].mxu0
      %v2985 = vadd.f32 %v2632, %v2984
      %v2986 = vpop.f32.mrb[0].mxu0
      %v2987 = vadd.f32 %v2634, %v2986
      %v2988 = vpop.f32.mrb[0].mxu0
      %v2989 = vadd.f32 %v2636, %v2988
      %v2990 = vpop.f32.mrb[0].mxu0
      %v2991 = vadd.f32 %v2638, %v2990
      %2992 = vmatprep.mubr.bf16.mxu0 %v1200
      %2993 = vmatmul.mubr.bf16.gmra.mrb[0].mxu0 %v1199
      %v2994 = vpop.f32.mrb[0].mxu0
      %v2995 = vadd.f32 %v2642, %v2994
      %v2996 = vpop.f32.mrb[0].mxu0
      %v2997 = vadd.f32 %v2644, %v2996
      %v2998 = vpop.f32.mrb[0].mxu0
      %v2999 = vadd.f32 %v2646, %v2998
      %v3000 = vpop.f32.mrb[0].mxu0
      %v3001 = vadd.f32 %v2648, %v3000
      %3002 = vmatprep.mubr.bf16.mxu0 %v1207
      %3003 = vmatmul.mubr.bf16.gmra.mrb[0].mxu0 %v1206
      %v3004 = vpop.f32.mrb[0].mxu0
      %v3005 = vadd.f32 %v2652, %v3004
      %v3006 = vpop.f32.mrb[0].mxu0
      %v3007 = vadd.f32 %v2654, %v3006
      %v3008 = vpop.f32.mrb[0].mxu0
      %v3009 = vadd.f32 %v2656, %v3008
      %v3010 = vpop.f32.mrb[0].mxu0
      %v3011 = vadd.f32 %v2658, %v3010
      %3012 = vmatprep.mubr.bf16.mxu0 %v1214
      %3013 = vmatmul.mubr.bf16.gmra.mrb[0].mxu0 %v1213
      %v3014 = vpop.f32.mrb[0].mxu0
      %v3015 = vadd.f32 %v2662, %v3014
      %v3016 = vpop.f32.mrb[0].mxu0
      %v3017 = vadd.f32 %v2664, %v3016
      %v3018 = vpop.f32.mrb[0].mxu0
      %v3019 = vadd.f32 %v2666, %v3018
      %v3020 = vpop.f32.mrb[0].mxu0
      %v3021 = vadd.f32 %v2668, %v3020
      %3022 = vdwg.mxu0
      %3023 = vmatprep.subr.bf16.mxu0 %v1957
      %3024 = vmatpush1.bf16.msra.mxu0 %v1956
      %3025 = vmatprep.subr.bf16.mxu0 %v1961
      %3026 = vmatpush1.bf16.msra.mxu0 %v1960
      %3027 = vmatprep.subr.bf16.mxu0 %v1965
      %3028 = vmatpush1.bf16.msra.mxu0 %v1964
      %3029 = vmatprep.subr.bf16.mxu0 %v1969
      %3030 = vmatpush1.bf16.msra.mxu0 %v1968
      %3031 = vmatprep.subr.bf16.mxu0 %v1973
      %3032 = vmatpush1.bf16.msra.mxu0 %v1972
      %3033 = vmatprep.subr.bf16.mxu0 %v1977
      %3034 = vmatpush1.bf16.msra.mxu0 %v1976
      %3035 = vmatprep.subr.bf16.mxu0 %v1981
      %3036 = vmatpush1.bf16.msra.mxu0 %v1980
      %3037 = vmatprep.subr.bf16.mxu0 %v1985
      %3038 = vmatpush1.bf16.msra.mxu0 %v1984
      %3039 = vmatprep.subr.bf16.mxu0 %v1989
      %3040 = vmatpush1.bf16.msra.mxu0 %v1988
      %3041 = vmatprep.subr.bf16.mxu0 %v1993
      %3042 = vmatpush1.bf16.msra.mxu0 %v1992
      %3043 = vmatprep.subr.bf16.mxu0 %v1997
      %3044 = vmatpush1.bf16.msra.mxu0 %v1996
      %3045 = vmatprep.subr.bf16.mxu0 %v2001
      %3046 = vmatpush1.bf16.msra.mxu0 %v2000
      %3047 = vmatprep.subr.bf16.mxu0 %v2005
      %3048 = vmatpush1.bf16.msra.mxu0 %v2004
      %3049 = vmatprep.subr.bf16.mxu0 %v2009
      %3050 = vmatpush1.bf16.msra.mxu0 %v2008
      %3051 = vmatprep.subr.bf16.mxu0 %v2013
      %3052 = vmatpush1.bf16.msra.mxu0 %v2012
      %3053 = vmatprep.subr.bf16.mxu0 %v2017
      %3054 = vmatpush1.bf16.msra.mxu0 %v2016
      %3055 = vmatprep.mubr.bf16.mxu0 %v999
      %3056 = vmatmul.mubr.bf16.gmra.mrb[0].mxu0 %v998
      %v3057 = vpop.f32.mrb[0].mxu0
      %v3058 = vadd.f32 %v2705, %v3057
      %v3059 = vpop.f32.mrb[0].mxu0
      %v3060 = vadd.f32 %v2707, %v3059
      %v3061 = vpop.f32.mrb[0].mxu0
      %v3062 = vadd.f32 %v2709, %v3061
      %v3063 = vpop.f32.mrb[0].mxu0
      %v3064 = vadd.f32 %v2711, %v3063
      %3065 = vmatprep.mubr.bf16.mxu0 %v1006
      %3066 = vmatmul.mubr.bf16.gmra.mrb[0].mxu0 %v1005
      %v3067 = vpop.f32.mrb[0].mxu0
      %v3068 = vadd.f32 %v2715, %v3067
      %v3069 = vpop.f32.mrb[0].mxu0
      %v3070 = vadd.f32 %v2717, %v3069
      %v3071 = vpop.f32.mrb[0].mxu0
      %v3072 = vadd.f32 %v2719, %v3071
      %v3073 = vpop.f32.mrb[0].mxu0
      %v3074 = vadd.f32 %v2721, %v3073
      %3075 = vmatprep.mubr.bf16.mxu0 %v1013
      %3076 = vmatmul.mubr.bf16.gmra.mrb[0].mxu0 %v1012
      %v3077 = vpop.f32.mrb[0].mxu0
      %v3078 = vadd.f32 %v2725, %v3077
      %v3079 = vpop.f32.mrb[0].mxu0
      %v3080 = vadd.f32 %v2727, %v3079
      %v3081 = vpop.f32.mrb[0].mxu0
      %v3082 = vadd.f32 %v2729, %v3081
      %v3083 = vpop.f32.mrb[0].mxu0
      %v3084 = vadd.f32 %v2731, %v3083
      %3085 = vmatprep.mubr.bf16.mxu0 %v1020
      %3086 = vmatmul.mubr.bf16.gmra.mrb[0].mxu0 %v1019
      %v3087 = vpop.f32.mrb[0].mxu0
      %v3088 = vadd.f32 %v2735, %v3087
      %v3089 = vpop.f32.mrb[0].mxu0
      %v3090 = vadd.f32 %v2737, %v3089
      %v3091 = vpop.f32.mrb[0].mxu0
      %v3092 = vadd.f32 %v2739, %v3091
      %v3093 = vpop.f32.mrb[0].mxu0
      %v3094 = vadd.f32 %v2741, %v3093
      %3095 = vmatprep.mubr.bf16.mxu0 %v1027
      %3096 = vmatmul.mubr.bf16.gmra.mrb[0].mxu0 %v1026
      %v3097 = vpop.f32.mrb[0].mxu0
      %v3098 = vadd.f32 %v2745, %v3097
      %v3099 = vpop.f32.mrb[0].mxu0
      %v3100 = vadd.f32 %v2747, %v3099
      %v3101 = vpop.f32.mrb[0].mxu0
      %v3102 = vadd.f32 %v2749, %v3101
      %v3103 = vpop.f32.mrb[0].mxu0
      %v3104 = vadd.f32 %v2751, %v3103
      %3105 = vmatprep.mubr.bf16.mxu0 %v1034
      %3106 = vmatmul.mubr.bf16.gmra.mrb[0].mxu0 %v1033
      %v3107 = vpop.f32.mrb[0].mxu0
      %v3108 = vadd.f32 %v2755, %v3107
      %v3109 = vpop.f32.mrb[0].mxu0
      %v3110 = vadd.f32 %v2757, %v3109
      %v3111 = vpop.f32.mrb[0].mxu0
      %v3112 = vadd.f32 %v2759, %v3111
      %v3113 = vpop.f32.mrb[0].mxu0
      %v3114 = vadd.f32 %v2761, %v3113
      %3115 = vmatprep.mubr.bf16.mxu0 %v1041
      %3116 = vmatmul.mubr.bf16.gmra.mrb[0].mxu0 %v1040
      %v3117 = vpop.f32.mrb[0].mxu0
      %v3118 = vadd.f32 %v2765, %v3117
      %v3119 = vpop.f32.mrb[0].mxu0
      %v3120 = vadd.f32 %v2767, %v3119
      %v3121 = vpop.f32.mrb[0].mxu0
      %v3122 = vadd.f32 %v2769, %v3121
      %v3123 = vpop.f32.mrb[0].mxu0
      %v3124 = vadd.f32 %v2771, %v3123
      %3125 = vmatprep.mubr.bf16.mxu0 %v1048
      %3126 = vmatmul.mubr.bf16.gmra.mrb[0].mxu0 %v1047
      %v3127 = vpop.f32.mrb[0].mxu0
      %v3128 = vadd.f32 %v2775, %v3127
      %v3129 = vpop.f32.mrb[0].mxu0
      %v3130 = vadd.f32 %v2777, %v3129
      %v3131 = vpop.f32.mrb[0].mxu0
      %v3132 = vadd.f32 %v2779, %v3131
      %v3133 = vpop.f32.mrb[0].mxu0
      %v3134 = vadd.f32 %v2781, %v3133
      %3135 = vmatprep.mubr.bf16.mxu0 %v1055
      %3136 = vmatmul.mubr.bf16.gmra.mrb[0].mxu0 %v1054
      %v3137 = vpop.f32.mrb[0].mxu0
      %v3138 = vadd.f32 %v2785, %v3137
      %v3139 = vpop.f32.mrb[0].mxu0
      %v3140 = vadd.f32 %v2787, %v3139
      %v3141 = vpop.f32.mrb[0].mxu0
      %v3142 = vadd.f32 %v2789, %v3141
      %v3143 = vpop.f32.mrb[0].mxu0
      %v3144 = vadd.f32 %v2791, %v3143
      %3145 = vmatprep.mubr.bf16.mxu0 %v1062
      %3146 = vmatmul.mubr.bf16.gmra.mrb[0].mxu0 %v1061
      %v3147 = vpop.f32.mrb[0].mxu0
      %v3148 = vadd.f32 %v2795, %v3147
      %v3149 = vpop.f32.mrb[0].mxu0
      %v3150 = vadd.f32 %v2797, %v3149
      %v3151 = vpop.f32.mrb[0].mxu0
      %v3152 = vadd.f32 %v2799, %v3151
      %v3153 = vpop.f32.mrb[0].mxu0
      %v3154 = vadd.f32 %v2801, %v3153
      %3155 = vmatprep.mubr.bf16.mxu0 %v1069
      %3156 = vmatmul.mubr.bf16.gmra.mrb[0].mxu0 %v1068
      %v3157 = vpop.f32.mrb[0].mxu0
      %v3158 = vadd.f32 %v2805, %v3157
      %v3159 = vpop.f32.mrb[0].mxu0
      %v3160 = vadd.f32 %v2807, %v3159
      %v3161 = vpop.f32.mrb[0].mxu0
      %v3162 = vadd.f32 %v2809, %v3161
      %v3163 = vpop.f32.mrb[0].mxu0
      %v3164 = vadd.f32 %v2811, %v3163
      %3165 = vmatprep.mubr.bf16.mxu0 %v1076
      %3166 = vmatmul.mubr.bf16.gmra.mrb[0].mxu0 %v1075
      %v3167 = vpop.f32.mrb[0].mxu0
      %v3168 = vadd.f32 %v2815, %v3167
      %v3169 = vpop.f32.mrb[0].mxu0
      %v3170 = vadd.f32 %v2817, %v3169
      %v3171 = vpop.f32.mrb[0].mxu0
      %v3172 = vadd.f32 %v2819, %v3171
      %v3173 = vpop.f32.mrb[0].mxu0
      %v3174 = vadd.f32 %v2821, %v3173
      %3175 = vmatprep.mubr.bf16.mxu0 %v1083
      %3176 = vmatmul.mubr.bf16.gmra.mrb[0].mxu0 %v1082
      %v3177 = vpop.f32.mrb[0].mxu0
      %v3178 = vadd.f32 %v2825, %v3177
      %v3179 = vpop.f32.mrb[0].mxu0
      %v3180 = vadd.f32 %v2827, %v3179
      %v3181 = vpop.f32.mrb[0].mxu0
      %v3182 = vadd.f32 %v2829, %v3181
      %v3183 = vpop.f32.mrb[0].mxu0
      %v3184 = vadd.f32 %v2831, %v3183
      %3185 = vmatprep.mubr.bf16.mxu0 %v1090
      %3186 = vmatmul.mubr.bf16.gmra.mrb[0].mxu0 %v1089
      %v3187 = vpop.f32.mrb[0].mxu0
      %v3188 = vadd.f32 %v2835, %v3187
      %v3189 = vpop.f32.mrb[0].mxu0
      %v3190 = vadd.f32 %v2837, %v3189
      %v3191 = vpop.f32.mrb[0].mxu0
      %v3192 = vadd.f32 %v2839, %v3191
      %v3193 = vpop.f32.mrb[0].mxu0
      %v3194 = vadd.f32 %v2841, %v3193
      %3195 = vmatprep.mubr.bf16.mxu0 %v1097
      %3196 = vmatmul.mubr.bf16.gmra.mrb[0].mxu0 %v1096
      %v3197 = vpop.f32.mrb[0].mxu0
      %v3198 = vadd.f32 %v2845, %v3197
      %v3199 = vpop.f32.mrb[0].mxu0
      %v3200 = vadd.f32 %v2847, %v3199
      %v3201 = vpop.f32.mrb[0].mxu0
      %v3202 = vadd.f32 %v2849, %v3201
      %v3203 = vpop.f32.mrb[0].mxu0
      %v3204 = vadd.f32 %v2851, %v3203
      %3205 = vmatprep.mubr.bf16.mxu0 %v1104
      %3206 = vmatmul.mubr.bf16.gmra.mrb[0].mxu0 %v1103
      %v3207 = vpop.f32.mrb[0].mxu0
      %v3208 = vadd.f32 %v2855, %v3207
      %v3209 = vpop.f32.mrb[0].mxu0
      %v3210 = vadd.f32 %v2857, %v3209
      %v3211 = vpop.f32.mrb[0].mxu0
      %v3212 = vadd.f32 %v2859, %v3211
      %v3213 = vpop.f32.mrb[0].mxu0
      %v3214 = vadd.f32 %v2861, %v3213
      %3215 = vmatprep.mubr.bf16.mxu0 %v1111
      %3216 = vmatmul.mubr.bf16.gmra.mrb[0].mxu0 %v1110
      %v3217 = vpop.f32.mrb[0].mxu0
      %v3218 = vadd.f32 %v2865, %v3217
      %v3219 = vpop.f32.mrb[0].mxu0
      %v3220 = vadd.f32 %v2867, %v3219
      %v3221 = vpop.f32.mrb[0].mxu0
      %v3222 = vadd.f32 %v2869, %v3221
      %v3223 = vpop.f32.mrb[0].mxu0
      %v3224 = vadd.f32 %v2871, %v3223
      %3225 = vmatprep.mubr.bf16.mxu0 %v1118
      %3226 = vmatmul.mubr.bf16.gmra.mrb[0].mxu0 %v1117
      %v3227 = vpop.f32.mrb[0].mxu0
      %v3228 = vadd.f32 %v2875, %v3227
      %v3229 = vpop.f32.mrb[0].mxu0
      %v3230 = vadd.f32 %v2877, %v3229
      %v3231 = vpop.f32.mrb[0].mxu0
      %v3232 = vadd.f32 %v2879, %v3231
      %v3233 = vpop.f32.mrb[0].mxu0
      %v3234 = vadd.f32 %v2881, %v3233
      %3235 = vmatprep.mubr.bf16.mxu0 %v1125
      %3236 = vmatmul.mubr.bf16.gmra.mrb[0].mxu0 %v1124
      %v3237 = vpop.f32.mrb[0].mxu0
      %v3238 = vadd.f32 %v2885, %v3237
      %v3239 = vpop.f32.mrb[0].mxu0
      %v3240 = vadd.f32 %v2887, %v3239
      %v3241 = vpop.f32.mrb[0].mxu0
      %v3242 = vadd.f32 %v2889, %v3241
      %v3243 = vpop.f32.mrb[0].mxu0
      %v3244 = vadd.f32 %v2891, %v3243
      %3245 = vmatprep.mubr.bf16.mxu0 %v1132
      %3246 = vmatmul.mubr.bf16.gmra.mrb[0].mxu0 %v1131
      %v3247 = vpop.f32.mrb[0].mxu0
      %v3248 = vadd.f32 %v2895, %v3247
      %v3249 = vpop.f32.mrb[0].mxu0
      %v3250 = vadd.f32 %v2897, %v3249
      %v3251 = vpop.f32.mrb[0].mxu0
      %v3252 = vadd.f32 %v2899, %v3251
      %v3253 = vpop.f32.mrb[0].mxu0
      %v3254 = vadd.f32 %v2901, %v3253
      %3255 = vmatprep.mubr.bf16.mxu0 %v1139
      %3256 = vmatmul.mubr.bf16.gmra.mrb[0].mxu0 %v1138
      %v3257 = vpop.f32.mrb[0].mxu0
      %v3258 = vadd.f32 %v2905, %v3257
      %v3259 = vpop.f32.mrb[0].mxu0
      %v3260 = vadd.f32 %v2907, %v3259
      %v3261 = vpop.f32.mrb[0].mxu0
      %v3262 = vadd.f32 %v2909, %v3261
      %v3263 = vpop.f32.mrb[0].mxu0
      %v3264 = vadd.f32 %v2911, %v3263
      %3265 = vmatprep.mubr.bf16.mxu0 %v1146
      %3266 = vmatmul.mubr.bf16.gmra.mrb[0].mxu0 %v1145
      %v3267 = vpop.f32.mrb[0].mxu0
      %v3268 = vadd.f32 %v2915, %v3267
      %v3269 = vpop.f32.mrb[0].mxu0
      %v3270 = vadd.f32 %v2917, %v3269
      %v3271 = vpop.f32.mrb[0].mxu0
      %v3272 = vadd.f32 %v2919, %v3271
      %v3273 = vpop.f32.mrb[0].mxu0
      %v3274 = vadd.f32 %v2921, %v3273
      %3275 = vmatprep.mubr.bf16.mxu0 %v1153
      %3276 = vmatmul.mubr.bf16.gmra.mrb[0].mxu0 %v1152
      %v3277 = vpop.f32.mrb[0].mxu0
      %v3278 = vadd.f32 %v2925, %v3277
      %v3279 = vpop.f32.mrb[0].mxu0
      %v3280 = vadd.f32 %v2927, %v3279
      %v3281 = vpop.f32.mrb[0].mxu0
      %v3282 = vadd.f32 %v2929, %v3281
      %v3283 = vpop.f32.mrb[0].mxu0
      %v3284 = vadd.f32 %v2931, %v3283
      %3285 = vmatprep.mubr.bf16.mxu0 %v1160
      %3286 = vmatmul.mubr.bf16.gmra.mrb[0].mxu0 %v1159
      %v3287 = vpop.f32.mrb[0].mxu0
      %v3288 = vadd.f32 %v2935, %v3287
      %v3289 = vpop.f32.mrb[0].mxu0
      %v3290 = vadd.f32 %v2937, %v3289
      %v3291 = vpop.f32.mrb[0].mxu0
      %v3292 = vadd.f32 %v2939, %v3291
      %v3293 = vpop.f32.mrb[0].mxu0
      %v3294 = vadd.f32 %v2941, %v3293
      %3295 = vmatprep.mubr.bf16.mxu0 %v1167
      %3296 = vmatmul.mubr.bf16.gmra.mrb[0].mxu0 %v1166
      %v3297 = vpop.f32.mrb[0].mxu0
      %v3298 = vadd.f32 %v2945, %v3297
      %v3299 = vpop.f32.mrb[0].mxu0
      %v3300 = vadd.f32 %v2947, %v3299
      %v3301 = vpop.f32.mrb[0].mxu0
      %v3302 = vadd.f32 %v2949, %v3301
      %v3303 = vpop.f32.mrb[0].mxu0
      %v3304 = vadd.f32 %v2951, %v3303
      %3305 = vmatprep.mubr.bf16.mxu0 %v1174
      %3306 = vmatmul.mubr.bf16.gmra.mrb[0].mxu0 %v1173
      %v3307 = vpop.f32.mrb[0].mxu0
      %v3308 = vadd.f32 %v2955, %v3307
      %v3309 = vpop.f32.mrb[0].mxu0
      %v3310 = vadd.f32 %v2957, %v3309
      %v3311 = vpop.f32.mrb[0].mxu0
      %v3312 = vadd.f32 %v2959, %v3311
      %v3313 = vpop.f32.mrb[0].mxu0
      %v3314 = vadd.f32 %v2961, %v3313
      %3315 = vmatprep.mubr.bf16.mxu0 %v1181
      %3316 = vmatmul.mubr.bf16.gmra.mrb[0].mxu0 %v1180
      %v3317 = vpop.f32.mrb[0].mxu0
      %v3318 = vadd.f32 %v2965, %v3317
      %v3319 = vpop.f32.mrb[0].mxu0
      %v3320 = vadd.f32 %v2967, %v3319
      %v3321 = vpop.f32.mrb[0].mxu0
      %v3322 = vadd.f32 %v2969, %v3321
      %v3323 = vpop.f32.mrb[0].mxu0
      %v3324 = vadd.f32 %v2971, %v3323
      %3325 = vmatprep.mubr.bf16.mxu0 %v1188
      %3326 = vmatmul.mubr.bf16.gmra.mrb[0].mxu0 %v1187
      %v3327 = vpop.f32.mrb[0].mxu0
      %v3328 = vadd.f32 %v2975, %v3327
      %v3329 = vpop.f32.mrb[0].mxu0
      %v3330 = vadd.f32 %v2977, %v3329
      %v3331 = vpop.f32.mrb[0].mxu0
      %v3332 = vadd.f32 %v2979, %v3331
      %v3333 = vpop.f32.mrb[0].mxu0
      %v3334 = vadd.f32 %v2981, %v3333
      %3335 = vmatprep.mubr.bf16.mxu0 %v1195
      %3336 = vmatmul.mubr.bf16.gmra.mrb[0].mxu0 %v1194
      %v3337 = vpop.f32.mrb[0].mxu0
      %v3338 = vadd.f32 %v2985, %v3337
      %v3339 = vpop.f32.mrb[0].mxu0
      %v3340 = vadd.f32 %v2987, %v3339
      %v3341 = vpop.f32.mrb[0].mxu0
      %v3342 = vadd.f32 %v2989, %v3341
      %v3343 = vpop.f32.mrb[0].mxu0
      %v3344 = vadd.f32 %v2991, %v3343
      %3345 = vmatprep.mubr.bf16.mxu0 %v1202
      %3346 = vmatmul.mubr.bf16.gmra.mrb[0].mxu0 %v1201
      %v3347 = vpop.f32.mrb[0].mxu0
      %v3348 = vadd.f32 %v2995, %v3347
      %v3349 = vpop.f32.mrb[0].mxu0
      %v3350 = vadd.f32 %v2997, %v3349
      %v3351 = vpop.f32.mrb[0].mxu0
      %v3352 = vadd.f32 %v2999, %v3351
      %v3353 = vpop.f32.mrb[0].mxu0
      %v3354 = vadd.f32 %v3001, %v3353
      %3355 = vmatprep.mubr.bf16.mxu0 %v1209
      %3356 = vmatmul.mubr.bf16.gmra.mrb[0].mxu0 %v1208
      %v3357 = vpop.f32.mrb[0].mxu0
      %v3358 = vadd.f32 %v3005, %v3357
      %v3359 = vpop.f32.mrb[0].mxu0
      %v3360 = vadd.f32 %v3007, %v3359
      %v3361 = vpop.f32.mrb[0].mxu0
      %v3362 = vadd.f32 %v3009, %v3361
      %v3363 = vpop.f32.mrb[0].mxu0
      %v3364 = vadd.f32 %v3011, %v3363
      %3365 = vmatprep.mubr.bf16.mxu0 %v1216
      %3366 = vmatmul.mubr.bf16.gmra.mrb[0].mxu0 %v1215
      %v3367 = vpop.f32.mrb[0].mxu0
      %v3368 = vadd.f32 %v3015, %v3367
      %v3369 = vpop.f32.mrb[0].mxu0
      %v3370 = vadd.f32 %v3017, %v3369
      %v3371 = vpop.f32.mrb[0].mxu0
      %v3372 = vadd.f32 %v3019, %v3371
      %v3373 = vpop.f32.mrb[0].mxu0
      %v3374 = vadd.f32 %v3021, %v3373
      %3375 = vdwg.mxu0
      %3376 = vmatprep.subr.bf16.mxu0 %v2021
      %3377 = vmatpush1.bf16.msra.mxu0 %v2020
      %3378 = vmatprep.subr.bf16.mxu0 0
      %3379 = vmatpush1.bf16.msra.mxu0 0
      %3380 = vmatprep.subr.bf16.mxu0 0
      %3381 = vmatpush1.bf16.msra.mxu0 0
      %3382 = vmatprep.subr.bf16.mxu0 0
      %3383 = vmatpush1.bf16.msra.mxu0 0
      %3384 = vmatprep.subr.bf16.mxu0 0
      %3385 = vmatpush1.bf16.msra.mxu0 0
      %3386 = vmatprep.subr.bf16.mxu0 0
      %3387 = vmatpush1.bf16.msra.mxu0 0
      %3388 = vmatprep.subr.bf16.mxu0 0
      %3389 = vmatpush1.bf16.msra.mxu0 0
      %3390 = vmatprep.subr.bf16.mxu0 0
      %3391 = vmatpush1.bf16.msra.mxu0 0
      %3392 = vmatprep.subr.bf16.mxu0 0
      %3393 = vmatpush1.bf16.msra.mxu0 0
      %3394 = vmatprep.subr.bf16.mxu0 0
      %3395 = vmatpush1.bf16.msra.mxu0 0
      %3396 = vmatprep.subr.bf16.mxu0 0
      %3397 = vmatpush1.bf16.msra.mxu0 0
      %3398 = vmatprep.subr.bf16.mxu0 0
      %3399 = vmatpush1.bf16.msra.mxu0 0
      %3400 = vmatprep.subr.bf16.mxu0 0
      %3401 = vmatpush1.bf16.msra.mxu0 0
      %3402 = vmatprep.subr.bf16.mxu0 0
      %3403 = vmatpush1.bf16.msra.mxu0 0
      %3404 = vmatprep.subr.bf16.mxu0 0
      %3405 = vmatpush1.bf16.msra.mxu0 0
      %3406 = vmatprep.subr.bf16.mxu0 0
      %3407 = vmatpush1.bf16.msra.mxu0 0
      %3408 = vmatprep.mubr.bf16.mxu0 0
      %3409 = vmatmul.mubr.bf16.gmra.mrb[0].mxu0 %v2222
      %v3410 = vpop.f32.mrb[0].mxu0
      %v3411 = vadd.f32 %v3058, %v3410
      %v3412 = vpop.f32.mrb[0].mxu0
      %v3413 = vadd.f32 %v3060, %v3412
      %v3414 = vpop.f32.mrb[0].mxu0
      %v3415 = vadd.f32 %v3062, %v3414
      %v3416 = vpop.f32.mrb[0].mxu0
      %v3417 = vadd.f32 %v3064, %v3416
      %3418 = vmatprep.mubr.bf16.mxu0 0
      %3419 = vmatmul.mubr.bf16.gmra.mrb[0].mxu0 %v2225
      %v3420 = vpop.f32.mrb[0].mxu0
      %v3421 = vadd.f32 %v3068, %v3420
      %v3422 = vpop.f32.mrb[0].mxu0
      %v3423 = vadd.f32 %v3070, %v3422
      %v3424 = vpop.f32.mrb[0].mxu0
      %v3425 = vadd.f32 %v3072, %v3424
      %v3426 = vpop.f32.mrb[0].mxu0
      %v3427 = vadd.f32 %v3074, %v3426
      %3428 = vmatprep.mubr.bf16.mxu0 0
      %3429 = vmatmul.mubr.bf16.gmra.mrb[0].mxu0 %v2228
      %v3430 = vpop.f32.mrb[0].mxu0
      %v3431 = vadd.f32 %v3078, %v3430
      %v3432 = vpop.f32.mrb[0].mxu0
      %v3433 = vadd.f32 %v3080, %v3432
      %v3434 = vpop.f32.mrb[0].mxu0
      %v3435 = vadd.f32 %v3082, %v3434
      %v3436 = vpop.f32.mrb[0].mxu0
      %v3437 = vadd.f32 %v3084, %v3436
      %3438 = vmatprep.mubr.bf16.mxu0 0
      %3439 = vmatmul.mubr.bf16.gmra.mrb[0].mxu0 %v2231
      %v3440 = vpop.f32.mrb[0].mxu0
      %v3441 = vadd.f32 %v3088, %v3440
      %v3442 = vpop.f32.mrb[0].mxu0
      %v3443 = vadd.f32 %v3090, %v3442
      %v3444 = vpop.f32.mrb[0].mxu0
      %v3445 = vadd.f32 %v3092, %v3444
      %v3446 = vpop.f32.mrb[0].mxu0
      %v3447 = vadd.f32 %v3094, %v3446
      %3448 = vmatprep.mubr.bf16.mxu0 0
      %3449 = vmatmul.mubr.bf16.gmra.mrb[0].mxu0 %v2234
      %v3450 = vpop.f32.mrb[0].mxu0
      %v3451 = vadd.f32 %v3098, %v3450
      %v3452 = vpop.f32.mrb[0].mxu0
      %v3453 = vadd.f32 %v3100, %v3452
      %v3454 = vpop.f32.mrb[0].mxu0
      %v3455 = vadd.f32 %v3102, %v3454
      %v3456 = vpop.f32.mrb[0].mxu0
      %v3457 = vadd.f32 %v3104, %v3456
      %3458 = vmatprep.mubr.bf16.mxu0 0
      %3459 = vmatmul.mubr.bf16.gmra.mrb[0].mxu0 %v2237
      %v3460 = vpop.f32.mrb[0].mxu0
      %v3461 = vadd.f32 %v3108, %v3460
      %v3462 = vpop.f32.mrb[0].mxu0
      %v3463 = vadd.f32 %v3110, %v3462
      %v3464 = vpop.f32.mrb[0].mxu0
      %v3465 = vadd.f32 %v3112, %v3464
      %v3466 = vpop.f32.mrb[0].mxu0
      %v3467 = vadd.f32 %v3114, %v3466
      %3468 = vmatprep.mubr.bf16.mxu0 0
      %3469 = vmatmul.mubr.bf16.gmra.mrb[0].mxu0 %v2240
      %v3470 = vpop.f32.mrb[0].mxu0
      %v3471 = vadd.f32 %v3118, %v3470
      %v3472 = vpop.f32.mrb[0].mxu0
      %v3473 = vadd.f32 %v3120, %v3472
      %v3474 = vpop.f32.mrb[0].mxu0
      %v3475 = vadd.f32 %v3122, %v3474
      %v3476 = vpop.f32.mrb[0].mxu0
      %v3477 = vadd.f32 %v3124, %v3476
      %3478 = vmatprep.mubr.bf16.mxu0 0
      %3479 = vmatmul.mubr.bf16.gmra.mrb[0].mxu0 %v2243
      %v3480 = vpop.f32.mrb[0].mxu0
      %v3481 = vadd.f32 %v3128, %v3480
      %v3482 = vpop.f32.mrb[0].mxu0
      %v3483 = vadd.f32 %v3130, %v3482
      %v3484 = vpop.f32.mrb[0].mxu0
      %v3485 = vadd.f32 %v3132, %v3484
      %v3486 = vpop.f32.mrb[0].mxu0
      %v3487 = vadd.f32 %v3134, %v3486
      %3488 = vmatprep.mubr.bf16.mxu0 0
      %3489 = vmatmul.mubr.bf16.gmra.mrb[0].mxu0 %v2246
      %v3490 = vpop.f32.mrb[0].mxu0
      %v3491 = vadd.f32 %v3138, %v3490
      %v3492 = vpop.f32.mrb[0].mxu0
      %v3493 = vadd.f32 %v3140, %v3492
      %v3494 = vpop.f32.mrb[0].mxu0
      %v3495 = vadd.f32 %v3142, %v3494
      %v3496 = vpop.f32.mrb[0].mxu0
      %v3497 = vadd.f32 %v3144, %v3496
      %3498 = vmatprep.mubr.bf16.mxu0 0
      %3499 = vmatmul.mubr.bf16.gmra.mrb[0].mxu0 %v2249
      %v3500 = vpop.f32.mrb[0].mxu0
      %v3501 = vadd.f32 %v3148, %v3500
      %v3502 = vpop.f32.mrb[0].mxu0
      %v3503 = vadd.f32 %v3150, %v3502
      %v3504 = vpop.f32.mrb[0].mxu0
      %v3505 = vadd.f32 %v3152, %v3504
      %v3506 = vpop.f32.mrb[0].mxu0
      %v3507 = vadd.f32 %v3154, %v3506
      %3508 = vmatprep.mubr.bf16.mxu0 0
      %3509 = vmatmul.mubr.bf16.gmra.mrb[0].mxu0 %v2252
      %v3510 = vpop.f32.mrb[0].mxu0
      %v3511 = vadd.f32 %v3158, %v3510
      %v3512 = vpop.f32.mrb[0].mxu0
      %v3513 = vadd.f32 %v3160, %v3512
      %v3514 = vpop.f32.mrb[0].mxu0
      %v3515 = vadd.f32 %v3162, %v3514
      %v3516 = vpop.f32.mrb[0].mxu0
      %v3517 = vadd.f32 %v3164, %v3516
      %3518 = vmatprep.mubr.bf16.mxu0 0
      %3519 = vmatmul.mubr.bf16.gmra.mrb[0].mxu0 %v2255
      %v3520 = vpop.f32.mrb[0].mxu0
      %v3521 = vadd.f32 %v3168, %v3520
      %v3522 = vpop.f32.mrb[0].mxu0
      %v3523 = vadd.f32 %v3170, %v3522
      %v3524 = vpop.f32.mrb[0].mxu0
      %v3525 = vadd.f32 %v3172, %v3524
      %v3526 = vpop.f32.mrb[0].mxu0
      %v3527 = vadd.f32 %v3174, %v3526
      %3528 = vmatprep.mubr.bf16.mxu0 0
      %3529 = vmatmul.mubr.bf16.gmra.mrb[0].mxu0 %v2258
      %v3530 = vpop.f32.mrb[0].mxu0
      %v3531 = vadd.f32 %v3178, %v3530
      %v3532 = vpop.f32.mrb[0].mxu0
      %v3533 = vadd.f32 %v3180, %v3532
      %v3534 = vpop.f32.mrb[0].mxu0
      %v3535 = vadd.f32 %v3182, %v3534
      %v3536 = vpop.f32.mrb[0].mxu0
      %v3537 = vadd.f32 %v3184, %v3536
      %3538 = vmatprep.mubr.bf16.mxu0 0
      %3539 = vmatmul.mubr.bf16.gmra.mrb[0].mxu0 %v2261
      %v3540 = vpop.f32.mrb[0].mxu0
      %v3541 = vadd.f32 %v3188, %v3540
      %v3542 = vpop.f32.mrb[0].mxu0
      %v3543 = vadd.f32 %v3190, %v3542
      %v3544 = vpop.f32.mrb[0].mxu0
      %v3545 = vadd.f32 %v3192, %v3544
      %v3546 = vpop.f32.mrb[0].mxu0
      %v3547 = vadd.f32 %v3194, %v3546
      %3548 = vmatprep.mubr.bf16.mxu0 0
      %3549 = vmatmul.mubr.bf16.gmra.mrb[0].mxu0 %v2264
      %v3550 = vpop.f32.mrb[0].mxu0
      %v3551 = vadd.f32 %v3198, %v3550
      %v3552 = vpop.f32.mrb[0].mxu0
      %v3553 = vadd.f32 %v3200, %v3552
      %v3554 = vpop.f32.mrb[0].mxu0
      %v3555 = vadd.f32 %v3202, %v3554
      %v3556 = vpop.f32.mrb[0].mxu0
      %v3557 = vadd.f32 %v3204, %v3556
      %3558 = vmatprep.mubr.bf16.mxu0 0
      %3559 = vmatmul.mubr.bf16.gmra.mrb[0].mxu0 %v2267
      %v3560 = vpop.f32.mrb[0].mxu0
      %v3561 = vadd.f32 %v3208, %v3560
      %v3562 = vpop.f32.mrb[0].mxu0
      %v3563 = vadd.f32 %v3210, %v3562
      %v3564 = vpop.f32.mrb[0].mxu0
      %v3565 = vadd.f32 %v3212, %v3564
      %v3566 = vpop.f32.mrb[0].mxu0
      %v3567 = vadd.f32 %v3214, %v3566
      %3568 = vmatprep.mubr.bf16.mxu0 0
      %3569 = vmatmul.mubr.bf16.gmra.mrb[0].mxu0 %v2270
      %v3570 = vpop.f32.mrb[0].mxu0
      %v3571 = vadd.f32 %v3218, %v3570
      %v3572 = vpop.f32.mrb[0].mxu0
      %v3573 = vadd.f32 %v3220, %v3572
      %v3574 = vpop.f32.mrb[0].mxu0
      %v3575 = vadd.f32 %v3222, %v3574
      %v3576 = vpop.f32.mrb[0].mxu0
      %v3577 = vadd.f32 %v3224, %v3576
      %3578 = vmatprep.mubr.bf16.mxu0 0
      %3579 = vmatmul.mubr.bf16.gmra.mrb[0].mxu0 %v2273
      %v3580 = vpop.f32.mrb[0].mxu0
      %v3581 = vadd.f32 %v3228, %v3580
      %v3582 = vpop.f32.mrb[0].mxu0
      %v3583 = vadd.f32 %v3230, %v3582
      %v3584 = vpop.f32.mrb[0].mxu0
      %v3585 = vadd.f32 %v3232, %v3584
      %v3586 = vpop.f32.mrb[0].mxu0
      %v3587 = vadd.f32 %v3234, %v3586
      %3588 = vmatprep.mubr.bf16.mxu0 0
      %3589 = vmatmul.mubr.bf16.gmra.mrb[0].mxu0 %v2276
      %v3590 = vpop.f32.mrb[0].mxu0
      %v3591 = vadd.f32 %v3238, %v3590
      %v3592 = vpop.f32.mrb[0].mxu0
      %v3593 = vadd.f32 %v3240, %v3592
      %v3594 = vpop.f32.mrb[0].mxu0
      %v3595 = vadd.f32 %v3242, %v3594
      %v3596 = vpop.f32.mrb[0].mxu0
      %v3597 = vadd.f32 %v3244, %v3596
      %3598 = vmatprep.mubr.bf16.mxu0 0
      %3599 = vmatmul.mubr.bf16.gmra.mrb[0].mxu0 %v2279
      %v3600 = vpop.f32.mrb[0].mxu0
      %v3601 = vadd.f32 %v3248, %v3600
      %v3602 = vpop.f32.mrb[0].mxu0
      %v3603 = vadd.f32 %v3250, %v3602
      %v3604 = vpop.f32.mrb[0].mxu0
      %v3605 = vadd.f32 %v3252, %v3604
      %v3606 = vpop.f32.mrb[0].mxu0
      %v3607 = vadd.f32 %v3254, %v3606
      %3608 = vmatprep.mubr.bf16.mxu0 0
      %3609 = vmatmul.mubr.bf16.gmra.mrb[0].mxu0 %v2282
      %v3610 = vpop.f32.mrb[0].mxu0
      %v3611 = vadd.f32 %v3258, %v3610
      %v3612 = vpop.f32.mrb[0].mxu0
      %v3613 = vadd.f32 %v3260, %v3612
      %v3614 = vpop.f32.mrb[0].mxu0
      %v3615 = vadd.f32 %v3262, %v3614
      %v3616 = vpop.f32.mrb[0].mxu0
      %v3617 = vadd.f32 %v3264, %v3616
      %3618 = vmatprep.mubr.bf16.mxu0 0
      %3619 = vmatmul.mubr.bf16.gmra.mrb[0].mxu0 %v2285
      %v3620 = vpop.f32.mrb[0].mxu0
      %v3621 = vadd.f32 %v3268, %v3620
      %v3622 = vpop.f32.mrb[0].mxu0
      %v3623 = vadd.f32 %v3270, %v3622
      %v3624 = vpop.f32.mrb[0].mxu0
      %v3625 = vadd.f32 %v3272, %v3624
      %v3626 = vpop.f32.mrb[0].mxu0
      %v3627 = vadd.f32 %v3274, %v3626
      %3628 = vmatprep.mubr.bf16.mxu0 0
      %3629 = vmatmul.mubr.bf16.gmra.mrb[0].mxu0 %v2288
      %v3630 = vpop.f32.mrb[0].mxu0
      %v3631 = vadd.f32 %v3278, %v3630
      %v3632 = vpop.f32.mrb[0].mxu0
      %v3633 = vadd.f32 %v3280, %v3632
      %v3634 = vpop.f32.mrb[0].mxu0
      %v3635 = vadd.f32 %v3282, %v3634
      %v3636 = vpop.f32.mrb[0].mxu0
      %v3637 = vadd.f32 %v3284, %v3636
      %3638 = vmatprep.mubr.bf16.mxu0 0
      %3639 = vmatmul.mubr.bf16.gmra.mrb[0].mxu0 %v2291
      %v3640 = vpop.f32.mrb[0].mxu0
      %v3641 = vadd.f32 %v3288, %v3640
      %v3642 = vpop.f32.mrb[0].mxu0
      %v3643 = vadd.f32 %v3290, %v3642
      %v3644 = vpop.f32.mrb[0].mxu0
      %v3645 = vadd.f32 %v3292, %v3644
      %v3646 = vpop.f32.mrb[0].mxu0
      %v3647 = vadd.f32 %v3294, %v3646
      %3648 = vmatprep.mubr.bf16.mxu0 0
      %3649 = vmatmul.mubr.bf16.gmra.mrb[0].mxu0 %v2294
      %v3650 = vpop.f32.mrb[0].mxu0
      %v3651 = vadd.f32 %v3298, %v3650
      %v3652 = vpop.f32.mrb[0].mxu0
      %v3653 = vadd.f32 %v3300, %v3652
      %v3654 = vpop.f32.mrb[0].mxu0
      %v3655 = vadd.f32 %v3302, %v3654
      %v3656 = vpop.f32.mrb[0].mxu0
      %v3657 = vadd.f32 %v3304, %v3656
      %3658 = vmatprep.mubr.bf16.mxu0 0
      %3659 = vmatmul.mubr.bf16.gmra.mrb[0].mxu0 %v2297
      %v3660 = vpop.f32.mrb[0].mxu0
      %v3661 = vadd.f32 %v3308, %v3660
      %v3662 = vpop.f32.mrb[0].mxu0
      %v3663 = vadd.f32 %v3310, %v3662
      %v3664 = vpop.f32.mrb[0].mxu0
      %v3665 = vadd.f32 %v3312, %v3664
      %v3666 = vpop.f32.mrb[0].mxu0
      %v3667 = vadd.f32 %v3314, %v3666
      %3668 = vmatprep.mubr.bf16.mxu0 0
      %3669 = vmatmul.mubr.bf16.gmra.mrb[0].mxu0 %v2300
      %v3670 = vpop.f32.mrb[0].mxu0
      %v3671 = vadd.f32 %v3318, %v3670
      %v3672 = vpop.f32.mrb[0].mxu0
      %v3673 = vadd.f32 %v3320, %v3672
      %v3674 = vpop.f32.mrb[0].mxu0
      %v3675 = vadd.f32 %v3322, %v3674
      %v3676 = vpop.f32.mrb[0].mxu0
      %v3677 = vadd.f32 %v3324, %v3676
      %3678 = vmatprep.mubr.bf16.mxu0 0
      %3679 = vmatmul.mubr.bf16.gmra.mrb[0].mxu0 %v2303
      %v3680 = vpop.f32.mrb[0].mxu0
      %v3681 = vadd.f32 %v3328, %v3680
      %v3682 = vpop.f32.mrb[0].mxu0
      %v3683 = vadd.f32 %v3330, %v3682
      %v3684 = vpop.f32.mrb[0].mxu0
      %v3685 = vadd.f32 %v3332, %v3684
      %v3686 = vpop.f32.mrb[0].mxu0
      %v3687 = vadd.f32 %v3334, %v3686
      %3688 = vmatprep.mubr.bf16.mxu0 0
      %3689 = vmatmul.mubr.bf16.gmra.mrb[0].mxu0 %v2306
      %v3690 = vpop.f32.mrb[0].mxu0
      %v3691 = vadd.f32 %v3338, %v3690
      %v3692 = vpop.f32.mrb[0].mxu0
      %v3693 = vadd.f32 %v3340, %v3692
      %v3694 = vpop.f32.mrb[0].mxu0
      %v3695 = vadd.f32 %v3342, %v3694
      %v3696 = vpop.f32.mrb[0].mxu0
      %v3697 = vadd.f32 %v3344, %v3696
      %3698 = vmatprep.mubr.bf16.mxu0 0
      %3699 = vmatmul.mubr.bf16.gmra.mrb[0].mxu0 %v2309
      %v3700 = vpop.f32.mrb[0].mxu0
      %v3701 = vadd.f32 %v3348, %v3700
      %v3702 = vpop.f32.mrb[0].mxu0
      %v3703 = vadd.f32 %v3350, %v3702
      %v3704 = vpop.f32.mrb[0].mxu0
      %v3705 = vadd.f32 %v3352, %v3704
      %v3706 = vpop.f32.mrb[0].mxu0
      %v3707 = vadd.f32 %v3354, %v3706
      %3708 = vmatprep.mubr.bf16.mxu0 0
      %3709 = vmatmul.mubr.bf16.gmra.mrb[0].mxu0 %v2312
      %v3710 = vpop.f32.mrb[0].mxu0
      %v3711 = vadd.f32 %v3358, %v3710
      %v3712 = vpop.f32.mrb[0].mxu0
      %v3713 = vadd.f32 %v3360, %v3712
      %v3714 = vpop.f32.mrb[0].mxu0
      %v3715 = vadd.f32 %v3362, %v3714
      %v3716 = vpop.f32.mrb[0].mxu0
      %v3717 = vadd.f32 %v3364, %v3716
      %3718 = vmatprep.mubr.bf16.mxu0 0
      %3719 = vmatmul.mubr.bf16.gmra.mrb[0].mxu0 %v2315
      %v3720 = vpop.f32.mrb[0].mxu0
      %v3721 = vadd.f32 %v3368, %v3720
      %v3722 = vpop.f32.mrb[0].mxu0
      %v3723 = vadd.f32 %v3370, %v3722
      %v3724 = vpop.f32.mrb[0].mxu0
      %v3725 = vadd.f32 %v3372, %v3724
      %v3726 = vpop.f32.mrb[0].mxu0
      %v3727 = vadd.f32 %v3374, %v3726
      %3728 = vdwg.mxu0
      %3729 = vmatprep.subr.bf16.mxu0 %v1831
      %3730 = vmatpush1.bf16.msra.mxu0 %v1830
      %3731 = vmatprep.subr.bf16.mxu0 %v1835
      %3732 = vmatpush1.bf16.msra.mxu0 %v1834
      %3733 = vmatprep.subr.bf16.mxu0 %v1839
      %3734 = vmatpush1.bf16.msra.mxu0 %v1838
      %3735 = vmatprep.subr.bf16.mxu0 %v1843
      %3736 = vmatpush1.bf16.msra.mxu0 %v1842
      %3737 = vmatprep.subr.bf16.mxu0 %v1847
      %3738 = vmatpush1.bf16.msra.mxu0 %v1846
      %3739 = vmatprep.subr.bf16.mxu0 %v1851
      %3740 = vmatpush1.bf16.msra.mxu0 %v1850
      %3741 = vmatprep.subr.bf16.mxu0 %v1855
      %3742 = vmatpush1.bf16.msra.mxu0 %v1854
      %3743 = vmatprep.subr.bf16.mxu0 %v1859
      %3744 = vmatpush1.bf16.msra.mxu0 %v1858
      %3745 = vmatprep.subr.bf16.mxu0 %v1863
      %3746 = vmatpush1.bf16.msra.mxu0 %v1862
      %3747 = vmatprep.subr.bf16.mxu0 %v1867
      %3748 = vmatpush1.bf16.msra.mxu0 %v1866
      %3749 = vmatprep.subr.bf16.mxu0 %v1871
      %3750 = vmatpush1.bf16.msra.mxu0 %v1870
      %3751 = vmatprep.subr.bf16.mxu0 %v1875
      %3752 = vmatpush1.bf16.msra.mxu0 %v1874
      %3753 = vmatprep.subr.bf16.mxu0 %v1879
      %3754 = vmatpush1.bf16.msra.mxu0 %v1878
      %3755 = vmatprep.subr.bf16.mxu0 %v1883
      %3756 = vmatpush1.bf16.msra.mxu0 %v1882
      %3757 = vmatprep.subr.bf16.mxu0 %v1887
      %3758 = vmatpush1.bf16.msra.mxu0 %v1886
      %3759 = vmatprep.subr.bf16.mxu0 %v1891
      %3760 = vmatpush1.bf16.msra.mxu0 %v1890
      %3761 = vmatprep.mubr.bf16.mxu0 %v995
      %3762 = vmatmul.mubr.bf16.gmra.mrb[0].mxu0 %v994
      %v3763 = vpop.f32.mrb[0].mxu0
      %v3764 = vadd.f32 %v1231, %v3763
      %v3765 = vpop.f32.mrb[0].mxu0
      %v3766 = vadd.f32 %v1235, %v3765
      %v3767 = vpop.f32.mrb[0].mxu0
      %v3768 = vadd.f32 %v1231, %v3767
      %v3769 = vpop.f32.mrb[0].mxu0
      %v3770 = vadd.f32 %v1235, %v3769
      %3771 = vmatprep.mubr.bf16.mxu0 %v1002
      %3772 = vmatmul.mubr.bf16.gmra.mrb[0].mxu0 %v1001
      %v3773 = vpop.f32.mrb[0].mxu0
      %v3774 = vadd.f32 %v1231, %v3773
      %v3775 = vpop.f32.mrb[0].mxu0
      %v3776 = vadd.f32 %v1235, %v3775
      %v3777 = vpop.f32.mrb[0].mxu0
      %v3778 = vadd.f32 %v1231, %v3777
      %v3779 = vpop.f32.mrb[0].mxu0
      %v3780 = vadd.f32 %v1235, %v3779
      %3781 = vmatprep.mubr.bf16.mxu0 %v1009
      %3782 = vmatmul.mubr.bf16.gmra.mrb[0].mxu0 %v1008
      %v3783 = vpop.f32.mrb[0].mxu0
      %v3784 = vadd.f32 %v1231, %v3783
      %v3785 = vpop.f32.mrb[0].mxu0
      %v3786 = vadd.f32 %v1235, %v3785
      %v3787 = vpop.f32.mrb[0].mxu0
      %v3788 = vadd.f32 %v1231, %v3787
      %v3789 = vpop.f32.mrb[0].mxu0
      %v3790 = vadd.f32 %v1235, %v3789
      %3791 = vmatprep.mubr.bf16.mxu0 %v1016
      %3792 = vmatmul.mubr.bf16.gmra.mrb[0].mxu0 %v1015
      %v3793 = vpop.f32.mrb[0].mxu0
      %v3794 = vadd.f32 %v1231, %v3793
      %v3795 = vpop.f32.mrb[0].mxu0
      %v3796 = vadd.f32 %v1235, %v3795
      %v3797 = vpop.f32.mrb[0].mxu0
      %v3798 = vadd.f32 %v1231, %v3797
      %v3799 = vpop.f32.mrb[0].mxu0
      %v3800 = vadd.f32 %v1235, %v3799
      %3801 = vmatprep.mubr.bf16.mxu0 %v1023
      %3802 = vmatmul.mubr.bf16.gmra.mrb[0].mxu0 %v1022
      %v3803 = vpop.f32.mrb[0].mxu0
      %v3804 = vadd.f32 %v1231, %v3803
      %v3805 = vpop.f32.mrb[0].mxu0
      %v3806 = vadd.f32 %v1235, %v3805
      %v3807 = vpop.f32.mrb[0].mxu0
      %v3808 = vadd.f32 %v1231, %v3807
      %v3809 = vpop.f32.mrb[0].mxu0
      %v3810 = vadd.f32 %v1235, %v3809
      %3811 = vmatprep.mubr.bf16.mxu0 %v1030
      %3812 = vmatmul.mubr.bf16.gmra.mrb[0].mxu0 %v1029
      %v3813 = vpop.f32.mrb[0].mxu0
      %v3814 = vadd.f32 %v1231, %v3813
      %v3815 = vpop.f32.mrb[0].mxu0
      %v3816 = vadd.f32 %v1235, %v3815
      %v3817 = vpop.f32.mrb[0].mxu0
      %v3818 = vadd.f32 %v1231, %v3817
      %v3819 = vpop.f32.mrb[0].mxu0
      %v3820 = vadd.f32 %v1235, %v3819
      %3821 = vmatprep.mubr.bf16.mxu0 %v1037
      %3822 = vmatmul.mubr.bf16.gmra.mrb[0].mxu0 %v1036
      %v3823 = vpop.f32.mrb[0].mxu0
      %v3824 = vadd.f32 %v1231, %v3823
      %v3825 = vpop.f32.mrb[0].mxu0
      %v3826 = vadd.f32 %v1235, %v3825
      %v3827 = vpop.f32.mrb[0].mxu0
      %v3828 = vadd.f32 %v1231, %v3827
      %v3829 = vpop.f32.mrb[0].mxu0
      %v3830 = vadd.f32 %v1235, %v3829
      %3831 = vmatprep.mubr.bf16.mxu0 %v1044
      %3832 = vmatmul.mubr.bf16.gmra.mrb[0].mxu0 %v1043
      %v3833 = vpop.f32.mrb[0].mxu0
      %v3834 = vadd.f32 %v1231, %v3833
      %v3835 = vpop.f32.mrb[0].mxu0
      %v3836 = vadd.f32 %v1235, %v3835
      %v3837 = vpop.f32.mrb[0].mxu0
      %v3838 = vadd.f32 %v1231, %v3837
      %v3839 = vpop.f32.mrb[0].mxu0
      %v3840 = vadd.f32 %v1235, %v3839
      %3841 = vmatprep.mubr.bf16.mxu0 %v1051
      %3842 = vmatmul.mubr.bf16.gmra.mrb[0].mxu0 %v1050
      %v3843 = vpop.f32.mrb[0].mxu0
      %v3844 = vadd.f32 %v1231, %v3843
      %v3845 = vpop.f32.mrb[0].mxu0
      %v3846 = vadd.f32 %v1235, %v3845
      %v3847 = vpop.f32.mrb[0].mxu0
      %v3848 = vadd.f32 %v1231, %v3847
      %v3849 = vpop.f32.mrb[0].mxu0
      %v3850 = vadd.f32 %v1235, %v3849
      %3851 = vmatprep.mubr.bf16.mxu0 %v1058
      %3852 = vmatmul.mubr.bf16.gmra.mrb[0].mxu0 %v1057
      %v3853 = vpop.f32.mrb[0].mxu0
      %v3854 = vadd.f32 %v1231, %v3853
      %v3855 = vpop.f32.mrb[0].mxu0
      %v3856 = vadd.f32 %v1235, %v3855
      %v3857 = vpop.f32.mrb[0].mxu0
      %v3858 = vadd.f32 %v1231, %v3857
      %v3859 = vpop.f32.mrb[0].mxu0
      %v3860 = vadd.f32 %v1235, %v3859
      %3861 = vmatprep.mubr.bf16.mxu0 %v1065
      %3862 = vmatmul.mubr.bf16.gmra.mrb[0].mxu0 %v1064
      %v3863 = vpop.f32.mrb[0].mxu0
      %v3864 = vadd.f32 %v1231, %v3863
      %v3865 = vpop.f32.mrb[0].mxu0
      %v3866 = vadd.f32 %v1235, %v3865
      %v3867 = vpop.f32.mrb[0].mxu0
      %v3868 = vadd.f32 %v1231, %v3867
      %v3869 = vpop.f32.mrb[0].mxu0
      %v3870 = vadd.f32 %v1235, %v3869
      %3871 = vmatprep.mubr.bf16.mxu0 %v1072
      %3872 = vmatmul.mubr.bf16.gmra.mrb[0].mxu0 %v1071
      %v3873 = vpop.f32.mrb[0].mxu0
      %v3874 = vadd.f32 %v1231, %v3873
      %v3875 = vpop.f32.mrb[0].mxu0
      %v3876 = vadd.f32 %v1235, %v3875
      %v3877 = vpop.f32.mrb[0].mxu0
      %v3878 = vadd.f32 %v1231, %v3877
      %v3879 = vpop.f32.mrb[0].mxu0
      %v3880 = vadd.f32 %v1235, %v3879
      %3881 = vmatprep.mubr.bf16.mxu0 %v1079
      %3882 = vmatmul.mubr.bf16.gmra.mrb[0].mxu0 %v1078
      %v3883 = vpop.f32.mrb[0].mxu0
      %v3884 = vadd.f32 %v1231, %v3883
      %v3885 = vpop.f32.mrb[0].mxu0
      %v3886 = vadd.f32 %v1235, %v3885
      %v3887 = vpop.f32.mrb[0].mxu0
      %v3888 = vadd.f32 %v1231, %v3887
      %v3889 = vpop.f32.mrb[0].mxu0
      %v3890 = vadd.f32 %v1235, %v3889
      %3891 = vmatprep.mubr.bf16.mxu0 %v1086
      %3892 = vmatmul.mubr.bf16.gmra.mrb[0].mxu0 %v1085
      %v3893 = vpop.f32.mrb[0].mxu0
      %v3894 = vadd.f32 %v1231, %v3893
      %v3895 = vpop.f32.mrb[0].mxu0
      %v3896 = vadd.f32 %v1235, %v3895
      %v3897 = vpop.f32.mrb[0].mxu0
      %v3898 = vadd.f32 %v1231, %v3897
      %v3899 = vpop.f32.mrb[0].mxu0
      %v3900 = vadd.f32 %v1235, %v3899
      %3901 = vmatprep.mubr.bf16.mxu0 %v1093
      %3902 = vmatmul.mubr.bf16.gmra.mrb[0].mxu0 %v1092
      %v3903 = vpop.f32.mrb[0].mxu0
      %v3904 = vadd.f32 %v1231, %v3903
      %v3905 = vpop.f32.mrb[0].mxu0
      %v3906 = vadd.f32 %v1235, %v3905
      %v3907 = vpop.f32.mrb[0].mxu0
      %v3908 = vadd.f32 %v1231, %v3907
      %v3909 = vpop.f32.mrb[0].mxu0
      %v3910 = vadd.f32 %v1235, %v3909
      %3911 = vmatprep.mubr.bf16.mxu0 %v1100
      %3912 = vmatmul.mubr.bf16.gmra.mrb[0].mxu0 %v1099
      %v3913 = vpop.f32.mrb[0].mxu0
      %v3914 = vadd.f32 %v1231, %v3913
      %v3915 = vpop.f32.mrb[0].mxu0
      %v3916 = vadd.f32 %v1235, %v3915
      %v3917 = vpop.f32.mrb[0].mxu0
      %v3918 = vadd.f32 %v1231, %v3917
      %v3919 = vpop.f32.mrb[0].mxu0
      %v3920 = vadd.f32 %v1235, %v3919
      %3921 = vmatprep.mubr.bf16.mxu0 %v1107
      %3922 = vmatmul.mubr.bf16.gmra.mrb[0].mxu0 %v1106
      %v3923 = vpop.f32.mrb[0].mxu0
      %v3924 = vadd.f32 %v1231, %v3923
      %v3925 = vpop.f32.mrb[0].mxu0
      %v3926 = vadd.f32 %v1235, %v3925
      %v3927 = vpop.f32.mrb[0].mxu0
      %v3928 = vadd.f32 %v1231, %v3927
      %v3929 = vpop.f32.mrb[0].mxu0
      %v3930 = vadd.f32 %v1235, %v3929
      %3931 = vmatprep.mubr.bf16.mxu0 %v1114
      %3932 = vmatmul.mubr.bf16.gmra.mrb[0].mxu0 %v1113
      %v3933 = vpop.f32.mrb[0].mxu0
      %v3934 = vadd.f32 %v1231, %v3933
      %v3935 = vpop.f32.mrb[0].mxu0
      %v3936 = vadd.f32 %v1235, %v3935
      %v3937 = vpop.f32.mrb[0].mxu0
      %v3938 = vadd.f32 %v1231, %v3937
      %v3939 = vpop.f32.mrb[0].mxu0
      %v3940 = vadd.f32 %v1235, %v3939
      %3941 = vmatprep.mubr.bf16.mxu0 %v1121
      %3942 = vmatmul.mubr.bf16.gmra.mrb[0].mxu0 %v1120
      %v3943 = vpop.f32.mrb[0].mxu0
      %v3944 = vadd.f32 %v1231, %v3943
      %v3945 = vpop.f32.mrb[0].mxu0
      %v3946 = vadd.f32 %v1235, %v3945
      %v3947 = vpop.f32.mrb[0].mxu0
      %v3948 = vadd.f32 %v1231, %v3947
      %v3949 = vpop.f32.mrb[0].mxu0
      %v3950 = vadd.f32 %v1235, %v3949
      %3951 = vmatprep.mubr.bf16.mxu0 %v1128
      %3952 = vmatmul.mubr.bf16.gmra.mrb[0].mxu0 %v1127
      %v3953 = vpop.f32.mrb[0].mxu0
      %v3954 = vadd.f32 %v1231, %v3953
      %v3955 = vpop.f32.mrb[0].mxu0
      %v3956 = vadd.f32 %v1235, %v3955
      %v3957 = vpop.f32.mrb[0].mxu0
      %v3958 = vadd.f32 %v1231, %v3957
      %v3959 = vpop.f32.mrb[0].mxu0
      %v3960 = vadd.f32 %v1235, %v3959
      %3961 = vmatprep.mubr.bf16.mxu0 %v1135
      %3962 = vmatmul.mubr.bf16.gmra.mrb[0].mxu0 %v1134
      %v3963 = vpop.f32.mrb[0].mxu0
      %v3964 = vadd.f32 %v1231, %v3963
      %v3965 = vpop.f32.mrb[0].mxu0
      %v3966 = vadd.f32 %v1235, %v3965
      %v3967 = vpop.f32.mrb[0].mxu0
      %v3968 = vadd.f32 %v1231, %v3967
      %v3969 = vpop.f32.mrb[0].mxu0
      %v3970 = vadd.f32 %v1235, %v3969
      %3971 = vmatprep.mubr.bf16.mxu0 %v1142
      %3972 = vmatmul.mubr.bf16.gmra.mrb[0].mxu0 %v1141
      %v3973 = vpop.f32.mrb[0].mxu0
      %v3974 = vadd.f32 %v1231, %v3973
      %v3975 = vpop.f32.mrb[0].mxu0
      %v3976 = vadd.f32 %v1235, %v3975
      %v3977 = vpop.f32.mrb[0].mxu0
      %v3978 = vadd.f32 %v1231, %v3977
      %v3979 = vpop.f32.mrb[0].mxu0
      %v3980 = vadd.f32 %v1235, %v3979
      %3981 = vmatprep.mubr.bf16.mxu0 %v1149
      %3982 = vmatmul.mubr.bf16.gmra.mrb[0].mxu0 %v1148
      %v3983 = vpop.f32.mrb[0].mxu0
      %v3984 = vadd.f32 %v1231, %v3983
      %v3985 = vpop.f32.mrb[0].mxu0
      %v3986 = vadd.f32 %v1235, %v3985
      %v3987 = vpop.f32.mrb[0].mxu0
      %v3988 = vadd.f32 %v1231, %v3987
      %v3989 = vpop.f32.mrb[0].mxu0
      %v3990 = vadd.f32 %v1235, %v3989
      %3991 = vmatprep.mubr.bf16.mxu0 %v1156
      %3992 = vmatmul.mubr.bf16.gmra.mrb[0].mxu0 %v1155
      %v3993 = vpop.f32.mrb[0].mxu0
      %v3994 = vadd.f32 %v1231, %v3993
      %v3995 = vpop.f32.mrb[0].mxu0
      %v3996 = vadd.f32 %v1235, %v3995
      %v3997 = vpop.f32.mrb[0].mxu0
      %v3998 = vadd.f32 %v1231, %v3997
      %v3999 = vpop.f32.mrb[0].mxu0
      %v4000 = vadd.f32 %v1235, %v3999
      %4001 = vmatprep.mubr.bf16.mxu0 %v1163
      %4002 = vmatmul.mubr.bf16.gmra.mrb[0].mxu0 %v1162
      %v4003 = vpop.f32.mrb[0].mxu0
      %v4004 = vadd.f32 %v1231, %v4003
      %v4005 = vpop.f32.mrb[0].mxu0
      %v4006 = vadd.f32 %v1235, %v4005
      %v4007 = vpop.f32.mrb[0].mxu0
      %v4008 = vadd.f32 %v1231, %v4007
      %v4009 = vpop.f32.mrb[0].mxu0
      %v4010 = vadd.f32 %v1235, %v4009
      %4011 = vmatprep.mubr.bf16.mxu0 %v1170
      %4012 = vmatmul.mubr.bf16.gmra.mrb[0].mxu0 %v1169
      %v4013 = vpop.f32.mrb[0].mxu0
      %v4014 = vadd.f32 %v1231, %v4013
      %v4015 = vpop.f32.mrb[0].mxu0
      %v4016 = vadd.f32 %v1235, %v4015
      %v4017 = vpop.f32.mrb[0].mxu0
      %v4018 = vadd.f32 %v1231, %v4017
      %v4019 = vpop.f32.mrb[0].mxu0
      %v4020 = vadd.f32 %v1235, %v4019
      %4021 = vmatprep.mubr.bf16.mxu0 %v1177
      %4022 = vmatmul.mubr.bf16.gmra.mrb[0].mxu0 %v1176
      %v4023 = vpop.f32.mrb[0].mxu0
      %v4024 = vadd.f32 %v1231, %v4023
      %v4025 = vpop.f32.mrb[0].mxu0
      %v4026 = vadd.f32 %v1235, %v4025
      %v4027 = vpop.f32.mrb[0].mxu0
      %v4028 = vadd.f32 %v1231, %v4027
      %v4029 = vpop.f32.mrb[0].mxu0
      %v4030 = vadd.f32 %v1235, %v4029
      %4031 = vmatprep.mubr.bf16.mxu0 %v1184
      %4032 = vmatmul.mubr.bf16.gmra.mrb[0].mxu0 %v1183
      %v4033 = vpop.f32.mrb[0].mxu0
      %v4034 = vadd.f32 %v1231, %v4033
      %v4035 = vpop.f32.mrb[0].mxu0
      %v4036 = vadd.f32 %v1235, %v4035
      %v4037 = vpop.f32.mrb[0].mxu0
      %v4038 = vadd.f32 %v1231, %v4037
      %v4039 = vpop.f32.mrb[0].mxu0
      %v4040 = vadd.f32 %v1235, %v4039
      %4041 = vmatprep.mubr.bf16.mxu0 %v1191
      %4042 = vmatmul.mubr.bf16.gmra.mrb[0].mxu0 %v1190
      %v4043 = vpop.f32.mrb[0].mxu0
      %v4044 = vadd.f32 %v1231, %v4043
      %v4045 = vpop.f32.mrb[0].mxu0
      %v4046 = vadd.f32 %v1235, %v4045
      %v4047 = vpop.f32.mrb[0].mxu0
      %v4048 = vadd.f32 %v1231, %v4047
      %v4049 = vpop.f32.mrb[0].mxu0
      %v4050 = vadd.f32 %v1235, %v4049
      %4051 = vmatprep.mubr.bf16.mxu0 %v1198
      %4052 = vmatmul.mubr.bf16.gmra.mrb[0].mxu0 %v1197
      %v4053 = vpop.f32.mrb[0].mxu0
      %v4054 = vadd.f32 %v1231, %v4053
      %v4055 = vpop.f32.mrb[0].mxu0
      %v4056 = vadd.f32 %v1235, %v4055
      %v4057 = vpop.f32.mrb[0].mxu0
      %v4058 = vadd.f32 %v1231, %v4057
      %v4059 = vpop.f32.mrb[0].mxu0
      %v4060 = vadd.f32 %v1235, %v4059
      %4061 = vmatprep.mubr.bf16.mxu0 %v1205
      %4062 = vmatmul.mubr.bf16.gmra.mrb[0].mxu0 %v1204
      %v4063 = vpop.f32.mrb[0].mxu0
      %v4064 = vadd.f32 %v1231, %v4063
      %v4065 = vpop.f32.mrb[0].mxu0
      %v4066 = vadd.f32 %v1235, %v4065
      %v4067 = vpop.f32.mrb[0].mxu0
      %v4068 = vadd.f32 %v1231, %v4067
      %v4069 = vpop.f32.mrb[0].mxu0
      %v4070 = vadd.f32 %v1235, %v4069
      %4071 = vmatprep.mubr.bf16.mxu0 %v1212
      %4072 = vmatmul.mubr.bf16.gmra.mrb[0].mxu0 %v1211
      %v4073 = vpop.f32.mrb[0].mxu0
      %v4074 = vadd.f32 %v1231, %v4073
      %v4075 = vpop.f32.mrb[0].mxu0
      %v4076 = vadd.f32 %v1235, %v4075
      %v4077 = vpop.f32.mrb[0].mxu0
      %v4078 = vadd.f32 %v1231, %v4077
      %v4079 = vpop.f32.mrb[0].mxu0
      %v4080 = vadd.f32 %v1235, %v4079
      %4081 = vdwg.mxu0
      %4082 = vmatprep.subr.bf16.mxu0 %v1895
      %4083 = vmatpush1.bf16.msra.mxu0 %v1894
      %4084 = vmatprep.subr.bf16.mxu0 %v1899
      %4085 = vmatpush1.bf16.msra.mxu0 %v1898
      %4086 = vmatprep.subr.bf16.mxu0 %v1903
      %4087 = vmatpush1.bf16.msra.mxu0 %v1902
      %4088 = vmatprep.subr.bf16.mxu0 %v1907
      %4089 = vmatpush1.bf16.msra.mxu0 %v1906
      %4090 = vmatprep.subr.bf16.mxu0 %v1911
      %4091 = vmatpush1.bf16.msra.mxu0 %v1910
      %4092 = vmatprep.subr.bf16.mxu0 %v1915
      %4093 = vmatpush1.bf16.msra.mxu0 %v1914
      %4094 = vmatprep.subr.bf16.mxu0 %v1919
      %4095 = vmatpush1.bf16.msra.mxu0 %v1918
      %4096 = vmatprep.subr.bf16.mxu0 %v1923
      %4097 = vmatpush1.bf16.msra.mxu0 %v1922
      %4098 = vmatprep.subr.bf16.mxu0 %v1927
      %4099 = vmatpush1.bf16.msra.mxu0 %v1926
      %4100 = vmatprep.subr.bf16.mxu0 %v1931
      %4101 = vmatpush1.bf16.msra.mxu0 %v1930
      %4102 = vmatprep.subr.bf16.mxu0 %v1935
      %4103 = vmatpush1.bf16.msra.mxu0 %v1934
      %4104 = vmatprep.subr.bf16.mxu0 %v1939
      %4105 = vmatpush1.bf16.msra.mxu0 %v1938
      %4106 = vmatprep.subr.bf16.mxu0 %v1943
      %4107 = vmatpush1.bf16.msra.mxu0 %v1942
      %4108 = vmatprep.subr.bf16.mxu0 %v1947
      %4109 = vmatpush1.bf16.msra.mxu0 %v1946
      %4110 = vmatprep.subr.bf16.mxu0 %v1951
      %4111 = vmatpush1.bf16.msra.mxu0 %v1950
      %4112 = vmatprep.subr.bf16.mxu0 %v1955
      %4113 = vmatpush1.bf16.msra.mxu0 %v1954
      %4114 = vmatprep.mubr.bf16.mxu0 %v997
      %4115 = vmatmul.mubr.bf16.gmra.mrb[0].mxu0 %v996
      %v4116 = vpop.f32.mrb[0].mxu0
      %v4117 = vadd.f32 %v3764, %v4116
      %v4118 = vpop.f32.mrb[0].mxu0
      %v4119 = vadd.f32 %v3766, %v4118
      %v4120 = vpop.f32.mrb[0].mxu0
      %v4121 = vadd.f32 %v3768, %v4120
      %v4122 = vpop.f32.mrb[0].mxu0
      %v4123 = vadd.f32 %v3770, %v4122
      %4124 = vmatprep.mubr.bf16.mxu0 %v1004
      %4125 = vmatmul.mubr.bf16.gmra.mrb[0].mxu0 %v1003
      %v4126 = vpop.f32.mrb[0].mxu0
      %v4127 = vadd.f32 %v3774, %v4126
      %v4128 = vpop.f32.mrb[0].mxu0
      %v4129 = vadd.f32 %v3776, %v4128
      %v4130 = vpop.f32.mrb[0].mxu0
      %v4131 = vadd.f32 %v3778, %v4130
      %v4132 = vpop.f32.mrb[0].mxu0
      %v4133 = vadd.f32 %v3780, %v4132
      %4134 = vmatprep.mubr.bf16.mxu0 %v1011
      %4135 = vmatmul.mubr.bf16.gmra.mrb[0].mxu0 %v1010
      %v4136 = vpop.f32.mrb[0].mxu0
      %v4137 = vadd.f32 %v3784, %v4136
      %v4138 = vpop.f32.mrb[0].mxu0
      %v4139 = vadd.f32 %v3786, %v4138
      %v4140 = vpop.f32.mrb[0].mxu0
      %v4141 = vadd.f32 %v3788, %v4140
      %v4142 = vpop.f32.mrb[0].mxu0
      %v4143 = vadd.f32 %v3790, %v4142
      %4144 = vmatprep.mubr.bf16.mxu0 %v1018
      %4145 = vmatmul.mubr.bf16.gmra.mrb[0].mxu0 %v1017
      %v4146 = vpop.f32.mrb[0].mxu0
      %v4147 = vadd.f32 %v3794, %v4146
      %v4148 = vpop.f32.mrb[0].mxu0
      %v4149 = vadd.f32 %v3796, %v4148
      %v4150 = vpop.f32.mrb[0].mxu0
      %v4151 = vadd.f32 %v3798, %v4150
      %v4152 = vpop.f32.mrb[0].mxu0
      %v4153 = vadd.f32 %v3800, %v4152
      %4154 = vmatprep.mubr.bf16.mxu0 %v1025
      %4155 = vmatmul.mubr.bf16.gmra.mrb[0].mxu0 %v1024
      %v4156 = vpop.f32.mrb[0].mxu0
      %v4157 = vadd.f32 %v3804, %v4156
      %v4158 = vpop.f32.mrb[0].mxu0
      %v4159 = vadd.f32 %v3806, %v4158
      %v4160 = vpop.f32.mrb[0].mxu0
      %v4161 = vadd.f32 %v3808, %v4160
      %v4162 = vpop.f32.mrb[0].mxu0
      %v4163 = vadd.f32 %v3810, %v4162
      %4164 = vmatprep.mubr.bf16.mxu0 %v1032
      %4165 = vmatmul.mubr.bf16.gmra.mrb[0].mxu0 %v1031
      %v4166 = vpop.f32.mrb[0].mxu0
      %v4167 = vadd.f32 %v3814, %v4166
      %v4168 = vpop.f32.mrb[0].mxu0
      %v4169 = vadd.f32 %v3816, %v4168
      %v4170 = vpop.f32.mrb[0].mxu0
      %v4171 = vadd.f32 %v3818, %v4170
      %v4172 = vpop.f32.mrb[0].mxu0
      %v4173 = vadd.f32 %v3820, %v4172
      %4174 = vmatprep.mubr.bf16.mxu0 %v1039
      %4175 = vmatmul.mubr.bf16.gmra.mrb[0].mxu0 %v1038
      %v4176 = vpop.f32.mrb[0].mxu0
      %v4177 = vadd.f32 %v3824, %v4176
      %v4178 = vpop.f32.mrb[0].mxu0
      %v4179 = vadd.f32 %v3826, %v4178
      %v4180 = vpop.f32.mrb[0].mxu0
      %v4181 = vadd.f32 %v3828, %v4180
      %v4182 = vpop.f32.mrb[0].mxu0
      %v4183 = vadd.f32 %v3830, %v4182
      %4184 = vmatprep.mubr.bf16.mxu0 %v1046
      %4185 = vmatmul.mubr.bf16.gmra.mrb[0].mxu0 %v1045
      %v4186 = vpop.f32.mrb[0].mxu0
      %v4187 = vadd.f32 %v3834, %v4186
      %v4188 = vpop.f32.mrb[0].mxu0
      %v4189 = vadd.f32 %v3836, %v4188
      %v4190 = vpop.f32.mrb[0].mxu0
      %v4191 = vadd.f32 %v3838, %v4190
      %v4192 = vpop.f32.mrb[0].mxu0
      %v4193 = vadd.f32 %v3840, %v4192
      %4194 = vmatprep.mubr.bf16.mxu0 %v1053
      %4195 = vmatmul.mubr.bf16.gmra.mrb[0].mxu0 %v1052
      %v4196 = vpop.f32.mrb[0].mxu0
      %v4197 = vadd.f32 %v3844, %v4196
      %v4198 = vpop.f32.mrb[0].mxu0
      %v4199 = vadd.f32 %v3846, %v4198
      %v4200 = vpop.f32.mrb[0].mxu0
      %v4201 = vadd.f32 %v3848, %v4200
      %v4202 = vpop.f32.mrb[0].mxu0
      %v4203 = vadd.f32 %v3850, %v4202
      %4204 = vmatprep.mubr.bf16.mxu0 %v1060
      %4205 = vmatmul.mubr.bf16.gmra.mrb[0].mxu0 %v1059
      %v4206 = vpop.f32.mrb[0].mxu0
      %v4207 = vadd.f32 %v3854, %v4206
      %v4208 = vpop.f32.mrb[0].mxu0
      %v4209 = vadd.f32 %v3856, %v4208
      %v4210 = vpop.f32.mrb[0].mxu0
      %v4211 = vadd.f32 %v3858, %v4210
      %v4212 = vpop.f32.mrb[0].mxu0
      %v4213 = vadd.f32 %v3860, %v4212
      %4214 = vmatprep.mubr.bf16.mxu0 %v1067
      %4215 = vmatmul.mubr.bf16.gmra.mrb[0].mxu0 %v1066
      %v4216 = vpop.f32.mrb[0].mxu0
      %v4217 = vadd.f32 %v3864, %v4216
      %v4218 = vpop.f32.mrb[0].mxu0
      %v4219 = vadd.f32 %v3866, %v4218
      %v4220 = vpop.f32.mrb[0].mxu0
      %v4221 = vadd.f32 %v3868, %v4220
      %v4222 = vpop.f32.mrb[0].mxu0
      %v4223 = vadd.f32 %v3870, %v4222
      %4224 = vmatprep.mubr.bf16.mxu0 %v1074
      %4225 = vmatmul.mubr.bf16.gmra.mrb[0].mxu0 %v1073
      %v4226 = vpop.f32.mrb[0].mxu0
      %v4227 = vadd.f32 %v3874, %v4226
      %v4228 = vpop.f32.mrb[0].mxu0
      %v4229 = vadd.f32 %v3876, %v4228
      %v4230 = vpop.f32.mrb[0].mxu0
      %v4231 = vadd.f32 %v3878, %v4230
      %v4232 = vpop.f32.mrb[0].mxu0
      %v4233 = vadd.f32 %v3880, %v4232
      %4234 = vmatprep.mubr.bf16.mxu0 %v1081
      %4235 = vmatmul.mubr.bf16.gmra.mrb[0].mxu0 %v1080
      %v4236 = vpop.f32.mrb[0].mxu0
      %v4237 = vadd.f32 %v3884, %v4236
      %v4238 = vpop.f32.mrb[0].mxu0
      %v4239 = vadd.f32 %v3886, %v4238
      %v4240 = vpop.f32.mrb[0].mxu0
      %v4241 = vadd.f32 %v3888, %v4240
      %v4242 = vpop.f32.mrb[0].mxu0
      %v4243 = vadd.f32 %v3890, %v4242
      %4244 = vmatprep.mubr.bf16.mxu0 %v1088
      %4245 = vmatmul.mubr.bf16.gmra.mrb[0].mxu0 %v1087
      %v4246 = vpop.f32.mrb[0].mxu0
      %v4247 = vadd.f32 %v3894, %v4246
      %v4248 = vpop.f32.mrb[0].mxu0
      %v4249 = vadd.f32 %v3896, %v4248
      %v4250 = vpop.f32.mrb[0].mxu0
      %v4251 = vadd.f32 %v3898, %v4250
      %v4252 = vpop.f32.mrb[0].mxu0
      %v4253 = vadd.f32 %v3900, %v4252
      %4254 = vmatprep.mubr.bf16.mxu0 %v1095
      %4255 = vmatmul.mubr.bf16.gmra.mrb[0].mxu0 %v1094
      %v4256 = vpop.f32.mrb[0].mxu0
      %v4257 = vadd.f32 %v3904, %v4256
      %v4258 = vpop.f32.mrb[0].mxu0
      %v4259 = vadd.f32 %v3906, %v4258
      %v4260 = vpop.f32.mrb[0].mxu0
      %v4261 = vadd.f32 %v3908, %v4260
      %v4262 = vpop.f32.mrb[0].mxu0
      %v4263 = vadd.f32 %v3910, %v4262
      %4264 = vmatprep.mubr.bf16.mxu0 %v1102
      %4265 = vmatmul.mubr.bf16.gmra.mrb[0].mxu0 %v1101
      %v4266 = vpop.f32.mrb[0].mxu0
      %v4267 = vadd.f32 %v3914, %v4266
      %v4268 = vpop.f32.mrb[0].mxu0
      %v4269 = vadd.f32 %v3916, %v4268
      %v4270 = vpop.f32.mrb[0].mxu0
      %v4271 = vadd.f32 %v3918, %v4270
      %v4272 = vpop.f32.mrb[0].mxu0
      %v4273 = vadd.f32 %v3920, %v4272
      %4274 = vmatprep.mubr.bf16.mxu0 %v1109
      %4275 = vmatmul.mubr.bf16.gmra.mrb[0].mxu0 %v1108
      %v4276 = vpop.f32.mrb[0].mxu0
      %v4277 = vadd.f32 %v3924, %v4276
      %v4278 = vpop.f32.mrb[0].mxu0
      %v4279 = vadd.f32 %v3926, %v4278
      %v4280 = vpop.f32.mrb[0].mxu0
      %v4281 = vadd.f32 %v3928, %v4280
      %v4282 = vpop.f32.mrb[0].mxu0
      %v4283 = vadd.f32 %v3930, %v4282
      %4284 = vmatprep.mubr.bf16.mxu0 %v1116
      %4285 = vmatmul.mubr.bf16.gmra.mrb[0].mxu0 %v1115
      %v4286 = vpop.f32.mrb[0].mxu0
      %v4287 = vadd.f32 %v3934, %v4286
      %v4288 = vpop.f32.mrb[0].mxu0
      %v4289 = vadd.f32 %v3936, %v4288
      %v4290 = vpop.f32.mrb[0].mxu0
      %v4291 = vadd.f32 %v3938, %v4290
      %v4292 = vpop.f32.mrb[0].mxu0
      %v4293 = vadd.f32 %v3940, %v4292
      %4294 = vmatprep.mubr.bf16.mxu0 %v1123
      %4295 = vmatmul.mubr.bf16.gmra.mrb[0].mxu0 %v1122
      %v4296 = vpop.f32.mrb[0].mxu0
      %v4297 = vadd.f32 %v3944, %v4296
      %v4298 = vpop.f32.mrb[0].mxu0
      %v4299 = vadd.f32 %v3946, %v4298
      %v4300 = vpop.f32.mrb[0].mxu0
      %v4301 = vadd.f32 %v3948, %v4300
      %v4302 = vpop.f32.mrb[0].mxu0
      %v4303 = vadd.f32 %v3950, %v4302
      %4304 = vmatprep.mubr.bf16.mxu0 %v1130
      %4305 = vmatmul.mubr.bf16.gmra.mrb[0].mxu0 %v1129
      %v4306 = vpop.f32.mrb[0].mxu0
      %v4307 = vadd.f32 %v3954, %v4306
      %v4308 = vpop.f32.mrb[0].mxu0
      %v4309 = vadd.f32 %v3956, %v4308
      %v4310 = vpop.f32.mrb[0].mxu0
      %v4311 = vadd.f32 %v3958, %v4310
      %v4312 = vpop.f32.mrb[0].mxu0
      %v4313 = vadd.f32 %v3960, %v4312
      %4314 = vmatprep.mubr.bf16.mxu0 %v1137
      %4315 = vmatmul.mubr.bf16.gmra.mrb[0].mxu0 %v1136
      %v4316 = vpop.f32.mrb[0].mxu0
      %v4317 = vadd.f32 %v3964, %v4316
      %v4318 = vpop.f32.mrb[0].mxu0
      %v4319 = vadd.f32 %v3966, %v4318
      %v4320 = vpop.f32.mrb[0].mxu0
      %v4321 = vadd.f32 %v3968, %v4320
      %v4322 = vpop.f32.mrb[0].mxu0
      %v4323 = vadd.f32 %v3970, %v4322
      %4324 = vmatprep.mubr.bf16.mxu0 %v1144
      %4325 = vmatmul.mubr.bf16.gmra.mrb[0].mxu0 %v1143
      %v4326 = vpop.f32.mrb[0].mxu0
      %v4327 = vadd.f32 %v3974, %v4326
      %v4328 = vpop.f32.mrb[0].mxu0
      %v4329 = vadd.f32 %v3976, %v4328
      %v4330 = vpop.f32.mrb[0].mxu0
      %v4331 = vadd.f32 %v3978, %v4330
      %v4332 = vpop.f32.mrb[0].mxu0
      %v4333 = vadd.f32 %v3980, %v4332
      %4334 = vmatprep.mubr.bf16.mxu0 %v1151
      %4335 = vmatmul.mubr.bf16.gmra.mrb[0].mxu0 %v1150
      %v4336 = vpop.f32.mrb[0].mxu0
      %v4337 = vadd.f32 %v3984, %v4336
      %v4338 = vpop.f32.mrb[0].mxu0
      %v4339 = vadd.f32 %v3986, %v4338
      %v4340 = vpop.f32.mrb[0].mxu0
      %v4341 = vadd.f32 %v3988, %v4340
      %v4342 = vpop.f32.mrb[0].mxu0
      %v4343 = vadd.f32 %v3990, %v4342
      %4344 = vmatprep.mubr.bf16.mxu0 %v1158
      %4345 = vmatmul.mubr.bf16.gmra.mrb[0].mxu0 %v1157
      %v4346 = vpop.f32.mrb[0].mxu0
      %v4347 = vadd.f32 %v3994, %v4346
      %v4348 = vpop.f32.mrb[0].mxu0
      %v4349 = vadd.f32 %v3996, %v4348
      %v4350 = vpop.f32.mrb[0].mxu0
      %v4351 = vadd.f32 %v3998, %v4350
      %v4352 = vpop.f32.mrb[0].mxu0
      %v4353 = vadd.f32 %v4000, %v4352
      %4354 = vmatprep.mubr.bf16.mxu0 %v1165
      %4355 = vmatmul.mubr.bf16.gmra.mrb[0].mxu0 %v1164
      %v4356 = vpop.f32.mrb[0].mxu0
      %v4357 = vadd.f32 %v4004, %v4356
      %v4358 = vpop.f32.mrb[0].mxu0
      %v4359 = vadd.f32 %v4006, %v4358
      %v4360 = vpop.f32.mrb[0].mxu0
      %v4361 = vadd.f32 %v4008, %v4360
      %v4362 = vpop.f32.mrb[0].mxu0
      %v4363 = vadd.f32 %v4010, %v4362
      %4364 = vmatprep.mubr.bf16.mxu0 %v1172
      %4365 = vmatmul.mubr.bf16.gmra.mrb[0].mxu0 %v1171
      %v4366 = vpop.f32.mrb[0].mxu0
      %v4367 = vadd.f32 %v4014, %v4366
      %v4368 = vpop.f32.mrb[0].mxu0
      %v4369 = vadd.f32 %v4016, %v4368
      %v4370 = vpop.f32.mrb[0].mxu0
      %v4371 = vadd.f32 %v4018, %v4370
      %v4372 = vpop.f32.mrb[0].mxu0
      %v4373 = vadd.f32 %v4020, %v4372
      %4374 = vmatprep.mubr.bf16.mxu0 %v1179
      %4375 = vmatmul.mubr.bf16.gmra.mrb[0].mxu0 %v1178
      %v4376 = vpop.f32.mrb[0].mxu0
      %v4377 = vadd.f32 %v4024, %v4376
      %v4378 = vpop.f32.mrb[0].mxu0
      %v4379 = vadd.f32 %v4026, %v4378
      %v4380 = vpop.f32.mrb[0].mxu0
      %v4381 = vadd.f32 %v4028, %v4380
      %v4382 = vpop.f32.mrb[0].mxu0
      %v4383 = vadd.f32 %v4030, %v4382
      %4384 = vmatprep.mubr.bf16.mxu0 %v1186
      %4385 = vmatmul.mubr.bf16.gmra.mrb[0].mxu0 %v1185
      %v4386 = vpop.f32.mrb[0].mxu0
      %v4387 = vadd.f32 %v4034, %v4386
      %v4388 = vpop.f32.mrb[0].mxu0
      %v4389 = vadd.f32 %v4036, %v4388
      %v4390 = vpop.f32.mrb[0].mxu0
      %v4391 = vadd.f32 %v4038, %v4390
      %v4392 = vpop.f32.mrb[0].mxu0
      %v4393 = vadd.f32 %v4040, %v4392
      %4394 = vmatprep.mubr.bf16.mxu0 %v1193
      %4395 = vmatmul.mubr.bf16.gmra.mrb[0].mxu0 %v1192
      %v4396 = vpop.f32.mrb[0].mxu0
      %v4397 = vadd.f32 %v4044, %v4396
      %v4398 = vpop.f32.mrb[0].mxu0
      %v4399 = vadd.f32 %v4046, %v4398
      %v4400 = vpop.f32.mrb[0].mxu0
      %v4401 = vadd.f32 %v4048, %v4400
      %v4402 = vpop.f32.mrb[0].mxu0
      %v4403 = vadd.f32 %v4050, %v4402
      %4404 = vmatprep.mubr.bf16.mxu0 %v1200
      %4405 = vmatmul.mubr.bf16.gmra.mrb[0].mxu0 %v1199
      %v4406 = vpop.f32.mrb[0].mxu0
      %v4407 = vadd.f32 %v4054, %v4406
      %v4408 = vpop.f32.mrb[0].mxu0
      %v4409 = vadd.f32 %v4056, %v4408
      %v4410 = vpop.f32.mrb[0].mxu0
      %v4411 = vadd.f32 %v4058, %v4410
      %v4412 = vpop.f32.mrb[0].mxu0
      %v4413 = vadd.f32 %v4060, %v4412
      %4414 = vmatprep.mubr.bf16.mxu0 %v1207
      %4415 = vmatmul.mubr.bf16.gmra.mrb[0].mxu0 %v1206
      %v4416 = vpop.f32.mrb[0].mxu0
      %v4417 = vadd.f32 %v4064, %v4416
      %v4418 = vpop.f32.mrb[0].mxu0
      %v4419 = vadd.f32 %v4066, %v4418
      %v4420 = vpop.f32.mrb[0].mxu0
      %v4421 = vadd.f32 %v4068, %v4420
      %v4422 = vpop.f32.mrb[0].mxu0
      %v4423 = vadd.f32 %v4070, %v4422
      %4424 = vmatprep.mubr.bf16.mxu0 %v1214
      %4425 = vmatmul.mubr.bf16.gmra.mrb[0].mxu0 %v1213
      %v4426 = vpop.f32.mrb[0].mxu0
      %v4427 = vadd.f32 %v4074, %v4426
      %v4428 = vpop.f32.mrb[0].mxu0
      %v4429 = vadd.f32 %v4076, %v4428
      %v4430 = vpop.f32.mrb[0].mxu0
      %v4431 = vadd.f32 %v4078, %v4430
      %v4432 = vpop.f32.mrb[0].mxu0
      %v4433 = vadd.f32 %v4080, %v4432
      %4434 = vdwg.mxu0
      %4435 = vmatprep.subr.bf16.mxu0 %v1959
      %4436 = vmatpush1.bf16.msra.mxu0 %v1958
      %4437 = vmatprep.subr.bf16.mxu0 %v1963
      %4438 = vmatpush1.bf16.msra.mxu0 %v1962
      %4439 = vmatprep.subr.bf16.mxu0 %v1967
      %4440 = vmatpush1.bf16.msra.mxu0 %v1966
      %4441 = vmatprep.subr.bf16.mxu0 %v1971
      %4442 = vmatpush1.bf16.msra.mxu0 %v1970
      %4443 = vmatprep.subr.bf16.mxu0 %v1975
      %4444 = vmatpush1.bf16.msra.mxu0 %v1974
      %4445 = vmatprep.subr.bf16.mxu0 %v1979
      %4446 = vmatpush1.bf16.msra.mxu0 %v1978
      %4447 = vmatprep.subr.bf16.mxu0 %v1983
      %4448 = vmatpush1.bf16.msra.mxu0 %v1982
      %4449 = vmatprep.subr.bf16.mxu0 %v1987
      %4450 = vmatpush1.bf16.msra.mxu0 %v1986
      %4451 = vmatprep.subr.bf16.mxu0 %v1991
      %4452 = vmatpush1.bf16.msra.mxu0 %v1990
      %4453 = vmatprep.subr.bf16.mxu0 %v1995
      %4454 = vmatpush1.bf16.msra.mxu0 %v1994
      %4455 = vmatprep.subr.bf16.mxu0 %v1999
      %4456 = vmatpush1.bf16.msra.mxu0 %v1998
      %4457 = vmatprep.subr.bf16.mxu0 %v2003
      %4458 = vmatpush1.bf16.msra.mxu0 %v2002
      %4459 = vmatprep.subr.bf16.mxu0 %v2007
      %4460 = vmatpush1.bf16.msra.mxu0 %v2006
      %4461 = vmatprep.subr.bf16.mxu0 %v2011
      %4462 = vmatpush1.bf16.msra.mxu0 %v2010
      %4463 = vmatprep.subr.bf16.mxu0 %v2015
      %4464 = vmatpush1.bf16.msra.mxu0 %v2014
      %4465 = vmatprep.subr.bf16.mxu0 %v2019
      %4466 = vmatpush1.bf16.msra.mxu0 %v2018
      %4467 = vmatprep.mubr.bf16.mxu0 %v999
      %4468 = vmatmul.mubr.bf16.gmra.mrb[0].mxu0 %v998
      %v4469 = vpop.f32.mrb[0].mxu0
      %v4470 = vadd.f32 %v4117, %v4469
      %v4471 = vpop.f32.mrb[0].mxu0
      %v4472 = vadd.f32 %v4119, %v4471
      %v4473 = vpop.f32.mrb[0].mxu0
      %v4474 = vadd.f32 %v4121, %v4473
      %v4475 = vpop.f32.mrb[0].mxu0
      %v4476 = vadd.f32 %v4123, %v4475
      %4477 = vmatprep.mubr.bf16.mxu0 %v1006
      %4478 = vmatmul.mubr.bf16.gmra.mrb[0].mxu0 %v1005
      %v4479 = vpop.f32.mrb[0].mxu0
      %v4480 = vadd.f32 %v4127, %v4479
      %v4481 = vpop.f32.mrb[0].mxu0
      %v4482 = vadd.f32 %v4129, %v4481
      %v4483 = vpop.f32.mrb[0].mxu0
      %v4484 = vadd.f32 %v4131, %v4483
      %v4485 = vpop.f32.mrb[0].mxu0
      %v4486 = vadd.f32 %v4133, %v4485
      %4487 = vmatprep.mubr.bf16.mxu0 %v1013
      %4488 = vmatmul.mubr.bf16.gmra.mrb[0].mxu0 %v1012
      %v4489 = vpop.f32.mrb[0].mxu0
      %v4490 = vadd.f32 %v4137, %v4489
      %v4491 = vpop.f32.mrb[0].mxu0
      %v4492 = vadd.f32 %v4139, %v4491
      %v4493 = vpop.f32.mrb[0].mxu0
      %v4494 = vadd.f32 %v4141, %v4493
      %v4495 = vpop.f32.mrb[0].mxu0
      %v4496 = vadd.f32 %v4143, %v4495
      %4497 = vmatprep.mubr.bf16.mxu0 %v1020
      %4498 = vmatmul.mubr.bf16.gmra.mrb[0].mxu0 %v1019
      %v4499 = vpop.f32.mrb[0].mxu0
      %v4500 = vadd.f32 %v4147, %v4499
      %v4501 = vpop.f32.mrb[0].mxu0
      %v4502 = vadd.f32 %v4149, %v4501
      %v4503 = vpop.f32.mrb[0].mxu0
      %v4504 = vadd.f32 %v4151, %v4503
      %v4505 = vpop.f32.mrb[0].mxu0
      %v4506 = vadd.f32 %v4153, %v4505
      %4507 = vmatprep.mubr.bf16.mxu0 %v1027
      %4508 = vmatmul.mubr.bf16.gmra.mrb[0].mxu0 %v1026
      %v4509 = vpop.f32.mrb[0].mxu0
      %v4510 = vadd.f32 %v4157, %v4509
      %v4511 = vpop.f32.mrb[0].mxu0
      %v4512 = vadd.f32 %v4159, %v4511
      %v4513 = vpop.f32.mrb[0].mxu0
      %v4514 = vadd.f32 %v4161, %v4513
      %v4515 = vpop.f32.mrb[0].mxu0
      %v4516 = vadd.f32 %v4163, %v4515
      %4517 = vmatprep.mubr.bf16.mxu0 %v1034
      %4518 = vmatmul.mubr.bf16.gmra.mrb[0].mxu0 %v1033
      %v4519 = vpop.f32.mrb[0].mxu0
      %v4520 = vadd.f32 %v4167, %v4519
      %v4521 = vpop.f32.mrb[0].mxu0
      %v4522 = vadd.f32 %v4169, %v4521
      %v4523 = vpop.f32.mrb[0].mxu0
      %v4524 = vadd.f32 %v4171, %v4523
      %v4525 = vpop.f32.mrb[0].mxu0
      %v4526 = vadd.f32 %v4173, %v4525
      %4527 = vmatprep.mubr.bf16.mxu0 %v1041
      %4528 = vmatmul.mubr.bf16.gmra.mrb[0].mxu0 %v1040
      %v4529 = vpop.f32.mrb[0].mxu0
      %v4530 = vadd.f32 %v4177, %v4529
      %v4531 = vpop.f32.mrb[0].mxu0
      %v4532 = vadd.f32 %v4179, %v4531
      %v4533 = vpop.f32.mrb[0].mxu0
      %v4534 = vadd.f32 %v4181, %v4533
      %v4535 = vpop.f32.mrb[0].mxu0
      %v4536 = vadd.f32 %v4183, %v4535
      %4537 = vmatprep.mubr.bf16.mxu0 %v1048
      %4538 = vmatmul.mubr.bf16.gmra.mrb[0].mxu0 %v1047
      %v4539 = vpop.f32.mrb[0].mxu0
      %v4540 = vadd.f32 %v4187, %v4539
      %v4541 = vpop.f32.mrb[0].mxu0
      %v4542 = vadd.f32 %v4189, %v4541
      %v4543 = vpop.f32.mrb[0].mxu0
      %v4544 = vadd.f32 %v4191, %v4543
      %v4545 = vpop.f32.mrb[0].mxu0
      %v4546 = vadd.f32 %v4193, %v4545
      %4547 = vmatprep.mubr.bf16.mxu0 %v1055
      %4548 = vmatmul.mubr.bf16.gmra.mrb[0].mxu0 %v1054
      %v4549 = vpop.f32.mrb[0].mxu0
      %v4550 = vadd.f32 %v4197, %v4549
      %v4551 = vpop.f32.mrb[0].mxu0
      %v4552 = vadd.f32 %v4199, %v4551
      %v4553 = vpop.f32.mrb[0].mxu0
      %v4554 = vadd.f32 %v4201, %v4553
      %v4555 = vpop.f32.mrb[0].mxu0
      %v4556 = vadd.f32 %v4203, %v4555
      %4557 = vmatprep.mubr.bf16.mxu0 %v1062
      %4558 = vmatmul.mubr.bf16.gmra.mrb[0].mxu0 %v1061
      %v4559 = vpop.f32.mrb[0].mxu0
      %v4560 = vadd.f32 %v4207, %v4559
      %v4561 = vpop.f32.mrb[0].mxu0
      %v4562 = vadd.f32 %v4209, %v4561
      %v4563 = vpop.f32.mrb[0].mxu0
      %v4564 = vadd.f32 %v4211, %v4563
      %v4565 = vpop.f32.mrb[0].mxu0
      %v4566 = vadd.f32 %v4213, %v4565
      %4567 = vmatprep.mubr.bf16.mxu0 %v1069
      %4568 = vmatmul.mubr.bf16.gmra.mrb[0].mxu0 %v1068
      %v4569 = vpop.f32.mrb[0].mxu0
      %v4570 = vadd.f32 %v4217, %v4569
      %v4571 = vpop.f32.mrb[0].mxu0
      %v4572 = vadd.f32 %v4219, %v4571
      %v4573 = vpop.f32.mrb[0].mxu0
      %v4574 = vadd.f32 %v4221, %v4573
      %v4575 = vpop.f32.mrb[0].mxu0
      %v4576 = vadd.f32 %v4223, %v4575
      %4577 = vmatprep.mubr.bf16.mxu0 %v1076
      %4578 = vmatmul.mubr.bf16.gmra.mrb[0].mxu0 %v1075
      %v4579 = vpop.f32.mrb[0].mxu0
      %v4580 = vadd.f32 %v4227, %v4579
      %v4581 = vpop.f32.mrb[0].mxu0
      %v4582 = vadd.f32 %v4229, %v4581
      %v4583 = vpop.f32.mrb[0].mxu0
      %v4584 = vadd.f32 %v4231, %v4583
      %v4585 = vpop.f32.mrb[0].mxu0
      %v4586 = vadd.f32 %v4233, %v4585
      %4587 = vmatprep.mubr.bf16.mxu0 %v1083
      %4588 = vmatmul.mubr.bf16.gmra.mrb[0].mxu0 %v1082
      %v4589 = vpop.f32.mrb[0].mxu0
      %v4590 = vadd.f32 %v4237, %v4589
      %v4591 = vpop.f32.mrb[0].mxu0
      %v4592 = vadd.f32 %v4239, %v4591
      %v4593 = vpop.f32.mrb[0].mxu0
      %v4594 = vadd.f32 %v4241, %v4593
      %v4595 = vpop.f32.mrb[0].mxu0
      %v4596 = vadd.f32 %v4243, %v4595
      %4597 = vmatprep.mubr.bf16.mxu0 %v1090
      %4598 = vmatmul.mubr.bf16.gmra.mrb[0].mxu0 %v1089
      %v4599 = vpop.f32.mrb[0].mxu0
      %v4600 = vadd.f32 %v4247, %v4599
      %v4601 = vpop.f32.mrb[0].mxu0
      %v4602 = vadd.f32 %v4249, %v4601
      %v4603 = vpop.f32.mrb[0].mxu0
      %v4604 = vadd.f32 %v4251, %v4603
      %v4605 = vpop.f32.mrb[0].mxu0
      %v4606 = vadd.f32 %v4253, %v4605
      %4607 = vmatprep.mubr.bf16.mxu0 %v1097
      %4608 = vmatmul.mubr.bf16.gmra.mrb[0].mxu0 %v1096
      %v4609 = vpop.f32.mrb[0].mxu0
      %v4610 = vadd.f32 %v4257, %v4609
      %v4611 = vpop.f32.mrb[0].mxu0
      %v4612 = vadd.f32 %v4259, %v4611
      %v4613 = vpop.f32.mrb[0].mxu0
      %v4614 = vadd.f32 %v4261, %v4613
      %v4615 = vpop.f32.mrb[0].mxu0
      %v4616 = vadd.f32 %v4263, %v4615
      %4617 = vmatprep.mubr.bf16.mxu0 %v1104
      %4618 = vmatmul.mubr.bf16.gmra.mrb[0].mxu0 %v1103
      %v4619 = vpop.f32.mrb[0].mxu0
      %v4620 = vadd.f32 %v4267, %v4619
      %v4621 = vpop.f32.mrb[0].mxu0
      %v4622 = vadd.f32 %v4269, %v4621
      %v4623 = vpop.f32.mrb[0].mxu0
      %v4624 = vadd.f32 %v4271, %v4623
      %v4625 = vpop.f32.mrb[0].mxu0
      %v4626 = vadd.f32 %v4273, %v4625
      %4627 = vmatprep.mubr.bf16.mxu0 %v1111
      %4628 = vmatmul.mubr.bf16.gmra.mrb[0].mxu0 %v1110
      %v4629 = vpop.f32.mrb[0].mxu0
      %v4630 = vadd.f32 %v4277, %v4629
      %v4631 = vpop.f32.mrb[0].mxu0
      %v4632 = vadd.f32 %v4279, %v4631
      %v4633 = vpop.f32.mrb[0].mxu0
      %v4634 = vadd.f32 %v4281, %v4633
      %v4635 = vpop.f32.mrb[0].mxu0
      %v4636 = vadd.f32 %v4283, %v4635
      %4637 = vmatprep.mubr.bf16.mxu0 %v1118
      %4638 = vmatmul.mubr.bf16.gmra.mrb[0].mxu0 %v1117
      %v4639 = vpop.f32.mrb[0].mxu0
      %v4640 = vadd.f32 %v4287, %v4639
      %v4641 = vpop.f32.mrb[0].mxu0
      %v4642 = vadd.f32 %v4289, %v4641
      %v4643 = vpop.f32.mrb[0].mxu0
      %v4644 = vadd.f32 %v4291, %v4643
      %v4645 = vpop.f32.mrb[0].mxu0
      %v4646 = vadd.f32 %v4293, %v4645
      %4647 = vmatprep.mubr.bf16.mxu0 %v1125
      %4648 = vmatmul.mubr.bf16.gmra.mrb[0].mxu0 %v1124
      %v4649 = vpop.f32.mrb[0].mxu0
      %v4650 = vadd.f32 %v4297, %v4649
      %v4651 = vpop.f32.mrb[0].mxu0
      %v4652 = vadd.f32 %v4299, %v4651
      %v4653 = vpop.f32.mrb[0].mxu0
      %v4654 = vadd.f32 %v4301, %v4653
      %v4655 = vpop.f32.mrb[0].mxu0
      %v4656 = vadd.f32 %v4303, %v4655
      %4657 = vmatprep.mubr.bf16.mxu0 %v1132
      %4658 = vmatmul.mubr.bf16.gmra.mrb[0].mxu0 %v1131
      %v4659 = vpop.f32.mrb[0].mxu0
      %v4660 = vadd.f32 %v4307, %v4659
      %v4661 = vpop.f32.mrb[0].mxu0
      %v4662 = vadd.f32 %v4309, %v4661
      %v4663 = vpop.f32.mrb[0].mxu0
      %v4664 = vadd.f32 %v4311, %v4663
      %v4665 = vpop.f32.mrb[0].mxu0
      %v4666 = vadd.f32 %v4313, %v4665
      %4667 = vmatprep.mubr.bf16.mxu0 %v1139
      %4668 = vmatmul.mubr.bf16.gmra.mrb[0].mxu0 %v1138
      %v4669 = vpop.f32.mrb[0].mxu0
      %v4670 = vadd.f32 %v4317, %v4669
      %v4671 = vpop.f32.mrb[0].mxu0
      %v4672 = vadd.f32 %v4319, %v4671
      %v4673 = vpop.f32.mrb[0].mxu0
      %v4674 = vadd.f32 %v4321, %v4673
      %v4675 = vpop.f32.mrb[0].mxu0
      %v4676 = vadd.f32 %v4323, %v4675
      %4677 = vmatprep.mubr.bf16.mxu0 %v1146
      %4678 = vmatmul.mubr.bf16.gmra.mrb[0].mxu0 %v1145
      %v4679 = vpop.f32.mrb[0].mxu0
      %v4680 = vadd.f32 %v4327, %v4679
      %v4681 = vpop.f32.mrb[0].mxu0
      %v4682 = vadd.f32 %v4329, %v4681
      %v4683 = vpop.f32.mrb[0].mxu0
      %v4684 = vadd.f32 %v4331, %v4683
      %v4685 = vpop.f32.mrb[0].mxu0
      %v4686 = vadd.f32 %v4333, %v4685
      %4687 = vmatprep.mubr.bf16.mxu0 %v1153
      %4688 = vmatmul.mubr.bf16.gmra.mrb[0].mxu0 %v1152
      %v4689 = vpop.f32.mrb[0].mxu0
      %v4690 = vadd.f32 %v4337, %v4689
      %v4691 = vpop.f32.mrb[0].mxu0
      %v4692 = vadd.f32 %v4339, %v4691
      %v4693 = vpop.f32.mrb[0].mxu0
      %v4694 = vadd.f32 %v4341, %v4693
      %v4695 = vpop.f32.mrb[0].mxu0
      %v4696 = vadd.f32 %v4343, %v4695
      %4697 = vmatprep.mubr.bf16.mxu0 %v1160
      %4698 = vmatmul.mubr.bf16.gmra.mrb[0].mxu0 %v1159
      %v4699 = vpop.f32.mrb[0].mxu0
      %v4700 = vadd.f32 %v4347, %v4699
      %v4701 = vpop.f32.mrb[0].mxu0
      %v4702 = vadd.f32 %v4349, %v4701
      %v4703 = vpop.f32.mrb[0].mxu0
      %v4704 = vadd.f32 %v4351, %v4703
      %v4705 = vpop.f32.mrb[0].mxu0
      %v4706 = vadd.f32 %v4353, %v4705
      %4707 = vmatprep.mubr.bf16.mxu0 %v1167
      %4708 = vmatmul.mubr.bf16.gmra.mrb[0].mxu0 %v1166
      %v4709 = vpop.f32.mrb[0].mxu0
      %v4710 = vadd.f32 %v4357, %v4709
      %v4711 = vpop.f32.mrb[0].mxu0
      %v4712 = vadd.f32 %v4359, %v4711
      %v4713 = vpop.f32.mrb[0].mxu0
      %v4714 = vadd.f32 %v4361, %v4713
      %v4715 = vpop.f32.mrb[0].mxu0
      %v4716 = vadd.f32 %v4363, %v4715
      %4717 = vmatprep.mubr.bf16.mxu0 %v1174
      %4718 = vmatmul.mubr.bf16.gmra.mrb[0].mxu0 %v1173
      %v4719 = vpop.f32.mrb[0].mxu0
      %v4720 = vadd.f32 %v4367, %v4719
      %v4721 = vpop.f32.mrb[0].mxu0
      %v4722 = vadd.f32 %v4369, %v4721
      %v4723 = vpop.f32.mrb[0].mxu0
      %v4724 = vadd.f32 %v4371, %v4723
      %v4725 = vpop.f32.mrb[0].mxu0
      %v4726 = vadd.f32 %v4373, %v4725
      %4727 = vmatprep.mubr.bf16.mxu0 %v1181
      %4728 = vmatmul.mubr.bf16.gmra.mrb[0].mxu0 %v1180
      %v4729 = vpop.f32.mrb[0].mxu0
      %v4730 = vadd.f32 %v4377, %v4729
      %v4731 = vpop.f32.mrb[0].mxu0
      %v4732 = vadd.f32 %v4379, %v4731
      %v4733 = vpop.f32.mrb[0].mxu0
      %v4734 = vadd.f32 %v4381, %v4733
      %v4735 = vpop.f32.mrb[0].mxu0
      %v4736 = vadd.f32 %v4383, %v4735
      %4737 = vmatprep.mubr.bf16.mxu0 %v1188
      %4738 = vmatmul.mubr.bf16.gmra.mrb[0].mxu0 %v1187
      %v4739 = vpop.f32.mrb[0].mxu0
      %v4740 = vadd.f32 %v4387, %v4739
      %v4741 = vpop.f32.mrb[0].mxu0
      %v4742 = vadd.f32 %v4389, %v4741
      %v4743 = vpop.f32.mrb[0].mxu0
      %v4744 = vadd.f32 %v4391, %v4743
      %v4745 = vpop.f32.mrb[0].mxu0
      %v4746 = vadd.f32 %v4393, %v4745
      %4747 = vmatprep.mubr.bf16.mxu0 %v1195
      %4748 = vmatmul.mubr.bf16.gmra.mrb[0].mxu0 %v1194
      %v4749 = vpop.f32.mrb[0].mxu0
      %v4750 = vadd.f32 %v4397, %v4749
      %v4751 = vpop.f32.mrb[0].mxu0
      %v4752 = vadd.f32 %v4399, %v4751
      %v4753 = vpop.f32.mrb[0].mxu0
      %v4754 = vadd.f32 %v4401, %v4753
      %v4755 = vpop.f32.mrb[0].mxu0
      %v4756 = vadd.f32 %v4403, %v4755
      %4757 = vmatprep.mubr.bf16.mxu0 %v1202
      %4758 = vmatmul.mubr.bf16.gmra.mrb[0].mxu0 %v1201
      %v4759 = vpop.f32.mrb[0].mxu0
      %v4760 = vadd.f32 %v4407, %v4759
      %v4761 = vpop.f32.mrb[0].mxu0
      %v4762 = vadd.f32 %v4409, %v4761
      %v4763 = vpop.f32.mrb[0].mxu0
      %v4764 = vadd.f32 %v4411, %v4763
      %v4765 = vpop.f32.mrb[0].mxu0
      %v4766 = vadd.f32 %v4413, %v4765
      %4767 = vmatprep.mubr.bf16.mxu0 %v1209
      %4768 = vmatmul.mubr.bf16.gmra.mrb[0].mxu0 %v1208
      %v4769 = vpop.f32.mrb[0].mxu0
      %v4770 = vadd.f32 %v4417, %v4769
      %v4771 = vpop.f32.mrb[0].mxu0
      %v4772 = vadd.f32 %v4419, %v4771
      %v4773 = vpop.f32.mrb[0].mxu0
      %v4774 = vadd.f32 %v4421, %v4773
      %v4775 = vpop.f32.mrb[0].mxu0
      %v4776 = vadd.f32 %v4423, %v4775
      %4777 = vmatprep.mubr.bf16.mxu0 %v1216
      %4778 = vmatmul.mubr.bf16.gmra.mrb[0].mxu0 %v1215
      %v4779 = vpop.f32.mrb[0].mxu0
      %v4780 = vadd.f32 %v4427, %v4779
      %v4781 = vpop.f32.mrb[0].mxu0
      %v4782 = vadd.f32 %v4429, %v4781
      %v4783 = vpop.f32.mrb[0].mxu0
      %v4784 = vadd.f32 %v4431, %v4783
      %v4785 = vpop.f32.mrb[0].mxu0
      %v4786 = vadd.f32 %v4433, %v4785
      %4787 = vdwg.mxu0
      %4788 = vmatprep.subr.bf16.mxu0 %v2023
      %4789 = vmatpush1.bf16.msra.mxu0 %v2022
      %4790 = vmatprep.subr.bf16.mxu0 0
      %4791 = vmatpush1.bf16.msra.mxu0 0
      %4792 = vmatprep.subr.bf16.mxu0 0
      %4793 = vmatpush1.bf16.msra.mxu0 0
      %4794 = vmatprep.subr.bf16.mxu0 0
      %4795 = vmatpush1.bf16.msra.mxu0 0
      %4796 = vmatprep.subr.bf16.mxu0 0
      %4797 = vmatpush1.bf16.msra.mxu0 0
      %4798 = vmatprep.subr.bf16.mxu0 0
      %4799 = vmatpush1.bf16.msra.mxu0 0
      %4800 = vmatprep.subr.bf16.mxu0 0
      %4801 = vmatpush1.bf16.msra.mxu0 0
      %4802 = vmatprep.subr.bf16.mxu0 0
      %4803 = vmatpush1.bf16.msra.mxu0 0
      %4804 = vmatprep.subr.bf16.mxu0 0
      %4805 = vmatpush1.bf16.msra.mxu0 0
      %4806 = vmatprep.subr.bf16.mxu0 0
      %4807 = vmatpush1.bf16.msra.mxu0 0
      %4808 = vmatprep.subr.bf16.mxu0 0
      %4809 = vmatpush1.bf16.msra.mxu0 0
      %4810 = vmatprep.subr.bf16.mxu0 0
      %4811 = vmatpush1.bf16.msra.mxu0 0
      %4812 = vmatprep.subr.bf16.mxu0 0
      %4813 = vmatpush1.bf16.msra.mxu0 0
      %4814 = vmatprep.subr.bf16.mxu0 0
      %4815 = vmatpush1.bf16.msra.mxu0 0
      %4816 = vmatprep.subr.bf16.mxu0 0
      %4817 = vmatpush1.bf16.msra.mxu0 0
      %4818 = vmatprep.subr.bf16.mxu0 0
      %4819 = vmatpush1.bf16.msra.mxu0 0
      %4820 = vmatprep.mubr.bf16.mxu0 0
      %4821 = vmatmul.mubr.bf16.gmra.mrb[0].mxu0 %v2222
      %v4822 = vpop.f32.mrb[0].mxu0
      %v4823 = vadd.f32 %v4470, %v4822
      %v4824 = vpop.f32.mrb[0].mxu0
      %v4825 = vadd.f32 %v4472, %v4824
      %v4826 = vpop.f32.mrb[0].mxu0
      %v4827 = vadd.f32 %v4474, %v4826
      %v4828 = vpop.f32.mrb[0].mxu0
      %v4829 = vadd.f32 %v4476, %v4828
      %4830 = vmatprep.mubr.bf16.mxu0 0
      %4831 = vmatmul.mubr.bf16.gmra.mrb[0].mxu0 %v2225
      %v4832 = vpop.f32.mrb[0].mxu0
      %v4833 = vadd.f32 %v4480, %v4832
      %v4834 = vpop.f32.mrb[0].mxu0
      %v4835 = vadd.f32 %v4482, %v4834
      %v4836 = vpop.f32.mrb[0].mxu0
      %v4837 = vadd.f32 %v4484, %v4836
      %v4838 = vpop.f32.mrb[0].mxu0
      %v4839 = vadd.f32 %v4486, %v4838
      %4840 = vmatprep.mubr.bf16.mxu0 0
      %4841 = vmatmul.mubr.bf16.gmra.mrb[0].mxu0 %v2228
      %v4842 = vpop.f32.mrb[0].mxu0
      %v4843 = vadd.f32 %v4490, %v4842
      %v4844 = vpop.f32.mrb[0].mxu0
      %v4845 = vadd.f32 %v4492, %v4844
      %v4846 = vpop.f32.mrb[0].mxu0
      %v4847 = vadd.f32 %v4494, %v4846
      %v4848 = vpop.f32.mrb[0].mxu0
      %v4849 = vadd.f32 %v4496, %v4848
      %4850 = vmatprep.mubr.bf16.mxu0 0
      %4851 = vmatmul.mubr.bf16.gmra.mrb[0].mxu0 %v2231
      %v4852 = vpop.f32.mrb[0].mxu0
      %v4853 = vadd.f32 %v4500, %v4852
      %v4854 = vpop.f32.mrb[0].mxu0
      %v4855 = vadd.f32 %v4502, %v4854
      %v4856 = vpop.f32.mrb[0].mxu0
      %v4857 = vadd.f32 %v4504, %v4856
      %v4858 = vpop.f32.mrb[0].mxu0
      %v4859 = vadd.f32 %v4506, %v4858
      %4860 = vmatprep.mubr.bf16.mxu0 0
      %4861 = vmatmul.mubr.bf16.gmra.mrb[0].mxu0 %v2234
      %v4862 = vpop.f32.mrb[0].mxu0
      %v4863 = vadd.f32 %v4510, %v4862
      %v4864 = vpop.f32.mrb[0].mxu0
      %v4865 = vadd.f32 %v4512, %v4864
      %v4866 = vpop.f32.mrb[0].mxu0
      %v4867 = vadd.f32 %v4514, %v4866
      %v4868 = vpop.f32.mrb[0].mxu0
      %v4869 = vadd.f32 %v4516, %v4868
      %4870 = vmatprep.mubr.bf16.mxu0 0
      %4871 = vmatmul.mubr.bf16.gmra.mrb[0].mxu0 %v2237
      %v4872 = vpop.f32.mrb[0].mxu0
      %v4873 = vadd.f32 %v4520, %v4872
      %v4874 = vpop.f32.mrb[0].mxu0
      %v4875 = vadd.f32 %v4522, %v4874
      %v4876 = vpop.f32.mrb[0].mxu0
      %v4877 = vadd.f32 %v4524, %v4876
      %v4878 = vpop.f32.mrb[0].mxu0
      %v4879 = vadd.f32 %v4526, %v4878
      %4880 = vmatprep.mubr.bf16.mxu0 0
      %4881 = vmatmul.mubr.bf16.gmra.mrb[0].mxu0 %v2240
      %v4882 = vpop.f32.mrb[0].mxu0
      %v4883 = vadd.f32 %v4530, %v4882
      %v4884 = vpop.f32.mrb[0].mxu0
      %v4885 = vadd.f32 %v4532, %v4884
      %v4886 = vpop.f32.mrb[0].mxu0
      %v4887 = vadd.f32 %v4534, %v4886
      %v4888 = vpop.f32.mrb[0].mxu0
      %v4889 = vadd.f32 %v4536, %v4888
      %4890 = vmatprep.mubr.bf16.mxu0 0
      %4891 = vmatmul.mubr.bf16.gmra.mrb[0].mxu0 %v2243
      %v4892 = vpop.f32.mrb[0].mxu0
      %v4893 = vadd.f32 %v4540, %v4892
      %v4894 = vpop.f32.mrb[0].mxu0
      %v4895 = vadd.f32 %v4542, %v4894
      %v4896 = vpop.f32.mrb[0].mxu0
      %v4897 = vadd.f32 %v4544, %v4896
      %v4898 = vpop.f32.mrb[0].mxu0
      %v4899 = vadd.f32 %v4546, %v4898
      %4900 = vmatprep.mubr.bf16.mxu0 0
      %4901 = vmatmul.mubr.bf16.gmra.mrb[0].mxu0 %v2246
      %v4902 = vpop.f32.mrb[0].mxu0
      %v4903 = vadd.f32 %v4550, %v4902
      %v4904 = vpop.f32.mrb[0].mxu0
      %v4905 = vadd.f32 %v4552, %v4904
      %v4906 = vpop.f32.mrb[0].mxu0
      %v4907 = vadd.f32 %v4554, %v4906
      %v4908 = vpop.f32.mrb[0].mxu0
      %v4909 = vadd.f32 %v4556, %v4908
      %4910 = vmatprep.mubr.bf16.mxu0 0
      %4911 = vmatmul.mubr.bf16.gmra.mrb[0].mxu0 %v2249
      %v4912 = vpop.f32.mrb[0].mxu0
      %v4913 = vadd.f32 %v4560, %v4912
      %v4914 = vpop.f32.mrb[0].mxu0
      %v4915 = vadd.f32 %v4562, %v4914
      %v4916 = vpop.f32.mrb[0].mxu0
      %v4917 = vadd.f32 %v4564, %v4916
      %v4918 = vpop.f32.mrb[0].mxu0
      %v4919 = vadd.f32 %v4566, %v4918
      %4920 = vmatprep.mubr.bf16.mxu0 0
      %4921 = vmatmul.mubr.bf16.gmra.mrb[0].mxu0 %v2252
      %v4922 = vpop.f32.mrb[0].mxu0
      %v4923 = vadd.f32 %v4570, %v4922
      %v4924 = vpop.f32.mrb[0].mxu0
      %v4925 = vadd.f32 %v4572, %v4924
      %v4926 = vpop.f32.mrb[0].mxu0
      %v4927 = vadd.f32 %v4574, %v4926
      %v4928 = vpop.f32.mrb[0].mxu0
      %v4929 = vadd.f32 %v4576, %v4928
      %4930 = vmatprep.mubr.bf16.mxu0 0
      %4931 = vmatmul.mubr.bf16.gmra.mrb[0].mxu0 %v2255
      %v4932 = vpop.f32.mrb[0].mxu0
      %v4933 = vadd.f32 %v4580, %v4932
      %v4934 = vpop.f32.mrb[0].mxu0
      %v4935 = vadd.f32 %v4582, %v4934
      %v4936 = vpop.f32.mrb[0].mxu0
      %v4937 = vadd.f32 %v4584, %v4936
      %v4938 = vpop.f32.mrb[0].mxu0
      %v4939 = vadd.f32 %v4586, %v4938
      %4940 = vmatprep.mubr.bf16.mxu0 0
      %4941 = vmatmul.mubr.bf16.gmra.mrb[0].mxu0 %v2258
      %v4942 = vpop.f32.mrb[0].mxu0
      %v4943 = vadd.f32 %v4590, %v4942
      %v4944 = vpop.f32.mrb[0].mxu0
      %v4945 = vadd.f32 %v4592, %v4944
      %v4946 = vpop.f32.mrb[0].mxu0
      %v4947 = vadd.f32 %v4594, %v4946
      %v4948 = vpop.f32.mrb[0].mxu0
      %v4949 = vadd.f32 %v4596, %v4948
      %4950 = vmatprep.mubr.bf16.mxu0 0
      %4951 = vmatmul.mubr.bf16.gmra.mrb[0].mxu0 %v2261
      %v4952 = vpop.f32.mrb[0].mxu0
      %v4953 = vadd.f32 %v4600, %v4952
      %v4954 = vpop.f32.mrb[0].mxu0
      %v4955 = vadd.f32 %v4602, %v4954
      %v4956 = vpop.f32.mrb[0].mxu0
      %v4957 = vadd.f32 %v4604, %v4956
      %v4958 = vpop.f32.mrb[0].mxu0
      %v4959 = vadd.f32 %v4606, %v4958
      %4960 = vmatprep.mubr.bf16.mxu0 0
      %4961 = vmatmul.mubr.bf16.gmra.mrb[0].mxu0 %v2264
      %v4962 = vpop.f32.mrb[0].mxu0
      %v4963 = vadd.f32 %v4610, %v4962
      %v4964 = vpop.f32.mrb[0].mxu0
      %v4965 = vadd.f32 %v4612, %v4964
      %v4966 = vpop.f32.mrb[0].mxu0
      %v4967 = vadd.f32 %v4614, %v4966
      %v4968 = vpop.f32.mrb[0].mxu0
      %v4969 = vadd.f32 %v4616, %v4968
      %4970 = vmatprep.mubr.bf16.mxu0 0
      %4971 = vmatmul.mubr.bf16.gmra.mrb[0].mxu0 %v2267
      %v4972 = vpop.f32.mrb[0].mxu0
      %v4973 = vadd.f32 %v4620, %v4972
      %v4974 = vpop.f32.mrb[0].mxu0
      %v4975 = vadd.f32 %v4622, %v4974
      %v4976 = vpop.f32.mrb[0].mxu0
      %v4977 = vadd.f32 %v4624, %v4976
      %v4978 = vpop.f32.mrb[0].mxu0
      %v4979 = vadd.f32 %v4626, %v4978
      %4980 = vmatprep.mubr.bf16.mxu0 0
      %4981 = vmatmul.mubr.bf16.gmra.mrb[0].mxu0 %v2270
      %v4982 = vpop.f32.mrb[0].mxu0
      %v4983 = vadd.f32 %v4630, %v4982
      %v4984 = vpop.f32.mrb[0].mxu0
      %v4985 = vadd.f32 %v4632, %v4984
      %v4986 = vpop.f32.mrb[0].mxu0
      %v4987 = vadd.f32 %v4634, %v4986
      %v4988 = vpop.f32.mrb[0].mxu0
      %v4989 = vadd.f32 %v4636, %v4988
      %4990 = vmatprep.mubr.bf16.mxu0 0
      %4991 = vmatmul.mubr.bf16.gmra.mrb[0].mxu0 %v2273
      %v4992 = vpop.f32.mrb[0].mxu0
      %v4993 = vadd.f32 %v4640, %v4992
      %v4994 = vpop.f32.mrb[0].mxu0
      %v4995 = vadd.f32 %v4642, %v4994
      %v4996 = vpop.f32.mrb[0].mxu0
      %v4997 = vadd.f32 %v4644, %v4996
      %v4998 = vpop.f32.mrb[0].mxu0
      %v4999 = vadd.f32 %v4646, %v4998
      %5000 = vmatprep.mubr.bf16.mxu0 0
      %5001 = vmatmul.mubr.bf16.gmra.mrb[0].mxu0 %v2276
      %v5002 = vpop.f32.mrb[0].mxu0
      %v5003 = vadd.f32 %v4650, %v5002
      %v5004 = vpop.f32.mrb[0].mxu0
      %v5005 = vadd.f32 %v4652, %v5004
      %v5006 = vpop.f32.mrb[0].mxu0
      %v5007 = vadd.f32 %v4654, %v5006
      %v5008 = vpop.f32.mrb[0].mxu0
      %v5009 = vadd.f32 %v4656, %v5008
      %5010 = vmatprep.mubr.bf16.mxu0 0
      %5011 = vmatmul.mubr.bf16.gmra.mrb[0].mxu0 %v2279
      %v5012 = vpop.f32.mrb[0].mxu0
      %v5013 = vadd.f32 %v4660, %v5012
      %v5014 = vpop.f32.mrb[0].mxu0
      %v5015 = vadd.f32 %v4662, %v5014
      %v5016 = vpop.f32.mrb[0].mxu0
      %v5017 = vadd.f32 %v4664, %v5016
      %v5018 = vpop.f32.mrb[0].mxu0
      %v5019 = vadd.f32 %v4666, %v5018
      %5020 = vmatprep.mubr.bf16.mxu0 0
      %5021 = vmatmul.mubr.bf16.gmra.mrb[0].mxu0 %v2282
      %v5022 = vpop.f32.mrb[0].mxu0
      %v5023 = vadd.f32 %v4670, %v5022
      %v5024 = vpop.f32.mrb[0].mxu0
      %v5025 = vadd.f32 %v4672, %v5024
      %v5026 = vpop.f32.mrb[0].mxu0
      %v5027 = vadd.f32 %v4674, %v5026
      %v5028 = vpop.f32.mrb[0].mxu0
      %v5029 = vadd.f32 %v4676, %v5028
      %5030 = vmatprep.mubr.bf16.mxu0 0
      %5031 = vmatmul.mubr.bf16.gmra.mrb[0].mxu0 %v2285
      %v5032 = vpop.f32.mrb[0].mxu0
      %v5033 = vadd.f32 %v4680, %v5032
      %v5034 = vpop.f32.mrb[0].mxu0
      %v5035 = vadd.f32 %v4682, %v5034
      %v5036 = vpop.f32.mrb[0].mxu0
      %v5037 = vadd.f32 %v4684, %v5036
      %v5038 = vpop.f32.mrb[0].mxu0
      %v5039 = vadd.f32 %v4686, %v5038
      %5040 = vmatprep.mubr.bf16.mxu0 0
      %5041 = vmatmul.mubr.bf16.gmra.mrb[0].mxu0 %v2288
      %v5042 = vpop.f32.mrb[0].mxu0
      %v5043 = vadd.f32 %v4690, %v5042
      %v5044 = vpop.f32.mrb[0].mxu0
      %v5045 = vadd.f32 %v4692, %v5044
      %v5046 = vpop.f32.mrb[0].mxu0
      %v5047 = vadd.f32 %v4694, %v5046
      %v5048 = vpop.f32.mrb[0].mxu0
      %v5049 = vadd.f32 %v4696, %v5048
      %5050 = vmatprep.mubr.bf16.mxu0 0
      %5051 = vmatmul.mubr.bf16.gmra.mrb[0].mxu0 %v2291
      %v5052 = vpop.f32.mrb[0].mxu0
      %v5053 = vadd.f32 %v4700, %v5052
      %v5054 = vpop.f32.mrb[0].mxu0
      %v5055 = vadd.f32 %v4702, %v5054
      %v5056 = vpop.f32.mrb[0].mxu0
      %v5057 = vadd.f32 %v4704, %v5056
      %v5058 = vpop.f32.mrb[0].mxu0
      %v5059 = vadd.f32 %v4706, %v5058
      %5060 = vmatprep.mubr.bf16.mxu0 0
      %5061 = vmatmul.mubr.bf16.gmra.mrb[0].mxu0 %v2294
      %v5062 = vpop.f32.mrb[0].mxu0
      %v5063 = vadd.f32 %v4710, %v5062
      %v5064 = vpop.f32.mrb[0].mxu0
      %v5065 = vadd.f32 %v4712, %v5064
      %v5066 = vpop.f32.mrb[0].mxu0
      %v5067 = vadd.f32 %v4714, %v5066
      %v5068 = vpop.f32.mrb[0].mxu0
      %v5069 = vadd.f32 %v4716, %v5068
      %5070 = vmatprep.mubr.bf16.mxu0 0
      %5071 = vmatmul.mubr.bf16.gmra.mrb[0].mxu0 %v2297
      %v5072 = vpop.f32.mrb[0].mxu0
      %v5073 = vadd.f32 %v4720, %v5072
      %v5074 = vpop.f32.mrb[0].mxu0
      %v5075 = vadd.f32 %v4722, %v5074
      %v5076 = vpop.f32.mrb[0].mxu0
      %v5077 = vadd.f32 %v4724, %v5076
      %v5078 = vpop.f32.mrb[0].mxu0
      %v5079 = vadd.f32 %v4726, %v5078
      %5080 = vmatprep.mubr.bf16.mxu0 0
      %5081 = vmatmul.mubr.bf16.gmra.mrb[0].mxu0 %v2300
      %v5082 = vpop.f32.mrb[0].mxu0
      %v5083 = vadd.f32 %v4730, %v5082
      %v5084 = vpop.f32.mrb[0].mxu0
      %v5085 = vadd.f32 %v4732, %v5084
      %v5086 = vpop.f32.mrb[0].mxu0
      %v5087 = vadd.f32 %v4734, %v5086
      %v5088 = vpop.f32.mrb[0].mxu0
      %v5089 = vadd.f32 %v4736, %v5088
      %5090 = vmatprep.mubr.bf16.mxu0 0
      %5091 = vmatmul.mubr.bf16.gmra.mrb[0].mxu0 %v2303
      %v5092 = vpop.f32.mrb[0].mxu0
      %v5093 = vadd.f32 %v4740, %v5092
      %v5094 = vpop.f32.mrb[0].mxu0
      %v5095 = vadd.f32 %v4742, %v5094
      %v5096 = vpop.f32.mrb[0].mxu0
      %v5097 = vadd.f32 %v4744, %v5096
      %v5098 = vpop.f32.mrb[0].mxu0
      %v5099 = vadd.f32 %v4746, %v5098
      %5100 = vmatprep.mubr.bf16.mxu0 0
      %5101 = vmatmul.mubr.bf16.gmra.mrb[0].mxu0 %v2306
      %v5102 = vpop.f32.mrb[0].mxu0
      %v5103 = vadd.f32 %v4750, %v5102
      %v5104 = vpop.f32.mrb[0].mxu0
      %v5105 = vadd.f32 %v4752, %v5104
      %v5106 = vpop.f32.mrb[0].mxu0
      %v5107 = vadd.f32 %v4754, %v5106
      %v5108 = vpop.f32.mrb[0].mxu0
      %v5109 = vadd.f32 %v4756, %v5108
      %5110 = vmatprep.mubr.bf16.mxu0 0
      %5111 = vmatmul.mubr.bf16.gmra.mrb[0].mxu0 %v2309
      %v5112 = vpop.f32.mrb[0].mxu0
      %v5113 = vadd.f32 %v4760, %v5112
      %v5114 = vpop.f32.mrb[0].mxu0
      %v5115 = vadd.f32 %v4762, %v5114
      %v5116 = vpop.f32.mrb[0].mxu0
      %v5117 = vadd.f32 %v4764, %v5116
      %v5118 = vpop.f32.mrb[0].mxu0
      %v5119 = vadd.f32 %v4766, %v5118
      %5120 = vmatprep.mubr.bf16.mxu0 0
      %5121 = vmatmul.mubr.bf16.gmra.mrb[0].mxu0 %v2312
      %v5122 = vpop.f32.mrb[0].mxu0
      %v5123 = vadd.f32 %v4770, %v5122
      %v5124 = vpop.f32.mrb[0].mxu0
      %v5125 = vadd.f32 %v4772, %v5124
      %v5126 = vpop.f32.mrb[0].mxu0
      %v5127 = vadd.f32 %v4774, %v5126
      %v5128 = vpop.f32.mrb[0].mxu0
      %v5129 = vadd.f32 %v4776, %v5128
      %5130 = vmatprep.mubr.bf16.mxu0 0
      %5131 = vmatmul.mubr.bf16.gmra.mrb[0].mxu0 %v2315
      %v5132 = vpop.f32.mrb[0].mxu0
      %v5133 = vadd.f32 %v4780, %v5132
      %v5134 = vpop.f32.mrb[0].mxu0
      %v5135 = vadd.f32 %v4782, %v5134
      %v5136 = vpop.f32.mrb[0].mxu0
      %v5137 = vadd.f32 %v4784, %v5136
      %v5138 = vpop.f32.mrb[0].mxu0
      %v5139 = vadd.f32 %v4786, %v5138
      %5140 = vdwg.mxu0
      %vm5141 = vcmp.gt.f32.partialorder %v3411, 0.0
      %vm5142 = vcmp.gt.f32.partialorder %v3413, 0.0
      %vm5143 = vcmp.gt.f32.partialorder %v4823, 0.0
      %vm5144 = vcmp.gt.f32.partialorder %v4825, 0.0
      %vm5145 = vcmp.gt.f32.partialorder %v3415, 0.0
      %vm5146 = vcmp.gt.f32.partialorder %v3417, 0.0
      %vm5147 = vcmp.gt.f32.partialorder %v4827, 0.0
      %vm5148 = vcmp.gt.f32.partialorder %v4829, 0.0
      %vm5149 = vcmp.gt.f32.partialorder %v3421, 0.0
      %vm5150 = vcmp.gt.f32.partialorder %v3423, 0.0
      %vm5151 = vcmp.gt.f32.partialorder %v4833, 0.0
      %vm5152 = vcmp.gt.f32.partialorder %v4835, 0.0
      %vm5153 = vcmp.gt.f32.partialorder %v3425, 0.0
      %vm5154 = vcmp.gt.f32.partialorder %v3427, 0.0
      %vm5155 = vcmp.gt.f32.partialorder %v4837, 0.0
      %vm5156 = vcmp.gt.f32.partialorder %v4839, 0.0
      %vm5157 = vcmp.gt.f32.partialorder %v3431, 0.0
      %vm5158 = vcmp.gt.f32.partialorder %v3433, 0.0
      %vm5159 = vcmp.gt.f32.partialorder %v4843, 0.0
      %vm5160 = vcmp.gt.f32.partialorder %v4845, 0.0
      %vm5161 = vcmp.gt.f32.partialorder %v3435, 0.0
      %vm5162 = vcmp.gt.f32.partialorder %v3437, 0.0
      %vm5163 = vcmp.gt.f32.partialorder %v4847, 0.0
      %vm5164 = vcmp.gt.f32.partialorder %v4849, 0.0
      %vm5165 = vcmp.gt.f32.partialorder %v3441, 0.0
      %vm5166 = vcmp.gt.f32.partialorder %v3443, 0.0
      %vm5167 = vcmp.gt.f32.partialorder %v4853, 0.0
      %vm5168 = vcmp.gt.f32.partialorder %v4855, 0.0
      %vm5169 = vcmp.gt.f32.partialorder %v3445, 0.0
      %vm5170 = vcmp.gt.f32.partialorder %v3447, 0.0
      %vm5171 = vcmp.gt.f32.partialorder %v4857, 0.0
      %vm5172 = vcmp.gt.f32.partialorder %v4859, 0.0
      %vm5173 = vcmp.gt.f32.partialorder %v3451, 0.0
      %vm5174 = vcmp.gt.f32.partialorder %v3453, 0.0
      %vm5175 = vcmp.gt.f32.partialorder %v4863, 0.0
      %vm5176 = vcmp.gt.f32.partialorder %v4865, 0.0
      %vm5177 = vcmp.gt.f32.partialorder %v3455, 0.0
      %vm5178 = vcmp.gt.f32.partialorder %v3457, 0.0
      %vm5179 = vcmp.gt.f32.partialorder %v4867, 0.0
      %vm5180 = vcmp.gt.f32.partialorder %v4869, 0.0
      %vm5181 = vcmp.gt.f32.partialorder %v3461, 0.0
      %vm5182 = vcmp.gt.f32.partialorder %v3463, 0.0
      %vm5183 = vcmp.gt.f32.partialorder %v4873, 0.0
      %vm5184 = vcmp.gt.f32.partialorder %v4875, 0.0
      %vm5185 = vcmp.gt.f32.partialorder %v3465, 0.0
      %vm5186 = vcmp.gt.f32.partialorder %v3467, 0.0
      %vm5187 = vcmp.gt.f32.partialorder %v4877, 0.0
      %vm5188 = vcmp.gt.f32.partialorder %v4879, 0.0
      %vm5189 = vcmp.gt.f32.partialorder %v3471, 0.0
      %vm5190 = vcmp.gt.f32.partialorder %v3473, 0.0
      %vm5191 = vcmp.gt.f32.partialorder %v4883, 0.0
      %vm5192 = vcmp.gt.f32.partialorder %v4885, 0.0
      %vm5193 = vcmp.gt.f32.partialorder %v3475, 0.0
      %vm5194 = vcmp.gt.f32.partialorder %v3477, 0.0
      %vm5195 = vcmp.gt.f32.partialorder %v4887, 0.0
      %vm5196 = vcmp.gt.f32.partialorder %v4889, 0.0
      %vm5197 = vcmp.gt.f32.partialorder %v3481, 0.0
      %vm5198 = vcmp.gt.f32.partialorder %v3483, 0.0
      %vm5199 = vcmp.gt.f32.partialorder %v4893, 0.0
      %vm5200 = vcmp.gt.f32.partialorder %v4895, 0.0
      %vm5201 = vcmp.gt.f32.partialorder %v3485, 0.0
      %vm5202 = vcmp.gt.f32.partialorder %v3487, 0.0
      %vm5203 = vcmp.gt.f32.partialorder %v4897, 0.0
      %vm5204 = vcmp.gt.f32.partialorder %v4899, 0.0
      %vm5205 = vcmp.gt.f32.partialorder %v3491, 0.0
      %vm5206 = vcmp.gt.f32.partialorder %v3493, 0.0
      %vm5207 = vcmp.gt.f32.partialorder %v4903, 0.0
      %vm5208 = vcmp.gt.f32.partialorder %v4905, 0.0
      %vm5209 = vcmp.gt.f32.partialorder %v3495, 0.0
      %vm5210 = vcmp.gt.f32.partialorder %v3497, 0.0
      %vm5211 = vcmp.gt.f32.partialorder %v4907, 0.0
      %vm5212 = vcmp.gt.f32.partialorder %v4909, 0.0
      %vm5213 = vcmp.gt.f32.partialorder %v3501, 0.0
      %vm5214 = vcmp.gt.f32.partialorder %v3503, 0.0
      %vm5215 = vcmp.gt.f32.partialorder %v4913, 0.0
      %vm5216 = vcmp.gt.f32.partialorder %v4915, 0.0
      %vm5217 = vcmp.gt.f32.partialorder %v3505, 0.0
      %vm5218 = vcmp.gt.f32.partialorder %v3507, 0.0
      %vm5219 = vcmp.gt.f32.partialorder %v4917, 0.0
      %vm5220 = vcmp.gt.f32.partialorder %v4919, 0.0
      %vm5221 = vcmp.gt.f32.partialorder %v3511, 0.0
      %vm5222 = vcmp.gt.f32.partialorder %v3513, 0.0
      %vm5223 = vcmp.gt.f32.partialorder %v4923, 0.0
      %vm5224 = vcmp.gt.f32.partialorder %v4925, 0.0
      %vm5225 = vcmp.gt.f32.partialorder %v3515, 0.0
      %vm5226 = vcmp.gt.f32.partialorder %v3517, 0.0
      %vm5227 = vcmp.gt.f32.partialorder %v4927, 0.0
      %vm5228 = vcmp.gt.f32.partialorder %v4929, 0.0
      %vm5229 = vcmp.gt.f32.partialorder %v3521, 0.0
      %vm5230 = vcmp.gt.f32.partialorder %v3523, 0.0
      %vm5231 = vcmp.gt.f32.partialorder %v4933, 0.0
      %vm5232 = vcmp.gt.f32.partialorder %v4935, 0.0
      %vm5233 = vcmp.gt.f32.partialorder %v3525, 0.0
      %vm5234 = vcmp.gt.f32.partialorder %v3527, 0.0
      %vm5235 = vcmp.gt.f32.partialorder %v4937, 0.0
      %vm5236 = vcmp.gt.f32.partialorder %v4939, 0.0
      %vm5237 = vcmp.gt.f32.partialorder %v3531, 0.0
      %vm5238 = vcmp.gt.f32.partialorder %v3533, 0.0
      %vm5239 = vcmp.gt.f32.partialorder %v4943, 0.0
      %vm5240 = vcmp.gt.f32.partialorder %v4945, 0.0
      %vm5241 = vcmp.gt.f32.partialorder %v3535, 0.0
      %vm5242 = vcmp.gt.f32.partialorder %v3537, 0.0
      %vm5243 = vcmp.gt.f32.partialorder %v4947, 0.0
      %vm5244 = vcmp.gt.f32.partialorder %v4949, 0.0
      %vm5245 = vcmp.gt.f32.partialorder %v3541, 0.0
      %vm5246 = vcmp.gt.f32.partialorder %v3543, 0.0
      %vm5247 = vcmp.gt.f32.partialorder %v4953, 0.0
      %vm5248 = vcmp.gt.f32.partialorder %v4955, 0.0
      %vm5249 = vcmp.gt.f32.partialorder %v3545, 0.0
      %vm5250 = vcmp.gt.f32.partialorder %v3547, 0.0
      %vm5251 = vcmp.gt.f32.partialorder %v4957, 0.0
      %vm5252 = vcmp.gt.f32.partialorder %v4959, 0.0
      %vm5253 = vcmp.gt.f32.partialorder %v3551, 0.0
      %vm5254 = vcmp.gt.f32.partialorder %v3553, 0.0
      %vm5255 = vcmp.gt.f32.partialorder %v4963, 0.0
      %vm5256 = vcmp.gt.f32.partialorder %v4965, 0.0
      %vm5257 = vcmp.gt.f32.partialorder %v3555, 0.0
      %vm5258 = vcmp.gt.f32.partialorder %v3557, 0.0
      %vm5259 = vcmp.gt.f32.partialorder %v4967, 0.0
      %vm5260 = vcmp.gt.f32.partialorder %v4969, 0.0
      %vm5261 = vcmp.gt.f32.partialorder %v3561, 0.0
      %vm5262 = vcmp.gt.f32.partialorder %v3563, 0.0
      %vm5263 = vcmp.gt.f32.partialorder %v4973, 0.0
      %vm5264 = vcmp.gt.f32.partialorder %v4975, 0.0
      %vm5265 = vcmp.gt.f32.partialorder %v3565, 0.0
      %vm5266 = vcmp.gt.f32.partialorder %v3567, 0.0
      %vm5267 = vcmp.gt.f32.partialorder %v4977, 0.0
      %vm5268 = vcmp.gt.f32.partialorder %v4979, 0.0
      %vm5269 = vcmp.gt.f32.partialorder %v3571, 0.0
      %vm5270 = vcmp.gt.f32.partialorder %v3573, 0.0
      %vm5271 = vcmp.gt.f32.partialorder %v4983, 0.0
      %vm5272 = vcmp.gt.f32.partialorder %v4985, 0.0
      %vm5273 = vcmp.gt.f32.partialorder %v3575, 0.0
      %vm5274 = vcmp.gt.f32.partialorder %v3577, 0.0
      %vm5275 = vcmp.gt.f32.partialorder %v4987, 0.0
      %vm5276 = vcmp.gt.f32.partialorder %v4989, 0.0
      %vm5277 = vcmp.gt.f32.partialorder %v3581, 0.0
      %vm5278 = vcmp.gt.f32.partialorder %v3583, 0.0
      %vm5279 = vcmp.gt.f32.partialorder %v4993, 0.0
      %vm5280 = vcmp.gt.f32.partialorder %v4995, 0.0
      %vm5281 = vcmp.gt.f32.partialorder %v3585, 0.0
      %vm5282 = vcmp.gt.f32.partialorder %v3587, 0.0
      %vm5283 = vcmp.gt.f32.partialorder %v4997, 0.0
      %vm5284 = vcmp.gt.f32.partialorder %v4999, 0.0
      %vm5285 = vcmp.gt.f32.partialorder %v3591, 0.0
      %vm5286 = vcmp.gt.f32.partialorder %v3593, 0.0
      %vm5287 = vcmp.gt.f32.partialorder %v5003, 0.0
      %vm5288 = vcmp.gt.f32.partialorder %v5005, 0.0
      %vm5289 = vcmp.gt.f32.partialorder %v3595, 0.0
      %vm5290 = vcmp.gt.f32.partialorder %v3597, 0.0
      %vm5291 = vcmp.gt.f32.partialorder %v5007, 0.0
      %vm5292 = vcmp.gt.f32.partialorder %v5009, 0.0
      %vm5293 = vcmp.gt.f32.partialorder %v3601, 0.0
      %vm5294 = vcmp.gt.f32.partialorder %v3603, 0.0
      %vm5295 = vcmp.gt.f32.partialorder %v5013, 0.0
      %vm5296 = vcmp.gt.f32.partialorder %v5015, 0.0
      %vm5297 = vcmp.gt.f32.partialorder %v3605, 0.0
      %vm5298 = vcmp.gt.f32.partialorder %v3607, 0.0
      %vm5299 = vcmp.gt.f32.partialorder %v5017, 0.0
      %vm5300 = vcmp.gt.f32.partialorder %v5019, 0.0
      %vm5301 = vcmp.gt.f32.partialorder %v3611, 0.0
      %vm5302 = vcmp.gt.f32.partialorder %v3613, 0.0
      %vm5303 = vcmp.gt.f32.partialorder %v5023, 0.0
      %vm5304 = vcmp.gt.f32.partialorder %v5025, 0.0
      %vm5305 = vcmp.gt.f32.partialorder %v3615, 0.0
      %vm5306 = vcmp.gt.f32.partialorder %v3617, 0.0
      %vm5307 = vcmp.gt.f32.partialorder %v5027, 0.0
      %vm5308 = vcmp.gt.f32.partialorder %v5029, 0.0
      %vm5309 = vcmp.gt.f32.partialorder %v3621, 0.0
      %vm5310 = vcmp.gt.f32.partialorder %v3623, 0.0
      %vm5311 = vcmp.gt.f32.partialorder %v5033, 0.0
      %vm5312 = vcmp.gt.f32.partialorder %v5035, 0.0
      %vm5313 = vcmp.gt.f32.partialorder %v3625, 0.0
      %vm5314 = vcmp.gt.f32.partialorder %v3627, 0.0
      %vm5315 = vcmp.gt.f32.partialorder %v5037, 0.0
      %vm5316 = vcmp.gt.f32.partialorder %v5039, 0.0
      %vm5317 = vcmp.gt.f32.partialorder %v3631, 0.0
      %vm5318 = vcmp.gt.f32.partialorder %v3633, 0.0
      %vm5319 = vcmp.gt.f32.partialorder %v5043, 0.0
      %vm5320 = vcmp.gt.f32.partialorder %v5045, 0.0
      %vm5321 = vcmp.gt.f32.partialorder %v3635, 0.0
      %vm5322 = vcmp.gt.f32.partialorder %v3637, 0.0
      %vm5323 = vcmp.gt.f32.partialorder %v5047, 0.0
      %vm5324 = vcmp.gt.f32.partialorder %v5049, 0.0
      %vm5325 = vcmp.gt.f32.partialorder %v3641, 0.0
      %vm5326 = vcmp.gt.f32.partialorder %v3643, 0.0
      %vm5327 = vcmp.gt.f32.partialorder %v5053, 0.0
      %vm5328 = vcmp.gt.f32.partialorder %v5055, 0.0
      %vm5329 = vcmp.gt.f32.partialorder %v3645, 0.0
      %vm5330 = vcmp.gt.f32.partialorder %v3647, 0.0
      %vm5331 = vcmp.gt.f32.partialorder %v5057, 0.0
      %vm5332 = vcmp.gt.f32.partialorder %v5059, 0.0
      %vm5333 = vcmp.gt.f32.partialorder %v3651, 0.0
      %vm5334 = vcmp.gt.f32.partialorder %v3653, 0.0
      %vm5335 = vcmp.gt.f32.partialorder %v5063, 0.0
      %vm5336 = vcmp.gt.f32.partialorder %v5065, 0.0
      %vm5337 = vcmp.gt.f32.partialorder %v3655, 0.0
      %vm5338 = vcmp.gt.f32.partialorder %v3657, 0.0
      %vm5339 = vcmp.gt.f32.partialorder %v5067, 0.0
      %vm5340 = vcmp.gt.f32.partialorder %v5069, 0.0
      %vm5341 = vcmp.gt.f32.partialorder %v3661, 0.0
      %vm5342 = vcmp.gt.f32.partialorder %v3663, 0.0
      %vm5343 = vcmp.gt.f32.partialorder %v5073, 0.0
      %vm5344 = vcmp.gt.f32.partialorder %v5075, 0.0
      %vm5345 = vcmp.gt.f32.partialorder %v3665, 0.0
      %vm5346 = vcmp.gt.f32.partialorder %v3667, 0.0
      %vm5347 = vcmp.gt.f32.partialorder %v5077, 0.0
      %vm5348 = vcmp.gt.f32.partialorder %v5079, 0.0
      %vm5349 = vcmp.gt.f32.partialorder %v3671, 0.0
      %vm5350 = vcmp.gt.f32.partialorder %v3673, 0.0
      %vm5351 = vcmp.gt.f32.partialorder %v5083, 0.0
      %vm5352 = vcmp.gt.f32.partialorder %v5085, 0.0
      %vm5353 = vcmp.gt.f32.partialorder %v3675, 0.0
      %vm5354 = vcmp.gt.f32.partialorder %v3677, 0.0
      %vm5355 = vcmp.gt.f32.partialorder %v5087, 0.0
      %vm5356 = vcmp.gt.f32.partialorder %v5089, 0.0
      %vm5357 = vcmp.gt.f32.partialorder %v3681, 0.0
      %vm5358 = vcmp.gt.f32.partialorder %v3683, 0.0
      %vm5359 = vcmp.gt.f32.partialorder %v5093, 0.0
      %vm5360 = vcmp.gt.f32.partialorder %v5095, 0.0
      %vm5361 = vcmp.gt.f32.partialorder %v3685, 0.0
      %vm5362 = vcmp.gt.f32.partialorder %v3687, 0.0
      %vm5363 = vcmp.gt.f32.partialorder %v5097, 0.0
      %vm5364 = vcmp.gt.f32.partialorder %v5099, 0.0
      %vm5365 = vcmp.gt.f32.partialorder %v3691, 0.0
      %vm5366 = vcmp.gt.f32.partialorder %v3693, 0.0
      %vm5367 = vcmp.gt.f32.partialorder %v5103, 0.0
      %vm5368 = vcmp.gt.f32.partialorder %v5105, 0.0
      %vm5369 = vcmp.gt.f32.partialorder %v3695, 0.0
      %vm5370 = vcmp.gt.f32.partialorder %v3697, 0.0
      %vm5371 = vcmp.gt.f32.partialorder %v5107, 0.0
      %vm5372 = vcmp.gt.f32.partialorder %v5109, 0.0
      %vm5373 = vcmp.gt.f32.partialorder %v3701, 0.0
      %vm5374 = vcmp.gt.f32.partialorder %v3703, 0.0
      %vm5375 = vcmp.gt.f32.partialorder %v5113, 0.0
      %vm5376 = vcmp.gt.f32.partialorder %v5115, 0.0
      %vm5377 = vcmp.gt.f32.partialorder %v3705, 0.0
      %vm5378 = vcmp.gt.f32.partialorder %v3707, 0.0
      %vm5379 = vcmp.gt.f32.partialorder %v5117, 0.0
      %vm5380 = vcmp.gt.f32.partialorder %v5119, 0.0
      %vm5381 = vcmp.gt.f32.partialorder %v3711, 0.0
      %vm5382 = vcmp.gt.f32.partialorder %v3713, 0.0
      %vm5383 = vcmp.gt.f32.partialorder %v5123, 0.0
      %vm5384 = vcmp.gt.f32.partialorder %v5125, 0.0
      %vm5385 = vcmp.gt.f32.partialorder %v3715, 0.0
      %vm5386 = vcmp.gt.f32.partialorder %v3717, 0.0
      %vm5387 = vcmp.gt.f32.partialorder %v5127, 0.0
      %vm5388 = vcmp.gt.f32.partialorder %v5129, 0.0
      %vm5389 = vcmp.gt.f32.partialorder %v3721, 0.0
      %vm5390 = vcmp.gt.f32.partialorder %v3723, 0.0
      %vm5391 = vcmp.gt.f32.partialorder %v5133, 0.0
      %vm5392 = vcmp.gt.f32.partialorder %v5135, 0.0
      %vm5393 = vcmp.gt.f32.partialorder %v3725, 0.0
      %vm5394 = vcmp.gt.f32.partialorder %v3727, 0.0
      %vm5395 = vcmp.gt.f32.partialorder %v5137, 0.0
      %vm5396 = vcmp.gt.f32.partialorder %v5139, 0.0
      %v5397 = vmul.f32 %v3411, 0.2
      %v5398 = vmul.f32 %v3413, 0.2
      %v5399 = vmul.f32 %v4823, 0.2
      %v5400 = vmul.f32 %v4825, 0.2
      %v5401 = vmul.f32 %v3415, 0.2
      %v5402 = vmul.f32 %v3417, 0.2
      %v5403 = vmul.f32 %v4827, 0.2
      %v5404 = vmul.f32 %v4829, 0.2
      %v5405 = vmul.f32 %v3421, 0.2
      %v5406 = vmul.f32 %v3423, 0.2
      %v5407 = vmul.f32 %v4833, 0.2
      %v5408 = vmul.f32 %v4835, 0.2
      %v5409 = vmul.f32 %v3425, 0.2
      %v5410 = vmul.f32 %v3427, 0.2
      %v5411 = vmul.f32 %v4837, 0.2
      %v5412 = vmul.f32 %v4839, 0.2
      %v5413 = vmul.f32 %v3431, 0.2
      %v5414 = vmul.f32 %v3433, 0.2
      %v5415 = vmul.f32 %v4843, 0.2
      %v5416 = vmul.f32 %v4845, 0.2
      %v5417 = vmul.f32 %v3435, 0.2
      %v5418 = vmul.f32 %v3437, 0.2
      %v5419 = vmul.f32 %v4847, 0.2
      %v5420 = vmul.f32 %v4849, 0.2
      %v5421 = vmul.f32 %v3441, 0.2
      %v5422 = vmul.f32 %v3443, 0.2
      %v5423 = vmul.f32 %v4853, 0.2
      %v5424 = vmul.f32 %v4855, 0.2
      %v5425 = vmul.f32 %v3445, 0.2
      %v5426 = vmul.f32 %v3447, 0.2
      %v5427 = vmul.f32 %v4857, 0.2
      %v5428 = vmul.f32 %v4859, 0.2
      %v5429 = vmul.f32 %v3451, 0.2
      %v5430 = vmul.f32 %v3453, 0.2
      %v5431 = vmul.f32 %v4863, 0.2
      %v5432 = vmul.f32 %v4865, 0.2
      %v5433 = vmul.f32 %v3455, 0.2
      %v5434 = vmul.f32 %v3457, 0.2
      %v5435 = vmul.f32 %v4867, 0.2
      %v5436 = vmul.f32 %v4869, 0.2
      %v5437 = vmul.f32 %v3461, 0.2
      %v5438 = vmul.f32 %v3463, 0.2
      %v5439 = vmul.f32 %v4873, 0.2
      %v5440 = vmul.f32 %v4875, 0.2
      %v5441 = vmul.f32 %v3465, 0.2
      %v5442 = vmul.f32 %v3467, 0.2
      %v5443 = vmul.f32 %v4877, 0.2
      %v5444 = vmul.f32 %v4879, 0.2
      %v5445 = vmul.f32 %v3471, 0.2
      %v5446 = vmul.f32 %v3473, 0.2
      %v5447 = vmul.f32 %v4883, 0.2
      %v5448 = vmul.f32 %v4885, 0.2
      %v5449 = vmul.f32 %v3475, 0.2
      %v5450 = vmul.f32 %v3477, 0.2
      %v5451 = vmul.f32 %v4887, 0.2
      %v5452 = vmul.f32 %v4889, 0.2
      %v5453 = vmul.f32 %v3481, 0.2
      %v5454 = vmul.f32 %v3483, 0.2
      %v5455 = vmul.f32 %v4893, 0.2
      %v5456 = vmul.f32 %v4895, 0.2
      %v5457 = vmul.f32 %v3485, 0.2
      %v5458 = vmul.f32 %v3487, 0.2
      %v5459 = vmul.f32 %v4897, 0.2
      %v5460 = vmul.f32 %v4899, 0.2
      %v5461 = vmul.f32 %v3491, 0.2
      %v5462 = vmul.f32 %v3493, 0.2
      %v5463 = vmul.f32 %v4903, 0.2
      %v5464 = vmul.f32 %v4905, 0.2
      %v5465 = vmul.f32 %v3495, 0.2
      %v5466 = vmul.f32 %v3497, 0.2
      %v5467 = vmul.f32 %v4907, 0.2
      %v5468 = vmul.f32 %v4909, 0.2
      %v5469 = vmul.f32 %v3501, 0.2
      %v5470 = vmul.f32 %v3503, 0.2
      %v5471 = vmul.f32 %v4913, 0.2
      %v5472 = vmul.f32 %v4915, 0.2
      %v5473 = vmul.f32 %v3505, 0.2
      %v5474 = vmul.f32 %v3507, 0.2
      %v5475 = vmul.f32 %v4917, 0.2
      %v5476 = vmul.f32 %v4919, 0.2
      %v5477 = vmul.f32 %v3511, 0.2
      %v5478 = vmul.f32 %v3513, 0.2
      %v5479 = vmul.f32 %v4923, 0.2
      %v5480 = vmul.f32 %v4925, 0.2
      %v5481 = vmul.f32 %v3515, 0.2
      %v5482 = vmul.f32 %v3517, 0.2
      %v5483 = vmul.f32 %v4927, 0.2
      %v5484 = vmul.f32 %v4929, 0.2
      %v5485 = vmul.f32 %v3521, 0.2
      %v5486 = vmul.f32 %v3523, 0.2
      %v5487 = vmul.f32 %v4933, 0.2
      %v5488 = vmul.f32 %v4935, 0.2
      %v5489 = vmul.f32 %v3525, 0.2
      %v5490 = vmul.f32 %v3527, 0.2
      %v5491 = vmul.f32 %v4937, 0.2
      %v5492 = vmul.f32 %v4939, 0.2
      %v5493 = vmul.f32 %v3531, 0.2
      %v5494 = vmul.f32 %v3533, 0.2
      %v5495 = vmul.f32 %v4943, 0.2
      %v5496 = vmul.f32 %v4945, 0.2
      %v5497 = vmul.f32 %v3535, 0.2
      %v5498 = vmul.f32 %v3537, 0.2
      %v5499 = vmul.f32 %v4947, 0.2
      %v5500 = vmul.f32 %v4949, 0.2
      %v5501 = vmul.f32 %v3541, 0.2
      %v5502 = vmul.f32 %v3543, 0.2
      %v5503 = vmul.f32 %v4953, 0.2
      %v5504 = vmul.f32 %v4955, 0.2
      %v5505 = vmul.f32 %v3545, 0.2
      %v5506 = vmul.f32 %v3547, 0.2
      %v5507 = vmul.f32 %v4957, 0.2
      %v5508 = vmul.f32 %v4959, 0.2
      %v5509 = vmul.f32 %v3551, 0.2
      %v5510 = vmul.f32 %v3553, 0.2
      %v5511 = vmul.f32 %v4963, 0.2
      %v5512 = vmul.f32 %v4965, 0.2
      %v5513 = vmul.f32 %v3555, 0.2
      %v5514 = vmul.f32 %v3557, 0.2
      %v5515 = vmul.f32 %v4967, 0.2
      %v5516 = vmul.f32 %v4969, 0.2
      %v5517 = vmul.f32 %v3561, 0.2
      %v5518 = vmul.f32 %v3563, 0.2
      %v5519 = vmul.f32 %v4973, 0.2
      %v5520 = vmul.f32 %v4975, 0.2
      %v5521 = vmul.f32 %v3565, 0.2
      %v5522 = vmul.f32 %v3567, 0.2
      %v5523 = vmul.f32 %v4977, 0.2
      %v5524 = vmul.f32 %v4979, 0.2
      %v5525 = vmul.f32 %v3571, 0.2
      %v5526 = vmul.f32 %v3573, 0.2
      %v5527 = vmul.f32 %v4983, 0.2
      %v5528 = vmul.f32 %v4985, 0.2
      %v5529 = vmul.f32 %v3575, 0.2
      %v5530 = vmul.f32 %v3577, 0.2
      %v5531 = vmul.f32 %v4987, 0.2
      %v5532 = vmul.f32 %v4989, 0.2
      %v5533 = vmul.f32 %v3581, 0.2
      %v5534 = vmul.f32 %v3583, 0.2
      %v5535 = vmul.f32 %v4993, 0.2
      %v5536 = vmul.f32 %v4995, 0.2
      %v5537 = vmul.f32 %v3585, 0.2
      %v5538 = vmul.f32 %v3587, 0.2
      %v5539 = vmul.f32 %v4997, 0.2
      %v5540 = vmul.f32 %v4999, 0.2
      %v5541 = vmul.f32 %v3591, 0.2
      %v5542 = vmul.f32 %v3593, 0.2
      %v5543 = vmul.f32 %v5003, 0.2
      %v5544 = vmul.f32 %v5005, 0.2
      %v5545 = vmul.f32 %v3595, 0.2
      %v5546 = vmul.f32 %v3597, 0.2
      %v5547 = vmul.f32 %v5007, 0.2
      %v5548 = vmul.f32 %v5009, 0.2
      %v5549 = vmul.f32 %v3601, 0.2
      %v5550 = vmul.f32 %v3603, 0.2
      %v5551 = vmul.f32 %v5013, 0.2
      %v5552 = vmul.f32 %v5015, 0.2
      %v5553 = vmul.f32 %v3605, 0.2
      %v5554 = vmul.f32 %v3607, 0.2
      %v5555 = vmul.f32 %v5017, 0.2
      %v5556 = vmul.f32 %v5019, 0.2
      %v5557 = vmul.f32 %v3611, 0.2
      %v5558 = vmul.f32 %v3613, 0.2
      %v5559 = vmul.f32 %v5023, 0.2
      %v5560 = vmul.f32 %v5025, 0.2
      %v5561 = vmul.f32 %v3615, 0.2
      %v5562 = vmul.f32 %v3617, 0.2
      %v5563 = vmul.f32 %v5027, 0.2
      %v5564 = vmul.f32 %v5029, 0.2
      %v5565 = vmul.f32 %v3621, 0.2
      %v5566 = vmul.f32 %v3623, 0.2
      %v5567 = vmul.f32 %v5033, 0.2
      %v5568 = vmul.f32 %v5035, 0.2
      %v5569 = vmul.f32 %v3625, 0.2
      %v5570 = vmul.f32 %v3627, 0.2
      %v5571 = vmul.f32 %v5037, 0.2
      %v5572 = vmul.f32 %v5039, 0.2
      %v5573 = vmul.f32 %v3631, 0.2
      %v5574 = vmul.f32 %v3633, 0.2
      %v5575 = vmul.f32 %v5043, 0.2
      %v5576 = vmul.f32 %v5045, 0.2
      %v5577 = vmul.f32 %v3635, 0.2
      %v5578 = vmul.f32 %v3637, 0.2
      %v5579 = vmul.f32 %v5047, 0.2
      %v5580 = vmul.f32 %v5049, 0.2
      %v5581 = vmul.f32 %v3641, 0.2
      %v5582 = vmul.f32 %v3643, 0.2
      %v5583 = vmul.f32 %v5053, 0.2
      %v5584 = vmul.f32 %v5055, 0.2
      %v5585 = vmul.f32 %v3645, 0.2
      %v5586 = vmul.f32 %v3647, 0.2
      %v5587 = vmul.f32 %v5057, 0.2
      %v5588 = vmul.f32 %v5059, 0.2
      %v5589 = vmul.f32 %v3651, 0.2
      %v5590 = vmul.f32 %v3653, 0.2
      %v5591 = vmul.f32 %v5063, 0.2
      %v5592 = vmul.f32 %v5065, 0.2
      %v5593 = vmul.f32 %v3655, 0.2
      %v5594 = vmul.f32 %v3657, 0.2
      %v5595 = vmul.f32 %v5067, 0.2
      %v5596 = vmul.f32 %v5069, 0.2
      %v5597 = vmul.f32 %v3661, 0.2
      %v5598 = vmul.f32 %v3663, 0.2
      %v5599 = vmul.f32 %v5073, 0.2
      %v5600 = vmul.f32 %v5075, 0.2
      %v5601 = vmul.f32 %v3665, 0.2
      %v5602 = vmul.f32 %v3667, 0.2
      %v5603 = vmul.f32 %v5077, 0.2
      %v5604 = vmul.f32 %v5079, 0.2
      %v5605 = vmul.f32 %v3671, 0.2
      %v5606 = vmul.f32 %v3673, 0.2
      %v5607 = vmul.f32 %v5083, 0.2
      %v5608 = vmul.f32 %v5085, 0.2
      %v5609 = vmul.f32 %v3675, 0.2
      %v5610 = vmul.f32 %v3677, 0.2
      %v5611 = vmul.f32 %v5087, 0.2
      %v5612 = vmul.f32 %v5089, 0.2
      %v5613 = vmul.f32 %v3681, 0.2
      %v5614 = vmul.f32 %v3683, 0.2
      %v5615 = vmul.f32 %v5093, 0.2
      %v5616 = vmul.f32 %v5095, 0.2
      %v5617 = vmul.f32 %v3685, 0.2
      %v5618 = vmul.f32 %v3687, 0.2
      %v5619 = vmul.f32 %v5097, 0.2
      %v5620 = vmul.f32 %v5099, 0.2
      %v5621 = vmul.f32 %v3691, 0.2
      %v5622 = vmul.f32 %v3693, 0.2
      %v5623 = vmul.f32 %v5103, 0.2
      %v5624 = vmul.f32 %v5105, 0.2
      %v5625 = vmul.f32 %v3695, 0.2
      %v5626 = vmul.f32 %v3697, 0.2
      %v5627 = vmul.f32 %v5107, 0.2
      %v5628 = vmul.f32 %v5109, 0.2
      %v5629 = vmul.f32 %v3701, 0.2
      %v5630 = vmul.f32 %v3703, 0.2
      %v5631 = vmul.f32 %v5113, 0.2
      %v5632 = vmul.f32 %v5115, 0.2
      %v5633 = vmul.f32 %v3705, 0.2
      %v5634 = vmul.f32 %v3707, 0.2
      %v5635 = vmul.f32 %v5117, 0.2
      %v5636 = vmul.f32 %v5119, 0.2
      %v5637 = vmul.f32 %v3711, 0.2
      %v5638 = vmul.f32 %v3713, 0.2
      %v5639 = vmul.f32 %v5123, 0.2
      %v5640 = vmul.f32 %v5125, 0.2
      %v5641 = vmul.f32 %v3715, 0.2
      %v5642 = vmul.f32 %v3717, 0.2
      %v5643 = vmul.f32 %v5127, 0.2
      %v5644 = vmul.f32 %v5129, 0.2
      %v5645 = vmul.f32 %v3721, 0.2
      %v5646 = vmul.f32 %v3723, 0.2
      %v5647 = vmul.f32 %v5133, 0.2
      %v5648 = vmul.f32 %v5135, 0.2
      %v5649 = vmul.f32 %v3725, 0.2
      %v5650 = vmul.f32 %v3727, 0.2
      %v5651 = vmul.f32 %v5137, 0.2
      %v5652 = vmul.f32 %v5139, 0.2
      %v5653 = vsel %vm5141, %v3411, %v5397
      %v5654 = vsel %vm5142, %v3413, %v5398
      %v5655 = vsel %vm5143, %v4823, %v5399
      %v5656 = vsel %vm5144, %v4825, %v5400
      %v5657 = vsel %vm5145, %v3415, %v5401
      %v5658 = vsel %vm5146, %v3417, %v5402
      %v5659 = vsel %vm5147, %v4827, %v5403
      %v5660 = vsel %vm5148, %v4829, %v5404
      %v5661 = vsel %vm5149, %v3421, %v5405
      %v5662 = vsel %vm5150, %v3423, %v5406
      %v5663 = vsel %vm5151, %v4833, %v5407
      %v5664 = vsel %vm5152, %v4835, %v5408
      %v5665 = vsel %vm5153, %v3425, %v5409
      %v5666 = vsel %vm5154, %v3427, %v5410
      %v5667 = vsel %vm5155, %v4837, %v5411
      %v5668 = vsel %vm5156, %v4839, %v5412
      %v5669 = vsel %vm5157, %v3431, %v5413
      %v5670 = vsel %vm5158, %v3433, %v5414
      %v5671 = vsel %vm5159, %v4843, %v5415
      %v5672 = vsel %vm5160, %v4845, %v5416
      %v5673 = vsel %vm5161, %v3435, %v5417
      %v5674 = vsel %vm5162, %v3437, %v5418
      %v5675 = vsel %vm5163, %v4847, %v5419
      %v5676 = vsel %vm5164, %v4849, %v5420
      %v5677 = vsel %vm5165, %v3441, %v5421
      %v5678 = vsel %vm5166, %v3443, %v5422
      %v5679 = vsel %vm5167, %v4853, %v5423
      %v5680 = vsel %vm5168, %v4855, %v5424
      %v5681 = vsel %vm5169, %v3445, %v5425
      %v5682 = vsel %vm5170, %v3447, %v5426
      %v5683 = vsel %vm5171, %v4857, %v5427
      %v5684 = vsel %vm5172, %v4859, %v5428
      %v5685 = vsel %vm5173, %v3451, %v5429
      %v5686 = vsel %vm5174, %v3453, %v5430
      %v5687 = vsel %vm5175, %v4863, %v5431
      %v5688 = vsel %vm5176, %v4865, %v5432
      %v5689 = vsel %vm5177, %v3455, %v5433
      %v5690 = vsel %vm5178, %v3457, %v5434
      %v5691 = vsel %vm5179, %v4867, %v5435
      %v5692 = vsel %vm5180, %v4869, %v5436
      %v5693 = vsel %vm5181, %v3461, %v5437
      %v5694 = vsel %vm5182, %v3463, %v5438
      %v5695 = vsel %vm5183, %v4873, %v5439
      %v5696 = vsel %vm5184, %v4875, %v5440
      %v5697 = vsel %vm5185, %v3465, %v5441
      %v5698 = vsel %vm5186, %v3467, %v5442
      %v5699 = vsel %vm5187, %v4877, %v5443
      %v5700 = vsel %vm5188, %v4879, %v5444
      %v5701 = vsel %vm5189, %v3471, %v5445
      %v5702 = vsel %vm5190, %v3473, %v5446
      %v5703 = vsel %vm5191, %v4883, %v5447
      %v5704 = vsel %vm5192, %v4885, %v5448
      %v5705 = vsel %vm5193, %v3475, %v5449
      %v5706 = vsel %vm5194, %v3477, %v5450
      %v5707 = vsel %vm5195, %v4887, %v5451
      %v5708 = vsel %vm5196, %v4889, %v5452
      %v5709 = vsel %vm5197, %v3481, %v5453
      %v5710 = vsel %vm5198, %v3483, %v5454
      %v5711 = vsel %vm5199, %v4893, %v5455
      %v5712 = vsel %vm5200, %v4895, %v5456
      %v5713 = vsel %vm5201, %v3485, %v5457
      %v5714 = vsel %vm5202, %v3487, %v5458
      %v5715 = vsel %vm5203, %v4897, %v5459
      %v5716 = vsel %vm5204, %v4899, %v5460
      %v5717 = vsel %vm5205, %v3491, %v5461
      %v5718 = vsel %vm5206, %v3493, %v5462
      %v5719 = vsel %vm5207, %v4903, %v5463
      %v5720 = vsel %vm5208, %v4905, %v5464
      %v5721 = vsel %vm5209, %v3495, %v5465
      %v5722 = vsel %vm5210, %v3497, %v5466
      %v5723 = vsel %vm5211, %v4907, %v5467
      %v5724 = vsel %vm5212, %v4909, %v5468
      %v5725 = vsel %vm5213, %v3501, %v5469
      %v5726 = vsel %vm5214, %v3503, %v5470
      %v5727 = vsel %vm5215, %v4913, %v5471
      %v5728 = vsel %vm5216, %v4915, %v5472
      %v5729 = vsel %vm5217, %v3505, %v5473
      %v5730 = vsel %vm5218, %v3507, %v5474
      %v5731 = vsel %vm5219, %v4917, %v5475
      %v5732 = vsel %vm5220, %v4919, %v5476
      %v5733 = vsel %vm5221, %v3511, %v5477
      %v5734 = vsel %vm5222, %v3513, %v5478
      %v5735 = vsel %vm5223, %v4923, %v5479
      %v5736 = vsel %vm5224, %v4925, %v5480
      %v5737 = vsel %vm5225, %v3515, %v5481
      %v5738 = vsel %vm5226, %v3517, %v5482
      %v5739 = vsel %vm5227, %v4927, %v5483
      %v5740 = vsel %vm5228, %v4929, %v5484
      %v5741 = vsel %vm5229, %v3521, %v5485
      %v5742 = vsel %vm5230, %v3523, %v5486
      %v5743 = vsel %vm5231, %v4933, %v5487
      %v5744 = vsel %vm5232, %v4935, %v5488
      %v5745 = vsel %vm5233, %v3525, %v5489
      %v5746 = vsel %vm5234, %v3527, %v5490
      %v5747 = vsel %vm5235, %v4937, %v5491
      %v5748 = vsel %vm5236, %v4939, %v5492
      %v5749 = vsel %vm5237, %v3531, %v5493
      %v5750 = vsel %vm5238, %v3533, %v5494
      %v5751 = vsel %vm5239, %v4943, %v5495
      %v5752 = vsel %vm5240, %v4945, %v5496
      %v5753 = vsel %vm5241, %v3535, %v5497
      %v5754 = vsel %vm5242, %v3537, %v5498
      %v5755 = vsel %vm5243, %v4947, %v5499
      %v5756 = vsel %vm5244, %v4949, %v5500
      %v5757 = vsel %vm5245, %v3541, %v5501
      %v5758 = vsel %vm5246, %v3543, %v5502
      %v5759 = vsel %vm5247, %v4953, %v5503
      %v5760 = vsel %vm5248, %v4955, %v5504
      %v5761 = vsel %vm5249, %v3545, %v5505
      %v5762 = vsel %vm5250, %v3547, %v5506
      %v5763 = vsel %vm5251, %v4957, %v5507
      %v5764 = vsel %vm5252, %v4959, %v5508
      %v5765 = vsel %vm5253, %v3551, %v5509
      %v5766 = vsel %vm5254, %v3553, %v5510
      %v5767 = vsel %vm5255, %v4963, %v5511
      %v5768 = vsel %vm5256, %v4965, %v5512
      %v5769 = vsel %vm5257, %v3555, %v5513
      %v5770 = vsel %vm5258, %v3557, %v5514
      %v5771 = vsel %vm5259, %v4967, %v5515
      %v5772 = vsel %vm5260, %v4969, %v5516
      %v5773 = vsel %vm5261, %v3561, %v5517
      %v5774 = vsel %vm5262, %v3563, %v5518
      %v5775 = vsel %vm5263, %v4973, %v5519
      %v5776 = vsel %vm5264, %v4975, %v5520
      %v5777 = vsel %vm5265, %v3565, %v5521
      %v5778 = vsel %vm5266, %v3567, %v5522
      %v5779 = vsel %vm5267, %v4977, %v5523
      %v5780 = vsel %vm5268, %v4979, %v5524
      %v5781 = vsel %vm5269, %v3571, %v5525
      %v5782 = vsel %vm5270, %v3573, %v5526
      %v5783 = vsel %vm5271, %v4983, %v5527
      %v5784 = vsel %vm5272, %v4985, %v5528
      %v5785 = vsel %vm5273, %v3575, %v5529
      %v5786 = vsel %vm5274, %v3577, %v5530
      %v5787 = vsel %vm5275, %v4987, %v5531
      %v5788 = vsel %vm5276, %v4989, %v5532
      %v5789 = vsel %vm5277, %v3581, %v5533
      %v5790 = vsel %vm5278, %v3583, %v5534
      %v5791 = vsel %vm5279, %v4993, %v5535
      %v5792 = vsel %vm5280, %v4995, %v5536
      %v5793 = vsel %vm5281, %v3585, %v5537
      %v5794 = vsel %vm5282, %v3587, %v5538
      %v5795 = vsel %vm5283, %v4997, %v5539
      %v5796 = vsel %vm5284, %v4999, %v5540
      %v5797 = vsel %vm5285, %v3591, %v5541
      %v5798 = vsel %vm5286, %v3593, %v5542
      %v5799 = vsel %vm5287, %v5003, %v5543
      %v5800 = vsel %vm5288, %v5005, %v5544
      %v5801 = vsel %vm5289, %v3595, %v5545
      %v5802 = vsel %vm5290, %v3597, %v5546
      %v5803 = vsel %vm5291, %v5007, %v5547
      %v5804 = vsel %vm5292, %v5009, %v5548
      %v5805 = vsel %vm5293, %v3601, %v5549
      %v5806 = vsel %vm5294, %v3603, %v5550
      %v5807 = vsel %vm5295, %v5013, %v5551
      %v5808 = vsel %vm5296, %v5015, %v5552
      %v5809 = vsel %vm5297, %v3605, %v5553
      %v5810 = vsel %vm5298, %v3607, %v5554
      %v5811 = vsel %vm5299, %v5017, %v5555
      %v5812 = vsel %vm5300, %v5019, %v5556
      %v5813 = vsel %vm5301, %v3611, %v5557
      %v5814 = vsel %vm5302, %v3613, %v5558
      %v5815 = vsel %vm5303, %v5023, %v5559
      %v5816 = vsel %vm5304, %v5025, %v5560
      %v5817 = vsel %vm5305, %v3615, %v5561
      %v5818 = vsel %vm5306, %v3617, %v5562
      %v5819 = vsel %vm5307, %v5027, %v5563
      %v5820 = vsel %vm5308, %v5029, %v5564
      %v5821 = vsel %vm5309, %v3621, %v5565
      %v5822 = vsel %vm5310, %v3623, %v5566
      %v5823 = vsel %vm5311, %v5033, %v5567
      %v5824 = vsel %vm5312, %v5035, %v5568
      %v5825 = vsel %vm5313, %v3625, %v5569
      %v5826 = vsel %vm5314, %v3627, %v5570
      %v5827 = vsel %vm5315, %v5037, %v5571
      %v5828 = vsel %vm5316, %v5039, %v5572
      %v5829 = vsel %vm5317, %v3631, %v5573
      %v5830 = vsel %vm5318, %v3633, %v5574
      %v5831 = vsel %vm5319, %v5043, %v5575
      %v5832 = vsel %vm5320, %v5045, %v5576
      %v5833 = vsel %vm5321, %v3635, %v5577
      %v5834 = vsel %vm5322, %v3637, %v5578
      %v5835 = vsel %vm5323, %v5047, %v5579
      %v5836 = vsel %vm5324, %v5049, %v5580
      %v5837 = vsel %vm5325, %v3641, %v5581
      %v5838 = vsel %vm5326, %v3643, %v5582
      %v5839 = vsel %vm5327, %v5053, %v5583
      %v5840 = vsel %vm5328, %v5055, %v5584
      %v5841 = vsel %vm5329, %v3645, %v5585
      %v5842 = vsel %vm5330, %v3647, %v5586
      %v5843 = vsel %vm5331, %v5057, %v5587
      %v5844 = vsel %vm5332, %v5059, %v5588
      %v5845 = vsel %vm5333, %v3651, %v5589
      %v5846 = vsel %vm5334, %v3653, %v5590
      %v5847 = vsel %vm5335, %v5063, %v5591
      %v5848 = vsel %vm5336, %v5065, %v5592
      %v5849 = vsel %vm5337, %v3655, %v5593
      %v5850 = vsel %vm5338, %v3657, %v5594
      %v5851 = vsel %vm5339, %v5067, %v5595
      %v5852 = vsel %vm5340, %v5069, %v5596
      %v5853 = vsel %vm5341, %v3661, %v5597
      %v5854 = vsel %vm5342, %v3663, %v5598
      %v5855 = vsel %vm5343, %v5073, %v5599
      %v5856 = vsel %vm5344, %v5075, %v5600
      %v5857 = vsel %vm5345, %v3665, %v5601
      %v5858 = vsel %vm5346, %v3667, %v5602
      %v5859 = vsel %vm5347, %v5077, %v5603
      %v5860 = vsel %vm5348, %v5079, %v5604
      %v5861 = vsel %vm5349, %v3671, %v5605
      %v5862 = vsel %vm5350, %v3673, %v5606
      %v5863 = vsel %vm5351, %v5083, %v5607
      %v5864 = vsel %vm5352, %v5085, %v5608
      %v5865 = vsel %vm5353, %v3675, %v5609
      %v5866 = vsel %vm5354, %v3677, %v5610
      %v5867 = vsel %vm5355, %v5087, %v5611
      %v5868 = vsel %vm5356, %v5089, %v5612
      %v5869 = vsel %vm5357, %v3681, %v5613
      %v5870 = vsel %vm5358, %v3683, %v5614
      %v5871 = vsel %vm5359, %v5093, %v5615
      %v5872 = vsel %vm5360, %v5095, %v5616
      %v5873 = vsel %vm5361, %v3685, %v5617
      %v5874 = vsel %vm5362, %v3687, %v5618
      %v5875 = vsel %vm5363, %v5097, %v5619
      %v5876 = vsel %vm5364, %v5099, %v5620
      %v5877 = vsel %vm5365, %v3691, %v5621
      %v5878 = vsel %vm5366, %v3693, %v5622
      %v5879 = vsel %vm5367, %v5103, %v5623
      %v5880 = vsel %vm5368, %v5105, %v5624
      %v5881 = vsel %vm5369, %v3695, %v5625
      %v5882 = vsel %vm5370, %v3697, %v5626
      %v5883 = vsel %vm5371, %v5107, %v5627
      %v5884 = vsel %vm5372, %v5109, %v5628
      %v5885 = vsel %vm5373, %v3701, %v5629
      %v5886 = vsel %vm5374, %v3703, %v5630
      %v5887 = vsel %vm5375, %v5113, %v5631
      %v5888 = vsel %vm5376, %v5115, %v5632
      %v5889 = vsel %vm5377, %v3705, %v5633
      %v5890 = vsel %vm5378, %v3707, %v5634
      %v5891 = vsel %vm5379, %v5117, %v5635
      %v5892 = vsel %vm5380, %v5119, %v5636
      %v5893 = vsel %vm5381, %v3711, %v5637
      %v5894 = vsel %vm5382, %v3713, %v5638
      %v5895 = vsel %vm5383, %v5123, %v5639
      %v5896 = vsel %vm5384, %v5125, %v5640
      %v5897 = vsel %vm5385, %v3715, %v5641
      %v5898 = vsel %vm5386, %v3717, %v5642
      %v5899 = vsel %vm5387, %v5127, %v5643
      %v5900 = vsel %vm5388, %v5129, %v5644
      %v5901 = vsel %vm5389, %v3721, %v5645
      %v5902 = vsel %vm5390, %v3723, %v5646
      %v5903 = vsel %vm5391, %v5133, %v5647
      %v5904 = vsel %vm5392, %v5135, %v5648
      %v5905 = vsel %vm5393, %v3725, %v5649
      %v5906 = vsel %vm5394, %v3727, %v5650
      %v5907 = vsel %vm5395, %v5137, %v5651
      %v5908 = vsel %vm5396, %v5139, %v5652
      %v5909 = vpack.c.bf16 %v5657, %v5653
      %v5910 = vpack.c.bf16 %v5658, %v5654
      %v5911 = vpack.c.bf16 %v5659, %v5655
      %v5912 = vpack.c.bf16 %v5660, %v5656
      %v5913 = vpack.c.bf16 %v5665, %v5661
      %v5914 = vpack.c.bf16 %v5666, %v5662
      %v5915 = vpack.c.bf16 %v5667, %v5663
      %v5916 = vpack.c.bf16 %v5668, %v5664
      %v5917 = vpack.c.bf16 %v5673, %v5669
      %v5918 = vpack.c.bf16 %v5674, %v5670
      %v5919 = vpack.c.bf16 %v5675, %v5671
      %v5920 = vpack.c.bf16 %v5676, %v5672
      %v5921 = vpack.c.bf16 %v5681, %v5677
      %v5922 = vpack.c.bf16 %v5682, %v5678
      %v5923 = vpack.c.bf16 %v5683, %v5679
      %v5924 = vpack.c.bf16 %v5684, %v5680
      %v5925 = vpack.c.bf16 %v5689, %v5685
      %v5926 = vpack.c.bf16 %v5690, %v5686
      %v5927 = vpack.c.bf16 %v5691, %v5687
      %v5928 = vpack.c.bf16 %v5692, %v5688
      %v5929 = vpack.c.bf16 %v5697, %v5693
      %v5930 = vpack.c.bf16 %v5698, %v5694
      %v5931 = vpack.c.bf16 %v5699, %v5695
      %v5932 = vpack.c.bf16 %v5700, %v5696
      %v5933 = vpack.c.bf16 %v5705, %v5701
      %v5934 = vpack.c.bf16 %v5706, %v5702
      %v5935 = vpack.c.bf16 %v5707, %v5703
      %v5936 = vpack.c.bf16 %v5708, %v5704
      %v5937 = vpack.c.bf16 %v5713, %v5709
      %v5938 = vpack.c.bf16 %v5714, %v5710
      %v5939 = vpack.c.bf16 %v5715, %v5711
      %v5940 = vpack.c.bf16 %v5716, %v5712
      %v5941 = vpack.c.bf16 %v5721, %v5717
      %v5942 = vpack.c.bf16 %v5722, %v5718
      %v5943 = vpack.c.bf16 %v5723, %v5719
      %v5944 = vpack.c.bf16 %v5724, %v5720
      %v5945 = vpack.c.bf16 %v5729, %v5725
      %v5946 = vpack.c.bf16 %v5730, %v5726
      %v5947 = vpack.c.bf16 %v5731, %v5727
      %v5948 = vpack.c.bf16 %v5732, %v5728
      %v5949 = vpack.c.bf16 %v5737, %v5733
      %v5950 = vpack.c.bf16 %v5738, %v5734
      %v5951 = vpack.c.bf16 %v5739, %v5735
      %v5952 = vpack.c.bf16 %v5740, %v5736
      %v5953 = vpack.c.bf16 %v5745, %v5741
      %v5954 = vpack.c.bf16 %v5746, %v5742
      %v5955 = vpack.c.bf16 %v5747, %v5743
      %v5956 = vpack.c.bf16 %v5748, %v5744
      %v5957 = vpack.c.bf16 %v5753, %v5749
      %v5958 = vpack.c.bf16 %v5754, %v5750
      %v5959 = vpack.c.bf16 %v5755, %v5751
      %v5960 = vpack.c.bf16 %v5756, %v5752
      %v5961 = vpack.c.bf16 %v5761, %v5757
      %v5962 = vpack.c.bf16 %v5762, %v5758
      %v5963 = vpack.c.bf16 %v5763, %v5759
      %v5964 = vpack.c.bf16 %v5764, %v5760
      %v5965 = vpack.c.bf16 %v5769, %v5765
      %v5966 = vpack.c.bf16 %v5770, %v5766
      %v5967 = vpack.c.bf16 %v5771, %v5767
      %v5968 = vpack.c.bf16 %v5772, %v5768
      %v5969 = vpack.c.bf16 %v5777, %v5773
      %v5970 = vpack.c.bf16 %v5778, %v5774
      %v5971 = vpack.c.bf16 %v5779, %v5775
      %v5972 = vpack.c.bf16 %v5780, %v5776
      %v5973 = vpack.c.bf16 %v5785, %v5781
      %v5974 = vpack.c.bf16 %v5786, %v5782
      %v5975 = vpack.c.bf16 %v5787, %v5783
      %v5976 = vpack.c.bf16 %v5788, %v5784
      %v5977 = vpack.c.bf16 %v5793, %v5789
      %v5978 = vpack.c.bf16 %v5794, %v5790
      %v5979 = vpack.c.bf16 %v5795, %v5791
      %v5980 = vpack.c.bf16 %v5796, %v5792
      %v5981 = vpack.c.bf16 %v5801, %v5797
      %v5982 = vpack.c.bf16 %v5802, %v5798
      %v5983 = vpack.c.bf16 %v5803, %v5799
      %v5984 = vpack.c.bf16 %v5804, %v5800
      %v5985 = vpack.c.bf16 %v5809, %v5805
      %v5986 = vpack.c.bf16 %v5810, %v5806
      %v5987 = vpack.c.bf16 %v5811, %v5807
      %v5988 = vpack.c.bf16 %v5812, %v5808
      %v5989 = vpack.c.bf16 %v5817, %v5813
      %v5990 = vpack.c.bf16 %v5818, %v5814
      %v5991 = vpack.c.bf16 %v5819, %v5815
      %v5992 = vpack.c.bf16 %v5820, %v5816
      %v5993 = vpack.c.bf16 %v5825, %v5821
      %v5994 = vpack.c.bf16 %v5826, %v5822
      %v5995 = vpack.c.bf16 %v5827, %v5823
      %v5996 = vpack.c.bf16 %v5828, %v5824
      %v5997 = vpack.c.bf16 %v5833, %v5829
      %v5998 = vpack.c.bf16 %v5834, %v5830
      %v5999 = vpack.c.bf16 %v5835, %v5831
      %v6000 = vpack.c.bf16 %v5836, %v5832
      %v6001 = vpack.c.bf16 %v5841, %v5837
      %v6002 = vpack.c.bf16 %v5842, %v5838
      %v6003 = vpack.c.bf16 %v5843, %v5839
      %v6004 = vpack.c.bf16 %v5844, %v5840
      %v6005 = vpack.c.bf16 %v5849, %v5845
      %v6006 = vpack.c.bf16 %v5850, %v5846
      %v6007 = vpack.c.bf16 %v5851, %v5847
      %v6008 = vpack.c.bf16 %v5852, %v5848
      %v6009 = vpack.c.bf16 %v5857, %v5853
      %v6010 = vpack.c.bf16 %v5858, %v5854
      %v6011 = vpack.c.bf16 %v5859, %v5855
      %v6012 = vpack.c.bf16 %v5860, %v5856
      %v6013 = vpack.c.bf16 %v5865, %v5861
      %v6014 = vpack.c.bf16 %v5866, %v5862
      %v6015 = vpack.c.bf16 %v5867, %v5863
      %v6016 = vpack.c.bf16 %v5868, %v5864
      %v6017 = vpack.c.bf16 %v5873, %v5869
      %v6018 = vpack.c.bf16 %v5874, %v5870
      %v6019 = vpack.c.bf16 %v5875, %v5871
      %v6020 = vpack.c.bf16 %v5876, %v5872
      %v6021 = vpack.c.bf16 %v5881, %v5877
      %v6022 = vpack.c.bf16 %v5882, %v5878
      %v6023 = vpack.c.bf16 %v5883, %v5879
      %v6024 = vpack.c.bf16 %v5884, %v5880
      %v6025 = vpack.c.bf16 %v5889, %v5885
      %v6026 = vpack.c.bf16 %v5890, %v5886
      %v6027 = vpack.c.bf16 %v5891, %v5887
      %v6028 = vpack.c.bf16 %v5892, %v5888
      %v6029 = vpack.c.bf16 %v5897, %v5893
      %v6030 = vpack.c.bf16 %v5898, %v5894
      %v6031 = vpack.c.bf16 %v5899, %v5895
      %v6032 = vpack.c.bf16 %v5900, %v5896
      %v6033 = vpack.c.bf16 %v5905, %v5901
      %v6034 = vpack.c.bf16 %v5906, %v5902
      %v6035 = vpack.c.bf16 %v5907, %v5903
      %v6036 = vpack.c.bf16 %v5908, %v5904
      %v6037 = vld [vmem:[%s4] sm:$0x3]
      %v6039 = vlaneseq
      %v6040 = vshrl.u32 %v6039, 7
      %v6041 = vsub.s32 0, %v6040
      %v6042 = vrot.slane %v6037, %v6041
      %v6043 = vlaneseq
      %v6044 = vshrl.u32 %v6043, 7
      %v6045 = vsub.s32 1, %v6044
      %v6046 = vrot.slane %v6037, %v6045
      %v6113 = vunpack.c.l.b16 %v482
      %v6114 = vunpack.c.h.b16 %v482
      %v6115 = vunpack.c.l.b16 %v483
      %v6116 = vunpack.c.h.b16 %v483
      %v6117 = vunpack.c.l.b16 %v484
      %v6118 = vunpack.c.h.b16 %v484
      %v6119 = vunpack.c.l.b16 %v485
      %v6120 = vunpack.c.h.b16 %v485
      %v6121 = vunpack.c.l.b16 %v486
      %v6122 = vunpack.c.h.b16 %v486
      %v6123 = vunpack.c.l.b16 %v487
      %v6124 = vunpack.c.h.b16 %v487
      %v6125 = vunpack.c.l.b16 %v488
      %v6126 = vunpack.c.h.b16 %v488
      %v6127 = vunpack.c.l.b16 %v489
      %v6128 = vunpack.c.h.b16 %v489
      %v6129 = vunpack.c.l.b16 %v490
      %v6130 = vunpack.c.h.b16 %v490
      %v6131 = vunpack.c.l.b16 %v491
      %v6132 = vunpack.c.h.b16 %v491
      %v6133 = vunpack.c.l.b16 %v492
      %v6134 = vunpack.c.h.b16 %v492
      %v6135 = vunpack.c.l.b16 %v493
      %v6136 = vunpack.c.h.b16 %v493
      %v6137 = vunpack.c.l.b16 %v494
      %v6138 = vunpack.c.h.b16 %v494
      %v6139 = vunpack.c.l.b16 %v495
      %v6140 = vunpack.c.h.b16 %v495
      %v6141 = vunpack.c.l.b16 %v496
      %v6142 = vunpack.c.h.b16 %v496
      %v6143 = vunpack.c.l.b16 %v497
      %v6144 = vunpack.c.h.b16 %v497
      %v6145 = vunpack.c.l.b16 %v498
      %v6146 = vunpack.c.h.b16 %v498
      %v6147 = vunpack.c.l.b16 %v499
      %v6148 = vunpack.c.h.b16 %v499
      %v6149 = vunpack.c.l.b16 %v500
      %v6150 = vunpack.c.h.b16 %v500
      %v6151 = vunpack.c.l.b16 %v501
      %v6152 = vunpack.c.h.b16 %v501
      %v6153 = vunpack.c.l.b16 %v502
      %v6154 = vunpack.c.h.b16 %v502
      %v6155 = vunpack.c.l.b16 %v503
      %v6156 = vunpack.c.h.b16 %v503
      %v6157 = vunpack.c.l.b16 %v504
      %v6158 = vunpack.c.h.b16 %v504
      %v6159 = vunpack.c.l.b16 %v505
      %v6160 = vunpack.c.h.b16 %v505
      %v6161 = vunpack.c.l.b16 %v506
      %v6162 = vunpack.c.h.b16 %v506
      %v6163 = vunpack.c.l.b16 %v507
      %v6164 = vunpack.c.h.b16 %v507
      %v6165 = vunpack.c.l.b16 %v508
      %v6166 = vunpack.c.h.b16 %v508
      %v6167 = vunpack.c.l.b16 %v509
      %v6168 = vunpack.c.h.b16 %v509
      %v6169 = vunpack.c.l.b16 %v510
      %v6170 = vunpack.c.h.b16 %v510
      %v6171 = vunpack.c.l.b16 %v511
      %v6172 = vunpack.c.h.b16 %v511
      %v6173 = vunpack.c.l.b16 %v512
      %v6174 = vunpack.c.h.b16 %v512
      %v6175 = vunpack.c.l.b16 %v513
      %v6176 = vunpack.c.h.b16 %v513
      %v6177 = vunpack.c.l.b16 %v514
      %v6178 = vunpack.c.h.b16 %v514
      %v6179 = vunpack.c.l.b16 %v515
      %v6180 = vunpack.c.h.b16 %v515
      %v6181 = vunpack.c.l.b16 %v516
      %v6182 = vunpack.c.h.b16 %v516
      %v6183 = vunpack.c.l.b16 %v517
      %v6184 = vunpack.c.h.b16 %v517
      %v6185 = vunpack.c.l.b16 %v518
      %v6186 = vunpack.c.h.b16 %v518
      %v6187 = vunpack.c.l.b16 %v519
      %v6188 = vunpack.c.h.b16 %v519
      %v6189 = vunpack.c.l.b16 %v520
      %v6190 = vunpack.c.h.b16 %v520
      %v6191 = vunpack.c.l.b16 %v521
      %v6192 = vunpack.c.h.b16 %v521
      %v6193 = vunpack.c.l.b16 %v522
      %v6194 = vunpack.c.h.b16 %v522
      %v6195 = vunpack.c.l.b16 %v523
      %v6196 = vunpack.c.h.b16 %v523
      %v6197 = vunpack.c.l.b16 %v524
      %v6198 = vunpack.c.h.b16 %v524
      %v6199 = vunpack.c.l.b16 %v525
      %v6200 = vunpack.c.h.b16 %v525
      %v6201 = vunpack.c.l.b16 %v526
      %v6202 = vunpack.c.h.b16 %v526
      %v6203 = vunpack.c.l.b16 %v527
      %v6204 = vunpack.c.h.b16 %v527
      %v6205 = vunpack.c.l.b16 %v528
      %v6206 = vunpack.c.h.b16 %v528
      %v6207 = vunpack.c.l.b16 %v529
      %v6208 = vunpack.c.h.b16 %v529
      %v6209 = vunpack.c.l.b16 %v530
      %v6210 = vunpack.c.h.b16 %v530
      %v6211 = vunpack.c.l.b16 %v531
      %v6212 = vunpack.c.h.b16 %v531
      %v6213 = vunpack.c.l.b16 %v532
      %v6214 = vunpack.c.h.b16 %v532
      %v6215 = vunpack.c.l.b16 %v533
      %v6216 = vunpack.c.h.b16 %v533
      %v6217 = vunpack.c.l.b16 %v534
      %v6218 = vunpack.c.h.b16 %v534
      %v6219 = vunpack.c.l.b16 %v535
      %v6220 = vunpack.c.h.b16 %v535
      %v6221 = vunpack.c.l.b16 %v536
      %v6222 = vunpack.c.h.b16 %v536
      %v6223 = vunpack.c.l.b16 %v537
      %v6224 = vunpack.c.h.b16 %v537
      %v6225 = vunpack.c.l.b16 %v538
      %v6226 = vunpack.c.h.b16 %v538
      %v6227 = vunpack.c.l.b16 %v539
      %v6228 = vunpack.c.h.b16 %v539
      %v6229 = vunpack.c.l.b16 %v540
      %v6230 = vunpack.c.h.b16 %v540
      %v6231 = vunpack.c.l.b16 %v541
      %v6232 = vunpack.c.h.b16 %v541
      %v6233 = vunpack.c.l.b16 %v542
      %v6234 = vunpack.c.h.b16 %v542
      %v6235 = vunpack.c.l.b16 %v543
      %v6236 = vunpack.c.h.b16 %v543
      %v6237 = vunpack.c.l.b16 %v544
      %v6238 = vunpack.c.h.b16 %v544
      %v6239 = vunpack.c.l.b16 %v545
      %v6240 = vunpack.c.h.b16 %v545
      %v6241 = vpack.c.b16 %v6115, %v6113
      %v6242 = vpack.c.b16 %v6116, %v6114
      %v6243 = vpack.c.b16 %v6119, %v6117
      %v6244 = vpack.c.b16 %v6120, %v6118
      %v6245 = vpack.c.b16 %v6123, %v6121
      %v6246 = vpack.c.b16 %v6124, %v6122
      %v6247 = vpack.c.b16 %v6127, %v6125
      %v6248 = vpack.c.b16 %v6128, %v6126
      %v6249 = vpack.c.b16 %v6131, %v6129
      %v6250 = vpack.c.b16 %v6132, %v6130
      %v6251 = vpack.c.b16 %v6135, %v6133
      %v6252 = vpack.c.b16 %v6136, %v6134
      %v6253 = vpack.c.b16 %v6139, %v6137
      %v6254 = vpack.c.b16 %v6140, %v6138
      %v6255 = vpack.c.b16 %v6143, %v6141
      %v6256 = vpack.c.b16 %v6144, %v6142
      %v6257 = vpack.c.b16 %v6147, %v6145
      %v6258 = vpack.c.b16 %v6148, %v6146
      %v6259 = vpack.c.b16 %v6151, %v6149
      %v6260 = vpack.c.b16 %v6152, %v6150
      %v6261 = vpack.c.b16 %v6155, %v6153
      %v6262 = vpack.c.b16 %v6156, %v6154
      %v6263 = vpack.c.b16 %v6159, %v6157
      %v6264 = vpack.c.b16 %v6160, %v6158
      %v6265 = vpack.c.b16 %v6163, %v6161
      %v6266 = vpack.c.b16 %v6164, %v6162
      %v6267 = vpack.c.b16 %v6167, %v6165
      %v6268 = vpack.c.b16 %v6168, %v6166
      %v6269 = vpack.c.b16 %v6171, %v6169
      %v6270 = vpack.c.b16 %v6172, %v6170
      %v6271 = vpack.c.b16 %v6175, %v6173
      %v6272 = vpack.c.b16 %v6176, %v6174
      %v6273 = vpack.c.b16 %v6179, %v6177
      %v6274 = vpack.c.b16 %v6180, %v6178
      %v6275 = vpack.c.b16 %v6183, %v6181
      %v6276 = vpack.c.b16 %v6184, %v6182
      %v6277 = vpack.c.b16 %v6187, %v6185
      %v6278 = vpack.c.b16 %v6188, %v6186
      %v6279 = vpack.c.b16 %v6191, %v6189
      %v6280 = vpack.c.b16 %v6192, %v6190
      %v6281 = vpack.c.b16 %v6195, %v6193
      %v6282 = vpack.c.b16 %v6196, %v6194
      %v6283 = vpack.c.b16 %v6199, %v6197
      %v6284 = vpack.c.b16 %v6200, %v6198
      %v6285 = vpack.c.b16 %v6203, %v6201
      %v6286 = vpack.c.b16 %v6204, %v6202
      %v6287 = vpack.c.b16 %v6207, %v6205
      %v6288 = vpack.c.b16 %v6208, %v6206
      %v6289 = vpack.c.b16 %v6211, %v6209
      %v6290 = vpack.c.b16 %v6212, %v6210
      %v6291 = vpack.c.b16 %v6215, %v6213
      %v6292 = vpack.c.b16 %v6216, %v6214
      %v6293 = vpack.c.b16 %v6219, %v6217
      %v6294 = vpack.c.b16 %v6220, %v6218
      %v6295 = vpack.c.b16 %v6223, %v6221
      %v6296 = vpack.c.b16 %v6224, %v6222
      %v6297 = vpack.c.b16 %v6227, %v6225
      %v6298 = vpack.c.b16 %v6228, %v6226
      %v6299 = vpack.c.b16 %v6231, %v6229
      %v6300 = vpack.c.b16 %v6232, %v6230
      %v6301 = vpack.c.b16 %v6235, %v6233
      %v6302 = vpack.c.b16 %v6236, %v6234
      %v6303 = vpack.c.b16 %v6239, %v6237
      %v6304 = vpack.c.b16 %v6240, %v6238
      %6369 = vmatprep.subr.bf16.mxu0 %v6242
      %6370 = vmatpush1.bf16.msra.mxu0 %v6241
      %6371 = vmatprep.subr.bf16.mxu0 %v6244
      %6372 = vmatpush1.bf16.msra.mxu0 %v6243
      %6373 = vmatprep.subr.bf16.mxu0 %v6246
      %6374 = vmatpush1.bf16.msra.mxu0 %v6245
      %6375 = vmatprep.subr.bf16.mxu0 %v6248
      %6376 = vmatpush1.bf16.msra.mxu0 %v6247
      %6377 = vmatprep.subr.bf16.mxu0 %v6250
      %6378 = vmatpush1.bf16.msra.mxu0 %v6249
      %6379 = vmatprep.subr.bf16.mxu0 %v6252
      %6380 = vmatpush1.bf16.msra.mxu0 %v6251
      %6381 = vmatprep.subr.bf16.mxu0 %v6254
      %6382 = vmatpush1.bf16.msra.mxu0 %v6253
      %6383 = vmatprep.subr.bf16.mxu0 %v6256
      %6384 = vmatpush1.bf16.msra.mxu0 %v6255
      %6385 = vmatprep.subr.bf16.mxu0 %v6258
      %6386 = vmatpush1.bf16.msra.mxu0 %v6257
      %6387 = vmatprep.subr.bf16.mxu0 %v6260
      %6388 = vmatpush1.bf16.msra.mxu0 %v6259
      %6389 = vmatprep.subr.bf16.mxu0 %v6262
      %6390 = vmatpush1.bf16.msra.mxu0 %v6261
      %6391 = vmatprep.subr.bf16.mxu0 %v6264
      %6392 = vmatpush1.bf16.msra.mxu0 %v6263
      %6393 = vmatprep.subr.bf16.mxu0 %v6266
      %6394 = vmatpush1.bf16.msra.mxu0 %v6265
      %6395 = vmatprep.subr.bf16.mxu0 %v6268
      %6396 = vmatpush1.bf16.msra.mxu0 %v6267
      %6397 = vmatprep.subr.bf16.mxu0 %v6270
      %6398 = vmatpush1.bf16.msra.mxu0 %v6269
      %6399 = vmatprep.subr.bf16.mxu0 %v6272
      %6400 = vmatpush1.bf16.msra.mxu0 %v6271
      %6401 = vmatprep.mubr.bf16.mxu0 %v5910
      %6402 = vmatmul.mubr.bf16.gmra.mrb[0].mxu0 %v5909
      %v6403 = vpop.f32.mrb[0].mxu0
      %v6404 = vadd.f32 %v6042, %v6403
      %v6405 = vpop.f32.mrb[0].mxu0
      %v6406 = vadd.f32 %v6046, %v6405
      %v6407 = vpop.f32.mrb[0].mxu0
      %v6408 = vadd.f32 %v6042, %v6407
      %v6409 = vpop.f32.mrb[0].mxu0
      %v6410 = vadd.f32 %v6046, %v6409
      %6411 = vmatprep.mubr.bf16.mxu0 %v5914
      %6412 = vmatmul.mubr.bf16.gmra.mrb[0].mxu0 %v5913
      %v6413 = vpop.f32.mrb[0].mxu0
      %v6414 = vadd.f32 %v6042, %v6413
      %v6415 = vpop.f32.mrb[0].mxu0
      %v6416 = vadd.f32 %v6046, %v6415
      %v6417 = vpop.f32.mrb[0].mxu0
      %v6418 = vadd.f32 %v6042, %v6417
      %v6419 = vpop.f32.mrb[0].mxu0
      %v6420 = vadd.f32 %v6046, %v6419
      %6421 = vmatprep.mubr.bf16.mxu0 %v5918
      %6422 = vmatmul.mubr.bf16.gmra.mrb[0].mxu0 %v5917
      %v6423 = vpop.f32.mrb[0].mxu0
      %v6424 = vadd.f32 %v6042, %v6423
      %v6425 = vpop.f32.mrb[0].mxu0
      %v6426 = vadd.f32 %v6046, %v6425
      %v6427 = vpop.f32.mrb[0].mxu0
      %v6428 = vadd.f32 %v6042, %v6427
      %v6429 = vpop.f32.mrb[0].mxu0
      %v6430 = vadd.f32 %v6046, %v6429
      %6431 = vmatprep.mubr.bf16.mxu0 %v5922
      %6432 = vmatmul.mubr.bf16.gmra.mrb[0].mxu0 %v5921
      %v6433 = vpop.f32.mrb[0].mxu0
      %v6434 = vadd.f32 %v6042, %v6433
      %v6435 = vpop.f32.mrb[0].mxu0
      %v6436 = vadd.f32 %v6046, %v6435
      %v6437 = vpop.f32.mrb[0].mxu0
      %v6438 = vadd.f32 %v6042, %v6437
      %v6439 = vpop.f32.mrb[0].mxu0
      %v6440 = vadd.f32 %v6046, %v6439
      %6441 = vmatprep.mubr.bf16.mxu0 %v5926
      %6442 = vmatmul.mubr.bf16.gmra.mrb[0].mxu0 %v5925
      %v6443 = vpop.f32.mrb[0].mxu0
      %v6444 = vadd.f32 %v6042, %v6443
      %v6445 = vpop.f32.mrb[0].mxu0
      %v6446 = vadd.f32 %v6046, %v6445
      %v6447 = vpop.f32.mrb[0].mxu0
      %v6448 = vadd.f32 %v6042, %v6447
      %v6449 = vpop.f32.mrb[0].mxu0
      %v6450 = vadd.f32 %v6046, %v6449
      %6451 = vmatprep.mubr.bf16.mxu0 %v5930
      %6452 = vmatmul.mubr.bf16.gmra.mrb[0].mxu0 %v5929
      %v6453 = vpop.f32.mrb[0].mxu0
      %v6454 = vadd.f32 %v6042, %v6453
      %v6455 = vpop.f32.mrb[0].mxu0
      %v6456 = vadd.f32 %v6046, %v6455
      %v6457 = vpop.f32.mrb[0].mxu0
      %v6458 = vadd.f32 %v6042, %v6457
      %v6459 = vpop.f32.mrb[0].mxu0
      %v6460 = vadd.f32 %v6046, %v6459
      %6461 = vmatprep.mubr.bf16.mxu0 %v5934
      %6462 = vmatmul.mubr.bf16.gmra.mrb[0].mxu0 %v5933
      %v6463 = vpop.f32.mrb[0].mxu0
      %v6464 = vadd.f32 %v6042, %v6463
      %v6465 = vpop.f32.mrb[0].mxu0
      %v6466 = vadd.f32 %v6046, %v6465
      %v6467 = vpop.f32.mrb[0].mxu0
      %v6468 = vadd.f32 %v6042, %v6467
      %v6469 = vpop.f32.mrb[0].mxu0
      %v6470 = vadd.f32 %v6046, %v6469
      %6471 = vmatprep.mubr.bf16.mxu0 %v5938
      %6472 = vmatmul.mubr.bf16.gmra.mrb[0].mxu0 %v5937
      %v6473 = vpop.f32.mrb[0].mxu0
      %v6474 = vadd.f32 %v6042, %v6473
      %v6475 = vpop.f32.mrb[0].mxu0
      %v6476 = vadd.f32 %v6046, %v6475
      %v6477 = vpop.f32.mrb[0].mxu0
      %v6478 = vadd.f32 %v6042, %v6477
      %v6479 = vpop.f32.mrb[0].mxu0
      %v6480 = vadd.f32 %v6046, %v6479
      %6481 = vmatprep.mubr.bf16.mxu0 %v5942
      %6482 = vmatmul.mubr.bf16.gmra.mrb[0].mxu0 %v5941
      %v6483 = vpop.f32.mrb[0].mxu0
      %v6484 = vadd.f32 %v6042, %v6483
      %v6485 = vpop.f32.mrb[0].mxu0
      %v6486 = vadd.f32 %v6046, %v6485
      %v6487 = vpop.f32.mrb[0].mxu0
      %v6488 = vadd.f32 %v6042, %v6487
      %v6489 = vpop.f32.mrb[0].mxu0
      %v6490 = vadd.f32 %v6046, %v6489
      %6491 = vmatprep.mubr.bf16.mxu0 %v5946
      %6492 = vmatmul.mubr.bf16.gmra.mrb[0].mxu0 %v5945
      %v6493 = vpop.f32.mrb[0].mxu0
      %v6494 = vadd.f32 %v6042, %v6493
      %v6495 = vpop.f32.mrb[0].mxu0
      %v6496 = vadd.f32 %v6046, %v6495
      %v6497 = vpop.f32.mrb[0].mxu0
      %v6498 = vadd.f32 %v6042, %v6497
      %v6499 = vpop.f32.mrb[0].mxu0
      %v6500 = vadd.f32 %v6046, %v6499
      %6501 = vmatprep.mubr.bf16.mxu0 %v5950
      %6502 = vmatmul.mubr.bf16.gmra.mrb[0].mxu0 %v5949
      %v6503 = vpop.f32.mrb[0].mxu0
      %v6504 = vadd.f32 %v6042, %v6503
      %v6505 = vpop.f32.mrb[0].mxu0
      %v6506 = vadd.f32 %v6046, %v6505
      %v6507 = vpop.f32.mrb[0].mxu0
      %v6508 = vadd.f32 %v6042, %v6507
      %v6509 = vpop.f32.mrb[0].mxu0
      %v6510 = vadd.f32 %v6046, %v6509
      %6511 = vmatprep.mubr.bf16.mxu0 %v5954
      %6512 = vmatmul.mubr.bf16.gmra.mrb[0].mxu0 %v5953
      %v6513 = vpop.f32.mrb[0].mxu0
      %v6514 = vadd.f32 %v6042, %v6513
      %v6515 = vpop.f32.mrb[0].mxu0
      %v6516 = vadd.f32 %v6046, %v6515
      %v6517 = vpop.f32.mrb[0].mxu0
      %v6518 = vadd.f32 %v6042, %v6517
      %v6519 = vpop.f32.mrb[0].mxu0
      %v6520 = vadd.f32 %v6046, %v6519
      %6521 = vmatprep.mubr.bf16.mxu0 %v5958
      %6522 = vmatmul.mubr.bf16.gmra.mrb[0].mxu0 %v5957
      %v6523 = vpop.f32.mrb[0].mxu0
      %v6524 = vadd.f32 %v6042, %v6523
      %v6525 = vpop.f32.mrb[0].mxu0
      %v6526 = vadd.f32 %v6046, %v6525
      %v6527 = vpop.f32.mrb[0].mxu0
      %v6528 = vadd.f32 %v6042, %v6527
      %v6529 = vpop.f32.mrb[0].mxu0
      %v6530 = vadd.f32 %v6046, %v6529
      %6531 = vmatprep.mubr.bf16.mxu0 %v5962
      %6532 = vmatmul.mubr.bf16.gmra.mrb[0].mxu0 %v5961
      %v6533 = vpop.f32.mrb[0].mxu0
      %v6534 = vadd.f32 %v6042, %v6533
      %v6535 = vpop.f32.mrb[0].mxu0
      %v6536 = vadd.f32 %v6046, %v6535
      %v6537 = vpop.f32.mrb[0].mxu0
      %v6538 = vadd.f32 %v6042, %v6537
      %v6539 = vpop.f32.mrb[0].mxu0
      %v6540 = vadd.f32 %v6046, %v6539
      %6541 = vmatprep.mubr.bf16.mxu0 %v5966
      %6542 = vmatmul.mubr.bf16.gmra.mrb[0].mxu0 %v5965
      %v6543 = vpop.f32.mrb[0].mxu0
      %v6544 = vadd.f32 %v6042, %v6543
      %v6545 = vpop.f32.mrb[0].mxu0
      %v6546 = vadd.f32 %v6046, %v6545
      %v6547 = vpop.f32.mrb[0].mxu0
      %v6548 = vadd.f32 %v6042, %v6547
      %v6549 = vpop.f32.mrb[0].mxu0
      %v6550 = vadd.f32 %v6046, %v6549
      %6551 = vmatprep.mubr.bf16.mxu0 %v5970
      %6552 = vmatmul.mubr.bf16.gmra.mrb[0].mxu0 %v5969
      %v6553 = vpop.f32.mrb[0].mxu0
      %v6554 = vadd.f32 %v6042, %v6553
      %v6555 = vpop.f32.mrb[0].mxu0
      %v6556 = vadd.f32 %v6046, %v6555
      %v6557 = vpop.f32.mrb[0].mxu0
      %v6558 = vadd.f32 %v6042, %v6557
      %v6559 = vpop.f32.mrb[0].mxu0
      %v6560 = vadd.f32 %v6046, %v6559
      %6561 = vmatprep.mubr.bf16.mxu0 %v5974
      %6562 = vmatmul.mubr.bf16.gmra.mrb[0].mxu0 %v5973
      %v6563 = vpop.f32.mrb[0].mxu0
      %v6564 = vadd.f32 %v6042, %v6563
      %v6565 = vpop.f32.mrb[0].mxu0
      %v6566 = vadd.f32 %v6046, %v6565
      %v6567 = vpop.f32.mrb[0].mxu0
      %v6568 = vadd.f32 %v6042, %v6567
      %v6569 = vpop.f32.mrb[0].mxu0
      %v6570 = vadd.f32 %v6046, %v6569
      %6571 = vmatprep.mubr.bf16.mxu0 %v5978
      %6572 = vmatmul.mubr.bf16.gmra.mrb[0].mxu0 %v5977
      %v6573 = vpop.f32.mrb[0].mxu0
      %v6574 = vadd.f32 %v6042, %v6573
      %v6575 = vpop.f32.mrb[0].mxu0
      %v6576 = vadd.f32 %v6046, %v6575
      %v6577 = vpop.f32.mrb[0].mxu0
      %v6578 = vadd.f32 %v6042, %v6577
      %v6579 = vpop.f32.mrb[0].mxu0
      %v6580 = vadd.f32 %v6046, %v6579
      %6581 = vmatprep.mubr.bf16.mxu0 %v5982
      %6582 = vmatmul.mubr.bf16.gmra.mrb[0].mxu0 %v5981
      %v6583 = vpop.f32.mrb[0].mxu0
      %v6584 = vadd.f32 %v6042, %v6583
      %v6585 = vpop.f32.mrb[0].mxu0
      %v6586 = vadd.f32 %v6046, %v6585
      %v6587 = vpop.f32.mrb[0].mxu0
      %v6588 = vadd.f32 %v6042, %v6587
      %v6589 = vpop.f32.mrb[0].mxu0
      %v6590 = vadd.f32 %v6046, %v6589
      %6591 = vmatprep.mubr.bf16.mxu0 %v5986
      %6592 = vmatmul.mubr.bf16.gmra.mrb[0].mxu0 %v5985
      %v6593 = vpop.f32.mrb[0].mxu0
      %v6594 = vadd.f32 %v6042, %v6593
      %v6595 = vpop.f32.mrb[0].mxu0
      %v6596 = vadd.f32 %v6046, %v6595
      %v6597 = vpop.f32.mrb[0].mxu0
      %v6598 = vadd.f32 %v6042, %v6597
      %v6599 = vpop.f32.mrb[0].mxu0
      %v6600 = vadd.f32 %v6046, %v6599
      %6601 = vmatprep.mubr.bf16.mxu0 %v5990
      %6602 = vmatmul.mubr.bf16.gmra.mrb[0].mxu0 %v5989
      %v6603 = vpop.f32.mrb[0].mxu0
      %v6604 = vadd.f32 %v6042, %v6603
      %v6605 = vpop.f32.mrb[0].mxu0
      %v6606 = vadd.f32 %v6046, %v6605
      %v6607 = vpop.f32.mrb[0].mxu0
      %v6608 = vadd.f32 %v6042, %v6607
      %v6609 = vpop.f32.mrb[0].mxu0
      %v6610 = vadd.f32 %v6046, %v6609
      %6611 = vmatprep.mubr.bf16.mxu0 %v5994
      %6612 = vmatmul.mubr.bf16.gmra.mrb[0].mxu0 %v5993
      %v6613 = vpop.f32.mrb[0].mxu0
      %v6614 = vadd.f32 %v6042, %v6613
      %v6615 = vpop.f32.mrb[0].mxu0
      %v6616 = vadd.f32 %v6046, %v6615
      %v6617 = vpop.f32.mrb[0].mxu0
      %v6618 = vadd.f32 %v6042, %v6617
      %v6619 = vpop.f32.mrb[0].mxu0
      %v6620 = vadd.f32 %v6046, %v6619
      %6621 = vmatprep.mubr.bf16.mxu0 %v5998
      %6622 = vmatmul.mubr.bf16.gmra.mrb[0].mxu0 %v5997
      %v6623 = vpop.f32.mrb[0].mxu0
      %v6624 = vadd.f32 %v6042, %v6623
      %v6625 = vpop.f32.mrb[0].mxu0
      %v6626 = vadd.f32 %v6046, %v6625
      %v6627 = vpop.f32.mrb[0].mxu0
      %v6628 = vadd.f32 %v6042, %v6627
      %v6629 = vpop.f32.mrb[0].mxu0
      %v6630 = vadd.f32 %v6046, %v6629
      %6631 = vmatprep.mubr.bf16.mxu0 %v6002
      %6632 = vmatmul.mubr.bf16.gmra.mrb[0].mxu0 %v6001
      %v6633 = vpop.f32.mrb[0].mxu0
      %v6634 = vadd.f32 %v6042, %v6633
      %v6635 = vpop.f32.mrb[0].mxu0
      %v6636 = vadd.f32 %v6046, %v6635
      %v6637 = vpop.f32.mrb[0].mxu0
      %v6638 = vadd.f32 %v6042, %v6637
      %v6639 = vpop.f32.mrb[0].mxu0
      %v6640 = vadd.f32 %v6046, %v6639
      %6641 = vmatprep.mubr.bf16.mxu0 %v6006
      %6642 = vmatmul.mubr.bf16.gmra.mrb[0].mxu0 %v6005
      %v6643 = vpop.f32.mrb[0].mxu0
      %v6644 = vadd.f32 %v6042, %v6643
      %v6645 = vpop.f32.mrb[0].mxu0
      %v6646 = vadd.f32 %v6046, %v6645
      %v6647 = vpop.f32.mrb[0].mxu0
      %v6648 = vadd.f32 %v6042, %v6647
      %v6649 = vpop.f32.mrb[0].mxu0
      %v6650 = vadd.f32 %v6046, %v6649
      %6651 = vmatprep.mubr.bf16.mxu0 %v6010
      %6652 = vmatmul.mubr.bf16.gmra.mrb[0].mxu0 %v6009
      %v6653 = vpop.f32.mrb[0].mxu0
      %v6654 = vadd.f32 %v6042, %v6653
      %v6655 = vpop.f32.mrb[0].mxu0
      %v6656 = vadd.f32 %v6046, %v6655
      %v6657 = vpop.f32.mrb[0].mxu0
      %v6658 = vadd.f32 %v6042, %v6657
      %v6659 = vpop.f32.mrb[0].mxu0
      %v6660 = vadd.f32 %v6046, %v6659
      %6661 = vmatprep.mubr.bf16.mxu0 %v6014
      %6662 = vmatmul.mubr.bf16.gmra.mrb[0].mxu0 %v6013
      %v6663 = vpop.f32.mrb[0].mxu0
      %v6664 = vadd.f32 %v6042, %v6663
      %v6665 = vpop.f32.mrb[0].mxu0
      %v6666 = vadd.f32 %v6046, %v6665
      %v6667 = vpop.f32.mrb[0].mxu0
      %v6668 = vadd.f32 %v6042, %v6667
      %v6669 = vpop.f32.mrb[0].mxu0
      %v6670 = vadd.f32 %v6046, %v6669
      %6671 = vmatprep.mubr.bf16.mxu0 %v6018
      %6672 = vmatmul.mubr.bf16.gmra.mrb[0].mxu0 %v6017
      %v6673 = vpop.f32.mrb[0].mxu0
      %v6674 = vadd.f32 %v6042, %v6673
      %v6675 = vpop.f32.mrb[0].mxu0
      %v6676 = vadd.f32 %v6046, %v6675
      %v6677 = vpop.f32.mrb[0].mxu0
      %v6678 = vadd.f32 %v6042, %v6677
      %v6679 = vpop.f32.mrb[0].mxu0
      %v6680 = vadd.f32 %v6046, %v6679
      %6681 = vmatprep.mubr.bf16.mxu0 %v6022
      %6682 = vmatmul.mubr.bf16.gmra.mrb[0].mxu0 %v6021
      %v6683 = vpop.f32.mrb[0].mxu0
      %v6684 = vadd.f32 %v6042, %v6683
      %v6685 = vpop.f32.mrb[0].mxu0
      %v6686 = vadd.f32 %v6046, %v6685
      %v6687 = vpop.f32.mrb[0].mxu0
      %v6688 = vadd.f32 %v6042, %v6687
      %v6689 = vpop.f32.mrb[0].mxu0
      %v6690 = vadd.f32 %v6046, %v6689
      %6691 = vmatprep.mubr.bf16.mxu0 %v6026
      %6692 = vmatmul.mubr.bf16.gmra.mrb[0].mxu0 %v6025
      %v6693 = vpop.f32.mrb[0].mxu0
      %v6694 = vadd.f32 %v6042, %v6693
      %v6695 = vpop.f32.mrb[0].mxu0
      %v6696 = vadd.f32 %v6046, %v6695
      %v6697 = vpop.f32.mrb[0].mxu0
      %v6698 = vadd.f32 %v6042, %v6697
      %v6699 = vpop.f32.mrb[0].mxu0
      %v6700 = vadd.f32 %v6046, %v6699
      %6701 = vmatprep.mubr.bf16.mxu0 %v6030
      %6702 = vmatmul.mubr.bf16.gmra.mrb[0].mxu0 %v6029
      %v6703 = vpop.f32.mrb[0].mxu0
      %v6704 = vadd.f32 %v6042, %v6703
      %v6705 = vpop.f32.mrb[0].mxu0
      %v6706 = vadd.f32 %v6046, %v6705
      %v6707 = vpop.f32.mrb[0].mxu0
      %v6708 = vadd.f32 %v6042, %v6707
      %v6709 = vpop.f32.mrb[0].mxu0
      %v6710 = vadd.f32 %v6046, %v6709
      %6711 = vmatprep.mubr.bf16.mxu0 %v6034
      %6712 = vmatmul.mubr.bf16.gmra.mrb[0].mxu0 %v6033
      %v6713 = vpop.f32.mrb[0].mxu0
      %v6714 = vadd.f32 %v6042, %v6713
      %v6715 = vpop.f32.mrb[0].mxu0
      %v6716 = vadd.f32 %v6046, %v6715
      %v6717 = vpop.f32.mrb[0].mxu0
      %v6718 = vadd.f32 %v6042, %v6717
      %v6719 = vpop.f32.mrb[0].mxu0
      %v6720 = vadd.f32 %v6046, %v6719
      %6721 = vdwg.mxu0
      %6722 = vmatprep.subr.bf16.mxu0 %v6274
      %6723 = vmatpush1.bf16.msra.mxu0 %v6273
      %6724 = vmatprep.subr.bf16.mxu0 %v6276
      %6725 = vmatpush1.bf16.msra.mxu0 %v6275
      %6726 = vmatprep.subr.bf16.mxu0 %v6278
      %6727 = vmatpush1.bf16.msra.mxu0 %v6277
      %6728 = vmatprep.subr.bf16.mxu0 %v6280
      %6729 = vmatpush1.bf16.msra.mxu0 %v6279
      %6730 = vmatprep.subr.bf16.mxu0 %v6282
      %6731 = vmatpush1.bf16.msra.mxu0 %v6281
      %6732 = vmatprep.subr.bf16.mxu0 %v6284
      %6733 = vmatpush1.bf16.msra.mxu0 %v6283
      %6734 = vmatprep.subr.bf16.mxu0 %v6286
      %6735 = vmatpush1.bf16.msra.mxu0 %v6285
      %6736 = vmatprep.subr.bf16.mxu0 %v6288
      %6737 = vmatpush1.bf16.msra.mxu0 %v6287
      %6738 = vmatprep.subr.bf16.mxu0 %v6290
      %6739 = vmatpush1.bf16.msra.mxu0 %v6289
      %6740 = vmatprep.subr.bf16.mxu0 %v6292
      %6741 = vmatpush1.bf16.msra.mxu0 %v6291
      %6742 = vmatprep.subr.bf16.mxu0 %v6294
      %6743 = vmatpush1.bf16.msra.mxu0 %v6293
      %6744 = vmatprep.subr.bf16.mxu0 %v6296
      %6745 = vmatpush1.bf16.msra.mxu0 %v6295
      %6746 = vmatprep.subr.bf16.mxu0 %v6298
      %6747 = vmatpush1.bf16.msra.mxu0 %v6297
      %6748 = vmatprep.subr.bf16.mxu0 %v6300
      %6749 = vmatpush1.bf16.msra.mxu0 %v6299
      %6750 = vmatprep.subr.bf16.mxu0 %v6302
      %6751 = vmatpush1.bf16.msra.mxu0 %v6301
      %6752 = vmatprep.subr.bf16.mxu0 %v6304
      %6753 = vmatpush1.bf16.msra.mxu0 %v6303
      %6754 = vmatprep.mubr.bf16.mxu0 %v5912
      %6755 = vmatmul.mubr.bf16.gmra.mrb[0].mxu0 %v5911
      %v6756 = vpop.f32.mrb[0].mxu0
      %v6757 = vadd.f32 %v6404, %v6756
      %v6758 = vpop.f32.mrb[0].mxu0
      %v6759 = vadd.f32 %v6406, %v6758
      %v6760 = vpop.f32.mrb[0].mxu0
      %v6761 = vadd.f32 %v6408, %v6760
      %v6762 = vpop.f32.mrb[0].mxu0
      %v6763 = vadd.f32 %v6410, %v6762
      %6764 = vmatprep.mubr.bf16.mxu0 %v5916
      %6765 = vmatmul.mubr.bf16.gmra.mrb[0].mxu0 %v5915
      %v6766 = vpop.f32.mrb[0].mxu0
      %v6767 = vadd.f32 %v6414, %v6766
      %v6768 = vpop.f32.mrb[0].mxu0
      %v6769 = vadd.f32 %v6416, %v6768
      %v6770 = vpop.f32.mrb[0].mxu0
      %v6771 = vadd.f32 %v6418, %v6770
      %v6772 = vpop.f32.mrb[0].mxu0
      %v6773 = vadd.f32 %v6420, %v6772
      %6774 = vmatprep.mubr.bf16.mxu0 %v5920
      %6775 = vmatmul.mubr.bf16.gmra.mrb[0].mxu0 %v5919
      %v6776 = vpop.f32.mrb[0].mxu0
      %v6777 = vadd.f32 %v6424, %v6776
      %v6778 = vpop.f32.mrb[0].mxu0
      %v6779 = vadd.f32 %v6426, %v6778
      %v6780 = vpop.f32.mrb[0].mxu0
      %v6781 = vadd.f32 %v6428, %v6780
      %v6782 = vpop.f32.mrb[0].mxu0
      %v6783 = vadd.f32 %v6430, %v6782
      %6784 = vmatprep.mubr.bf16.mxu0 %v5924
      %6785 = vmatmul.mubr.bf16.gmra.mrb[0].mxu0 %v5923
      %v6786 = vpop.f32.mrb[0].mxu0
      %v6787 = vadd.f32 %v6434, %v6786
      %v6788 = vpop.f32.mrb[0].mxu0
      %v6789 = vadd.f32 %v6436, %v6788
      %v6790 = vpop.f32.mrb[0].mxu0
      %v6791 = vadd.f32 %v6438, %v6790
      %v6792 = vpop.f32.mrb[0].mxu0
      %v6793 = vadd.f32 %v6440, %v6792
      %6794 = vmatprep.mubr.bf16.mxu0 %v5928
      %6795 = vmatmul.mubr.bf16.gmra.mrb[0].mxu0 %v5927
      %v6796 = vpop.f32.mrb[0].mxu0
      %v6797 = vadd.f32 %v6444, %v6796
      %v6798 = vpop.f32.mrb[0].mxu0
      %v6799 = vadd.f32 %v6446, %v6798
      %v6800 = vpop.f32.mrb[0].mxu0
      %v6801 = vadd.f32 %v6448, %v6800
      %v6802 = vpop.f32.mrb[0].mxu0
      %v6803 = vadd.f32 %v6450, %v6802
      %6804 = vmatprep.mubr.bf16.mxu0 %v5932
      %6805 = vmatmul.mubr.bf16.gmra.mrb[0].mxu0 %v5931
      %v6806 = vpop.f32.mrb[0].mxu0
      %v6807 = vadd.f32 %v6454, %v6806
      %v6808 = vpop.f32.mrb[0].mxu0
      %v6809 = vadd.f32 %v6456, %v6808
      %v6810 = vpop.f32.mrb[0].mxu0
      %v6811 = vadd.f32 %v6458, %v6810
      %v6812 = vpop.f32.mrb[0].mxu0
      %v6813 = vadd.f32 %v6460, %v6812
      %6814 = vmatprep.mubr.bf16.mxu0 %v5936
      %6815 = vmatmul.mubr.bf16.gmra.mrb[0].mxu0 %v5935
      %v6816 = vpop.f32.mrb[0].mxu0
      %v6817 = vadd.f32 %v6464, %v6816
      %v6818 = vpop.f32.mrb[0].mxu0
      %v6819 = vadd.f32 %v6466, %v6818
      %v6820 = vpop.f32.mrb[0].mxu0
      %v6821 = vadd.f32 %v6468, %v6820
      %v6822 = vpop.f32.mrb[0].mxu0
      %v6823 = vadd.f32 %v6470, %v6822
      %6824 = vmatprep.mubr.bf16.mxu0 %v5940
      %6825 = vmatmul.mubr.bf16.gmra.mrb[0].mxu0 %v5939
      %v6826 = vpop.f32.mrb[0].mxu0
      %v6827 = vadd.f32 %v6474, %v6826
      %v6828 = vpop.f32.mrb[0].mxu0
      %v6829 = vadd.f32 %v6476, %v6828
      %v6830 = vpop.f32.mrb[0].mxu0
      %v6831 = vadd.f32 %v6478, %v6830
      %v6832 = vpop.f32.mrb[0].mxu0
      %v6833 = vadd.f32 %v6480, %v6832
      %6834 = vmatprep.mubr.bf16.mxu0 %v5944
      %6835 = vmatmul.mubr.bf16.gmra.mrb[0].mxu0 %v5943
      %v6836 = vpop.f32.mrb[0].mxu0
      %v6837 = vadd.f32 %v6484, %v6836
      %v6838 = vpop.f32.mrb[0].mxu0
      %v6839 = vadd.f32 %v6486, %v6838
      %v6840 = vpop.f32.mrb[0].mxu0
      %v6841 = vadd.f32 %v6488, %v6840
      %v6842 = vpop.f32.mrb[0].mxu0
      %v6843 = vadd.f32 %v6490, %v6842
      %6844 = vmatprep.mubr.bf16.mxu0 %v5948
      %6845 = vmatmul.mubr.bf16.gmra.mrb[0].mxu0 %v5947
      %v6846 = vpop.f32.mrb[0].mxu0
      %v6847 = vadd.f32 %v6494, %v6846
      %v6848 = vpop.f32.mrb[0].mxu0
      %v6849 = vadd.f32 %v6496, %v6848
      %v6850 = vpop.f32.mrb[0].mxu0
      %v6851 = vadd.f32 %v6498, %v6850
      %v6852 = vpop.f32.mrb[0].mxu0
      %v6853 = vadd.f32 %v6500, %v6852
      %6854 = vmatprep.mubr.bf16.mxu0 %v5952
      %6855 = vmatmul.mubr.bf16.gmra.mrb[0].mxu0 %v5951
      %v6856 = vpop.f32.mrb[0].mxu0
      %v6857 = vadd.f32 %v6504, %v6856
      %v6858 = vpop.f32.mrb[0].mxu0
      %v6859 = vadd.f32 %v6506, %v6858
      %v6860 = vpop.f32.mrb[0].mxu0
      %v6861 = vadd.f32 %v6508, %v6860
      %v6862 = vpop.f32.mrb[0].mxu0
      %v6863 = vadd.f32 %v6510, %v6862
      %6864 = vmatprep.mubr.bf16.mxu0 %v5956
      %6865 = vmatmul.mubr.bf16.gmra.mrb[0].mxu0 %v5955
      %v6866 = vpop.f32.mrb[0].mxu0
      %v6867 = vadd.f32 %v6514, %v6866
      %v6868 = vpop.f32.mrb[0].mxu0
      %v6869 = vadd.f32 %v6516, %v6868
      %v6870 = vpop.f32.mrb[0].mxu0
      %v6871 = vadd.f32 %v6518, %v6870
      %v6872 = vpop.f32.mrb[0].mxu0
      %v6873 = vadd.f32 %v6520, %v6872
      %6874 = vmatprep.mubr.bf16.mxu0 %v5960
      %6875 = vmatmul.mubr.bf16.gmra.mrb[0].mxu0 %v5959
      %v6876 = vpop.f32.mrb[0].mxu0
      %v6877 = vadd.f32 %v6524, %v6876
      %v6878 = vpop.f32.mrb[0].mxu0
      %v6879 = vadd.f32 %v6526, %v6878
      %v6880 = vpop.f32.mrb[0].mxu0
      %v6881 = vadd.f32 %v6528, %v6880
      %v6882 = vpop.f32.mrb[0].mxu0
      %v6883 = vadd.f32 %v6530, %v6882
      %6884 = vmatprep.mubr.bf16.mxu0 %v5964
      %6885 = vmatmul.mubr.bf16.gmra.mrb[0].mxu0 %v5963
      %v6886 = vpop.f32.mrb[0].mxu0
      %v6887 = vadd.f32 %v6534, %v6886
      %v6888 = vpop.f32.mrb[0].mxu0
      %v6889 = vadd.f32 %v6536, %v6888
      %v6890 = vpop.f32.mrb[0].mxu0
      %v6891 = vadd.f32 %v6538, %v6890
      %v6892 = vpop.f32.mrb[0].mxu0
      %v6893 = vadd.f32 %v6540, %v6892
      %6894 = vmatprep.mubr.bf16.mxu0 %v5968
      %6895 = vmatmul.mubr.bf16.gmra.mrb[0].mxu0 %v5967
      %v6896 = vpop.f32.mrb[0].mxu0
      %v6897 = vadd.f32 %v6544, %v6896
      %v6898 = vpop.f32.mrb[0].mxu0
      %v6899 = vadd.f32 %v6546, %v6898
      %v6900 = vpop.f32.mrb[0].mxu0
      %v6901 = vadd.f32 %v6548, %v6900
      %v6902 = vpop.f32.mrb[0].mxu0
      %v6903 = vadd.f32 %v6550, %v6902
      %6904 = vmatprep.mubr.bf16.mxu0 %v5972
      %6905 = vmatmul.mubr.bf16.gmra.mrb[0].mxu0 %v5971
      %v6906 = vpop.f32.mrb[0].mxu0
      %v6907 = vadd.f32 %v6554, %v6906
      %v6908 = vpop.f32.mrb[0].mxu0
      %v6909 = vadd.f32 %v6556, %v6908
      %v6910 = vpop.f32.mrb[0].mxu0
      %v6911 = vadd.f32 %v6558, %v6910
      %v6912 = vpop.f32.mrb[0].mxu0
      %v6913 = vadd.f32 %v6560, %v6912
      %6914 = vmatprep.mubr.bf16.mxu0 %v5976
      %6915 = vmatmul.mubr.bf16.gmra.mrb[0].mxu0 %v5975
      %v6916 = vpop.f32.mrb[0].mxu0
      %v6917 = vadd.f32 %v6564, %v6916
      %v6918 = vpop.f32.mrb[0].mxu0
      %v6919 = vadd.f32 %v6566, %v6918
      %v6920 = vpop.f32.mrb[0].mxu0
      %v6921 = vadd.f32 %v6568, %v6920
      %v6922 = vpop.f32.mrb[0].mxu0
      %v6923 = vadd.f32 %v6570, %v6922
      %6924 = vmatprep.mubr.bf16.mxu0 %v5980
      %6925 = vmatmul.mubr.bf16.gmra.mrb[0].mxu0 %v5979
      %v6926 = vpop.f32.mrb[0].mxu0
      %v6927 = vadd.f32 %v6574, %v6926
      %v6928 = vpop.f32.mrb[0].mxu0
      %v6929 = vadd.f32 %v6576, %v6928
      %v6930 = vpop.f32.mrb[0].mxu0
      %v6931 = vadd.f32 %v6578, %v6930
      %v6932 = vpop.f32.mrb[0].mxu0
      %v6933 = vadd.f32 %v6580, %v6932
      %6934 = vmatprep.mubr.bf16.mxu0 %v5984
      %6935 = vmatmul.mubr.bf16.gmra.mrb[0].mxu0 %v5983
      %v6936 = vpop.f32.mrb[0].mxu0
      %v6937 = vadd.f32 %v6584, %v6936
      %v6938 = vpop.f32.mrb[0].mxu0
      %v6939 = vadd.f32 %v6586, %v6938
      %v6940 = vpop.f32.mrb[0].mxu0
      %v6941 = vadd.f32 %v6588, %v6940
      %v6942 = vpop.f32.mrb[0].mxu0
      %v6943 = vadd.f32 %v6590, %v6942
      %6944 = vmatprep.mubr.bf16.mxu0 %v5988
      %6945 = vmatmul.mubr.bf16.gmra.mrb[0].mxu0 %v5987
      %v6946 = vpop.f32.mrb[0].mxu0
      %v6947 = vadd.f32 %v6594, %v6946
      %v6948 = vpop.f32.mrb[0].mxu0
      %v6949 = vadd.f32 %v6596, %v6948
      %v6950 = vpop.f32.mrb[0].mxu0
      %v6951 = vadd.f32 %v6598, %v6950
      %v6952 = vpop.f32.mrb[0].mxu0
      %v6953 = vadd.f32 %v6600, %v6952
      %6954 = vmatprep.mubr.bf16.mxu0 %v5992
      %6955 = vmatmul.mubr.bf16.gmra.mrb[0].mxu0 %v5991
      %v6956 = vpop.f32.mrb[0].mxu0
      %v6957 = vadd.f32 %v6604, %v6956
      %v6958 = vpop.f32.mrb[0].mxu0
      %v6959 = vadd.f32 %v6606, %v6958
      %v6960 = vpop.f32.mrb[0].mxu0
      %v6961 = vadd.f32 %v6608, %v6960
      %v6962 = vpop.f32.mrb[0].mxu0
      %v6963 = vadd.f32 %v6610, %v6962
      %6964 = vmatprep.mubr.bf16.mxu0 %v5996
      %6965 = vmatmul.mubr.bf16.gmra.mrb[0].mxu0 %v5995
      %v6966 = vpop.f32.mrb[0].mxu0
      %v6967 = vadd.f32 %v6614, %v6966
      %v6968 = vpop.f32.mrb[0].mxu0
      %v6969 = vadd.f32 %v6616, %v6968
      %v6970 = vpop.f32.mrb[0].mxu0
      %v6971 = vadd.f32 %v6618, %v6970
      %v6972 = vpop.f32.mrb[0].mxu0
      %v6973 = vadd.f32 %v6620, %v6972
      %6974 = vmatprep.mubr.bf16.mxu0 %v6000
      %6975 = vmatmul.mubr.bf16.gmra.mrb[0].mxu0 %v5999
      %v6976 = vpop.f32.mrb[0].mxu0
      %v6977 = vadd.f32 %v6624, %v6976
      %v6978 = vpop.f32.mrb[0].mxu0
      %v6979 = vadd.f32 %v6626, %v6978
      %v6980 = vpop.f32.mrb[0].mxu0
      %v6981 = vadd.f32 %v6628, %v6980
      %v6982 = vpop.f32.mrb[0].mxu0
      %v6983 = vadd.f32 %v6630, %v6982
      %6984 = vmatprep.mubr.bf16.mxu0 %v6004
      %6985 = vmatmul.mubr.bf16.gmra.mrb[0].mxu0 %v6003
      %v6986 = vpop.f32.mrb[0].mxu0
      %v6987 = vadd.f32 %v6634, %v6986
      %v6988 = vpop.f32.mrb[0].mxu0
      %v6989 = vadd.f32 %v6636, %v6988
      %v6990 = vpop.f32.mrb[0].mxu0
      %v6991 = vadd.f32 %v6638, %v6990
      %v6992 = vpop.f32.mrb[0].mxu0
      %v6993 = vadd.f32 %v6640, %v6992
      %6994 = vmatprep.mubr.bf16.mxu0 %v6008
      %6995 = vmatmul.mubr.bf16.gmra.mrb[0].mxu0 %v6007
      %v6996 = vpop.f32.mrb[0].mxu0
      %v6997 = vadd.f32 %v6644, %v6996
      %v6998 = vpop.f32.mrb[0].mxu0
      %v6999 = vadd.f32 %v6646, %v6998
      %v7000 = vpop.f32.mrb[0].mxu0
      %v7001 = vadd.f32 %v6648, %v7000
      %v7002 = vpop.f32.mrb[0].mxu0
      %v7003 = vadd.f32 %v6650, %v7002
      %7004 = vmatprep.mubr.bf16.mxu0 %v6012
      %7005 = vmatmul.mubr.bf16.gmra.mrb[0].mxu0 %v6011
      %v7006 = vpop.f32.mrb[0].mxu0
      %v7007 = vadd.f32 %v6654, %v7006
      %v7008 = vpop.f32.mrb[0].mxu0
      %v7009 = vadd.f32 %v6656, %v7008
      %v7010 = vpop.f32.mrb[0].mxu0
      %v7011 = vadd.f32 %v6658, %v7010
      %v7012 = vpop.f32.mrb[0].mxu0
      %v7013 = vadd.f32 %v6660, %v7012
      %7014 = vmatprep.mubr.bf16.mxu0 %v6016
      %7015 = vmatmul.mubr.bf16.gmra.mrb[0].mxu0 %v6015
      %v7016 = vpop.f32.mrb[0].mxu0
      %v7017 = vadd.f32 %v6664, %v7016
      %v7018 = vpop.f32.mrb[0].mxu0
      %v7019 = vadd.f32 %v6666, %v7018
      %v7020 = vpop.f32.mrb[0].mxu0
      %v7021 = vadd.f32 %v6668, %v7020
      %v7022 = vpop.f32.mrb[0].mxu0
      %v7023 = vadd.f32 %v6670, %v7022
      %7024 = vmatprep.mubr.bf16.mxu0 %v6020
      %7025 = vmatmul.mubr.bf16.gmra.mrb[0].mxu0 %v6019
      %v7026 = vpop.f32.mrb[0].mxu0
      %v7027 = vadd.f32 %v6674, %v7026
      %v7028 = vpop.f32.mrb[0].mxu0
      %v7029 = vadd.f32 %v6676, %v7028
      %v7030 = vpop.f32.mrb[0].mxu0
      %v7031 = vadd.f32 %v6678, %v7030
      %v7032 = vpop.f32.mrb[0].mxu0
      %v7033 = vadd.f32 %v6680, %v7032
      %7034 = vmatprep.mubr.bf16.mxu0 %v6024
      %7035 = vmatmul.mubr.bf16.gmra.mrb[0].mxu0 %v6023
      %v7036 = vpop.f32.mrb[0].mxu0
      %v7037 = vadd.f32 %v6684, %v7036
      %v7038 = vpop.f32.mrb[0].mxu0
      %v7039 = vadd.f32 %v6686, %v7038
      %v7040 = vpop.f32.mrb[0].mxu0
      %v7041 = vadd.f32 %v6688, %v7040
      %v7042 = vpop.f32.mrb[0].mxu0
      %v7043 = vadd.f32 %v6690, %v7042
      %7044 = vmatprep.mubr.bf16.mxu0 %v6028
      %7045 = vmatmul.mubr.bf16.gmra.mrb[0].mxu0 %v6027
      %v7046 = vpop.f32.mrb[0].mxu0
      %v7047 = vadd.f32 %v6694, %v7046
      %v7048 = vpop.f32.mrb[0].mxu0
      %v7049 = vadd.f32 %v6696, %v7048
      %v7050 = vpop.f32.mrb[0].mxu0
      %v7051 = vadd.f32 %v6698, %v7050
      %v7052 = vpop.f32.mrb[0].mxu0
      %v7053 = vadd.f32 %v6700, %v7052
      %7054 = vmatprep.mubr.bf16.mxu0 %v6032
      %7055 = vmatmul.mubr.bf16.gmra.mrb[0].mxu0 %v6031
      %v7056 = vpop.f32.mrb[0].mxu0
      %v7057 = vadd.f32 %v6704, %v7056
      %v7058 = vpop.f32.mrb[0].mxu0
      %v7059 = vadd.f32 %v6706, %v7058
      %v7060 = vpop.f32.mrb[0].mxu0
      %v7061 = vadd.f32 %v6708, %v7060
      %v7062 = vpop.f32.mrb[0].mxu0
      %v7063 = vadd.f32 %v6710, %v7062
      %7064 = vmatprep.mubr.bf16.mxu0 %v6036
      %7065 = vmatmul.mubr.bf16.gmra.mrb[0].mxu0 %v6035
      %v7066 = vpop.f32.mrb[0].mxu0
      %v7067 = vadd.f32 %v6714, %v7066
      %v7068 = vpop.f32.mrb[0].mxu0
      %v7069 = vadd.f32 %v6716, %v7068
      %v7070 = vpop.f32.mrb[0].mxu0
      %v7071 = vadd.f32 %v6718, %v7070
      %v7072 = vpop.f32.mrb[0].mxu0
      %v7073 = vadd.f32 %v6720, %v7072
      %7074 = vdwg.mxu0
      %vm7075 = vcmp.gt.f32.partialorder %v6757, 0.0
      %vm7076 = vcmp.gt.f32.partialorder %v6759, 0.0
      %vm7077 = vcmp.gt.f32.partialorder %v6761, 0.0
      %vm7078 = vcmp.gt.f32.partialorder %v6763, 0.0
      %vm7079 = vcmp.gt.f32.partialorder %v6767, 0.0
      %vm7080 = vcmp.gt.f32.partialorder %v6769, 0.0
      %vm7081 = vcmp.gt.f32.partialorder %v6771, 0.0
      %vm7082 = vcmp.gt.f32.partialorder %v6773, 0.0
      %vm7083 = vcmp.gt.f32.partialorder %v6777, 0.0
      %vm7084 = vcmp.gt.f32.partialorder %v6779, 0.0
      %vm7085 = vcmp.gt.f32.partialorder %v6781, 0.0
      %vm7086 = vcmp.gt.f32.partialorder %v6783, 0.0
      %vm7087 = vcmp.gt.f32.partialorder %v6787, 0.0
      %vm7088 = vcmp.gt.f32.partialorder %v6789, 0.0
      %vm7089 = vcmp.gt.f32.partialorder %v6791, 0.0
      %vm7090 = vcmp.gt.f32.partialorder %v6793, 0.0
      %vm7091 = vcmp.gt.f32.partialorder %v6797, 0.0
      %vm7092 = vcmp.gt.f32.partialorder %v6799, 0.0
      %vm7093 = vcmp.gt.f32.partialorder %v6801, 0.0
      %vm7094 = vcmp.gt.f32.partialorder %v6803, 0.0
      %vm7095 = vcmp.gt.f32.partialorder %v6807, 0.0
      %vm7096 = vcmp.gt.f32.partialorder %v6809, 0.0
      %vm7097 = vcmp.gt.f32.partialorder %v6811, 0.0
      %vm7098 = vcmp.gt.f32.partialorder %v6813, 0.0
      %vm7099 = vcmp.gt.f32.partialorder %v6817, 0.0
      %vm7100 = vcmp.gt.f32.partialorder %v6819, 0.0
      %vm7101 = vcmp.gt.f32.partialorder %v6821, 0.0
      %vm7102 = vcmp.gt.f32.partialorder %v6823, 0.0
      %vm7103 = vcmp.gt.f32.partialorder %v6827, 0.0
      %vm7104 = vcmp.gt.f32.partialorder %v6829, 0.0
      %vm7105 = vcmp.gt.f32.partialorder %v6831, 0.0
      %vm7106 = vcmp.gt.f32.partialorder %v6833, 0.0
      %vm7107 = vcmp.gt.f32.partialorder %v6837, 0.0
      %vm7108 = vcmp.gt.f32.partialorder %v6839, 0.0
      %vm7109 = vcmp.gt.f32.partialorder %v6841, 0.0
      %vm7110 = vcmp.gt.f32.partialorder %v6843, 0.0
      %vm7111 = vcmp.gt.f32.partialorder %v6847, 0.0
      %vm7112 = vcmp.gt.f32.partialorder %v6849, 0.0
      %vm7113 = vcmp.gt.f32.partialorder %v6851, 0.0
      %vm7114 = vcmp.gt.f32.partialorder %v6853, 0.0
      %vm7115 = vcmp.gt.f32.partialorder %v6857, 0.0
      %vm7116 = vcmp.gt.f32.partialorder %v6859, 0.0
      %vm7117 = vcmp.gt.f32.partialorder %v6861, 0.0
      %vm7118 = vcmp.gt.f32.partialorder %v6863, 0.0
      %vm7119 = vcmp.gt.f32.partialorder %v6867, 0.0
      %vm7120 = vcmp.gt.f32.partialorder %v6869, 0.0
      %vm7121 = vcmp.gt.f32.partialorder %v6871, 0.0
      %vm7122 = vcmp.gt.f32.partialorder %v6873, 0.0
      %vm7123 = vcmp.gt.f32.partialorder %v6877, 0.0
      %vm7124 = vcmp.gt.f32.partialorder %v6879, 0.0
      %vm7125 = vcmp.gt.f32.partialorder %v6881, 0.0
      %vm7126 = vcmp.gt.f32.partialorder %v6883, 0.0
      %vm7127 = vcmp.gt.f32.partialorder %v6887, 0.0
      %vm7128 = vcmp.gt.f32.partialorder %v6889, 0.0
      %vm7129 = vcmp.gt.f32.partialorder %v6891, 0.0
      %vm7130 = vcmp.gt.f32.partialorder %v6893, 0.0
      %vm7131 = vcmp.gt.f32.partialorder %v6897, 0.0
      %vm7132 = vcmp.gt.f32.partialorder %v6899, 0.0
      %vm7133 = vcmp.gt.f32.partialorder %v6901, 0.0
      %vm7134 = vcmp.gt.f32.partialorder %v6903, 0.0
      %vm7135 = vcmp.gt.f32.partialorder %v6907, 0.0
      %vm7136 = vcmp.gt.f32.partialorder %v6909, 0.0
      %vm7137 = vcmp.gt.f32.partialorder %v6911, 0.0
      %vm7138 = vcmp.gt.f32.partialorder %v6913, 0.0
      %vm7139 = vcmp.gt.f32.partialorder %v6917, 0.0
      %vm7140 = vcmp.gt.f32.partialorder %v6919, 0.0
      %vm7141 = vcmp.gt.f32.partialorder %v6921, 0.0
      %vm7142 = vcmp.gt.f32.partialorder %v6923, 0.0
      %vm7143 = vcmp.gt.f32.partialorder %v6927, 0.0
      %vm7144 = vcmp.gt.f32.partialorder %v6929, 0.0
      %vm7145 = vcmp.gt.f32.partialorder %v6931, 0.0
      %vm7146 = vcmp.gt.f32.partialorder %v6933, 0.0
      %vm7147 = vcmp.gt.f32.partialorder %v6937, 0.0
      %vm7148 = vcmp.gt.f32.partialorder %v6939, 0.0
      %vm7149 = vcmp.gt.f32.partialorder %v6941, 0.0
      %vm7150 = vcmp.gt.f32.partialorder %v6943, 0.0
      %vm7151 = vcmp.gt.f32.partialorder %v6947, 0.0
      %vm7152 = vcmp.gt.f32.partialorder %v6949, 0.0
      %vm7153 = vcmp.gt.f32.partialorder %v6951, 0.0
      %vm7154 = vcmp.gt.f32.partialorder %v6953, 0.0
      %vm7155 = vcmp.gt.f32.partialorder %v6957, 0.0
      %vm7156 = vcmp.gt.f32.partialorder %v6959, 0.0
      %vm7157 = vcmp.gt.f32.partialorder %v6961, 0.0
      %vm7158 = vcmp.gt.f32.partialorder %v6963, 0.0
      %vm7159 = vcmp.gt.f32.partialorder %v6967, 0.0
      %vm7160 = vcmp.gt.f32.partialorder %v6969, 0.0
      %vm7161 = vcmp.gt.f32.partialorder %v6971, 0.0
      %vm7162 = vcmp.gt.f32.partialorder %v6973, 0.0
      %vm7163 = vcmp.gt.f32.partialorder %v6977, 0.0
      %vm7164 = vcmp.gt.f32.partialorder %v6979, 0.0
      %vm7165 = vcmp.gt.f32.partialorder %v6981, 0.0
      %vm7166 = vcmp.gt.f32.partialorder %v6983, 0.0
      %vm7167 = vcmp.gt.f32.partialorder %v6987, 0.0
      %vm7168 = vcmp.gt.f32.partialorder %v6989, 0.0
      %vm7169 = vcmp.gt.f32.partialorder %v6991, 0.0
      %vm7170 = vcmp.gt.f32.partialorder %v6993, 0.0
      %vm7171 = vcmp.gt.f32.partialorder %v6997, 0.0
      %vm7172 = vcmp.gt.f32.partialorder %v6999, 0.0
      %vm7173 = vcmp.gt.f32.partialorder %v7001, 0.0
      %vm7174 = vcmp.gt.f32.partialorder %v7003, 0.0
      %vm7175 = vcmp.gt.f32.partialorder %v7007, 0.0
      %vm7176 = vcmp.gt.f32.partialorder %v7009, 0.0
      %vm7177 = vcmp.gt.f32.partialorder %v7011, 0.0
      %vm7178 = vcmp.gt.f32.partialorder %v7013, 0.0
      %vm7179 = vcmp.gt.f32.partialorder %v7017, 0.0
      %vm7180 = vcmp.gt.f32.partialorder %v7019, 0.0
      %vm7181 = vcmp.gt.f32.partialorder %v7021, 0.0
      %vm7182 = vcmp.gt.f32.partialorder %v7023, 0.0
      %vm7183 = vcmp.gt.f32.partialorder %v7027, 0.0
      %vm7184 = vcmp.gt.f32.partialorder %v7029, 0.0
      %vm7185 = vcmp.gt.f32.partialorder %v7031, 0.0
      %vm7186 = vcmp.gt.f32.partialorder %v7033, 0.0
      %vm7187 = vcmp.gt.f32.partialorder %v7037, 0.0
      %vm7188 = vcmp.gt.f32.partialorder %v7039, 0.0
      %vm7189 = vcmp.gt.f32.partialorder %v7041, 0.0
      %vm7190 = vcmp.gt.f32.partialorder %v7043, 0.0
      %vm7191 = vcmp.gt.f32.partialorder %v7047, 0.0
      %vm7192 = vcmp.gt.f32.partialorder %v7049, 0.0
      %vm7193 = vcmp.gt.f32.partialorder %v7051, 0.0
      %vm7194 = vcmp.gt.f32.partialorder %v7053, 0.0
      %vm7195 = vcmp.gt.f32.partialorder %v7057, 0.0
      %vm7196 = vcmp.gt.f32.partialorder %v7059, 0.0
      %vm7197 = vcmp.gt.f32.partialorder %v7061, 0.0
      %vm7198 = vcmp.gt.f32.partialorder %v7063, 0.0
      %vm7199 = vcmp.gt.f32.partialorder %v7067, 0.0
      %vm7200 = vcmp.gt.f32.partialorder %v7069, 0.0
      %vm7201 = vcmp.gt.f32.partialorder %v7071, 0.0
      %vm7202 = vcmp.gt.f32.partialorder %v7073, 0.0
      %v7203 = vmul.f32 %v6757, 0.2
      %v7204 = vmul.f32 %v6759, 0.2
      %v7205 = vmul.f32 %v6761, 0.2
      %v7206 = vmul.f32 %v6763, 0.2
      %v7207 = vmul.f32 %v6767, 0.2
      %v7208 = vmul.f32 %v6769, 0.2
      %v7209 = vmul.f32 %v6771, 0.2
      %v7210 = vmul.f32 %v6773, 0.2
      %v7211 = vmul.f32 %v6777, 0.2
      %v7212 = vmul.f32 %v6779, 0.2
      %v7213 = vmul.f32 %v6781, 0.2
      %v7214 = vmul.f32 %v6783, 0.2
      %v7215 = vmul.f32 %v6787, 0.2
      %v7216 = vmul.f32 %v6789, 0.2
      %v7217 = vmul.f32 %v6791, 0.2
      %v7218 = vmul.f32 %v6793, 0.2
      %v7219 = vmul.f32 %v6797, 0.2
      %v7220 = vmul.f32 %v6799, 0.2
      %v7221 = vmul.f32 %v6801, 0.2
      %v7222 = vmul.f32 %v6803, 0.2
      %v7223 = vmul.f32 %v6807, 0.2
      %v7224 = vmul.f32 %v6809, 0.2
      %v7225 = vmul.f32 %v6811, 0.2
      %v7226 = vmul.f32 %v6813, 0.2
      %v7227 = vmul.f32 %v6817, 0.2
      %v7228 = vmul.f32 %v6819, 0.2
      %v7229 = vmul.f32 %v6821, 0.2
      %v7230 = vmul.f32 %v6823, 0.2
      %v7231 = vmul.f32 %v6827, 0.2
      %v7232 = vmul.f32 %v6829, 0.2
      %v7233 = vmul.f32 %v6831, 0.2
      %v7234 = vmul.f32 %v6833, 0.2
      %v7235 = vmul.f32 %v6837, 0.2
      %v7236 = vmul.f32 %v6839, 0.2
      %v7237 = vmul.f32 %v6841, 0.2
      %v7238 = vmul.f32 %v6843, 0.2
      %v7239 = vmul.f32 %v6847, 0.2
      %v7240 = vmul.f32 %v6849, 0.2
      %v7241 = vmul.f32 %v6851, 0.2
      %v7242 = vmul.f32 %v6853, 0.2
      %v7243 = vmul.f32 %v6857, 0.2
      %v7244 = vmul.f32 %v6859, 0.2
      %v7245 = vmul.f32 %v6861, 0.2
      %v7246 = vmul.f32 %v6863, 0.2
      %v7247 = vmul.f32 %v6867, 0.2
      %v7248 = vmul.f32 %v6869, 0.2
      %v7249 = vmul.f32 %v6871, 0.2
      %v7250 = vmul.f32 %v6873, 0.2
      %v7251 = vmul.f32 %v6877, 0.2
      %v7252 = vmul.f32 %v6879, 0.2
      %v7253 = vmul.f32 %v6881, 0.2
      %v7254 = vmul.f32 %v6883, 0.2
      %v7255 = vmul.f32 %v6887, 0.2
      %v7256 = vmul.f32 %v6889, 0.2
      %v7257 = vmul.f32 %v6891, 0.2
      %v7258 = vmul.f32 %v6893, 0.2
      %v7259 = vmul.f32 %v6897, 0.2
      %v7260 = vmul.f32 %v6899, 0.2
      %v7261 = vmul.f32 %v6901, 0.2
      %v7262 = vmul.f32 %v6903, 0.2
      %v7263 = vmul.f32 %v6907, 0.2
      %v7264 = vmul.f32 %v6909, 0.2
      %v7265 = vmul.f32 %v6911, 0.2
      %v7266 = vmul.f32 %v6913, 0.2
      %v7267 = vmul.f32 %v6917, 0.2
      %v7268 = vmul.f32 %v6919, 0.2
      %v7269 = vmul.f32 %v6921, 0.2
      %v7270 = vmul.f32 %v6923, 0.2
      %v7271 = vmul.f32 %v6927, 0.2
      %v7272 = vmul.f32 %v6929, 0.2
      %v7273 = vmul.f32 %v6931, 0.2
      %v7274 = vmul.f32 %v6933, 0.2
      %v7275 = vmul.f32 %v6937, 0.2
      %v7276 = vmul.f32 %v6939, 0.2
      %v7277 = vmul.f32 %v6941, 0.2
      %v7278 = vmul.f32 %v6943, 0.2
      %v7279 = vmul.f32 %v6947, 0.2
      %v7280 = vmul.f32 %v6949, 0.2
      %v7281 = vmul.f32 %v6951, 0.2
      %v7282 = vmul.f32 %v6953, 0.2
      %v7283 = vmul.f32 %v6957, 0.2
      %v7284 = vmul.f32 %v6959, 0.2
      %v7285 = vmul.f32 %v6961, 0.2
      %v7286 = vmul.f32 %v6963, 0.2
      %v7287 = vmul.f32 %v6967, 0.2
      %v7288 = vmul.f32 %v6969, 0.2
      %v7289 = vmul.f32 %v6971, 0.2
      %v7290 = vmul.f32 %v6973, 0.2
      %v7291 = vmul.f32 %v6977, 0.2
      %v7292 = vmul.f32 %v6979, 0.2
      %v7293 = vmul.f32 %v6981, 0.2
      %v7294 = vmul.f32 %v6983, 0.2
      %v7295 = vmul.f32 %v6987, 0.2
      %v7296 = vmul.f32 %v6989, 0.2
      %v7297 = vmul.f32 %v6991, 0.2
      %v7298 = vmul.f32 %v6993, 0.2
      %v7299 = vmul.f32 %v6997, 0.2
      %v7300 = vmul.f32 %v6999, 0.2
      %v7301 = vmul.f32 %v7001, 0.2
      %v7302 = vmul.f32 %v7003, 0.2
      %v7303 = vmul.f32 %v7007, 0.2
      %v7304 = vmul.f32 %v7009, 0.2
      %v7305 = vmul.f32 %v7011, 0.2
      %v7306 = vmul.f32 %v7013, 0.2
      %v7307 = vmul.f32 %v7017, 0.2
      %v7308 = vmul.f32 %v7019, 0.2
      %v7309 = vmul.f32 %v7021, 0.2
      %v7310 = vmul.f32 %v7023, 0.2
      %v7311 = vmul.f32 %v7027, 0.2
      %v7312 = vmul.f32 %v7029, 0.2
      %v7313 = vmul.f32 %v7031, 0.2
      %v7314 = vmul.f32 %v7033, 0.2
      %v7315 = vmul.f32 %v7037, 0.2
      %v7316 = vmul.f32 %v7039, 0.2
      %v7317 = vmul.f32 %v7041, 0.2
      %v7318 = vmul.f32 %v7043, 0.2
      %v7319 = vmul.f32 %v7047, 0.2
      %v7320 = vmul.f32 %v7049, 0.2
      %v7321 = vmul.f32 %v7051, 0.2
      %v7322 = vmul.f32 %v7053, 0.2
      %v7323 = vmul.f32 %v7057, 0.2
      %v7324 = vmul.f32 %v7059, 0.2
      %v7325 = vmul.f32 %v7061, 0.2
      %v7326 = vmul.f32 %v7063, 0.2
      %v7327 = vmul.f32 %v7067, 0.2
      %v7328 = vmul.f32 %v7069, 0.2
      %v7329 = vmul.f32 %v7071, 0.2
      %v7330 = vmul.f32 %v7073, 0.2
      %v7331 = vsel %vm7075, %v6757, %v7203
      %v7332 = vsel %vm7076, %v6759, %v7204
      %v7333 = vsel %vm7077, %v6761, %v7205
      %v7334 = vsel %vm7078, %v6763, %v7206
      %v7335 = vsel %vm7079, %v6767, %v7207
      %v7336 = vsel %vm7080, %v6769, %v7208
      %v7337 = vsel %vm7081, %v6771, %v7209
      %v7338 = vsel %vm7082, %v6773, %v7210
      %v7339 = vsel %vm7083, %v6777, %v7211
      %v7340 = vsel %vm7084, %v6779, %v7212
      %v7341 = vsel %vm7085, %v6781, %v7213
      %v7342 = vsel %vm7086, %v6783, %v7214
      %v7343 = vsel %vm7087, %v6787, %v7215
      %v7344 = vsel %vm7088, %v6789, %v7216
      %v7345 = vsel %vm7089, %v6791, %v7217
      %v7346 = vsel %vm7090, %v6793, %v7218
      %v7347 = vsel %vm7091, %v6797, %v7219
      %v7348 = vsel %vm7092, %v6799, %v7220
      %v7349 = vsel %vm7093, %v6801, %v7221
      %v7350 = vsel %vm7094, %v6803, %v7222
      %v7351 = vsel %vm7095, %v6807, %v7223
      %v7352 = vsel %vm7096, %v6809, %v7224
      %v7353 = vsel %vm7097, %v6811, %v7225
      %v7354 = vsel %vm7098, %v6813, %v7226
      %v7355 = vsel %vm7099, %v6817, %v7227
      %v7356 = vsel %vm7100, %v6819, %v7228
      %v7357 = vsel %vm7101, %v6821, %v7229
      %v7358 = vsel %vm7102, %v6823, %v7230
      %v7359 = vsel %vm7103, %v6827, %v7231
      %v7360 = vsel %vm7104, %v6829, %v7232
      %v7361 = vsel %vm7105, %v6831, %v7233
      %v7362 = vsel %vm7106, %v6833, %v7234
      %v7363 = vsel %vm7107, %v6837, %v7235
      %v7364 = vsel %vm7108, %v6839, %v7236
      %v7365 = vsel %vm7109, %v6841, %v7237
      %v7366 = vsel %vm7110, %v6843, %v7238
      %v7367 = vsel %vm7111, %v6847, %v7239
      %v7368 = vsel %vm7112, %v6849, %v7240
      %v7369 = vsel %vm7113, %v6851, %v7241
      %v7370 = vsel %vm7114, %v6853, %v7242
      %v7371 = vsel %vm7115, %v6857, %v7243
      %v7372 = vsel %vm7116, %v6859, %v7244
      %v7373 = vsel %vm7117, %v6861, %v7245
      %v7374 = vsel %vm7118, %v6863, %v7246
      %v7375 = vsel %vm7119, %v6867, %v7247
      %v7376 = vsel %vm7120, %v6869, %v7248
      %v7377 = vsel %vm7121, %v6871, %v7249
      %v7378 = vsel %vm7122, %v6873, %v7250
      %v7379 = vsel %vm7123, %v6877, %v7251
      %v7380 = vsel %vm7124, %v6879, %v7252
      %v7381 = vsel %vm7125, %v6881, %v7253
      %v7382 = vsel %vm7126, %v6883, %v7254
      %v7383 = vsel %vm7127, %v6887, %v7255
      %v7384 = vsel %vm7128, %v6889, %v7256
      %v7385 = vsel %vm7129, %v6891, %v7257
      %v7386 = vsel %vm7130, %v6893, %v7258
      %v7387 = vsel %vm7131, %v6897, %v7259
      %v7388 = vsel %vm7132, %v6899, %v7260
      %v7389 = vsel %vm7133, %v6901, %v7261
      %v7390 = vsel %vm7134, %v6903, %v7262
      %v7391 = vsel %vm7135, %v6907, %v7263
      %v7392 = vsel %vm7136, %v6909, %v7264
      %v7393 = vsel %vm7137, %v6911, %v7265
      %v7394 = vsel %vm7138, %v6913, %v7266
      %v7395 = vsel %vm7139, %v6917, %v7267
      %v7396 = vsel %vm7140, %v6919, %v7268
      %v7397 = vsel %vm7141, %v6921, %v7269
      %v7398 = vsel %vm7142, %v6923, %v7270
      %v7399 = vsel %vm7143, %v6927, %v7271
      %v7400 = vsel %vm7144, %v6929, %v7272
      %v7401 = vsel %vm7145, %v6931, %v7273
      %v7402 = vsel %vm7146, %v6933, %v7274
      %v7403 = vsel %vm7147, %v6937, %v7275
      %v7404 = vsel %vm7148, %v6939, %v7276
      %v7405 = vsel %vm7149, %v6941, %v7277
      %v7406 = vsel %vm7150, %v6943, %v7278
      %v7407 = vsel %vm7151, %v6947, %v7279
      %v7408 = vsel %vm7152, %v6949, %v7280
      %v7409 = vsel %vm7153, %v6951, %v7281
      %v7410 = vsel %vm7154, %v6953, %v7282
      %v7411 = vsel %vm7155, %v6957, %v7283
      %v7412 = vsel %vm7156, %v6959, %v7284
      %v7413 = vsel %vm7157, %v6961, %v7285
      %v7414 = vsel %vm7158, %v6963, %v7286
      %v7415 = vsel %vm7159, %v6967, %v7287
      %v7416 = vsel %vm7160, %v6969, %v7288
      %v7417 = vsel %vm7161, %v6971, %v7289
      %v7418 = vsel %vm7162, %v6973, %v7290
      %v7419 = vsel %vm7163, %v6977, %v7291
      %v7420 = vsel %vm7164, %v6979, %v7292
      %v7421 = vsel %vm7165, %v6981, %v7293
      %v7422 = vsel %vm7166, %v6983, %v7294
      %v7423 = vsel %vm7167, %v6987, %v7295
      %v7424 = vsel %vm7168, %v6989, %v7296
      %v7425 = vsel %vm7169, %v6991, %v7297
      %v7426 = vsel %vm7170, %v6993, %v7298
      %v7427 = vsel %vm7171, %v6997, %v7299
      %v7428 = vsel %vm7172, %v6999, %v7300
      %v7429 = vsel %vm7173, %v7001, %v7301
      %v7430 = vsel %vm7174, %v7003, %v7302
      %v7431 = vsel %vm7175, %v7007, %v7303
      %v7432 = vsel %vm7176, %v7009, %v7304
      %v7433 = vsel %vm7177, %v7011, %v7305
      %v7434 = vsel %vm7178, %v7013, %v7306
      %v7435 = vsel %vm7179, %v7017, %v7307
      %v7436 = vsel %vm7180, %v7019, %v7308
      %v7437 = vsel %vm7181, %v7021, %v7309
      %v7438 = vsel %vm7182, %v7023, %v7310
      %v7439 = vsel %vm7183, %v7027, %v7311
      %v7440 = vsel %vm7184, %v7029, %v7312
      %v7441 = vsel %vm7185, %v7031, %v7313
      %v7442 = vsel %vm7186, %v7033, %v7314
      %v7443 = vsel %vm7187, %v7037, %v7315
      %v7444 = vsel %vm7188, %v7039, %v7316
      %v7445 = vsel %vm7189, %v7041, %v7317
      %v7446 = vsel %vm7190, %v7043, %v7318
      %v7447 = vsel %vm7191, %v7047, %v7319
      %v7448 = vsel %vm7192, %v7049, %v7320
      %v7449 = vsel %vm7193, %v7051, %v7321
      %v7450 = vsel %vm7194, %v7053, %v7322
      %v7451 = vsel %vm7195, %v7057, %v7323
      %v7452 = vsel %vm7196, %v7059, %v7324
      %v7453 = vsel %vm7197, %v7061, %v7325
      %v7454 = vsel %vm7198, %v7063, %v7326
      %v7455 = vsel %vm7199, %v7067, %v7327
      %v7456 = vsel %vm7200, %v7069, %v7328
      %v7457 = vsel %vm7201, %v7071, %v7329
      %v7458 = vsel %vm7202, %v7073, %v7330
      %v7459 = vld [vmem:[%s5] sm:$0x3]
      %v7460 = vld [vmem:[#allocation2] sm:$0x1]
      %7462 = vset.pattern.permute.xlu0 0
      %7463 = vperm.xlu0 %7462, %v7460
      %v7464 = vpop.permute.xlu0 %7463
      %v7466 = vlaneseq
      %v7467 = vshrl.u32 %v7466, 7
      %v7468 = vsub.s32 0, %v7467
      %v7469 = vrot.slane %v7464, %v7468
      %v7471 = vlaneseq
      %v7472 = vshrl.u32 %v7471, 7
      %v7473 = vsub.s32 0, %v7472
      %v7474 = vrot.slane %v7459, %v7473
      %v7475 = vlaneseq
      %v7476 = vshrl.u32 %v7475, 7
      %v7477 = vsub.s32 1, %v7476
      %v7478 = vrot.slane %v7459, %v7477
      %7481 = vmatprep.subr.mxu0 %v7332
      %7482 = vmatpush1.xpose.msra.mxu0 %v7331
      %7483 = vmatprep.subr.mxu0 %v7334
      %7484 = vmatpush1.xpose.msra.mxu0 %v7333
      %7485 = vmatprep.subr.mxu0 %v7336
      %7486 = vmatpush1.xpose.msra.mxu0 %v7335
      %7487 = vmatprep.subr.mxu0 %v7338
      %7488 = vmatpush1.xpose.msra.mxu0 %v7337
      %7489 = vmatprep.subr.mxu0 %v7340
      %7490 = vmatpush1.xpose.msra.mxu0 %v7339
      %7491 = vmatprep.subr.mxu0 %v7342
      %7492 = vmatpush1.xpose.msra.mxu0 %v7341
      %7493 = vmatprep.subr.mxu0 %v7344
      %7494 = vmatpush1.xpose.msra.mxu0 %v7343
      %7495 = vmatprep.subr.mxu0 %v7346
      %7496 = vmatpush1.xpose.msra.mxu0 %v7345
      %7497 = vmatprep.subr.mxu0 %v7348
      %7498 = vmatpush1.xpose.msra.mxu0 %v7347
      %7499 = vmatprep.subr.mxu0 %v7350
      %7500 = vmatpush1.xpose.msra.mxu0 %v7349
      %7501 = vmatprep.subr.mxu0 %v7352
      %7502 = vmatpush1.xpose.msra.mxu0 %v7351
      %7503 = vmatprep.subr.mxu0 %v7354
      %7504 = vmatpush1.xpose.msra.mxu0 %v7353
      %7505 = vmatprep.subr.mxu0 %v7356
      %7506 = vmatpush1.xpose.msra.mxu0 %v7355
      %7507 = vmatprep.subr.mxu0 %v7358
      %7508 = vmatpush1.xpose.msra.mxu0 %v7357
      %7509 = vmatprep.subr.mxu0 %v7360
      %7510 = vmatpush1.xpose.msra.mxu0 %v7359
      %7511 = vmatprep.subr.mxu0 %v7362
      %7512 = vmatpush1.xpose.msra.mxu0 %v7361
      %7513 = vmatprep.subr.mxu0 %v7364
      %7514 = vmatpush1.xpose.msra.mxu0 %v7363
      %7515 = vmatprep.subr.mxu0 %v7366
      %7516 = vmatpush1.xpose.msra.mxu0 %v7365
      %7517 = vmatprep.subr.mxu0 %v7368
      %7518 = vmatpush1.xpose.msra.mxu0 %v7367
      %7519 = vmatprep.subr.mxu0 %v7370
      %7520 = vmatpush1.xpose.msra.mxu0 %v7369
      %7521 = vmatprep.subr.mxu0 %v7372
      %7522 = vmatpush1.xpose.msra.mxu0 %v7371
      %7523 = vmatprep.subr.mxu0 %v7374
      %7524 = vmatpush1.xpose.msra.mxu0 %v7373
      %7525 = vmatprep.subr.mxu0 %v7376
      %7526 = vmatpush1.xpose.msra.mxu0 %v7375
      %7527 = vmatprep.subr.mxu0 %v7378
      %7528 = vmatpush1.xpose.msra.mxu0 %v7377
      %7529 = vmatprep.subr.mxu0 %v7380
      %7530 = vmatpush1.xpose.msra.mxu0 %v7379
      %7531 = vmatprep.subr.mxu0 %v7382
      %7532 = vmatpush1.xpose.msra.mxu0 %v7381
      %7533 = vmatprep.subr.mxu0 %v7384
      %7534 = vmatpush1.xpose.msra.mxu0 %v7383
      %7535 = vmatprep.subr.mxu0 %v7386
      %7536 = vmatpush1.xpose.msra.mxu0 %v7385
      %7537 = vmatprep.subr.mxu0 %v7388
      %7538 = vmatpush1.xpose.msra.mxu0 %v7387
      %7539 = vmatprep.subr.mxu0 %v7390
      %7540 = vmatpush1.xpose.msra.mxu0 %v7389
      %7541 = vmatprep.subr.mxu0 %v7392
      %7542 = vmatpush1.xpose.msra.mxu0 %v7391
      %7543 = vmatprep.subr.mxu0 %v7394
      %7544 = vmatpush1.xpose.msra.mxu0 %v7393
      %7545 = vmatprep.mubr.f32.mxu0 %v7478
      %7546 = vmatmul.mubr.f32.gmra.mrb[0].mxu0 %v7474
      %v7547 = vpop.f32.mrb[0].mxu0
      %v7548 = vadd.f32 %v7469, %v7547
      %v7549 = vpop.f32.mrb[0].mxu0
      %v7550 = vadd.f32 %v7469, %v7549
      %7551 = vdwg.mxu0
      %7552 = vmatprep.subr.mxu0 %v7396
      %7553 = vmatpush1.xpose.msra.mxu0 %v7395
      %7554 = vmatprep.subr.mxu0 %v7398
      %7555 = vmatpush1.xpose.msra.mxu0 %v7397
      %7556 = vmatprep.subr.mxu0 %v7400
      %7557 = vmatpush1.xpose.msra.mxu0 %v7399
      %7558 = vmatprep.subr.mxu0 %v7402
      %7559 = vmatpush1.xpose.msra.mxu0 %v7401
      %7560 = vmatprep.subr.mxu0 %v7404
      %7561 = vmatpush1.xpose.msra.mxu0 %v7403
      %7562 = vmatprep.subr.mxu0 %v7406
      %7563 = vmatpush1.xpose.msra.mxu0 %v7405
      %7564 = vmatprep.subr.mxu0 %v7408
      %7565 = vmatpush1.xpose.msra.mxu0 %v7407
      %7566 = vmatprep.subr.mxu0 %v7410
      %7567 = vmatpush1.xpose.msra.mxu0 %v7409
      %7568 = vmatprep.subr.mxu0 %v7412
      %7569 = vmatpush1.xpose.msra.mxu0 %v7411
      %7570 = vmatprep.subr.mxu0 %v7414
      %7571 = vmatpush1.xpose.msra.mxu0 %v7413
      %7572 = vmatprep.subr.mxu0 %v7416
      %7573 = vmatpush1.xpose.msra.mxu0 %v7415
      %7574 = vmatprep.subr.mxu0 %v7418
      %7575 = vmatpush1.xpose.msra.mxu0 %v7417
      %7576 = vmatprep.subr.mxu0 %v7420
      %7577 = vmatpush1.xpose.msra.mxu0 %v7419
      %7578 = vmatprep.subr.mxu0 %v7422
      %7579 = vmatpush1.xpose.msra.mxu0 %v7421
      %7580 = vmatprep.subr.mxu0 %v7424
      %7581 = vmatpush1.xpose.msra.mxu0 %v7423
      %7582 = vmatprep.subr.mxu0 %v7426
      %7583 = vmatpush1.xpose.msra.mxu0 %v7425
      %7584 = vmatprep.subr.mxu0 %v7428
      %7585 = vmatpush1.xpose.msra.mxu0 %v7427
      %7586 = vmatprep.subr.mxu0 %v7430
      %7587 = vmatpush1.xpose.msra.mxu0 %v7429
      %7588 = vmatprep.subr.mxu0 %v7432
      %7589 = vmatpush1.xpose.msra.mxu0 %v7431
      %7590 = vmatprep.subr.mxu0 %v7434
      %7591 = vmatpush1.xpose.msra.mxu0 %v7433
      %7592 = vmatprep.subr.mxu0 %v7436
      %7593 = vmatpush1.xpose.msra.mxu0 %v7435
      %7594 = vmatprep.subr.mxu0 %v7438
      %7595 = vmatpush1.xpose.msra.mxu0 %v7437
      %7596 = vmatprep.subr.mxu0 %v7440
      %7597 = vmatpush1.xpose.msra.mxu0 %v7439
      %7598 = vmatprep.subr.mxu0 %v7442
      %7599 = vmatpush1.xpose.msra.mxu0 %v7441
      %7600 = vmatprep.subr.mxu0 %v7444
      %7601 = vmatpush1.xpose.msra.mxu0 %v7443
      %7602 = vmatprep.subr.mxu0 %v7446
      %7603 = vmatpush1.xpose.msra.mxu0 %v7445
      %7604 = vmatprep.subr.mxu0 %v7448
      %7605 = vmatpush1.xpose.msra.mxu0 %v7447
      %7606 = vmatprep.subr.mxu0 %v7450
      %7607 = vmatpush1.xpose.msra.mxu0 %v7449
      %7608 = vmatprep.subr.mxu0 %v7452
      %7609 = vmatpush1.xpose.msra.mxu0 %v7451
      %7610 = vmatprep.subr.mxu0 %v7454
      %7611 = vmatpush1.xpose.msra.mxu0 %v7453
      %7612 = vmatprep.subr.mxu0 %v7456
      %7613 = vmatpush1.xpose.msra.mxu0 %v7455
      %7614 = vmatprep.subr.mxu0 %v7458
      %7615 = vmatpush1.xpose.msra.mxu0 %v7457
      %7616 = vmatprep.mubr.f32.mxu0 %v7478
      %7617 = vmatmul.mubr.f32.gmra.mrb[0].mxu0 %v7474
      %v7618 = vpop.f32.mrb[0].mxu0
      %v7619 = vadd.f32 %v7469, %v7618
      %v7620 = vpop.f32.mrb[0].mxu0
      %v7621 = vadd.f32 %v7469, %v7620
      %7622 = vdwg.mxu0
      %v7623 = vxor.u32 %v7548, 2147483648
      %v7624 = vxor.u32 %v7550, 2147483648
      %v7625 = vxor.u32 %v7619, 2147483648
      %v7626 = vxor.u32 %v7621, 2147483648
      %v7627 = vmul.f32 %v7623, 1.442695
      %v7628 = vpow.pop %v7627
      %v7629 = vmul.f32 %v7624, 1.442695
      %v7630 = vpow.pop %v7629
      %v7631 = vmul.f32 %v7625, 1.442695
      %v7632 = vpow.pop %v7631
      %v7633 = vmul.f32 %v7626, 1.442695
      %v7634 = vpow.pop %v7633
      %v7635 = vadd.f32 %v7628, 1.0
      %v7636 = vadd.f32 %v7630, 1.0
      %v7637 = vadd.f32 %v7632, 1.0
      %v7638 = vadd.f32 %v7634, 1.0
      %v7639 = vrcp.pop %v7635
      %v7640 = vmul.f32 1.0, %v7639
      %v7641 = vrcp.pop %v7636
      %v7642 = vmul.f32 1.0, %v7641
      %v7643 = vrcp.pop %v7637
      %v7644 = vmul.f32 1.0, %v7643
      %v7645 = vrcp.pop %v7638
      %v7646 = vmul.f32 1.0, %v7645
      %v7651 = vcombine.low %v7640, %v7642
      %v7652 = vcombine.low %v7644, %v7646
      %v7654 = vunpack.c.l.s4 1966171168
      %v7655 = vunpack.c.0.s8 %v7654
      %v7656 = vlaneseq
      %v7657 = vshrl.u32 %v7656, 7
      %v7658 = vsub.s32 %v7655, %v7657
      %v7659 = vrot.slane %v7651, %v7658
      %v7661 = vunpack.c.l.s4 1966171168
      %v7662 = vunpack.c.0.s8 %v7661
      %v7663 = vlaneseq
      %v7664 = vshrl.u32 %v7663, 7
      %v7665 = vsub.s32 %v7662, %v7664
      %v7666 = vrot.slane %v7652, %v7665
      %v7667 = vcombine.low %v7659, %v7666
      %v7669 = vunpack.c.l.s4 1966171168
      %v7670 = vunpack.c.0.s8 %v7669
      %v7671 = vlaneseq
      %v7672 = vshrl.u32 %v7671, 7
      %v7673 = vsub.s32 %v7670, %v7672
      %v7674 = vrot.slane %v7667, %v7673
      %v7676 = vlaneseq
      %vm7677 = vcmp.ge.s32.totalorder %v7676, 0
      %vm7678 = vcmp.lt.s32.totalorder %v7676, 512
      %vm7679 = vmand %vm7677, %vm7678
      %7680 = vst.msk [vmem:[%s283] sm:$0xf] %vm7679, %v7674
      %s7681 = smul.u32 4, %s20
      %p7682 = scmp.lt.s32.totalorder %s7681, 7
      %s7683 = scalar_select %p7682, %s7681, 7
      %s7684 = scalar_lea.vmem %s7, %s7683
      // Predicated region
      $region49: #{discriminator_forward.1} parent=47 // pred_check
        %p7685 = pneg %p190
      $region50: #{discriminator_forward.1} parent=47 // pred_check_branch
        %7687 = sbr.rel (%p7685) target = $region52
      $region51: #{discriminator_forward.1} parent=47 // pred_region
        %s7688 = smul.u32 4, %s20
      $region52: #{discriminator_forward.1} parent=47 // pred_fallthru
        _
    $region48: #{discriminator_forward.1} parent=5 // pred_fallthru
      _
    %p7689 = scmp.le.s32.totalorder 2, %s15
    // Predicated region
    $region53: #{discriminator_forward.1} parent=5 // pred_check
      %p7690 = pneg %p7689
    $region54: #{discriminator_forward.1} parent=5 // pred_check_branch
      %7692 = sbr.rel (%p7690) target = $region56
    $region55: #{discriminator_forward.1} parent=5 // pred_region
      %s7693 = ssub.s32 %s15, 2
      // Predicated region
      $region57: #{discriminator_forward.1} parent=55 // pred_check
        %p7694 = pneg %p196
      $region58: #{discriminator_forward.1} parent=55 // pred_check_branch
        %7696 = sbr.rel (%p7694) target = $region60
      $region59: #{discriminator_forward.1} parent=55 // pred_region
        %s7697 = smul.u32 4, %s21
        %p7698 = scmp.lt.s32.totalorder %s7697, 7
        %s7699 = scalar_select %p7698, %s7697, 7
        %s7700 = scalar_lea.vmem %s7, %s7699
      $region60: #{discriminator_forward.1} parent=55 // pred_fallthru
        _
    $region56: #{discriminator_forward.1} parent=5 // pred_fallthru
      _
  $region6: #{discriminator_forward.1} parent=0 // loop_footer
    %s19 = sadd.s32 1, %s15
  $region7: #{discriminator_forward.1} parent=0 // loop_footer_branch
    %14 = sbr.rel target = $region3
  $region8: #{discriminator_forward.1} parent=0 // loop_exit
    _

</llo_original>
